<compile_context>
chip_gen: v6e
topology: v6e:2x2x1
jax: 0.10.0
libtpu: 0.0.40
codegen_flags: <defaults>
</compile_context>

<pallas_src>
import jax
import jax.numpy as jnp
from jax.experimental import pallas as pl
from jax.experimental.pallas import tpu as pltpu


def _ae_kernel(x_ref,
               w1, b1, w2, b2, w34, b34, w5, b5, w6, b6,
               o_ref):
    """Fused encoder+decoder chain for one batch tile, entirely in VMEM."""

    def linear(h, w_ref, b_ref):
        # Cast the activation to the weight dtype (bf16 when enabled) for the
        # MXU; accumulate in f32; bias add / ReLU happen in f32 on the VPU.
        return jnp.dot(h.astype(w_ref.dtype), w_ref[...],
                       preferred_element_type=jnp.float32) + b_ref[...]

    x = x_ref[...].astype(jnp.float32)

    h = jnp.maximum(linear(x, w1, b1), 0.0)      # D   -> 512   (enc1 + ReLU)
    h = jnp.maximum(linear(h, w2, b2), 0.0)      # 512 -> 128   (enc2 + ReLU)
    h = jnp.maximum(linear(h, w34, b34), 0.0)    # 128 -> 128   (enc3 . dec1 fused, + ReLU)
    h = jnp.maximum(linear(h, w5, b5), 0.0)      # 128 -> 512   (dec2 + ReLU)
    y = linear(h, w6, b6)                        # 512 -> D     (dec3)

    o_ref[...] = y.astype(o_ref.dtype)


def _round_up(n, m):
    return ((n + m - 1) // m) * m


def vanilla_ae_forward(x, params, *, block_m=256, use_bf16=False):
    """x: (B, input_size) float32.  params: dict of (W, b) per layer in PyTorch
    convention (W: (out, in)).  Returns (B, input_size)."""
    B, D = x.shape
    assert block_m % 8 == 0, "block_m must be a multiple of 8"

    # Effective batch tile: MXU-friendly, but do not over-pad tiny batches.
    bm = max(8, min(block_m, _round_up(B, 8)))
    B_pad = pl.cdiv(B, bm) * bm
    x_pad = x if B_pad == B else jnp.pad(x, ((0, B_pad - B), (0, 0)))

    hi = jax.lax.Precision.HIGHEST
    w_dtype = jnp.bfloat16 if use_bf16 else jnp.float32

    def wt(name):
        return params[name][0].T          # (in, out)

    def bias(name):
        return params[name][1]

    # Algebraic fusion of enc3 (128 -> hidden) and dec1 (hidden -> 128):
    #   relu((h @ W3t + b3) @ W4t + b4) == relu(h @ (W3t @ W4t) + (b3 @ W4t + b4))
    w3t, b3 = wt("enc3"), bias("enc3")
    w4t, b4 = wt("dec1"), bias("dec1")
    w34 = jnp.dot(w3t, w4t, precision=hi, preferred_element_type=jnp.float32)
    b34 = jnp.dot(b3, w4t, precision=hi, preferred_element_type=jnp.float32) + b4

    weights = [wt("enc1"), wt("enc2"), w34, wt("dec2"), wt("dec3")]
    biases = [bias("enc1"), bias("enc2"), b34, bias("dec2"), bias("dec3")]

    flat = []
    for w, b in zip(weights, biases):
        flat.append(w.astype(w_dtype))                    # (in, out)
        flat.append(b.reshape(1, -1).astype(jnp.float32))  # (1, out)

    grid = (B_pad // bm,)
    x_spec = pl.BlockSpec((bm, D), lambda i: (i, 0))
    o_spec = pl.BlockSpec((bm, D), lambda i: (i, 0))

    def const_spec(a, single_buffer):
        idx = lambda i, _nd=a.ndim: (0,) * _nd
        if single_buffer:
            # Weights never change across the grid -> no double-buffering.
            return pl.BlockSpec(a.shape, idx, pipeline_mode=pl.Buffered(1))
        return pl.BlockSpec(a.shape, idx)

    def build(single_buffer_weights):
        in_specs = [x_spec] + [const_spec(a, single_buffer_weights) for a in flat]
        return pl.pallas_call(
            _ae_kernel,
            out_shape=jax.ShapeDtypeStruct((B_pad, D), x.dtype),
            grid_spec=pltpu.PrefetchScalarGridSpec(
                num_scalar_prefetch=0,
                grid=grid,
                in_specs=in_specs,
                out_specs=o_spec,
            ),
            compiler_params=pltpu.CompilerParams(
                dimension_semantics=("parallel",),
                vmem_limit_bytes=32 * 1024 * 1024,
            ),
        )

    try:
        out = build(single_buffer_weights=True)(x_pad, *flat)
    except Exception:
        # Older JAX without BlockSpec(pipeline_mode=...) support: default
        # double-buffered weights (still correct, slightly more VMEM).
        out = build(single_buffer_weights=False)(x_pad, *flat)

    return out[:B] if B_pad != B else out


def init_params(key, input_size, hidden):
    """Deterministic init mimicking PyTorch Linear default (U[-1/sqrt(fan_in), +])."""
    dims = [
        ("enc1", input_size, 512),
        ("enc2", 512, 128),
        ("enc3", 128, hidden),
        ("dec1", hidden, 128),
        ("dec2", 128, 512),
        ("dec3", 512, input_size),
    ]
    params = {}
    for name, fan_in, fan_out in dims:
        key, kw, kb = jax.random.split(key, 3)
        bound = 1.0 / jnp.sqrt(jnp.float32(fan_in))
        W = jax.random.uniform(kw, (fan_out, fan_in), jnp.float32, -bound, bound)
        b = jax.random.uniform(kb, (fan_out,), jnp.float32, -bound, bound)
        params[name] = (W, b)
    return params


def reference_forward(x, params):
    """Pure-JAX reference matching the PyTorch module exactly."""
    h = x
    h = jax.nn.relu(h @ params["enc1"][0].T + params["enc1"][1])
    h = jax.nn.relu(h @ params["enc2"][0].T + params["enc2"][1])
    z = h @ params["enc3"][0].T + params["enc3"][1]
    h = jax.nn.relu(z @ params["dec1"][0].T + params["dec1"][1])
    h = jax.nn.relu(h @ params["dec2"][0].T + params["dec2"][1])
    return h @ params["dec3"][0].T + params["dec3"][1]


if __name__ == "__main__":
    key = jax.random.PRNGKey(0)
    key, kx, kp = jax.random.split(key, 3)

    batch = 512          # 2 grid steps at block_m=256 -> both TCs busy on v7x
    input_size = 256
    hidden = 32

    x = jax.random.normal(kx, (batch, input_size), jnp.float32)
    params = init_params(kp, input_size, hidden)

    out = vanilla_ae_forward(x, params, block_m=256)
    out = jax.block_until_ready(out)

    ref = reference_forward(x, params)
    assert out.shape == (batch, input_size)
    # enc3/dec1 fusion changes fp accumulation order -> allow small drift.
    assert jnp.allclose(out, ref, atol=1e-3, rtol=1e-3), (
        f"mismatch vs reference: max|diff|={jnp.max(jnp.abs(out - ref))}")

    print("KERNEL_OK")
</pallas_src>

<mosaic_0001>
module attributes {stable_mosaic.version = 11 : i64} {
  func.func @_ae_kernel(%arg0: i32, %arg1: memref<256x256xf32, #tpu.memory_space<vmem>>, %arg2: memref<256x512xf32, #tpu.memory_space<vmem>>, %arg3: memref<1x512xf32, #tpu.memory_space<vmem>>, %arg4: memref<512x128xf32, #tpu.memory_space<vmem>>, %arg5: memref<1x128xf32, #tpu.memory_space<vmem>>, %arg6: memref<128x128xf32, #tpu.memory_space<vmem>>, %arg7: memref<1x128xf32, #tpu.memory_space<vmem>>, %arg8: memref<128x512xf32, #tpu.memory_space<vmem>>, %arg9: memref<1x512xf32, #tpu.memory_space<vmem>>, %arg10: memref<512x256xf32, #tpu.memory_space<vmem>>, %arg11: memref<1x256xf32, #tpu.memory_space<vmem>>, %arg12: memref<256x256xf32, #tpu.memory_space<vmem>>) attributes {dimension_semantics = [#tpu.dimension_semantics<parallel>], iteration_bounds = array<i64: 2>, scalar_prefetch = 0 : i64, scratch_operands = 0 : i64, tpu.core_type = #tpu.core_type<tc>, window_params = [{transform_indices = @transform_0, window_bounds = array<i64: 256, 256>}, {pipeline_mode = #tpu.pipeline_mode<synchronous>, transform_indices = @transform_1, window_bounds = array<i64: 256, 512>}, {pipeline_mode = #tpu.pipeline_mode<synchronous>, transform_indices = @transform_2, window_bounds = array<i64: 1, 512>}, {pipeline_mode = #tpu.pipeline_mode<synchronous>, transform_indices = @transform_3, window_bounds = array<i64: 512, 128>}, {pipeline_mode = #tpu.pipeline_mode<synchronous>, transform_indices = @transform_4, window_bounds = array<i64: 1, 128>}, {pipeline_mode = #tpu.pipeline_mode<synchronous>, transform_indices = @transform_5, window_bounds = array<i64: 128, 128>}, {pipeline_mode = #tpu.pipeline_mode<synchronous>, transform_indices = @transform_6, window_bounds = array<i64: 1, 128>}, {pipeline_mode = #tpu.pipeline_mode<synchronous>, transform_indices = @transform_7, window_bounds = array<i64: 128, 512>}, {pipeline_mode = #tpu.pipeline_mode<synchronous>, transform_indices = @transform_8, window_bounds = array<i64: 1, 512>}, {pipeline_mode = #tpu.pipeline_mode<synchronous>, transform_indices = @transform_9, window_bounds = array<i64: 512, 256>}, {pipeline_mode = #tpu.pipeline_mode<synchronous>, transform_indices = @transform_10, window_bounds = array<i64: 1, 256>}, {transform_indices = @transform_11, window_bounds = array<i64: 256, 256>}]} {
    %c0 = arith.constant 0 : index
    %c0_0 = arith.constant 0 : index
    %0 = vector.load %arg1[%c0, %c0_0] : memref<256x256xf32, #tpu.memory_space<vmem>>, vector<256x256xf32>
    %c0_1 = arith.constant 0 : index
    %c0_2 = arith.constant 0 : index
    %1 = vector.load %arg2[%c0_1, %c0_2] : memref<256x512xf32, #tpu.memory_space<vmem>>, vector<256x512xf32>
    %cst = arith.constant dense<0.000000e+00> : vector<256x512xf32>
    %2 = tpu.matmul %0, %1, %cst {dimension_numbers = #tpu.dot_dimension_numbers<[1], [0], [0], [1], [0, 0, 1, 1], [], []>} : vector<256x256xf32>, vector<256x512xf32>, vector<256x512xf32> -> vector<256x512xf32>
    %c0_3 = arith.constant 0 : index
    %c0_4 = arith.constant 0 : index
    %3 = vector.load %arg3[%c0_3, %c0_4] : memref<1x512xf32, #tpu.memory_space<vmem>>, vector<1x512xf32>
    %4 = vector.broadcast %3 : vector<1x512xf32> to vector<256x512xf32>
    %5 = arith.addf %2, %4 : vector<256x512xf32>
    %cst_5 = arith.constant 0.000000e+00 : f32
    %6 = vector.broadcast %cst_5 : f32 to vector<256x512xf32>
    %7 = arith.maximumf %5, %6 : vector<256x512xf32>
    %c0_6 = arith.constant 0 : index
    %c0_7 = arith.constant 0 : index
    %8 = vector.load %arg4[%c0_6, %c0_7] : memref<512x128xf32, #tpu.memory_space<vmem>>, vector<512x128xf32>
    %cst_8 = arith.constant dense<0.000000e+00> : vector<256x128xf32>
    %9 = tpu.matmul %7, %8, %cst_8 {dimension_numbers = #tpu.dot_dimension_numbers<[1], [0], [0], [1], [0, 0, 1, 1], [], []>} : vector<256x512xf32>, vector<512x128xf32>, vector<256x128xf32> -> vector<256x128xf32>
    %c0_9 = arith.constant 0 : index
    %c0_10 = arith.constant 0 : index
    %10 = vector.load %arg5[%c0_9, %c0_10] : memref<1x128xf32, #tpu.memory_space<vmem>>, vector<1x128xf32>
    %11 = vector.broadcast %10 : vector<1x128xf32> to vector<256x128xf32>
    %12 = arith.addf %9, %11 : vector<256x128xf32>
    %cst_11 = arith.constant 0.000000e+00 : f32
    %13 = vector.broadcast %cst_11 : f32 to vector<256x128xf32>
    %14 = arith.maximumf %12, %13 : vector<256x128xf32>
    %c0_12 = arith.constant 0 : index
    %c0_13 = arith.constant 0 : index
    %15 = vector.load %arg6[%c0_12, %c0_13] : memref<128x128xf32, #tpu.memory_space<vmem>>, vector<128x128xf32>
    %cst_14 = arith.constant dense<0.000000e+00> : vector<256x128xf32>
    %16 = tpu.matmul %14, %15, %cst_14 {dimension_numbers = #tpu.dot_dimension_numbers<[1], [0], [0], [1], [0, 0, 1, 1], [], []>} : vector<256x128xf32>, vector<128x128xf32>, vector<256x128xf32> -> vector<256x128xf32>
    %c0_15 = arith.constant 0 : index
    %c0_16 = arith.constant 0 : index
    %17 = vector.load %arg7[%c0_15, %c0_16] : memref<1x128xf32, #tpu.memory_space<vmem>>, vector<1x128xf32>
    %18 = vector.broadcast %17 : vector<1x128xf32> to vector<256x128xf32>
    %19 = arith.addf %16, %18 : vector<256x128xf32>
    %cst_17 = arith.constant 0.000000e+00 : f32
    %20 = vector.broadcast %cst_17 : f32 to vector<256x128xf32>
    %21 = arith.maximumf %19, %20 : vector<256x128xf32>
    %c0_18 = arith.constant 0 : index
    %c0_19 = arith.constant 0 : index
    %22 = vector.load %arg8[%c0_18, %c0_19] : memref<128x512xf32, #tpu.memory_space<vmem>>, vector<128x512xf32>
    %cst_20 = arith.constant dense<0.000000e+00> : vector<256x512xf32>
    %23 = tpu.matmul %21, %22, %cst_20 {dimension_numbers = #tpu.dot_dimension_numbers<[1], [0], [0], [1], [0, 0, 1, 1], [], []>} : vector<256x128xf32>, vector<128x512xf32>, vector<256x512xf32> -> vector<256x512xf32>
    %c0_21 = arith.constant 0 : index
    %c0_22 = arith.constant 0 : index
    %24 = vector.load %arg9[%c0_21, %c0_22] : memref<1x512xf32, #tpu.memory_space<vmem>>, vector<1x512xf32>
    %25 = vector.broadcast %24 : vector<1x512xf32> to vector<256x512xf32>
    %26 = arith.addf %23, %25 : vector<256x512xf32>
    %cst_23 = arith.constant 0.000000e+00 : f32
    %27 = vector.broadcast %cst_23 : f32 to vector<256x512xf32>
    %28 = arith.maximumf %26, %27 : vector<256x512xf32>
    %c0_24 = arith.constant 0 : index
    %c0_25 = arith.constant 0 : index
    %29 = vector.load %arg10[%c0_24, %c0_25] : memref<512x256xf32, #tpu.memory_space<vmem>>, vector<512x256xf32>
    %cst_26 = arith.constant dense<0.000000e+00> : vector<256x256xf32>
    %30 = tpu.matmul %28, %29, %cst_26 {dimension_numbers = #tpu.dot_dimension_numbers<[1], [0], [0], [1], [0, 0, 1, 1], [], []>} : vector<256x512xf32>, vector<512x256xf32>, vector<256x256xf32> -> vector<256x256xf32>
    %c0_27 = arith.constant 0 : index
    %c0_28 = arith.constant 0 : index
    %31 = vector.load %arg11[%c0_27, %c0_28] : memref<1x256xf32, #tpu.memory_space<vmem>>, vector<1x256xf32>
    %32 = vector.broadcast %31 : vector<1x256xf32> to vector<256x256xf32>
    %33 = arith.addf %30, %32 : vector<256x256xf32>
    %c0_29 = arith.constant 0 : index
    %c0_30 = arith.constant 0 : index
    %34 = vector.load %arg12[%c0_29, %c0_30] : memref<256x256xf32, #tpu.memory_space<vmem>>, vector<256x256xf32>
    tpu.vector_store %arg12[%c0_29, %c0_30], %33 {strides = array<i32>} : memref<256x256xf32, #tpu.memory_space<vmem>>, vector<256x256xf32>,
    return
  }
  func.func @transform_0(%arg0: i32) -> (i32, i32) {
    %c0_i32 = arith.constant 0 : i32
    %c0_i32_0 = arith.constant 0 : i32
    return %arg0, %c0_i32 : i32, i32
  }
  func.func @transform_1(%arg0: i32) -> (i32, i32) {
    %c0_i32 = arith.constant 0 : i32
    %c0_i32_0 = arith.constant 0 : i32
    %c0_i32_1 = arith.constant 0 : i32
    return %c0_i32, %c0_i32_0 : i32, i32
  }
  func.func @transform_2(%arg0: i32) -> (i32, i32) {
    %c0_i32 = arith.constant 0 : i32
    %c0_i32_0 = arith.constant 0 : i32
    %c0_i32_1 = arith.constant 0 : i32
    return %c0_i32, %c0_i32_0 : i32, i32
  }
  func.func @transform_3(%arg0: i32) -> (i32, i32) {
    %c0_i32 = arith.constant 0 : i32
    %c0_i32_0 = arith.constant 0 : i32
    %c0_i32_1 = arith.constant 0 : i32
    return %c0_i32, %c0_i32_0 : i32, i32
  }
  func.func @transform_4(%arg0: i32) -> (i32, i32) {
    %c0_i32 = arith.constant 0 : i32
    %c0_i32_0 = arith.constant 0 : i32
    %c0_i32_1 = arith.constant 0 : i32
    return %c0_i32, %c0_i32_0 : i32, i32
  }
  func.func @transform_5(%arg0: i32) -> (i32, i32) {
    %c0_i32 = arith.constant 0 : i32
    %c0_i32_0 = arith.constant 0 : i32
    %c0_i32_1 = arith.constant 0 : i32
    return %c0_i32, %c0_i32_0 : i32, i32
  }
  func.func @transform_6(%arg0: i32) -> (i32, i32) {
    %c0_i32 = arith.constant 0 : i32
    %c0_i32_0 = arith.constant 0 : i32
    %c0_i32_1 = arith.constant 0 : i32
    return %c0_i32, %c0_i32_0 : i32, i32
  }
  func.func @transform_7(%arg0: i32) -> (i32, i32) {
    %c0_i32 = arith.constant 0 : i32
    %c0_i32_0 = arith.constant 0 : i32
    %c0_i32_1 = arith.constant 0 : i32
    return %c0_i32, %c0_i32_0 : i32, i32
  }
  func.func @transform_8(%arg0: i32) -> (i32, i32) {
    %c0_i32 = arith.constant 0 : i32
    %c0_i32_0 = arith.constant 0 : i32
    %c0_i32_1 = arith.constant 0 : i32
    return %c0_i32, %c0_i32_0 : i32, i32
  }
  func.func @transform_9(%arg0: i32) -> (i32, i32) {
    %c0_i32 = arith.constant 0 : i32
    %c0_i32_0 = arith.constant 0 : i32
    %c0_i32_1 = arith.constant 0 : i32
    return %c0_i32, %c0_i32_0 : i32, i32
  }
  func.func @transform_10(%arg0: i32) -> (i32, i32) {
    %c0_i32 = arith.constant 0 : i32
    %c0_i32_0 = arith.constant 0 : i32
    %c0_i32_1 = arith.constant 0 : i32
    return %c0_i32, %c0_i32_0 : i32, i32
  }
  func.func @transform_11(%arg0: i32) -> (i32, i32) {
    %c0_i32 = arith.constant 0 : i32
    %c0_i32_0 = arith.constant 0 : i32
    return %arg0, %c0_i32 : i32, i32
  }
}

module attributes {stable_mosaic.version = 11 : i64} {
  func.func @_ae_kernel(%arg0: i32, %arg1: memref<256x256xf32, #tpu.memory_space<vmem>>, %arg2: memref<256x512xf32, #tpu.memory_space<vmem>>, %arg3: memref<1x512xf32, #tpu.memory_space<vmem>>, %arg4: memref<512x128xf32, #tpu.memory_space<vmem>>, %arg5: memref<1x128xf32, #tpu.memory_space<vmem>>, %arg6: memref<128x128xf32, #tpu.memory_space<vmem>>, %arg7: memref<1x128xf32, #tpu.memory_space<vmem>>, %arg8: memref<128x512xf32, #tpu.memory_space<vmem>>, %arg9: memref<1x512xf32, #tpu.memory_space<vmem>>, %arg10: memref<512x256xf32, #tpu.memory_space<vmem>>, %arg11: memref<1x256xf32, #tpu.memory_space<vmem>>, %arg12: memref<256x256xf32, #tpu.memory_space<vmem>>) attributes {dimension_semantics = [#tpu.dimension_semantics<parallel>], iteration_bounds = array<i64: 2>, scalar_prefetch = 0 : i64, scratch_operands = 0 : i64, tpu.core_type = #tpu.core_type<tc>, window_params = [{transform_indices = @transform_0, window_bounds = array<i64: 256, 256>}, {pipeline_mode = #tpu.pipeline_mode<synchronous>, transform_indices = @transform_1, window_bounds = array<i64: 256, 512>}, {pipeline_mode = #tpu.pipeline_mode<synchronous>, transform_indices = @transform_2, window_bounds = array<i64: 1, 512>}, {pipeline_mode = #tpu.pipeline_mode<synchronous>, transform_indices = @transform_3, window_bounds = array<i64: 512, 128>}, {pipeline_mode = #tpu.pipeline_mode<synchronous>, transform_indices = @transform_4, window_bounds = array<i64: 1, 128>}, {pipeline_mode = #tpu.pipeline_mode<synchronous>, transform_indices = @transform_5, window_bounds = array<i64: 128, 128>}, {pipeline_mode = #tpu.pipeline_mode<synchronous>, transform_indices = @transform_6, window_bounds = array<i64: 1, 128>}, {pipeline_mode = #tpu.pipeline_mode<synchronous>, transform_indices = @transform_7, window_bounds = array<i64: 128, 512>}, {pipeline_mode = #tpu.pipeline_mode<synchronous>, transform_indices = @transform_8, window_bounds = array<i64: 1, 512>}, {pipeline_mode = #tpu.pipeline_mode<synchronous>, transform_indices = @transform_9, window_bounds = array<i64: 512, 256>}, {pipeline_mode = #tpu.pipeline_mode<synchronous>, transform_indices = @transform_10, window_bounds = array<i64: 1, 256>}, {transform_indices = @transform_11, window_bounds = array<i64: 256, 256>}]} {
    %c0 = arith.constant 0 : index
    %c0_0 = arith.constant 0 : index
    %0 = vector.load %arg1[%c0, %c0_0] : memref<256x256xf32, #tpu.memory_space<vmem>>, vector<256x256xf32>
    %c0_1 = arith.constant 0 : index
    %c0_2 = arith.constant 0 : index
    %1 = vector.load %arg2[%c0_1, %c0_2] : memref<256x512xf32, #tpu.memory_space<vmem>>, vector<256x512xf32>
    %cst = arith.constant dense<0.000000e+00> : vector<256x512xf32>
    %2 = tpu.matmul %0, %1, %cst {dimension_numbers = #tpu.dot_dimension_numbers<[1], [0], [0], [1], [0, 0, 1, 1], [], []>} : vector<256x256xf32>, vector<256x512xf32>, vector<256x512xf32> -> vector<256x512xf32>
    %c0_3 = arith.constant 0 : index
    %c0_4 = arith.constant 0 : index
    %3 = vector.load %arg3[%c0_3, %c0_4] : memref<1x512xf32, #tpu.memory_space<vmem>>, vector<1x512xf32>
    %4 = vector.broadcast %3 : vector<1x512xf32> to vector<256x512xf32>
    %5 = arith.addf %2, %4 : vector<256x512xf32>
    %cst_5 = arith.constant 0.000000e+00 : f32
    %6 = vector.broadcast %cst_5 : f32 to vector<256x512xf32>
    %7 = arith.maximumf %5, %6 : vector<256x512xf32>
    %c0_6 = arith.constant 0 : index
    %c0_7 = arith.constant 0 : index
    %8 = vector.load %arg4[%c0_6, %c0_7] : memref<512x128xf32, #tpu.memory_space<vmem>>, vector<512x128xf32>
    %cst_8 = arith.constant dense<0.000000e+00> : vector<256x128xf32>
    %9 = tpu.matmul %7, %8, %cst_8 {dimension_numbers = #tpu.dot_dimension_numbers<[1], [0], [0], [1], [0, 0, 1, 1], [], []>} : vector<256x512xf32>, vector<512x128xf32>, vector<256x128xf32> -> vector<256x128xf32>
    %c0_9 = arith.constant 0 : index
    %c0_10 = arith.constant 0 : index
    %10 = vector.load %arg5[%c0_9, %c0_10] : memref<1x128xf32, #tpu.memory_space<vmem>>, vector<1x128xf32>
    %11 = vector.broadcast %10 : vector<1x128xf32> to vector<256x128xf32>
    %12 = arith.addf %9, %11 : vector<256x128xf32>
    %cst_11 = arith.constant 0.000000e+00 : f32
    %13 = vector.broadcast %cst_11 : f32 to vector<256x128xf32>
    %14 = arith.maximumf %12, %13 : vector<256x128xf32>
    %c0_12 = arith.constant 0 : index
    %c0_13 = arith.constant 0 : index
    %15 = vector.load %arg6[%c0_12, %c0_13] : memref<128x128xf32, #tpu.memory_space<vmem>>, vector<128x128xf32>
    %cst_14 = arith.constant dense<0.000000e+00> : vector<256x128xf32>
    %16 = tpu.matmul %14, %15, %cst_14 {dimension_numbers = #tpu.dot_dimension_numbers<[1], [0], [0], [1], [0, 0, 1, 1], [], []>} : vector<256x128xf32>, vector<128x128xf32>, vector<256x128xf32> -> vector<256x128xf32>
    %c0_15 = arith.constant 0 : index
    %c0_16 = arith.constant 0 : index
    %17 = vector.load %arg7[%c0_15, %c0_16] : memref<1x128xf32, #tpu.memory_space<vmem>>, vector<1x128xf32>
    %18 = vector.broadcast %17 : vector<1x128xf32> to vector<256x128xf32>
    %19 = arith.addf %16, %18 : vector<256x128xf32>
    %cst_17 = arith.constant 0.000000e+00 : f32
    %20 = vector.broadcast %cst_17 : f32 to vector<256x128xf32>
    %21 = arith.maximumf %19, %20 : vector<256x128xf32>
    %c0_18 = arith.constant 0 : index
    %c0_19 = arith.constant 0 : index
    %22 = vector.load %arg8[%c0_18, %c0_19] : memref<128x512xf32, #tpu.memory_space<vmem>>, vector<128x512xf32>
    %cst_20 = arith.constant dense<0.000000e+00> : vector<256x512xf32>
    %23 = tpu.matmul %21, %22, %cst_20 {dimension_numbers = #tpu.dot_dimension_numbers<[1], [0], [0], [1], [0, 0, 1, 1], [], []>} : vector<256x128xf32>, vector<128x512xf32>, vector<256x512xf32> -> vector<256x512xf32>
    %c0_21 = arith.constant 0 : index
    %c0_22 = arith.constant 0 : index
    %24 = vector.load %arg9[%c0_21, %c0_22] : memref<1x512xf32, #tpu.memory_space<vmem>>, vector<1x512xf32>
    %25 = vector.broadcast %24 : vector<1x512xf32> to vector<256x512xf32>
    %26 = arith.addf %23, %25 : vector<256x512xf32>
    %cst_23 = arith.constant 0.000000e+00 : f32
    %27 = vector.broadcast %cst_23 : f32 to vector<256x512xf32>
    %28 = arith.maximumf %26, %27 : vector<256x512xf32>
    %c0_24 = arith.constant 0 : index
    %c0_25 = arith.constant 0 : index
    %29 = vector.load %arg10[%c0_24, %c0_25] : memref<512x256xf32, #tpu.memory_space<vmem>>, vector<512x256xf32>
    %cst_26 = arith.constant dense<0.000000e+00> : vector<256x256xf32>
    %30 = tpu.matmul %28, %29, %cst_26 {dimension_numbers = #tpu.dot_dimension_numbers<[1], [0], [0], [1], [0, 0, 1, 1], [], []>} : vector<256x512xf32>, vector<512x256xf32>, vector<256x256xf32> -> vector<256x256xf32>
    %c0_27 = arith.constant 0 : index
    %c0_28 = arith.constant 0 : index
    %31 = vector.load %arg11[%c0_27, %c0_28] : memref<1x256xf32, #tpu.memory_space<vmem>>, vector<1x256xf32>
    %32 = vector.broadcast %31 : vector<1x256xf32> to vector<256x256xf32>
    %33 = arith.addf %30, %32 : vector<256x256xf32>
    %c0_29 = arith.constant 0 : index
    %c0_30 = arith.constant 0 : index
    %34 = vector.load %arg12[%c0_29, %c0_30] : memref<256x256xf32, #tpu.memory_space<vmem>>, vector<256x256xf32>
    tpu.vector_store %arg12[%c0_29, %c0_30], %33 {strides = array<i32>} : memref<256x256xf32, #tpu.memory_space<vmem>>, vector<256x256xf32>,
    return
  }
  func.func @transform_0(%arg0: i32) -> (i32, i32) {
    %c0_i32 = arith.constant 0 : i32
    %c0_i32_0 = arith.constant 0 : i32
    return %arg0, %c0_i32 : i32, i32
  }
  func.func @transform_1(%arg0: i32) -> (i32, i32) {
    %c0_i32 = arith.constant 0 : i32
    %c0_i32_0 = arith.constant 0 : i32
    %c0_i32_1 = arith.constant 0 : i32
    return %c0_i32, %c0_i32_0 : i32, i32
  }
  func.func @transform_2(%arg0: i32) -> (i32, i32) {
    %c0_i32 = arith.constant 0 : i32
    %c0_i32_0 = arith.constant 0 : i32
    %c0_i32_1 = arith.constant 0 : i32
    return %c0_i32, %c0_i32_0 : i32, i32
  }
  func.func @transform_3(%arg0: i32) -> (i32, i32) {
    %c0_i32 = arith.constant 0 : i32
    %c0_i32_0 = arith.constant 0 : i32
    %c0_i32_1 = arith.constant 0 : i32
    return %c0_i32, %c0_i32_0 : i32, i32
  }
  func.func @transform_4(%arg0: i32) -> (i32, i32) {
    %c0_i32 = arith.constant 0 : i32
    %c0_i32_0 = arith.constant 0 : i32
    %c0_i32_1 = arith.constant 0 : i32
    return %c0_i32, %c0_i32_0 : i32, i32
  }
  func.func @transform_5(%arg0: i32) -> (i32, i32) {
    %c0_i32 = arith.constant 0 : i32
    %c0_i32_0 = arith.constant 0 : i32
    %c0_i32_1 = arith.constant 0 : i32
    return %c0_i32, %c0_i32_0 : i32, i32
  }
  func.func @transform_6(%arg0: i32) -> (i32, i32) {
    %c0_i32 = arith.constant 0 : i32
    %c0_i32_0 = arith.constant 0 : i32
    %c0_i32_1 = arith.constant 0 : i32
    return %c0_i32, %c0_i32_0 : i32, i32
  }
  func.func @transform_7(%arg0: i32) -> (i32, i32) {
    %c0_i32 = arith.constant 0 : i32
    %c0_i32_0 = arith.constant 0 : i32
    %c0_i32_1 = arith.constant 0 : i32
    return %c0_i32, %c0_i32_0 : i32, i32
  }
  func.func @transform_8(%arg0: i32) -> (i32, i32) {
    %c0_i32 = arith.constant 0 : i32
    %c0_i32_0 = arith.constant 0 : i32
    %c0_i32_1 = arith.constant 0 : i32
    return %c0_i32, %c0_i32_0 : i32, i32
  }
  func.func @transform_9(%arg0: i32) -> (i32, i32) {
    %c0_i32 = arith.constant 0 : i32
    %c0_i32_0 = arith.constant 0 : i32
    %c0_i32_1 = arith.constant 0 : i32
    return %c0_i32, %c0_i32_0 : i32, i32
  }
  func.func @transform_10(%arg0: i32) -> (i32, i32) {
    %c0_i32 = arith.constant 0 : i32
    %c0_i32_0 = arith.constant 0 : i32
    %c0_i32_1 = arith.constant 0 : i32
    return %c0_i32, %c0_i32_0 : i32, i32
  }
  func.func @transform_11(%arg0: i32) -> (i32, i32) {
    %c0_i32 = arith.constant 0 : i32
    %c0_i32_0 = arith.constant 0 : i32
    return %arg0, %c0_i32 : i32, i32
  }
}

</mosaic_0001>

<llo_original>
// kernel: tpu_custom_call.1
$region0: #{tpu_custom_call.1}
  #allocation0 [shape = 'u32[]', space=smem, size = 0x4, offset = 0x4, fixed_abs, tag = 'smem constant byte address 0x4 - core index']
  #allocation1 [shape = 'u32[144,128]{1,0:T(1,128)}', space=vmem, size = 0x12000, scoped, tag = 'internal scratch']
  %s0 = inlined_call_operand.hbm [shape: f32[512,256], index: 0, kind: input, shape index: {}]
  %s1 = inlined_call_operand.hbm [shape: f32[256,512], index: 1, kind: input, shape index: {}]
  %s2 = inlined_call_operand.hbm [shape: f32[1,512], index: 2, kind: input, shape index: {}]
  %s3 = inlined_call_operand.hbm [shape: f32[512,128], index: 3, kind: input, shape index: {}]
  %s4 = inlined_call_operand.vmem [shape: f32[1,128], index: 4, kind: input, shape index: {}]
  %s5 = inlined_call_operand.hbm [shape: f32[128,128], index: 5, kind: input, shape index: {}]
  %s6 = inlined_call_operand.vmem [shape: f32[1,128], index: 6, kind: input, shape index: {}]
  %s7 = inlined_call_operand.hbm [shape: f32[128,512], index: 7, kind: input, shape index: {}]
  %s8 = inlined_call_operand.vmem [shape: f32[1,512], index: 8, kind: input, shape index: {}]
  %s9 = inlined_call_operand.hbm [shape: f32[512,256], index: 9, kind: input, shape index: {}]
  %s10 = inlined_call_operand.vmem [shape: f32[1,256], index: 10, kind: input, shape index: {}]
  %s11 = inlined_call_operand.hbm [shape: f32[512,256], index: 11, kind: output, shape index: {}]
  %s12 = sld [smem:[#allocation0]]
  $region105: #{tpu_custom_call.1} parent=0
    _
  %s14 = ssub.s32 1, %s12
  %s15 = scalar_select 0, %s14, %s12
  $region1: #{tpu_custom_call.1} parent=0
    #allocation2 [shape = 'u8[524288]{0}', space=vmem, size = 0x80000, scoped, tag = 'input window, operand 0']
    #allocation3 [shape = 's32[2]{0}', space=sflag, size = 0x8, scoped, tag = 'scoped memory for tpu_custom_call.1']
    #allocation4 [shape = 's32[2]{0}', space=sflag, size = 0x8, scoped, tag = 'scoped memory for tpu_custom_call.1']
    #allocation5 [shape = 'u8[524288]{0}', space=vmem, size = 0x80000, scoped, tag = 'input window, operand 1, single buffered']
    #allocation6 [shape = 's32[1]{0}', space=sflag, size = 0x4, scoped, tag = 'scoped memory for tpu_custom_call.1']
    #allocation7 [shape = 'u8[2048]{0}', space=vmem, size = 0x800, scoped, tag = 'input window, operand 2, single buffered']
    #allocation8 [shape = 'u8[262144]{0}', space=vmem, size = 0x40000, scoped, tag = 'input window, operand 3, single buffered']
    #allocation9 [shape = 's32[1]{0}', space=sflag, size = 0x4, scoped, tag = 'scoped memory for tpu_custom_call.1']
    #allocation10 [shape = 'u8[65536]{0}', space=vmem, size = 0x10000, scoped, tag = 'input window, operand 5, single buffered']
    #allocation11 [shape = 'u8[262144]{0}', space=vmem, size = 0x40000, scoped, tag = 'input window, operand 7, single buffered']
    #allocation12 [shape = 's32[1]{0}', space=sflag, size = 0x4, scoped, tag = 'scoped memory for tpu_custom_call.1']
    #allocation13 [shape = 'u8[524288]{0}', space=vmem, size = 0x80000, scoped, tag = 'input window, operand 9, single buffered']
    #allocation14 [shape = 'u8[524288]{0}', space=vmem, size = 0x80000, scoped, tag = 'output window, operand 0']
    %16 = vsyncpa [#allocation3], 0
    %s17 = scalar_lea.sflag [#allocation3], 1
    %18 = vsyncpa %s17, 0
    %19 = vsyncpa [#allocation6], 0
    %20 = vsyncpa [#allocation9], 0
    %21 = vsyncpa [#allocation12], 0
    %22 = vsyncpa [#allocation4], 0
    %s23 = scalar_lea.sflag [#allocation4], 1
    %24 = vsyncpa %s23, 0
    loop: start=0, step=1, limit=4
    $region2: #{tpu_custom_call.1} parent=1 // loop_pre_header
      _
    $region3: #{tpu_custom_call.1} parent=1 // loop_header
      %s26 = sphi 0, %s30
      %p27 = scmp.ge.s32.totalorder %s26, 4
      %s36 = sphi 0, %s38
      %s39 = sphi 0, %s36
      %s40 = sphi 0, %s39
      %s56 = sphi 0, %s40
      %s60 = sphi 0, %s60
      %s62 = sphi 0, %s60
      %s63 = sphi 0, %s62
      %s77 = sphi 0, %s63
      %s81 = sphi 0, %s81
      %s83 = sphi 0, %s81
      %s84 = sphi 0, %s83
      %s98 = sphi 0, %s84
      %s102 = sphi 0, %s102
      %s104 = sphi 0, %s102
      %s105 = sphi 0, %s104
      %s119 = sphi 0, %s105
      %s123 = sphi 0, %s123
      %s125 = sphi 0, %s123
      %s126 = sphi 0, %s125
      %s140 = sphi 0, %s126
      %s144 = sphi 0, %s144
      %s146 = sphi 0, %s144
      %s147 = sphi 0, %s146
      %s161 = sphi 0, %s147
      %s165 = sphi 0, %s165
      %s167 = sphi 0, %s165
      %s168 = sphi 0, %s167
      %s182 = sphi 0, %s168
      %s186 = sphi 0, %s186
      %s188 = sphi 0, %s186
      %s189 = sphi 0, %s188
      %s203 = sphi 0, %s189
      %s207 = sphi 0, %s207
      %s209 = sphi 0, %s207
      %s210 = sphi 0, %s209
      %s224 = sphi 0, %s210
      %s228 = sphi 0, %s228
      %s230 = sphi 0, %s228
      %s231 = sphi 0, %s230
      %s245 = sphi 0, %s231
      %s249 = sphi 0, %s249
      %s251 = sphi 0, %s249
      %s252 = sphi 0, %s251
      %s266 = sphi 0, %s252
      %s272 = sphi 0, %s274
      %s275 = sphi 0, %s272
      %s276 = sphi 0, %s275
      %s292 = sphi 0, %s276
    $region4: #{tpu_custom_call.1} parent=1 // loop_header_branch
      %29 = sbr.rel (%p27) target = $region8
    $region5: #{tpu_custom_call.1} parent=1 // loop_body
      %s31 = ssub.s32 %s26, 1
      %s32 = ssub.s32 %s26, 2
      %s33 = sadd.s32 %s26, 1
      %s34 = ssub.s32 %s26, %s33
      %p35 = scmp.eq.s32.totalorder %s34, 0
      %s37 = sadd.s32 %s36, 1
      %s38 = scalar_select %p35, %s36, %s37
      %p41 = pneg %p35
      %p42 = scmp.eq.s32.totalorder %s26, 1
      %p43 = por %p41, %p42
      %p44 = scmp.ne.s32.totalorder %s36, %s39
      %p45 = scmp.eq.s32.totalorder %s26, 0
      %p46 = por %p44, %p45
      %p47 = scmp.ne.s32.totalorder %s36, %s39
      %p48 = scmp.eq.s32.totalorder %s31, 1
      %p49 = por %p47, %p48
      %p50 = scmp.ne.s32.totalorder %s39, %s40
      %p51 = scmp.eq.s32.totalorder %s31, 0
      %p52 = por %p50, %p51
      %p53 = scmp.ne.s32.totalorder %s39, %s40
      %p54 = scmp.eq.s32.totalorder %s32, 1
      %p55 = por %p53, %p54
      %p57 = scmp.ne.s32.totalorder %s40, %s56
      %p58 = scmp.eq.s32.totalorder %s32, 0
      %p59 = por %p57, %p58
      %s61 = sadd.s32 %s60, 1
      %p64 = scmp.eq.s32.totalorder %s26, 1
      %p65 = scmp.ne.s32.totalorder %s60, %s62
      %p66 = scmp.eq.s32.totalorder %s26, 0
      %p67 = por %p65, %p66
      %p68 = scmp.ne.s32.totalorder %s60, %s62
      %p69 = scmp.eq.s32.totalorder %s31, 1
      %p70 = por %p68, %p69
      %p71 = scmp.ne.s32.totalorder %s62, %s63
      %p72 = scmp.eq.s32.totalorder %s31, 0
      %p73 = por %p71, %p72
      %p74 = scmp.ne.s32.totalorder %s62, %s63
      %p75 = scmp.eq.s32.totalorder %s32, 1
      %p76 = por %p74, %p75
      %p78 = scmp.ne.s32.totalorder %s63, %s77
      %p79 = scmp.eq.s32.totalorder %s32, 0
      %p80 = por %p78, %p79
      %s82 = sadd.s32 %s81, 1
      %p85 = scmp.eq.s32.totalorder %s26, 1
      %p86 = scmp.ne.s32.totalorder %s81, %s83
      %p87 = scmp.eq.s32.totalorder %s26, 0
      %p88 = por %p86, %p87
      %p89 = scmp.ne.s32.totalorder %s81, %s83
      %p90 = scmp.eq.s32.totalorder %s31, 1
      %p91 = por %p89, %p90
      %p92 = scmp.ne.s32.totalorder %s83, %s84
      %p93 = scmp.eq.s32.totalorder %s31, 0
      %p94 = por %p92, %p93
      %p95 = scmp.ne.s32.totalorder %s83, %s84
      %p96 = scmp.eq.s32.totalorder %s32, 1
      %p97 = por %p95, %p96
      %p99 = scmp.ne.s32.totalorder %s84, %s98
      %p100 = scmp.eq.s32.totalorder %s32, 0
      %p101 = por %p99, %p100
      %s103 = sadd.s32 %s102, 1
      %p106 = scmp.eq.s32.totalorder %s26, 1
      %p107 = scmp.ne.s32.totalorder %s102, %s104
      %p108 = scmp.eq.s32.totalorder %s26, 0
      %p109 = por %p107, %p108
      %p110 = scmp.ne.s32.totalorder %s102, %s104
      %p111 = scmp.eq.s32.totalorder %s31, 1
      %p112 = por %p110, %p111
      %p113 = scmp.ne.s32.totalorder %s104, %s105
      %p114 = scmp.eq.s32.totalorder %s31, 0
      %p115 = por %p113, %p114
      %p116 = scmp.ne.s32.totalorder %s104, %s105
      %p117 = scmp.eq.s32.totalorder %s32, 1
      %p118 = por %p116, %p117
      %p120 = scmp.ne.s32.totalorder %s105, %s119
      %p121 = scmp.eq.s32.totalorder %s32, 0
      %p122 = por %p120, %p121
      %s124 = sadd.s32 %s123, 1
      %p127 = scmp.eq.s32.totalorder %s26, 1
      %p128 = scmp.ne.s32.totalorder %s123, %s125
      %p129 = scmp.eq.s32.totalorder %s26, 0
      %p130 = por %p128, %p129
      %p131 = scmp.ne.s32.totalorder %s123, %s125
      %p132 = scmp.eq.s32.totalorder %s31, 1
      %p133 = por %p131, %p132
      %p134 = scmp.ne.s32.totalorder %s125, %s126
      %p135 = scmp.eq.s32.totalorder %s31, 0
      %p136 = por %p134, %p135
      %p137 = scmp.ne.s32.totalorder %s125, %s126
      %p138 = scmp.eq.s32.totalorder %s32, 1
      %p139 = por %p137, %p138
      %p141 = scmp.ne.s32.totalorder %s126, %s140
      %p142 = scmp.eq.s32.totalorder %s32, 0
      %p143 = por %p141, %p142
      %s145 = sadd.s32 %s144, 1
      %p148 = scmp.eq.s32.totalorder %s26, 1
      %p149 = scmp.ne.s32.totalorder %s144, %s146
      %p150 = scmp.eq.s32.totalorder %s26, 0
      %p151 = por %p149, %p150
      %p152 = scmp.ne.s32.totalorder %s144, %s146
      %p153 = scmp.eq.s32.totalorder %s31, 1
      %p154 = por %p152, %p153
      %p155 = scmp.ne.s32.totalorder %s146, %s147
      %p156 = scmp.eq.s32.totalorder %s31, 0
      %p157 = por %p155, %p156
      %p158 = scmp.ne.s32.totalorder %s146, %s147
      %p159 = scmp.eq.s32.totalorder %s32, 1
      %p160 = por %p158, %p159
      %p162 = scmp.ne.s32.totalorder %s147, %s161
      %p163 = scmp.eq.s32.totalorder %s32, 0
      %p164 = por %p162, %p163
      %s166 = sadd.s32 %s165, 1
      %p169 = scmp.eq.s32.totalorder %s26, 1
      %p170 = scmp.ne.s32.totalorder %s165, %s167
      %p171 = scmp.eq.s32.totalorder %s26, 0
      %p172 = por %p170, %p171
      %p173 = scmp.ne.s32.totalorder %s165, %s167
      %p174 = scmp.eq.s32.totalorder %s31, 1
      %p175 = por %p173, %p174
      %p176 = scmp.ne.s32.totalorder %s167, %s168
      %p177 = scmp.eq.s32.totalorder %s31, 0
      %p178 = por %p176, %p177
      %p179 = scmp.ne.s32.totalorder %s167, %s168
      %p180 = scmp.eq.s32.totalorder %s32, 1
      %p181 = por %p179, %p180
      %p183 = scmp.ne.s32.totalorder %s168, %s182
      %p184 = scmp.eq.s32.totalorder %s32, 0
      %p185 = por %p183, %p184
      %s187 = sadd.s32 %s186, 1
      %p190 = scmp.eq.s32.totalorder %s26, 1
      %p191 = scmp.ne.s32.totalorder %s186, %s188
      %p192 = scmp.eq.s32.totalorder %s26, 0
      %p193 = por %p191, %p192
      %p194 = scmp.ne.s32.totalorder %s186, %s188
      %p195 = scmp.eq.s32.totalorder %s31, 1
      %p196 = por %p194, %p195
      %p197 = scmp.ne.s32.totalorder %s188, %s189
      %p198 = scmp.eq.s32.totalorder %s31, 0
      %p199 = por %p197, %p198
      %p200 = scmp.ne.s32.totalorder %s188, %s189
      %p201 = scmp.eq.s32.totalorder %s32, 1
      %p202 = por %p200, %p201
      %p204 = scmp.ne.s32.totalorder %s189, %s203
      %p205 = scmp.eq.s32.totalorder %s32, 0
      %p206 = por %p204, %p205
      %s208 = sadd.s32 %s207, 1
      %p211 = scmp.eq.s32.totalorder %s26, 1
      %p212 = scmp.ne.s32.totalorder %s207, %s209
      %p213 = scmp.eq.s32.totalorder %s26, 0
      %p214 = por %p212, %p213
      %p215 = scmp.ne.s32.totalorder %s207, %s209
      %p216 = scmp.eq.s32.totalorder %s31, 1
      %p217 = por %p215, %p216
      %p218 = scmp.ne.s32.totalorder %s209, %s210
      %p219 = scmp.eq.s32.totalorder %s31, 0
      %p220 = por %p218, %p219
      %p221 = scmp.ne.s32.totalorder %s209, %s210
      %p222 = scmp.eq.s32.totalorder %s32, 1
      %p223 = por %p221, %p222
      %p225 = scmp.ne.s32.totalorder %s210, %s224
      %p226 = scmp.eq.s32.totalorder %s32, 0
      %p227 = por %p225, %p226
      %s229 = sadd.s32 %s228, 1
      %p232 = scmp.eq.s32.totalorder %s26, 1
      %p233 = scmp.ne.s32.totalorder %s228, %s230
      %p234 = scmp.eq.s32.totalorder %s26, 0
      %p235 = por %p233, %p234
      %p236 = scmp.ne.s32.totalorder %s228, %s230
      %p237 = scmp.eq.s32.totalorder %s31, 1
      %p238 = por %p236, %p237
      %p239 = scmp.ne.s32.totalorder %s230, %s231
      %p240 = scmp.eq.s32.totalorder %s31, 0
      %p241 = por %p239, %p240
      %p242 = scmp.ne.s32.totalorder %s230, %s231
      %p243 = scmp.eq.s32.totalorder %s32, 1
      %p244 = por %p242, %p243
      %p246 = scmp.ne.s32.totalorder %s231, %s245
      %p247 = scmp.eq.s32.totalorder %s32, 0
      %p248 = por %p246, %p247
      %s250 = sadd.s32 %s249, 1
      %p253 = scmp.eq.s32.totalorder %s26, 1
      %p254 = scmp.ne.s32.totalorder %s249, %s251
      %p255 = scmp.eq.s32.totalorder %s26, 0
      %p256 = por %p254, %p255
      %p257 = scmp.ne.s32.totalorder %s249, %s251
      %p258 = scmp.eq.s32.totalorder %s31, 1
      %p259 = por %p257, %p258
      %p260 = scmp.ne.s32.totalorder %s251, %s252
      %p261 = scmp.eq.s32.totalorder %s31, 0
      %p262 = por %p260, %p261
      %p263 = scmp.ne.s32.totalorder %s251, %s252
      %p264 = scmp.eq.s32.totalorder %s32, 1
      %p265 = por %p263, %p264
      %p267 = scmp.ne.s32.totalorder %s252, %s266
      %p268 = scmp.eq.s32.totalorder %s32, 0
      %p269 = por %p267, %p268
      %s270 = ssub.s32 %s26, %s33
      %p271 = scmp.eq.s32.totalorder %s270, 0
      %s273 = sadd.s32 %s272, 1
      %s274 = scalar_select %p271, %s272, %s273
      %p277 = pneg %p271
      %p278 = scmp.eq.s32.totalorder %s26, 1
      %p279 = por %p277, %p278
      %p280 = scmp.ne.s32.totalorder %s272, %s275
      %p281 = scmp.eq.s32.totalorder %s26, 0
      %p282 = por %p280, %p281
      %p283 = scmp.ne.s32.totalorder %s272, %s275
      %p284 = scmp.eq.s32.totalorder %s31, 1
      %p285 = por %p283, %p284
      %p286 = scmp.ne.s32.totalorder %s275, %s276
      %p287 = scmp.eq.s32.totalorder %s31, 0
      %p288 = por %p286, %p287
      %p289 = scmp.ne.s32.totalorder %s275, %s276
      %p290 = scmp.eq.s32.totalorder %s32, 1
      %p291 = por %p289, %p290
      %p293 = scmp.ne.s32.totalorder %s276, %s292
      %p294 = scmp.eq.s32.totalorder %s32, 0
      %p295 = por %p293, %p294
      %p296 = scmp.le.s32.totalorder 1, %s26
      %p297 = scmp.lt.s32.totalorder %s26, 3
      %p298 = pnand %p296, %p297
      %p299 = pneg %p298
      // Predicated region
      $region9: #{tpu_custom_call.1} parent=5 // pred_check
        _
      $region10: #{tpu_custom_call.1} parent=5 // pred_check_branch
        %301 = sbr.rel (%p298) target = $region12
      $region11: #{tpu_custom_call.1} parent=5 // pred_region
        %s302 = ssub.s32 %s26, 1
        // Predicated region
        $region13: #{tpu_custom_call.1} parent=11 // pred_check
          %p303 = pneg %p73
        $region14: #{tpu_custom_call.1} parent=11 // pred_check_branch
          %305 = sbr.rel (%p303) target = $region16
        $region15: #{tpu_custom_call.1} parent=11 // pred_region
          %s307 = ssub.s32 16384, 16384
          %308 = vsyncadd [#allocation6], %s307
          %s309 = sshll.u32 [#allocation5], 4
          %s310 = int_to_ptr.vmem [resolvable:$true] %s309
          %315 = dma.hbm_to_vmem [thread:$0]  %s1, 16384, %s310, [#allocation6], 512, 512, 32
        $region16: #{tpu_custom_call.1} parent=11 // pred_fallthru
          _
        // Predicated region
        $region17: #{tpu_custom_call.1} parent=11 // pred_check
          %p316 = pneg %p94
        $region18: #{tpu_custom_call.1} parent=11 // pred_check_branch
          %318 = sbr.rel (%p316) target = $region20
        $region19: #{tpu_custom_call.1} parent=11 // pred_region
          %s320 = ssub.s32 64, 64
          %321 = vsyncadd [#allocation6], %s320
          %s323 = sshll.u32 [#allocation7], 4
          %s324 = int_to_ptr.vmem [resolvable:$true] %s323
          %326 = dma.hbm_to_vmem [thread:$0]  %s2, 64, %s324, [#allocation6]
        $region20: #{tpu_custom_call.1} parent=11 // pred_fallthru
          _
        // Predicated region
        $region21: #{tpu_custom_call.1} parent=11 // pred_check
          %p327 = pneg %p115
        $region22: #{tpu_custom_call.1} parent=11 // pred_check_branch
          %329 = sbr.rel (%p327) target = $region24
        $region23: #{tpu_custom_call.1} parent=11 // pred_region
          %s331 = ssub.s32 8192, 8192
          %332 = vsyncadd [#allocation9], %s331
          %s333 = sshll.u32 [#allocation8], 4
          %s334 = int_to_ptr.vmem [resolvable:$true] %s333
          %339 = dma.hbm_to_vmem [thread:$0]  %s3, 8192, %s334, [#allocation9], 128, 128, 8
        $region24: #{tpu_custom_call.1} parent=11 // pred_fallthru
          _
        // Predicated region
        $region25: #{tpu_custom_call.1} parent=11 // pred_check
          %p340 = pneg %p136
        $region26: #{tpu_custom_call.1} parent=11 // pred_check_branch
          %342 = sbr.rel (%p340) target = $region28
        $region27: #{tpu_custom_call.1} parent=11 // pred_region
          _
        $region28: #{tpu_custom_call.1} parent=11 // pred_fallthru
          _
        // Predicated region
        $region29: #{tpu_custom_call.1} parent=11 // pred_check
          %p343 = pneg %p157
        $region30: #{tpu_custom_call.1} parent=11 // pred_check_branch
          %345 = sbr.rel (%p343) target = $region32
        $region31: #{tpu_custom_call.1} parent=11 // pred_region
          %s347 = ssub.s32 2048, 2048
          %348 = vsyncadd [#allocation9], %s347
          %s349 = sshll.u32 [#allocation10], 4
          %s350 = int_to_ptr.vmem [resolvable:$true] %s349
          %355 = dma.hbm_to_vmem [thread:$0]  %s5, 2048, %s350, [#allocation9], 128, 128, 8
        $region32: #{tpu_custom_call.1} parent=11 // pred_fallthru
          _
        // Predicated region
        $region33: #{tpu_custom_call.1} parent=11 // pred_check
          %p356 = pneg %p178
        $region34: #{tpu_custom_call.1} parent=11 // pred_check_branch
          %358 = sbr.rel (%p356) target = $region36
        $region35: #{tpu_custom_call.1} parent=11 // pred_region
          _
        $region36: #{tpu_custom_call.1} parent=11 // pred_fallthru
          _
        // Predicated region
        $region37: #{tpu_custom_call.1} parent=11 // pred_check
          %p359 = pneg %p199
        $region38: #{tpu_custom_call.1} parent=11 // pred_check_branch
          %361 = sbr.rel (%p359) target = $region40
        $region39: #{tpu_custom_call.1} parent=11 // pred_region
          %s363 = ssub.s32 8192, 8192
          %364 = vsyncadd [#allocation12], %s363
          %s365 = sshll.u32 [#allocation11], 4
          %s366 = int_to_ptr.vmem [resolvable:$true] %s365
          %371 = dma.hbm_to_vmem [thread:$0]  %s7, 8192, %s366, [#allocation12], 512, 512, 32
        $region40: #{tpu_custom_call.1} parent=11 // pred_fallthru
          _
        // Predicated region
        $region41: #{tpu_custom_call.1} parent=11 // pred_check
          %p372 = pneg %p220
        $region42: #{tpu_custom_call.1} parent=11 // pred_check_branch
          %374 = sbr.rel (%p372) target = $region44
        $region43: #{tpu_custom_call.1} parent=11 // pred_region
          _
        $region44: #{tpu_custom_call.1} parent=11 // pred_fallthru
          _
        // Predicated region
        $region45: #{tpu_custom_call.1} parent=11 // pred_check
          %p375 = pneg %p241
        $region46: #{tpu_custom_call.1} parent=11 // pred_check_branch
          %377 = sbr.rel (%p375) target = $region48
        $region47: #{tpu_custom_call.1} parent=11 // pred_region
          %s379 = ssub.s32 16384, 16384
          %380 = vsyncadd [#allocation12], %s379
          %s381 = sshll.u32 [#allocation13], 4
          %s382 = int_to_ptr.vmem [resolvable:$true] %s381
          %387 = dma.hbm_to_vmem [thread:$0]  %s9, 16384, %s382, [#allocation12], 256, 256, 16
        $region48: #{tpu_custom_call.1} parent=11 // pred_fallthru
          _
        // Predicated region
        $region49: #{tpu_custom_call.1} parent=11 // pred_check
          %p388 = pneg %p262
        $region50: #{tpu_custom_call.1} parent=11 // pred_check_branch
          %390 = sbr.rel (%p388) target = $region52
        $region51: #{tpu_custom_call.1} parent=11 // pred_region
          _
        $region52: #{tpu_custom_call.1} parent=11 // pred_fallthru
          _
      $region12: #{tpu_custom_call.1} parent=5 // pred_fallthru
        _
      %p391 = scmp.lt.s32.totalorder %s26, 2
      // Predicated region
      $region53: #{tpu_custom_call.1} parent=5 // pred_check
        %p392 = pneg %p391
      $region54: #{tpu_custom_call.1} parent=5 // pred_check_branch
        %394 = sbr.rel (%p392) target = $region56
      $region55: #{tpu_custom_call.1} parent=5 // pred_region
        // Predicated region
        $region57: #{tpu_custom_call.1} parent=55 // pred_check
          %p395 = pneg %p46
        $region58: #{tpu_custom_call.1} parent=55 // pred_check_branch
          %397 = sbr.rel (%p395) target = $region60
        $region59: #{tpu_custom_call.1} parent=55 // pred_region
          %s398 = sand.u32 %s36, 1
          %s399 = scalar_lea.sflag [#allocation3], %s398
          %s400 = sand.u32 %s36, 1
          %s401 = smul.addr %s400, 512
          %s402 = scalar_lea.vmem [#allocation2], %s401
          %s403 = smul.u32 32, %s26
          %s405 = ssub.s32 8192, 8192
          %406 = vsyncadd %s399, %s405
          %s407 = smul.addr %s403, 2
          %s408 = smul.addr %s407, 128
          %s409 = scalar_lea.hbm %s0, %s408
          %s410 = sshll.u32 %s402, 4
          %s411 = int_to_ptr.vmem [resolvable:$true] %s410
          %416 = dma.hbm_to_vmem [thread:$0]  %s409, 8192, %s411, %s399, 256, 256, 16
        $region60: #{tpu_custom_call.1} parent=55 // pred_fallthru
          _
      $region56: #{tpu_custom_call.1} parent=5 // pred_fallthru
        _
      %p417 = scmp.le.s32.totalorder 1, %s26
      %p418 = scmp.lt.s32.totalorder %s26, 3
      %p419 = pnand %p417, %p418
      %p420 = pneg %p419
      // Predicated region
      $region61: #{tpu_custom_call.1} parent=5 // pred_check
        _
      $region62: #{tpu_custom_call.1} parent=5 // pred_check_branch
        %422 = sbr.rel (%p419) target = $region64
      $region63: #{tpu_custom_call.1} parent=5 // pred_region
        %s423 = ssub.s32 %s26, 1
        %s424 = sand.u32 %s39, 1
        %s425 = scalar_lea.sflag [#allocation3], %s424
        %s426 = sand.u32 %s39, 1
        %s427 = smul.addr %s426, 512
        %s428 = scalar_lea.vmem [#allocation2], %s427
        // Predicated region
        $region65: #{tpu_custom_call.1} parent=63 // pred_check
          %p429 = pneg %p52
        $region66: #{tpu_custom_call.1} parent=63 // pred_check_branch
          %431 = sbr.rel (%p429) target = $region68
        $region67: #{tpu_custom_call.1} parent=63 // pred_region
          %432 = dma.done %s425, 8192
        $region68: #{tpu_custom_call.1} parent=63 // pred_fallthru
          _
        // Predicated region
        $region69: #{tpu_custom_call.1} parent=63 // pred_check
          %p433 = pneg %p73
        $region70: #{tpu_custom_call.1} parent=63 // pred_check_branch
          %435 = sbr.rel (%p433) target = $region72
        $region71: #{tpu_custom_call.1} parent=63 // pred_region
          %436 = dma.done [#allocation6], 16384
        $region72: #{tpu_custom_call.1} parent=63 // pred_fallthru
          _
        // Predicated region
        $region73: #{tpu_custom_call.1} parent=63 // pred_check
          %p437 = pneg %p94
        $region74: #{tpu_custom_call.1} parent=63 // pred_check_branch
          %439 = sbr.rel (%p437) target = $region76
        $region75: #{tpu_custom_call.1} parent=63 // pred_region
          %440 = dma.done [#allocation6], 64
        $region76: #{tpu_custom_call.1} parent=63 // pred_fallthru
          _
        // Predicated region
        $region77: #{tpu_custom_call.1} parent=63 // pred_check
          %p441 = pneg %p115
        $region78: #{tpu_custom_call.1} parent=63 // pred_check_branch
          %443 = sbr.rel (%p441) target = $region80
        $region79: #{tpu_custom_call.1} parent=63 // pred_region
          %444 = dma.done [#allocation9], 8192
        $region80: #{tpu_custom_call.1} parent=63 // pred_fallthru
          _
        // Predicated region
        $region81: #{tpu_custom_call.1} parent=63 // pred_check
          %p445 = pneg %p157
        $region82: #{tpu_custom_call.1} parent=63 // pred_check_branch
          %447 = sbr.rel (%p445) target = $region84
        $region83: #{tpu_custom_call.1} parent=63 // pred_region
          %448 = dma.done [#allocation9], 2048
        $region84: #{tpu_custom_call.1} parent=63 // pred_fallthru
          _
        // Predicated region
        $region85: #{tpu_custom_call.1} parent=63 // pred_check
          %p449 = pneg %p199
        $region86: #{tpu_custom_call.1} parent=63 // pred_check_branch
          %451 = sbr.rel (%p449) target = $region88
        $region87: #{tpu_custom_call.1} parent=63 // pred_region
          %452 = dma.done [#allocation12], 8192
        $region88: #{tpu_custom_call.1} parent=63 // pred_fallthru
          _
        // Predicated region
        $region89: #{tpu_custom_call.1} parent=63 // pred_check
          %p453 = pneg %p241
        $region90: #{tpu_custom_call.1} parent=63 // pred_check_branch
          %455 = sbr.rel (%p453) target = $region92
        $region91: #{tpu_custom_call.1} parent=63 // pred_region
          %456 = dma.done [#allocation12], 16384
        $region92: #{tpu_custom_call.1} parent=63 // pred_fallthru
          _
        %s457 = sand.u32 %s39, 1
        %s458 = scalar_lea.sflag [#allocation3], %s457
        %s459 = sand.u32 %s39, 1
        %s460 = smul.addr %s459, 512
        %s461 = scalar_lea.vmem [#allocation2], %s460
        %p462 = pneg %p52
        %p463 = pneg %p49
        %p464 = pneg %p73
        %p465 = pneg %p70
        %p466 = pneg %p94
        %p467 = pneg %p91
        %p468 = pneg %p115
        %p469 = pneg %p112
        %p470 = pneg %p136
        %p471 = pneg %p133
        %p472 = pneg %p157
        %p473 = pneg %p154
        %p474 = pneg %p178
        %p475 = pneg %p175
        %p476 = pneg %p199
        %p477 = pneg %p196
        %p478 = pneg %p220
        %p479 = pneg %p217
        %p480 = pneg %p241
        %p481 = pneg %p238
        %p482 = pneg %p262
        %p483 = pneg %p259
        %p484 = pneg %p288
        %p485 = pneg %p285
        %s486 = sand.u32 %s275, 1
        %s487 = scalar_lea.sflag [#allocation4], %s486
        %s488 = sand.u32 %s275, 1
        %s489 = smul.addr %s488, 512
        %s490 = scalar_lea.vmem [#allocation14], %s489
        %s491 = smul.u32 32, %s31
        %s492 = smul.u32 32, %s31
        %v493 = vld [vmem:[%s428] sm:$0xff]
        %v494 = vld [vmem:[%s428 + $0x8] sm:$0xff]
        %v495 = vld [vmem:[%s428 + $0x10] sm:$0xff]
        %v496 = vld [vmem:[%s428 + $0x18] sm:$0xff]
        %v497 = vld [vmem:[%s428 + $0x20] sm:$0xff]
        %v498 = vld [vmem:[%s428 + $0x28] sm:$0xff]
        %v499 = vld [vmem:[%s428 + $0x30] sm:$0xff]
        %v500 = vld [vmem:[%s428 + $0x38] sm:$0xff]
        %v501 = vld [vmem:[%s428 + $0x40] sm:$0xff]
        %v502 = vld [vmem:[%s428 + $0x48] sm:$0xff]
        %v503 = vld [vmem:[%s428 + $0x50] sm:$0xff]
        %v504 = vld [vmem:[%s428 + $0x58] sm:$0xff]
        %v505 = vld [vmem:[%s428 + $0x60] sm:$0xff]
        %v506 = vld [vmem:[%s428 + $0x68] sm:$0xff]
        %v507 = vld [vmem:[%s428 + $0x70] sm:$0xff]
        %v508 = vld [vmem:[%s428 + $0x78] sm:$0xff]
        %v509 = vld [vmem:[%s428 + $0x80] sm:$0xff]
        %v510 = vld [vmem:[%s428 + $0x88] sm:$0xff]
        %v511 = vld [vmem:[%s428 + $0x90] sm:$0xff]
        %v512 = vld [vmem:[%s428 + $0x98] sm:$0xff]
        %v513 = vld [vmem:[%s428 + $0xa0] sm:$0xff]
        %v514 = vld [vmem:[%s428 + $0xa8] sm:$0xff]
        %v515 = vld [vmem:[%s428 + $0xb0] sm:$0xff]
        %v516 = vld [vmem:[%s428 + $0xb8] sm:$0xff]
        %v517 = vld [vmem:[%s428 + $0xc0] sm:$0xff]
        %v518 = vld [vmem:[%s428 + $0xc8] sm:$0xff]
        %v519 = vld [vmem:[%s428 + $0xd0] sm:$0xff]
        %v520 = vld [vmem:[%s428 + $0xd8] sm:$0xff]
        %v521 = vld [vmem:[%s428 + $0xe0] sm:$0xff]
        %v522 = vld [vmem:[%s428 + $0xe8] sm:$0xff]
        %v523 = vld [vmem:[%s428 + $0xf0] sm:$0xff]
        %v524 = vld [vmem:[%s428 + $0xf8] sm:$0xff]
        %v525 = vld [vmem:[%s428 + $0x100] sm:$0xff]
        %v526 = vld [vmem:[%s428 + $0x108] sm:$0xff]
        %v527 = vld [vmem:[%s428 + $0x110] sm:$0xff]
        %v528 = vld [vmem:[%s428 + $0x118] sm:$0xff]
        %v529 = vld [vmem:[%s428 + $0x120] sm:$0xff]
        %v530 = vld [vmem:[%s428 + $0x128] sm:$0xff]
        %v531 = vld [vmem:[%s428 + $0x130] sm:$0xff]
        %v532 = vld [vmem:[%s428 + $0x138] sm:$0xff]
        %v533 = vld [vmem:[%s428 + $0x140] sm:$0xff]
        %v534 = vld [vmem:[%s428 + $0x148] sm:$0xff]
        %v535 = vld [vmem:[%s428 + $0x150] sm:$0xff]
        %v536 = vld [vmem:[%s428 + $0x158] sm:$0xff]
        %v537 = vld [vmem:[%s428 + $0x160] sm:$0xff]
        %v538 = vld [vmem:[%s428 + $0x168] sm:$0xff]
        %v539 = vld [vmem:[%s428 + $0x170] sm:$0xff]
        %v540 = vld [vmem:[%s428 + $0x178] sm:$0xff]
        %v541 = vld [vmem:[%s428 + $0x180] sm:$0xff]
        %v542 = vld [vmem:[%s428 + $0x188] sm:$0xff]
        %v543 = vld [vmem:[%s428 + $0x190] sm:$0xff]
        %v544 = vld [vmem:[%s428 + $0x198] sm:$0xff]
        %v545 = vld [vmem:[%s428 + $0x1a0] sm:$0xff]
        %v546 = vld [vmem:[%s428 + $0x1a8] sm:$0xff]
        %v547 = vld [vmem:[%s428 + $0x1b0] sm:$0xff]
        %v548 = vld [vmem:[%s428 + $0x1b8] sm:$0xff]
        %v549 = vld [vmem:[%s428 + $0x1c0] sm:$0xff]
        %v550 = vld [vmem:[%s428 + $0x1c8] sm:$0xff]
        %v551 = vld [vmem:[%s428 + $0x1d0] sm:$0xff]
        %v552 = vld [vmem:[%s428 + $0x1d8] sm:$0xff]
        %v553 = vld [vmem:[%s428 + $0x1e0] sm:$0xff]
        %v554 = vld [vmem:[%s428 + $0x1e8] sm:$0xff]
        %v555 = vld [vmem:[%s428 + $0x1f0] sm:$0xff]
        %v556 = vld [vmem:[%s428 + $0x1f8] sm:$0xff]
        %v557 = vld [vmem:[#allocation5] sm:$0xff]
        %v558 = vld [vmem:[#allocation5 + $0x8] sm:$0xff]
        %v559 = vld [vmem:[#allocation5 + $0x10] sm:$0xff]
        %v560 = vld [vmem:[#allocation5 + $0x18] sm:$0xff]
        %v561 = vld [vmem:[#allocation5 + $0x20] sm:$0xff]
        %v562 = vld [vmem:[#allocation5 + $0x28] sm:$0xff]
        %v563 = vld [vmem:[#allocation5 + $0x30] sm:$0xff]
        %v564 = vld [vmem:[#allocation5 + $0x38] sm:$0xff]
        %v565 = vld [vmem:[#allocation5 + $0x40] sm:$0xff]
        %v566 = vld [vmem:[#allocation5 + $0x48] sm:$0xff]
        %v567 = vld [vmem:[#allocation5 + $0x50] sm:$0xff]
        %v568 = vld [vmem:[#allocation5 + $0x58] sm:$0xff]
        %v569 = vld [vmem:[#allocation5 + $0x60] sm:$0xff]
        %v570 = vld [vmem:[#allocation5 + $0x68] sm:$0xff]
        %v571 = vld [vmem:[#allocation5 + $0x70] sm:$0xff]
        %v572 = vld [vmem:[#allocation5 + $0x78] sm:$0xff]
        %v573 = vld [vmem:[#allocation5 + $0x80] sm:$0xff]
        %v574 = vld [vmem:[#allocation5 + $0x88] sm:$0xff]
        %v575 = vld [vmem:[#allocation5 + $0x90] sm:$0xff]
        %v576 = vld [vmem:[#allocation5 + $0x98] sm:$0xff]
        %v577 = vld [vmem:[#allocation5 + $0xa0] sm:$0xff]
        %v578 = vld [vmem:[#allocation5 + $0xa8] sm:$0xff]
        %v579 = vld [vmem:[#allocation5 + $0xb0] sm:$0xff]
        %v580 = vld [vmem:[#allocation5 + $0xb8] sm:$0xff]
        %v581 = vld [vmem:[#allocation5 + $0xc0] sm:$0xff]
        %v582 = vld [vmem:[#allocation5 + $0xc8] sm:$0xff]
        %v583 = vld [vmem:[#allocation5 + $0xd0] sm:$0xff]
        %v584 = vld [vmem:[#allocation5 + $0xd8] sm:$0xff]
        %v585 = vld [vmem:[#allocation5 + $0xe0] sm:$0xff]
        %v586 = vld [vmem:[#allocation5 + $0xe8] sm:$0xff]
        %v587 = vld [vmem:[#allocation5 + $0xf0] sm:$0xff]
        %v588 = vld [vmem:[#allocation5 + $0xf8] sm:$0xff]
        %v589 = vld [vmem:[#allocation5 + $0x100] sm:$0xff]
        %v590 = vld [vmem:[#allocation5 + $0x108] sm:$0xff]
        %v591 = vld [vmem:[#allocation5 + $0x110] sm:$0xff]
        %v592 = vld [vmem:[#allocation5 + $0x118] sm:$0xff]
        %v593 = vld [vmem:[#allocation5 + $0x120] sm:$0xff]
        %v594 = vld [vmem:[#allocation5 + $0x128] sm:$0xff]
        %v595 = vld [vmem:[#allocation5 + $0x130] sm:$0xff]
        %v596 = vld [vmem:[#allocation5 + $0x138] sm:$0xff]
        %v597 = vld [vmem:[#allocation5 + $0x140] sm:$0xff]
        %v598 = vld [vmem:[#allocation5 + $0x148] sm:$0xff]
        %v599 = vld [vmem:[#allocation5 + $0x150] sm:$0xff]
        %v600 = vld [vmem:[#allocation5 + $0x158] sm:$0xff]
        %v601 = vld [vmem:[#allocation5 + $0x160] sm:$0xff]
        %v602 = vld [vmem:[#allocation5 + $0x168] sm:$0xff]
        %v603 = vld [vmem:[#allocation5 + $0x170] sm:$0xff]
        %v604 = vld [vmem:[#allocation5 + $0x178] sm:$0xff]
        %v605 = vld [vmem:[#allocation5 + $0x180] sm:$0xff]
        %v606 = vld [vmem:[#allocation5 + $0x188] sm:$0xff]
        %v607 = vld [vmem:[#allocation5 + $0x190] sm:$0xff]
        %v608 = vld [vmem:[#allocation5 + $0x198] sm:$0xff]
        %v609 = vld [vmem:[#allocation5 + $0x1a0] sm:$0xff]
        %v610 = vld [vmem:[#allocation5 + $0x1a8] sm:$0xff]
        %v611 = vld [vmem:[#allocation5 + $0x1b0] sm:$0xff]
        %v612 = vld [vmem:[#allocation5 + $0x1b8] sm:$0xff]
        %v613 = vld [vmem:[#allocation5 + $0x1c0] sm:$0xff]
        %v614 = vld [vmem:[#allocation5 + $0x1c8] sm:$0xff]
        %v615 = vld [vmem:[#allocation5 + $0x1d0] sm:$0xff]
        %v616 = vld [vmem:[#allocation5 + $0x1d8] sm:$0xff]
        %v617 = vld [vmem:[#allocation5 + $0x1e0] sm:$0xff]
        %v618 = vld [vmem:[#allocation5 + $0x1e8] sm:$0xff]
        %v619 = vld [vmem:[#allocation5 + $0x1f0] sm:$0xff]
        %v620 = vld [vmem:[#allocation5 + $0x1f8] sm:$0xff]
        %v621 = vld [vmem:[#allocation5 + $0x200] sm:$0xff]
        %v622 = vld [vmem:[#allocation5 + $0x208] sm:$0xff]
        %v623 = vld [vmem:[#allocation5 + $0x210] sm:$0xff]
        %v624 = vld [vmem:[#allocation5 + $0x218] sm:$0xff]
        %v625 = vld [vmem:[#allocation5 + $0x220] sm:$0xff]
        %v626 = vld [vmem:[#allocation5 + $0x228] sm:$0xff]
        %v627 = vld [vmem:[#allocation5 + $0x230] sm:$0xff]
        %v628 = vld [vmem:[#allocation5 + $0x238] sm:$0xff]
        %v629 = vld [vmem:[#allocation5 + $0x240] sm:$0xff]
        %v630 = vld [vmem:[#allocation5 + $0x248] sm:$0xff]
        %v631 = vld [vmem:[#allocation5 + $0x250] sm:$0xff]
        %v632 = vld [vmem:[#allocation5 + $0x258] sm:$0xff]
        %v633 = vld [vmem:[#allocation5 + $0x260] sm:$0xff]
        %v634 = vld [vmem:[#allocation5 + $0x268] sm:$0xff]
        %v635 = vld [vmem:[#allocation5 + $0x270] sm:$0xff]
        %v636 = vld [vmem:[#allocation5 + $0x278] sm:$0xff]
        %v637 = vld [vmem:[#allocation5 + $0x280] sm:$0xff]
        %v638 = vld [vmem:[#allocation5 + $0x288] sm:$0xff]
        %v639 = vld [vmem:[#allocation5 + $0x290] sm:$0xff]
        %v640 = vld [vmem:[#allocation5 + $0x298] sm:$0xff]
        %v641 = vld [vmem:[#allocation5 + $0x2a0] sm:$0xff]
        %v642 = vld [vmem:[#allocation5 + $0x2a8] sm:$0xff]
        %v643 = vld [vmem:[#allocation5 + $0x2b0] sm:$0xff]
        %v644 = vld [vmem:[#allocation5 + $0x2b8] sm:$0xff]
        %v645 = vld [vmem:[#allocation5 + $0x2c0] sm:$0xff]
        %v646 = vld [vmem:[#allocation5 + $0x2c8] sm:$0xff]
        %v647 = vld [vmem:[#allocation5 + $0x2d0] sm:$0xff]
        %v648 = vld [vmem:[#allocation5 + $0x2d8] sm:$0xff]
        %v649 = vld [vmem:[#allocation5 + $0x2e0] sm:$0xff]
        %v650 = vld [vmem:[#allocation5 + $0x2e8] sm:$0xff]
        %v651 = vld [vmem:[#allocation5 + $0x2f0] sm:$0xff]
        %v652 = vld [vmem:[#allocation5 + $0x2f8] sm:$0xff]
        %v653 = vld [vmem:[#allocation5 + $0x300] sm:$0xff]
        %v654 = vld [vmem:[#allocation5 + $0x308] sm:$0xff]
        %v655 = vld [vmem:[#allocation5 + $0x310] sm:$0xff]
        %v656 = vld [vmem:[#allocation5 + $0x318] sm:$0xff]
        %v657 = vld [vmem:[#allocation5 + $0x320] sm:$0xff]
        %v658 = vld [vmem:[#allocation5 + $0x328] sm:$0xff]
        %v659 = vld [vmem:[#allocation5 + $0x330] sm:$0xff]
        %v660 = vld [vmem:[#allocation5 + $0x338] sm:$0xff]
        %v661 = vld [vmem:[#allocation5 + $0x340] sm:$0xff]
        %v662 = vld [vmem:[#allocation5 + $0x348] sm:$0xff]
        %v663 = vld [vmem:[#allocation5 + $0x350] sm:$0xff]
        %v664 = vld [vmem:[#allocation5 + $0x358] sm:$0xff]
        %v665 = vld [vmem:[#allocation5 + $0x360] sm:$0xff]
        %v666 = vld [vmem:[#allocation5 + $0x368] sm:$0xff]
        %v667 = vld [vmem:[#allocation5 + $0x370] sm:$0xff]
        %v668 = vld [vmem:[#allocation5 + $0x378] sm:$0xff]
        %v669 = vld [vmem:[#allocation5 + $0x380] sm:$0xff]
        %v670 = vld [vmem:[#allocation5 + $0x388] sm:$0xff]
        %v671 = vld [vmem:[#allocation5 + $0x390] sm:$0xff]
        %v672 = vld [vmem:[#allocation5 + $0x398] sm:$0xff]
        %v673 = vld [vmem:[#allocation5 + $0x3a0] sm:$0xff]
        %v674 = vld [vmem:[#allocation5 + $0x3a8] sm:$0xff]
        %v675 = vld [vmem:[#allocation5 + $0x3b0] sm:$0xff]
        %v676 = vld [vmem:[#allocation5 + $0x3b8] sm:$0xff]
        %v677 = vld [vmem:[#allocation5 + $0x3c0] sm:$0xff]
        %v678 = vld [vmem:[#allocation5 + $0x3c8] sm:$0xff]
        %v679 = vld [vmem:[#allocation5 + $0x3d0] sm:$0xff]
        %v680 = vld [vmem:[#allocation5 + $0x3d8] sm:$0xff]
        %v681 = vld [vmem:[#allocation5 + $0x3e0] sm:$0xff]
        %v682 = vld [vmem:[#allocation5 + $0x3e8] sm:$0xff]
        %v683 = vld [vmem:[#allocation5 + $0x3f0] sm:$0xff]
        %v684 = vld [vmem:[#allocation5 + $0x3f8] sm:$0xff]
        %v685 = vld [vmem:[#allocation7] sm:$0xf]
        %v687 = vlaneseq
        %v688 = vshrl.u32 %v687, 7
        %v689 = vsub.s32 0, %v688
        %v690 = vrot.slane %v685, %v689
        %v691 = vlaneseq
        %v692 = vshrl.u32 %v691, 7
        %v693 = vsub.s32 1, %v692
        %v694 = vrot.slane %v685, %v693
        %v695 = vlaneseq
        %v696 = vshrl.u32 %v695, 7
        %v697 = vsub.s32 2, %v696
        %v698 = vrot.slane %v685, %v697
        %v699 = vlaneseq
        %v700 = vshrl.u32 %v699, 7
        %v701 = vsub.s32 3, %v700
        %v702 = vrot.slane %v685, %v701
        %707 = vmatprep.subr.mxu0 %v618
        %708 = vmatpush1.msra.mxu0 %v617
        %709 = vmatprep.subr.mxu0 %v614
        %710 = vmatpush1.msra.mxu0 %v613
        %711 = vmatprep.subr.mxu0 %v610
        %712 = vmatpush1.msra.mxu0 %v609
        %713 = vmatprep.subr.mxu0 %v606
        %714 = vmatpush1.msra.mxu0 %v605
        %715 = vmatprep.subr.mxu0 %v602
        %716 = vmatpush1.msra.mxu0 %v601
        %717 = vmatprep.subr.mxu0 %v598
        %718 = vmatpush1.msra.mxu0 %v597
        %719 = vmatprep.subr.mxu0 %v594
        %720 = vmatpush1.msra.mxu0 %v593
        %721 = vmatprep.subr.mxu0 %v590
        %722 = vmatpush1.msra.mxu0 %v589
        %723 = vmatprep.subr.mxu0 %v586
        %724 = vmatpush1.msra.mxu0 %v585
        %725 = vmatprep.subr.mxu0 %v582
        %726 = vmatpush1.msra.mxu0 %v581
        %727 = vmatprep.subr.mxu0 %v578
        %728 = vmatpush1.msra.mxu0 %v577
        %729 = vmatprep.subr.mxu0 %v574
        %730 = vmatpush1.msra.mxu0 %v573
        %731 = vmatprep.subr.mxu0 %v570
        %732 = vmatpush1.msra.mxu0 %v569
        %733 = vmatprep.subr.mxu0 %v566
        %734 = vmatpush1.msra.mxu0 %v565
        %735 = vmatprep.subr.mxu0 %v562
        %736 = vmatpush1.msra.mxu0 %v561
        %737 = vmatprep.subr.mxu0 %v558
        %738 = vmatpush1.msra.mxu0 %v557
        %739 = vmatprep.subr.mxu0 %v682
        %740 = vmatpush2.msra.mxu0 %v681
        %741 = vmatprep.subr.mxu0 %v678
        %742 = vmatpush2.msra.mxu0 %v677
        %743 = vmatprep.subr.mxu0 %v674
        %744 = vmatpush2.msra.mxu0 %v673
        %745 = vmatprep.subr.mxu0 %v670
        %746 = vmatpush2.msra.mxu0 %v669
        %747 = vmatprep.subr.mxu0 %v666
        %748 = vmatpush2.msra.mxu0 %v665
        %749 = vmatprep.subr.mxu0 %v662
        %750 = vmatpush2.msra.mxu0 %v661
        %751 = vmatprep.subr.mxu0 %v658
        %752 = vmatpush2.msra.mxu0 %v657
        %753 = vmatprep.subr.mxu0 %v654
        %754 = vmatpush2.msra.mxu0 %v653
        %755 = vmatprep.subr.mxu0 %v650
        %756 = vmatpush2.msra.mxu0 %v649
        %757 = vmatprep.subr.mxu0 %v646
        %758 = vmatpush2.msra.mxu0 %v645
        %759 = vmatprep.subr.mxu0 %v642
        %760 = vmatpush2.msra.mxu0 %v641
        %761 = vmatprep.subr.mxu0 %v638
        %762 = vmatpush2.msra.mxu0 %v637
        %763 = vmatprep.subr.mxu0 %v634
        %764 = vmatpush2.msra.mxu0 %v633
        %765 = vmatprep.subr.mxu0 %v630
        %766 = vmatpush2.msra.mxu0 %v629
        %767 = vmatprep.subr.mxu0 %v626
        %768 = vmatpush2.msra.mxu0 %v625
        %769 = vmatprep.subr.mxu0 %v622
        %770 = vmatpush2.msra.mxu0 %v621
        %771 = vmatprep.mubr.f32.mxu0 %v494
        %772 = vmatmul.mubr.f32.gmra.mxu0 %v493
        %v773 = vpop.f32.mrf.mxu0
        %v774 = vadd.f32 %v690, %v773
        %v775 = vpop.f32.mrf.mxu0
        %v776 = vadd.f32 %v694, %v775
        %777 = vmatprep.mubr.f32.mxu0 %v496
        %778 = vmatmul.mubr.f32.gmra.mxu0 %v495
        %v779 = vpop.f32.mrf.mxu0
        %v780 = vadd.f32 %v690, %v779
        %v781 = vpop.f32.mrf.mxu0
        %v782 = vadd.f32 %v694, %v781
        %783 = vmatprep.mubr.f32.mxu0 %v498
        %784 = vmatmul.mubr.f32.gmra.mxu0 %v497
        %v785 = vpop.f32.mrf.mxu0
        %v786 = vadd.f32 %v690, %v785
        %v787 = vpop.f32.mrf.mxu0
        %v788 = vadd.f32 %v694, %v787
        %789 = vmatprep.mubr.f32.mxu0 %v500
        %790 = vmatmul.mubr.f32.gmra.mxu0 %v499
        %v791 = vpop.f32.mrf.mxu0
        %v792 = vadd.f32 %v690, %v791
        %v793 = vpop.f32.mrf.mxu0
        %v794 = vadd.f32 %v694, %v793
        %795 = vmatprep.mubr.f32.mxu0 %v502
        %796 = vmatmul.mubr.f32.gmra.mxu0 %v501
        %v797 = vpop.f32.mrf.mxu0
        %v798 = vadd.f32 %v690, %v797
        %v799 = vpop.f32.mrf.mxu0
        %v800 = vadd.f32 %v694, %v799
        %801 = vmatprep.mubr.f32.mxu0 %v504
        %802 = vmatmul.mubr.f32.gmra.mxu0 %v503
        %v803 = vpop.f32.mrf.mxu0
        %v804 = vadd.f32 %v690, %v803
        %v805 = vpop.f32.mrf.mxu0
        %v806 = vadd.f32 %v694, %v805
        %807 = vmatprep.mubr.f32.mxu0 %v506
        %808 = vmatmul.mubr.f32.gmra.mxu0 %v505
        %v809 = vpop.f32.mrf.mxu0
        %v810 = vadd.f32 %v690, %v809
        %v811 = vpop.f32.mrf.mxu0
        %v812 = vadd.f32 %v694, %v811
        %813 = vmatprep.mubr.f32.mxu0 %v508
        %814 = vmatmul.mubr.f32.gmra.mxu0 %v507
        %v815 = vpop.f32.mrf.mxu0
        %v816 = vadd.f32 %v690, %v815
        %v817 = vpop.f32.mrf.mxu0
        %v818 = vadd.f32 %v694, %v817
        %819 = vmatprep.mubr.f32.mxu0 %v510
        %820 = vmatmul.mubr.f32.gmra.mxu0 %v509
        %v821 = vpop.f32.mrf.mxu0
        %v822 = vadd.f32 %v690, %v821
        %v823 = vpop.f32.mrf.mxu0
        %v824 = vadd.f32 %v694, %v823
        %825 = vmatprep.mubr.f32.mxu0 %v512
        %826 = vmatmul.mubr.f32.gmra.mxu0 %v511
        %v827 = vpop.f32.mrf.mxu0
        %v828 = vadd.f32 %v690, %v827
        %v829 = vpop.f32.mrf.mxu0
        %v830 = vadd.f32 %v694, %v829
        %831 = vmatprep.mubr.f32.mxu0 %v514
        %832 = vmatmul.mubr.f32.gmra.mxu0 %v513
        %v833 = vpop.f32.mrf.mxu0
        %v834 = vadd.f32 %v690, %v833
        %v835 = vpop.f32.mrf.mxu0
        %v836 = vadd.f32 %v694, %v835
        %837 = vmatprep.mubr.f32.mxu0 %v516
        %838 = vmatmul.mubr.f32.gmra.mxu0 %v515
        %v839 = vpop.f32.mrf.mxu0
        %v840 = vadd.f32 %v690, %v839
        %v841 = vpop.f32.mrf.mxu0
        %v842 = vadd.f32 %v694, %v841
        %843 = vmatprep.mubr.f32.mxu0 %v518
        %844 = vmatmul.mubr.f32.gmra.mxu0 %v517
        %v845 = vpop.f32.mrf.mxu0
        %v846 = vadd.f32 %v690, %v845
        %v847 = vpop.f32.mrf.mxu0
        %v848 = vadd.f32 %v694, %v847
        %849 = vmatprep.mubr.f32.mxu0 %v520
        %850 = vmatmul.mubr.f32.gmra.mxu0 %v519
        %v851 = vpop.f32.mrf.mxu0
        %v852 = vadd.f32 %v690, %v851
        %v853 = vpop.f32.mrf.mxu0
        %v854 = vadd.f32 %v694, %v853
        %855 = vmatprep.mubr.f32.mxu0 %v522
        %856 = vmatmul.mubr.f32.gmra.mxu0 %v521
        %v857 = vpop.f32.mrf.mxu0
        %v858 = vadd.f32 %v690, %v857
        %v859 = vpop.f32.mrf.mxu0
        %v860 = vadd.f32 %v694, %v859
        %861 = vmatprep.mubr.f32.mxu0 %v524
        %862 = vmatmul.mubr.f32.gmra.mxu0 %v523
        %v863 = vpop.f32.mrf.mxu0
        %v864 = vadd.f32 %v690, %v863
        %v865 = vpop.f32.mrf.mxu0
        %v866 = vadd.f32 %v694, %v865
        %867 = vmatprep.mubr.f32.mxu0 %v526
        %868 = vmatmul.mubr.f32.gmra.mxu0 %v525
        %v869 = vpop.f32.mrf.mxu0
        %v870 = vadd.f32 %v690, %v869
        %v871 = vpop.f32.mrf.mxu0
        %v872 = vadd.f32 %v694, %v871
        %873 = vmatprep.mubr.f32.mxu0 %v528
        %874 = vmatmul.mubr.f32.gmra.mxu0 %v527
        %v875 = vpop.f32.mrf.mxu0
        %v876 = vadd.f32 %v690, %v875
        %v877 = vpop.f32.mrf.mxu0
        %v878 = vadd.f32 %v694, %v877
        %879 = vmatprep.mubr.f32.mxu0 %v530
        %880 = vmatmul.mubr.f32.gmra.mxu0 %v529
        %v881 = vpop.f32.mrf.mxu0
        %v882 = vadd.f32 %v690, %v881
        %v883 = vpop.f32.mrf.mxu0
        %v884 = vadd.f32 %v694, %v883
        %885 = vmatprep.mubr.f32.mxu0 %v532
        %886 = vmatmul.mubr.f32.gmra.mxu0 %v531
        %v887 = vpop.f32.mrf.mxu0
        %v888 = vadd.f32 %v690, %v887
        %v889 = vpop.f32.mrf.mxu0
        %v890 = vadd.f32 %v694, %v889
        %891 = vmatprep.mubr.f32.mxu0 %v534
        %892 = vmatmul.mubr.f32.gmra.mxu0 %v533
        %v893 = vpop.f32.mrf.mxu0
        %v894 = vadd.f32 %v690, %v893
        %v895 = vpop.f32.mrf.mxu0
        %v896 = vadd.f32 %v694, %v895
        %897 = vmatprep.mubr.f32.mxu0 %v536
        %898 = vmatmul.mubr.f32.gmra.mxu0 %v535
        %v899 = vpop.f32.mrf.mxu0
        %v900 = vadd.f32 %v690, %v899
        %v901 = vpop.f32.mrf.mxu0
        %v902 = vadd.f32 %v694, %v901
        %903 = vmatprep.mubr.f32.mxu0 %v538
        %904 = vmatmul.mubr.f32.gmra.mxu0 %v537
        %v905 = vpop.f32.mrf.mxu0
        %v906 = vadd.f32 %v690, %v905
        %v907 = vpop.f32.mrf.mxu0
        %v908 = vadd.f32 %v694, %v907
        %909 = vmatprep.mubr.f32.mxu0 %v540
        %910 = vmatmul.mubr.f32.gmra.mxu0 %v539
        %v911 = vpop.f32.mrf.mxu0
        %v912 = vadd.f32 %v690, %v911
        %v913 = vpop.f32.mrf.mxu0
        %v914 = vadd.f32 %v694, %v913
        %915 = vmatprep.mubr.f32.mxu0 %v542
        %916 = vmatmul.mubr.f32.gmra.mxu0 %v541
        %v917 = vpop.f32.mrf.mxu0
        %v918 = vadd.f32 %v690, %v917
        %v919 = vpop.f32.mrf.mxu0
        %v920 = vadd.f32 %v694, %v919
        %921 = vmatprep.mubr.f32.mxu0 %v544
        %922 = vmatmul.mubr.f32.gmra.mxu0 %v543
        %v923 = vpop.f32.mrf.mxu0
        %v924 = vadd.f32 %v690, %v923
        %v925 = vpop.f32.mrf.mxu0
        %v926 = vadd.f32 %v694, %v925
        %927 = vmatprep.mubr.f32.mxu0 %v546
        %928 = vmatmul.mubr.f32.gmra.mxu0 %v545
        %v929 = vpop.f32.mrf.mxu0
        %v930 = vadd.f32 %v690, %v929
        %v931 = vpop.f32.mrf.mxu0
        %v932 = vadd.f32 %v694, %v931
        %933 = vmatprep.mubr.f32.mxu0 %v548
        %934 = vmatmul.mubr.f32.gmra.mxu0 %v547
        %v935 = vpop.f32.mrf.mxu0
        %v936 = vadd.f32 %v690, %v935
        %v937 = vpop.f32.mrf.mxu0
        %v938 = vadd.f32 %v694, %v937
        %939 = vmatprep.mubr.f32.mxu0 %v550
        %940 = vmatmul.mubr.f32.gmra.mxu0 %v549
        %v941 = vpop.f32.mrf.mxu0
        %v942 = vadd.f32 %v690, %v941
        %v943 = vpop.f32.mrf.mxu0
        %v944 = vadd.f32 %v694, %v943
        %945 = vmatprep.mubr.f32.mxu0 %v552
        %946 = vmatmul.mubr.f32.gmra.mxu0 %v551
        %v947 = vpop.f32.mrf.mxu0
        %v948 = vadd.f32 %v690, %v947
        %v949 = vpop.f32.mrf.mxu0
        %v950 = vadd.f32 %v694, %v949
        %951 = vmatprep.mubr.f32.mxu0 %v554
        %952 = vmatmul.mubr.f32.gmra.mxu0 %v553
        %v953 = vpop.f32.mrf.mxu0
        %v954 = vadd.f32 %v690, %v953
        %v955 = vpop.f32.mrf.mxu0
        %v956 = vadd.f32 %v694, %v955
        %957 = vmatprep.mubr.f32.mxu0 %v556
        %958 = vmatmul.mubr.f32.gmra.mxu0 %v555
        %v959 = vpop.f32.mrf.mxu0
        %v960 = vadd.f32 %v690, %v959
        %v961 = vpop.f32.mrf.mxu0
        %v962 = vadd.f32 %v694, %v961
        %963 = vdwg.mxu0
        %964 = vmatprep.subr.mxu0 %v620
        %965 = vmatpush1.msra.mxu0 %v619
        %966 = vmatprep.subr.mxu0 %v616
        %967 = vmatpush1.msra.mxu0 %v615
        %968 = vmatprep.subr.mxu0 %v612
        %969 = vmatpush1.msra.mxu0 %v611
        %970 = vmatprep.subr.mxu0 %v608
        %971 = vmatpush1.msra.mxu0 %v607
        %972 = vmatprep.subr.mxu0 %v604
        %973 = vmatpush1.msra.mxu0 %v603
        %974 = vmatprep.subr.mxu0 %v600
        %975 = vmatpush1.msra.mxu0 %v599
        %976 = vmatprep.subr.mxu0 %v596
        %977 = vmatpush1.msra.mxu0 %v595
        %978 = vmatprep.subr.mxu0 %v592
        %979 = vmatpush1.msra.mxu0 %v591
        %980 = vmatprep.subr.mxu0 %v588
        %981 = vmatpush1.msra.mxu0 %v587
        %982 = vmatprep.subr.mxu0 %v584
        %983 = vmatpush1.msra.mxu0 %v583
        %984 = vmatprep.subr.mxu0 %v580
        %985 = vmatpush1.msra.mxu0 %v579
        %986 = vmatprep.subr.mxu0 %v576
        %987 = vmatpush1.msra.mxu0 %v575
        %988 = vmatprep.subr.mxu0 %v572
        %989 = vmatpush1.msra.mxu0 %v571
        %990 = vmatprep.subr.mxu0 %v568
        %991 = vmatpush1.msra.mxu0 %v567
        %992 = vmatprep.subr.mxu0 %v564
        %993 = vmatpush1.msra.mxu0 %v563
        %994 = vmatprep.subr.mxu0 %v560
        %995 = vmatpush1.msra.mxu0 %v559
        %996 = vmatprep.subr.mxu0 %v684
        %997 = vmatpush2.msra.mxu0 %v683
        %998 = vmatprep.subr.mxu0 %v680
        %999 = vmatpush2.msra.mxu0 %v679
        %1000 = vmatprep.subr.mxu0 %v676
        %1001 = vmatpush2.msra.mxu0 %v675
        %1002 = vmatprep.subr.mxu0 %v672
        %1003 = vmatpush2.msra.mxu0 %v671
        %1004 = vmatprep.subr.mxu0 %v668
        %1005 = vmatpush2.msra.mxu0 %v667
        %1006 = vmatprep.subr.mxu0 %v664
        %1007 = vmatpush2.msra.mxu0 %v663
        %1008 = vmatprep.subr.mxu0 %v660
        %1009 = vmatpush2.msra.mxu0 %v659
        %1010 = vmatprep.subr.mxu0 %v656
        %1011 = vmatpush2.msra.mxu0 %v655
        %1012 = vmatprep.subr.mxu0 %v652
        %1013 = vmatpush2.msra.mxu0 %v651
        %1014 = vmatprep.subr.mxu0 %v648
        %1015 = vmatpush2.msra.mxu0 %v647
        %1016 = vmatprep.subr.mxu0 %v644
        %1017 = vmatpush2.msra.mxu0 %v643
        %1018 = vmatprep.subr.mxu0 %v640
        %1019 = vmatpush2.msra.mxu0 %v639
        %1020 = vmatprep.subr.mxu0 %v636
        %1021 = vmatpush2.msra.mxu0 %v635
        %1022 = vmatprep.subr.mxu0 %v632
        %1023 = vmatpush2.msra.mxu0 %v631
        %1024 = vmatprep.subr.mxu0 %v628
        %1025 = vmatpush2.msra.mxu0 %v627
        %1026 = vmatprep.subr.mxu0 %v624
        %1027 = vmatpush2.msra.mxu0 %v623
        %1028 = vmatprep.mubr.f32.mxu0 %v494
        %1029 = vmatmul.mubr.f32.gmra.mxu0 %v493
        %v1030 = vpop.f32.mrf.mxu0
        %v1031 = vadd.f32 %v698, %v1030
        %v1032 = vpop.f32.mrf.mxu0
        %v1033 = vadd.f32 %v702, %v1032
        %1034 = vmatprep.mubr.f32.mxu0 %v496
        %1035 = vmatmul.mubr.f32.gmra.mxu0 %v495
        %v1036 = vpop.f32.mrf.mxu0
        %v1037 = vadd.f32 %v698, %v1036
        %v1038 = vpop.f32.mrf.mxu0
        %v1039 = vadd.f32 %v702, %v1038
        %1040 = vmatprep.mubr.f32.mxu0 %v498
        %1041 = vmatmul.mubr.f32.gmra.mxu0 %v497
        %v1042 = vpop.f32.mrf.mxu0
        %v1043 = vadd.f32 %v698, %v1042
        %v1044 = vpop.f32.mrf.mxu0
        %v1045 = vadd.f32 %v702, %v1044
        %1046 = vmatprep.mubr.f32.mxu0 %v500
        %1047 = vmatmul.mubr.f32.gmra.mxu0 %v499
        %v1048 = vpop.f32.mrf.mxu0
        %v1049 = vadd.f32 %v698, %v1048
        %v1050 = vpop.f32.mrf.mxu0
        %v1051 = vadd.f32 %v702, %v1050
        %1052 = vmatprep.mubr.f32.mxu0 %v502
        %1053 = vmatmul.mubr.f32.gmra.mxu0 %v501
        %v1054 = vpop.f32.mrf.mxu0
        %v1055 = vadd.f32 %v698, %v1054
        %v1056 = vpop.f32.mrf.mxu0
        %v1057 = vadd.f32 %v702, %v1056
        %1058 = vmatprep.mubr.f32.mxu0 %v504
        %1059 = vmatmul.mubr.f32.gmra.mxu0 %v503
        %v1060 = vpop.f32.mrf.mxu0
        %v1061 = vadd.f32 %v698, %v1060
        %v1062 = vpop.f32.mrf.mxu0
        %v1063 = vadd.f32 %v702, %v1062
        %1064 = vmatprep.mubr.f32.mxu0 %v506
        %1065 = vmatmul.mubr.f32.gmra.mxu0 %v505
        %v1066 = vpop.f32.mrf.mxu0
        %v1067 = vadd.f32 %v698, %v1066
        %v1068 = vpop.f32.mrf.mxu0
        %v1069 = vadd.f32 %v702, %v1068
        %1070 = vmatprep.mubr.f32.mxu0 %v508
        %1071 = vmatmul.mubr.f32.gmra.mxu0 %v507
        %v1072 = vpop.f32.mrf.mxu0
        %v1073 = vadd.f32 %v698, %v1072
        %v1074 = vpop.f32.mrf.mxu0
        %v1075 = vadd.f32 %v702, %v1074
        %1076 = vmatprep.mubr.f32.mxu0 %v510
        %1077 = vmatmul.mubr.f32.gmra.mxu0 %v509
        %v1078 = vpop.f32.mrf.mxu0
        %v1079 = vadd.f32 %v698, %v1078
        %v1080 = vpop.f32.mrf.mxu0
        %v1081 = vadd.f32 %v702, %v1080
        %1082 = vmatprep.mubr.f32.mxu0 %v512
        %1083 = vmatmul.mubr.f32.gmra.mxu0 %v511
        %v1084 = vpop.f32.mrf.mxu0
        %v1085 = vadd.f32 %v698, %v1084
        %v1086 = vpop.f32.mrf.mxu0
        %v1087 = vadd.f32 %v702, %v1086
        %1088 = vmatprep.mubr.f32.mxu0 %v514
        %1089 = vmatmul.mubr.f32.gmra.mxu0 %v513
        %v1090 = vpop.f32.mrf.mxu0
        %v1091 = vadd.f32 %v698, %v1090
        %v1092 = vpop.f32.mrf.mxu0
        %v1093 = vadd.f32 %v702, %v1092
        %1094 = vmatprep.mubr.f32.mxu0 %v516
        %1095 = vmatmul.mubr.f32.gmra.mxu0 %v515
        %v1096 = vpop.f32.mrf.mxu0
        %v1097 = vadd.f32 %v698, %v1096
        %v1098 = vpop.f32.mrf.mxu0
        %v1099 = vadd.f32 %v702, %v1098
        %1100 = vmatprep.mubr.f32.mxu0 %v518
        %1101 = vmatmul.mubr.f32.gmra.mxu0 %v517
        %v1102 = vpop.f32.mrf.mxu0
        %v1103 = vadd.f32 %v698, %v1102
        %v1104 = vpop.f32.mrf.mxu0
        %v1105 = vadd.f32 %v702, %v1104
        %1106 = vmatprep.mubr.f32.mxu0 %v520
        %1107 = vmatmul.mubr.f32.gmra.mxu0 %v519
        %v1108 = vpop.f32.mrf.mxu0
        %v1109 = vadd.f32 %v698, %v1108
        %v1110 = vpop.f32.mrf.mxu0
        %v1111 = vadd.f32 %v702, %v1110
        %1112 = vmatprep.mubr.f32.mxu0 %v522
        %1113 = vmatmul.mubr.f32.gmra.mxu0 %v521
        %v1114 = vpop.f32.mrf.mxu0
        %v1115 = vadd.f32 %v698, %v1114
        %v1116 = vpop.f32.mrf.mxu0
        %v1117 = vadd.f32 %v702, %v1116
        %1118 = vmatprep.mubr.f32.mxu0 %v524
        %1119 = vmatmul.mubr.f32.gmra.mxu0 %v523
        %v1120 = vpop.f32.mrf.mxu0
        %v1121 = vadd.f32 %v698, %v1120
        %v1122 = vpop.f32.mrf.mxu0
        %v1123 = vadd.f32 %v702, %v1122
        %1124 = vmatprep.mubr.f32.mxu0 %v526
        %1125 = vmatmul.mubr.f32.gmra.mxu0 %v525
        %v1126 = vpop.f32.mrf.mxu0
        %v1127 = vadd.f32 %v698, %v1126
        %v1128 = vpop.f32.mrf.mxu0
        %v1129 = vadd.f32 %v702, %v1128
        %1130 = vmatprep.mubr.f32.mxu0 %v528
        %1131 = vmatmul.mubr.f32.gmra.mxu0 %v527
        %v1132 = vpop.f32.mrf.mxu0
        %v1133 = vadd.f32 %v698, %v1132
        %v1134 = vpop.f32.mrf.mxu0
        %v1135 = vadd.f32 %v702, %v1134
        %1136 = vmatprep.mubr.f32.mxu0 %v530
        %1137 = vmatmul.mubr.f32.gmra.mxu0 %v529
        %v1138 = vpop.f32.mrf.mxu0
        %v1139 = vadd.f32 %v698, %v1138
        %v1140 = vpop.f32.mrf.mxu0
        %v1141 = vadd.f32 %v702, %v1140
        %1142 = vmatprep.mubr.f32.mxu0 %v532
        %1143 = vmatmul.mubr.f32.gmra.mxu0 %v531
        %v1144 = vpop.f32.mrf.mxu0
        %v1145 = vadd.f32 %v698, %v1144
        %v1146 = vpop.f32.mrf.mxu0
        %v1147 = vadd.f32 %v702, %v1146
        %1148 = vmatprep.mubr.f32.mxu0 %v534
        %1149 = vmatmul.mubr.f32.gmra.mxu0 %v533
        %v1150 = vpop.f32.mrf.mxu0
        %v1151 = vadd.f32 %v698, %v1150
        %v1152 = vpop.f32.mrf.mxu0
        %v1153 = vadd.f32 %v702, %v1152
        %1154 = vmatprep.mubr.f32.mxu0 %v536
        %1155 = vmatmul.mubr.f32.gmra.mxu0 %v535
        %v1156 = vpop.f32.mrf.mxu0
        %v1157 = vadd.f32 %v698, %v1156
        %v1158 = vpop.f32.mrf.mxu0
        %v1159 = vadd.f32 %v702, %v1158
        %1160 = vmatprep.mubr.f32.mxu0 %v538
        %1161 = vmatmul.mubr.f32.gmra.mxu0 %v537
        %v1162 = vpop.f32.mrf.mxu0
        %v1163 = vadd.f32 %v698, %v1162
        %v1164 = vpop.f32.mrf.mxu0
        %v1165 = vadd.f32 %v702, %v1164
        %1166 = vmatprep.mubr.f32.mxu0 %v540
        %1167 = vmatmul.mubr.f32.gmra.mxu0 %v539
        %v1168 = vpop.f32.mrf.mxu0
        %v1169 = vadd.f32 %v698, %v1168
        %v1170 = vpop.f32.mrf.mxu0
        %v1171 = vadd.f32 %v702, %v1170
        %1172 = vmatprep.mubr.f32.mxu0 %v542
        %1173 = vmatmul.mubr.f32.gmra.mxu0 %v541
        %v1174 = vpop.f32.mrf.mxu0
        %v1175 = vadd.f32 %v698, %v1174
        %v1176 = vpop.f32.mrf.mxu0
        %v1177 = vadd.f32 %v702, %v1176
        %1178 = vmatprep.mubr.f32.mxu0 %v544
        %1179 = vmatmul.mubr.f32.gmra.mxu0 %v543
        %v1180 = vpop.f32.mrf.mxu0
        %v1181 = vadd.f32 %v698, %v1180
        %v1182 = vpop.f32.mrf.mxu0
        %v1183 = vadd.f32 %v702, %v1182
        %1184 = vmatprep.mubr.f32.mxu0 %v546
        %1185 = vmatmul.mubr.f32.gmra.mxu0 %v545
        %v1186 = vpop.f32.mrf.mxu0
        %v1187 = vadd.f32 %v698, %v1186
        %v1188 = vpop.f32.mrf.mxu0
        %v1189 = vadd.f32 %v702, %v1188
        %1190 = vmatprep.mubr.f32.mxu0 %v548
        %1191 = vmatmul.mubr.f32.gmra.mxu0 %v547
        %v1192 = vpop.f32.mrf.mxu0
        %v1193 = vadd.f32 %v698, %v1192
        %v1194 = vpop.f32.mrf.mxu0
        %v1195 = vadd.f32 %v702, %v1194
        %1196 = vmatprep.mubr.f32.mxu0 %v550
        %1197 = vmatmul.mubr.f32.gmra.mxu0 %v549
        %v1198 = vpop.f32.mrf.mxu0
        %v1199 = vadd.f32 %v698, %v1198
        %v1200 = vpop.f32.mrf.mxu0
        %v1201 = vadd.f32 %v702, %v1200
        %1202 = vmatprep.mubr.f32.mxu0 %v552
        %1203 = vmatmul.mubr.f32.gmra.mxu0 %v551
        %v1204 = vpop.f32.mrf.mxu0
        %v1205 = vadd.f32 %v698, %v1204
        %v1206 = vpop.f32.mrf.mxu0
        %v1207 = vadd.f32 %v702, %v1206
        %1208 = vmatprep.mubr.f32.mxu0 %v554
        %1209 = vmatmul.mubr.f32.gmra.mxu0 %v553
        %v1210 = vpop.f32.mrf.mxu0
        %v1211 = vadd.f32 %v698, %v1210
        %v1212 = vpop.f32.mrf.mxu0
        %v1213 = vadd.f32 %v702, %v1212
        %1214 = vmatprep.mubr.f32.mxu0 %v556
        %1215 = vmatmul.mubr.f32.gmra.mxu0 %v555
        %v1216 = vpop.f32.mrf.mxu0
        %v1217 = vadd.f32 %v698, %v1216
        %v1218 = vpop.f32.mrf.mxu0
        %v1219 = vadd.f32 %v702, %v1218
        %1220 = vdwg.mxu0
        %v1221 = vmax.f32 %v774, 0.0
        %v1222 = vmax.f32 %v776, 0.0
        %v1223 = vmax.f32 %v1031, 0.0
        %v1224 = vmax.f32 %v1033, 0.0
        %v1225 = vmax.f32 %v780, 0.0
        %v1226 = vmax.f32 %v782, 0.0
        %v1227 = vmax.f32 %v1037, 0.0
        %v1228 = vmax.f32 %v1039, 0.0
        %v1229 = vmax.f32 %v786, 0.0
        %v1230 = vmax.f32 %v788, 0.0
        %v1231 = vmax.f32 %v1043, 0.0
        %v1232 = vmax.f32 %v1045, 0.0
        %v1233 = vmax.f32 %v792, 0.0
        %v1234 = vmax.f32 %v794, 0.0
        %v1235 = vmax.f32 %v1049, 0.0
        %v1236 = vmax.f32 %v1051, 0.0
        %v1237 = vmax.f32 %v798, 0.0
        %v1238 = vmax.f32 %v800, 0.0
        %v1239 = vmax.f32 %v1055, 0.0
        %v1240 = vmax.f32 %v1057, 0.0
        %v1241 = vmax.f32 %v804, 0.0
        %v1242 = vmax.f32 %v806, 0.0
        %v1243 = vmax.f32 %v1061, 0.0
        %v1244 = vmax.f32 %v1063, 0.0
        %v1245 = vmax.f32 %v810, 0.0
        %v1246 = vmax.f32 %v812, 0.0
        %v1247 = vmax.f32 %v1067, 0.0
        %v1248 = vmax.f32 %v1069, 0.0
        %v1249 = vmax.f32 %v816, 0.0
        %v1250 = vmax.f32 %v818, 0.0
        %v1251 = vmax.f32 %v1073, 0.0
        %v1252 = vmax.f32 %v1075, 0.0
        %v1253 = vmax.f32 %v822, 0.0
        %v1254 = vmax.f32 %v824, 0.0
        %v1255 = vmax.f32 %v1079, 0.0
        %v1256 = vmax.f32 %v1081, 0.0
        %v1257 = vmax.f32 %v828, 0.0
        %v1258 = vmax.f32 %v830, 0.0
        %v1259 = vmax.f32 %v1085, 0.0
        %v1260 = vmax.f32 %v1087, 0.0
        %v1261 = vmax.f32 %v834, 0.0
        %v1262 = vmax.f32 %v836, 0.0
        %v1263 = vmax.f32 %v1091, 0.0
        %v1264 = vmax.f32 %v1093, 0.0
        %v1265 = vmax.f32 %v840, 0.0
        %v1266 = vmax.f32 %v842, 0.0
        %v1267 = vmax.f32 %v1097, 0.0
        %v1268 = vmax.f32 %v1099, 0.0
        %v1269 = vmax.f32 %v846, 0.0
        %v1270 = vmax.f32 %v848, 0.0
        %v1271 = vmax.f32 %v1103, 0.0
        %v1272 = vmax.f32 %v1105, 0.0
        %v1273 = vmax.f32 %v852, 0.0
        %v1274 = vmax.f32 %v854, 0.0
        %v1275 = vmax.f32 %v1109, 0.0
        %v1276 = vmax.f32 %v1111, 0.0
        %v1277 = vmax.f32 %v858, 0.0
        %v1278 = vmax.f32 %v860, 0.0
        %v1279 = vmax.f32 %v1115, 0.0
        %v1280 = vmax.f32 %v1117, 0.0
        %v1281 = vmax.f32 %v864, 0.0
        %v1282 = vmax.f32 %v866, 0.0
        %v1283 = vmax.f32 %v1121, 0.0
        %v1284 = vmax.f32 %v1123, 0.0
        %v1285 = vmax.f32 %v870, 0.0
        %v1286 = vmax.f32 %v872, 0.0
        %v1287 = vmax.f32 %v1127, 0.0
        %v1288 = vmax.f32 %v1129, 0.0
        %v1289 = vmax.f32 %v876, 0.0
        %v1290 = vmax.f32 %v878, 0.0
        %v1291 = vmax.f32 %v1133, 0.0
        %v1292 = vmax.f32 %v1135, 0.0
        %v1293 = vmax.f32 %v882, 0.0
        %v1294 = vmax.f32 %v884, 0.0
        %v1295 = vmax.f32 %v1139, 0.0
        %v1296 = vmax.f32 %v1141, 0.0
        %v1297 = vmax.f32 %v888, 0.0
        %v1298 = vmax.f32 %v890, 0.0
        %v1299 = vmax.f32 %v1145, 0.0
        %v1300 = vmax.f32 %v1147, 0.0
        %v1301 = vmax.f32 %v894, 0.0
        %v1302 = vmax.f32 %v896, 0.0
        %v1303 = vmax.f32 %v1151, 0.0
        %v1304 = vmax.f32 %v1153, 0.0
        %v1305 = vmax.f32 %v900, 0.0
        %v1306 = vmax.f32 %v902, 0.0
        %v1307 = vmax.f32 %v1157, 0.0
        %v1308 = vmax.f32 %v1159, 0.0
        %v1309 = vmax.f32 %v906, 0.0
        %v1310 = vmax.f32 %v908, 0.0
        %v1311 = vmax.f32 %v1163, 0.0
        %v1312 = vmax.f32 %v1165, 0.0
        %v1313 = vmax.f32 %v912, 0.0
        %v1314 = vmax.f32 %v914, 0.0
        %v1315 = vmax.f32 %v1169, 0.0
        %v1316 = vmax.f32 %v1171, 0.0
        %v1317 = vmax.f32 %v918, 0.0
        %v1318 = vmax.f32 %v920, 0.0
        %v1319 = vmax.f32 %v1175, 0.0
        %v1320 = vmax.f32 %v1177, 0.0
        %v1321 = vmax.f32 %v924, 0.0
        %v1322 = vmax.f32 %v926, 0.0
        %v1323 = vmax.f32 %v1181, 0.0
        %v1324 = vmax.f32 %v1183, 0.0
        %v1325 = vmax.f32 %v930, 0.0
        %v1326 = vmax.f32 %v932, 0.0
        %v1327 = vmax.f32 %v1187, 0.0
        %v1328 = vmax.f32 %v1189, 0.0
        %v1329 = vmax.f32 %v936, 0.0
        %v1330 = vmax.f32 %v938, 0.0
        %v1331 = vmax.f32 %v1193, 0.0
        %v1332 = vmax.f32 %v1195, 0.0
        %v1333 = vmax.f32 %v942, 0.0
        %v1334 = vmax.f32 %v944, 0.0
        %v1335 = vmax.f32 %v1199, 0.0
        %v1336 = vmax.f32 %v1201, 0.0
        %v1337 = vmax.f32 %v948, 0.0
        %v1338 = vmax.f32 %v950, 0.0
        %v1339 = vmax.f32 %v1205, 0.0
        %v1340 = vmax.f32 %v1207, 0.0
        %v1341 = vmax.f32 %v954, 0.0
        %v1342 = vmax.f32 %v956, 0.0
        %v1343 = vmax.f32 %v1211, 0.0
        %v1344 = vmax.f32 %v1213, 0.0
        %v1345 = vmax.f32 %v960, 0.0
        %v1346 = vmax.f32 %v962, 0.0
        %v1347 = vmax.f32 %v1217, 0.0
        %v1348 = vmax.f32 %v1219, 0.0
        %v1349 = vld [vmem:[#allocation8] sm:$0xff]
        %v1350 = vld [vmem:[#allocation8 + $0x8] sm:$0xff]
        %v1351 = vld [vmem:[#allocation8 + $0x10] sm:$0xff]
        %v1352 = vld [vmem:[#allocation8 + $0x18] sm:$0xff]
        %v1353 = vld [vmem:[#allocation8 + $0x20] sm:$0xff]
        %v1354 = vld [vmem:[#allocation8 + $0x28] sm:$0xff]
        %v1355 = vld [vmem:[#allocation8 + $0x30] sm:$0xff]
        %v1356 = vld [vmem:[#allocation8 + $0x38] sm:$0xff]
        %v1357 = vld [vmem:[#allocation8 + $0x40] sm:$0xff]
        %v1358 = vld [vmem:[#allocation8 + $0x48] sm:$0xff]
        %v1359 = vld [vmem:[#allocation8 + $0x50] sm:$0xff]
        %v1360 = vld [vmem:[#allocation8 + $0x58] sm:$0xff]
        %v1361 = vld [vmem:[#allocation8 + $0x60] sm:$0xff]
        %v1362 = vld [vmem:[#allocation8 + $0x68] sm:$0xff]
        %v1363 = vld [vmem:[#allocation8 + $0x70] sm:$0xff]
        %v1364 = vld [vmem:[#allocation8 + $0x78] sm:$0xff]
        %v1365 = vld [vmem:[#allocation8 + $0x80] sm:$0xff]
        %v1366 = vld [vmem:[#allocation8 + $0x88] sm:$0xff]
        %v1367 = vld [vmem:[#allocation8 + $0x90] sm:$0xff]
        %v1368 = vld [vmem:[#allocation8 + $0x98] sm:$0xff]
        %v1369 = vld [vmem:[#allocation8 + $0xa0] sm:$0xff]
        %v1370 = vld [vmem:[#allocation8 + $0xa8] sm:$0xff]
        %v1371 = vld [vmem:[#allocation8 + $0xb0] sm:$0xff]
        %v1372 = vld [vmem:[#allocation8 + $0xb8] sm:$0xff]
        %v1373 = vld [vmem:[#allocation8 + $0xc0] sm:$0xff]
        %v1374 = vld [vmem:[#allocation8 + $0xc8] sm:$0xff]
        %v1375 = vld [vmem:[#allocation8 + $0xd0] sm:$0xff]
        %v1376 = vld [vmem:[#allocation8 + $0xd8] sm:$0xff]
        %v1377 = vld [vmem:[#allocation8 + $0xe0] sm:$0xff]
        %v1378 = vld [vmem:[#allocation8 + $0xe8] sm:$0xff]
        %v1379 = vld [vmem:[#allocation8 + $0xf0] sm:$0xff]
        %v1380 = vld [vmem:[#allocation8 + $0xf8] sm:$0xff]
        %v1381 = vld [vmem:[#allocation8 + $0x100] sm:$0xff]
        %v1382 = vld [vmem:[#allocation8 + $0x108] sm:$0xff]
        %v1383 = vld [vmem:[#allocation8 + $0x110] sm:$0xff]
        %v1384 = vld [vmem:[#allocation8 + $0x118] sm:$0xff]
        %v1385 = vld [vmem:[#allocation8 + $0x120] sm:$0xff]
        %v1386 = vld [vmem:[#allocation8 + $0x128] sm:$0xff]
        %v1387 = vld [vmem:[#allocation8 + $0x130] sm:$0xff]
        %v1388 = vld [vmem:[#allocation8 + $0x138] sm:$0xff]
        %v1389 = vld [vmem:[#allocation8 + $0x140] sm:$0xff]
        %v1390 = vld [vmem:[#allocation8 + $0x148] sm:$0xff]
        %v1391 = vld [vmem:[#allocation8 + $0x150] sm:$0xff]
        %v1392 = vld [vmem:[#allocation8 + $0x158] sm:$0xff]
        %v1393 = vld [vmem:[#allocation8 + $0x160] sm:$0xff]
        %v1394 = vld [vmem:[#allocation8 + $0x168] sm:$0xff]
        %v1395 = vld [vmem:[#allocation8 + $0x170] sm:$0xff]
        %v1396 = vld [vmem:[#allocation8 + $0x178] sm:$0xff]
        %v1397 = vld [vmem:[#allocation8 + $0x180] sm:$0xff]
        %v1398 = vld [vmem:[#allocation8 + $0x188] sm:$0xff]
        %v1399 = vld [vmem:[#allocation8 + $0x190] sm:$0xff]
        %v1400 = vld [vmem:[#allocation8 + $0x198] sm:$0xff]
        %v1401 = vld [vmem:[#allocation8 + $0x1a0] sm:$0xff]
        %v1402 = vld [vmem:[#allocation8 + $0x1a8] sm:$0xff]
        %v1403 = vld [vmem:[#allocation8 + $0x1b0] sm:$0xff]
        %v1404 = vld [vmem:[#allocation8 + $0x1b8] sm:$0xff]
        %v1405 = vld [vmem:[#allocation8 + $0x1c0] sm:$0xff]
        %v1406 = vld [vmem:[#allocation8 + $0x1c8] sm:$0xff]
        %v1407 = vld [vmem:[#allocation8 + $0x1d0] sm:$0xff]
        %v1408 = vld [vmem:[#allocation8 + $0x1d8] sm:$0xff]
        %v1409 = vld [vmem:[#allocation8 + $0x1e0] sm:$0xff]
        %v1410 = vld [vmem:[#allocation8 + $0x1e8] sm:$0xff]
        %v1411 = vld [vmem:[#allocation8 + $0x1f0] sm:$0xff]
        %v1412 = vld [vmem:[#allocation8 + $0x1f8] sm:$0xff]
        %v1413 = vld [vmem:[%s4] sm:$0x1]
        %v1415 = vlaneseq
        %v1416 = vshrl.u32 %v1415, 7
        %v1417 = vsub.s32 0, %v1416
        %v1418 = vrot.slane %v1413, %v1417
        %1420 = vmatprep.subr.mxu0 0.0
        %1421 = vmatpush1.msra.mxu0 %v1364
        %1422 = vmatprep.subr.mxu0 0.0
        %1423 = vmatpush1.msra.mxu0 %v1363
        %1424 = vmatprep.subr.mxu0 0.0
        %1425 = vmatpush1.msra.mxu0 %v1362
        %1426 = vmatprep.subr.mxu0 0.0
        %1427 = vmatpush1.msra.mxu0 %v1361
        %1428 = vmatprep.subr.mxu0 0.0
        %1429 = vmatpush1.msra.mxu0 %v1360
        %1430 = vmatprep.subr.mxu0 0.0
        %1431 = vmatpush1.msra.mxu0 %v1359
        %1432 = vmatprep.subr.mxu0 0.0
        %1433 = vmatpush1.msra.mxu0 %v1358
        %1434 = vmatprep.subr.mxu0 0.0
        %1435 = vmatpush1.msra.mxu0 %v1357
        %1436 = vmatprep.subr.mxu0 0.0
        %1437 = vmatpush1.msra.mxu0 %v1356
        %1438 = vmatprep.subr.mxu0 0.0
        %1439 = vmatpush1.msra.mxu0 %v1355
        %1440 = vmatprep.subr.mxu0 0.0
        %1441 = vmatpush1.msra.mxu0 %v1354
        %1442 = vmatprep.subr.mxu0 0.0
        %1443 = vmatpush1.msra.mxu0 %v1353
        %1444 = vmatprep.subr.mxu0 0.0
        %1445 = vmatpush1.msra.mxu0 %v1352
        %1446 = vmatprep.subr.mxu0 0.0
        %1447 = vmatpush1.msra.mxu0 %v1351
        %1448 = vmatprep.subr.mxu0 0.0
        %1449 = vmatpush1.msra.mxu0 %v1350
        %1450 = vmatprep.subr.mxu0 0.0
        %1451 = vmatpush1.msra.mxu0 %v1349
        %1452 = vmatprep.subr.mxu0 0.0
        %1453 = vmatpush2.msra.mxu0 %v1380
        %1454 = vmatprep.subr.mxu0 0.0
        %1455 = vmatpush2.msra.mxu0 %v1379
        %1456 = vmatprep.subr.mxu0 0.0
        %1457 = vmatpush2.msra.mxu0 %v1378
        %1458 = vmatprep.subr.mxu0 0.0
        %1459 = vmatpush2.msra.mxu0 %v1377
        %1460 = vmatprep.subr.mxu0 0.0
        %1461 = vmatpush2.msra.mxu0 %v1376
        %1462 = vmatprep.subr.mxu0 0.0
        %1463 = vmatpush2.msra.mxu0 %v1375
        %1464 = vmatprep.subr.mxu0 0.0
        %1465 = vmatpush2.msra.mxu0 %v1374
        %1466 = vmatprep.subr.mxu0 0.0
        %1467 = vmatpush2.msra.mxu0 %v1373
        %1468 = vmatprep.subr.mxu0 0.0
        %1469 = vmatpush2.msra.mxu0 %v1372
        %1470 = vmatprep.subr.mxu0 0.0
        %1471 = vmatpush2.msra.mxu0 %v1371
        %1472 = vmatprep.subr.mxu0 0.0
        %1473 = vmatpush2.msra.mxu0 %v1370
        %1474 = vmatprep.subr.mxu0 0.0
        %1475 = vmatpush2.msra.mxu0 %v1369
        %1476 = vmatprep.subr.mxu0 0.0
        %1477 = vmatpush2.msra.mxu0 %v1368
        %1478 = vmatprep.subr.mxu0 0.0
        %1479 = vmatpush2.msra.mxu0 %v1367
        %1480 = vmatprep.subr.mxu0 0.0
        %1481 = vmatpush2.msra.mxu0 %v1366
        %1482 = vmatprep.subr.mxu0 0.0
        %1483 = vmatpush2.msra.mxu0 %v1365
        %1484 = vmatprep.mubr.f32.mxu0 %v1222
        %1485 = vmatmul.mubr.f32.gmra.mxu0 %v1221
        %v1486 = vpop.f32.mrf.mxu0
        %v1487 = vadd.f32 %v1418, %v1486
        %v1488 = vpop.f32.mrf.mxu0
        %1489 = vmatprep.mubr.f32.mxu0 %v1226
        %1490 = vmatmul.mubr.f32.gmra.mxu0 %v1225
        %v1491 = vpop.f32.mrf.mxu0
        %v1492 = vadd.f32 %v1418, %v1491
        %v1493 = vpop.f32.mrf.mxu0
        %1494 = vmatprep.mubr.f32.mxu0 %v1230
        %1495 = vmatmul.mubr.f32.gmra.mxu0 %v1229
        %v1496 = vpop.f32.mrf.mxu0
        %v1497 = vadd.f32 %v1418, %v1496
        %v1498 = vpop.f32.mrf.mxu0
        %1499 = vmatprep.mubr.f32.mxu0 %v1234
        %1500 = vmatmul.mubr.f32.gmra.mxu0 %v1233
        %v1501 = vpop.f32.mrf.mxu0
        %v1502 = vadd.f32 %v1418, %v1501
        %v1503 = vpop.f32.mrf.mxu0
        %1504 = vmatprep.mubr.f32.mxu0 %v1238
        %1505 = vmatmul.mubr.f32.gmra.mxu0 %v1237
        %v1506 = vpop.f32.mrf.mxu0
        %v1507 = vadd.f32 %v1418, %v1506
        %v1508 = vpop.f32.mrf.mxu0
        %1509 = vmatprep.mubr.f32.mxu0 %v1242
        %1510 = vmatmul.mubr.f32.gmra.mxu0 %v1241
        %v1511 = vpop.f32.mrf.mxu0
        %v1512 = vadd.f32 %v1418, %v1511
        %v1513 = vpop.f32.mrf.mxu0
        %1514 = vmatprep.mubr.f32.mxu0 %v1246
        %1515 = vmatmul.mubr.f32.gmra.mxu0 %v1245
        %v1516 = vpop.f32.mrf.mxu0
        %v1517 = vadd.f32 %v1418, %v1516
        %v1518 = vpop.f32.mrf.mxu0
        %1519 = vmatprep.mubr.f32.mxu0 %v1250
        %1520 = vmatmul.mubr.f32.gmra.mxu0 %v1249
        %v1521 = vpop.f32.mrf.mxu0
        %v1522 = vadd.f32 %v1418, %v1521
        %v1523 = vpop.f32.mrf.mxu0
        %1524 = vmatprep.mubr.f32.mxu0 %v1254
        %1525 = vmatmul.mubr.f32.gmra.mxu0 %v1253
        %v1526 = vpop.f32.mrf.mxu0
        %v1527 = vadd.f32 %v1418, %v1526
        %v1528 = vpop.f32.mrf.mxu0
        %1529 = vmatprep.mubr.f32.mxu0 %v1258
        %1530 = vmatmul.mubr.f32.gmra.mxu0 %v1257
        %v1531 = vpop.f32.mrf.mxu0
        %v1532 = vadd.f32 %v1418, %v1531
        %v1533 = vpop.f32.mrf.mxu0
        %1534 = vmatprep.mubr.f32.mxu0 %v1262
        %1535 = vmatmul.mubr.f32.gmra.mxu0 %v1261
        %v1536 = vpop.f32.mrf.mxu0
        %v1537 = vadd.f32 %v1418, %v1536
        %v1538 = vpop.f32.mrf.mxu0
        %1539 = vmatprep.mubr.f32.mxu0 %v1266
        %1540 = vmatmul.mubr.f32.gmra.mxu0 %v1265
        %v1541 = vpop.f32.mrf.mxu0
        %v1542 = vadd.f32 %v1418, %v1541
        %v1543 = vpop.f32.mrf.mxu0
        %1544 = vmatprep.mubr.f32.mxu0 %v1270
        %1545 = vmatmul.mubr.f32.gmra.mxu0 %v1269
        %v1546 = vpop.f32.mrf.mxu0
        %v1547 = vadd.f32 %v1418, %v1546
        %v1548 = vpop.f32.mrf.mxu0
        %1549 = vmatprep.mubr.f32.mxu0 %v1274
        %1550 = vmatmul.mubr.f32.gmra.mxu0 %v1273
        %v1551 = vpop.f32.mrf.mxu0
        %v1552 = vadd.f32 %v1418, %v1551
        %v1553 = vpop.f32.mrf.mxu0
        %1554 = vmatprep.mubr.f32.mxu0 %v1278
        %1555 = vmatmul.mubr.f32.gmra.mxu0 %v1277
        %v1556 = vpop.f32.mrf.mxu0
        %v1557 = vadd.f32 %v1418, %v1556
        %v1558 = vpop.f32.mrf.mxu0
        %1559 = vmatprep.mubr.f32.mxu0 %v1282
        %1560 = vmatmul.mubr.f32.gmra.mxu0 %v1281
        %v1561 = vpop.f32.mrf.mxu0
        %v1562 = vadd.f32 %v1418, %v1561
        %v1563 = vpop.f32.mrf.mxu0
        %1564 = vmatprep.mubr.f32.mxu0 %v1286
        %1565 = vmatmul.mubr.f32.gmra.mxu0 %v1285
        %v1566 = vpop.f32.mrf.mxu0
        %v1567 = vadd.f32 %v1418, %v1566
        %v1568 = vpop.f32.mrf.mxu0
        %1569 = vmatprep.mubr.f32.mxu0 %v1290
        %1570 = vmatmul.mubr.f32.gmra.mxu0 %v1289
        %v1571 = vpop.f32.mrf.mxu0
        %v1572 = vadd.f32 %v1418, %v1571
        %v1573 = vpop.f32.mrf.mxu0
        %1574 = vmatprep.mubr.f32.mxu0 %v1294
        %1575 = vmatmul.mubr.f32.gmra.mxu0 %v1293
        %v1576 = vpop.f32.mrf.mxu0
        %v1577 = vadd.f32 %v1418, %v1576
        %v1578 = vpop.f32.mrf.mxu0
        %1579 = vmatprep.mubr.f32.mxu0 %v1298
        %1580 = vmatmul.mubr.f32.gmra.mxu0 %v1297
        %v1581 = vpop.f32.mrf.mxu0
        %v1582 = vadd.f32 %v1418, %v1581
        %v1583 = vpop.f32.mrf.mxu0
        %1584 = vmatprep.mubr.f32.mxu0 %v1302
        %1585 = vmatmul.mubr.f32.gmra.mxu0 %v1301
        %v1586 = vpop.f32.mrf.mxu0
        %v1587 = vadd.f32 %v1418, %v1586
        %v1588 = vpop.f32.mrf.mxu0
        %1589 = vmatprep.mubr.f32.mxu0 %v1306
        %1590 = vmatmul.mubr.f32.gmra.mxu0 %v1305
        %v1591 = vpop.f32.mrf.mxu0
        %v1592 = vadd.f32 %v1418, %v1591
        %v1593 = vpop.f32.mrf.mxu0
        %1594 = vmatprep.mubr.f32.mxu0 %v1310
        %1595 = vmatmul.mubr.f32.gmra.mxu0 %v1309
        %v1596 = vpop.f32.mrf.mxu0
        %v1597 = vadd.f32 %v1418, %v1596
        %v1598 = vpop.f32.mrf.mxu0
        %1599 = vmatprep.mubr.f32.mxu0 %v1314
        %1600 = vmatmul.mubr.f32.gmra.mxu0 %v1313
        %v1601 = vpop.f32.mrf.mxu0
        %v1602 = vadd.f32 %v1418, %v1601
        %v1603 = vpop.f32.mrf.mxu0
        %1604 = vmatprep.mubr.f32.mxu0 %v1318
        %1605 = vmatmul.mubr.f32.gmra.mxu0 %v1317
        %v1606 = vpop.f32.mrf.mxu0
        %v1607 = vadd.f32 %v1418, %v1606
        %v1608 = vpop.f32.mrf.mxu0
        %1609 = vmatprep.mubr.f32.mxu0 %v1322
        %1610 = vmatmul.mubr.f32.gmra.mxu0 %v1321
        %v1611 = vpop.f32.mrf.mxu0
        %v1612 = vadd.f32 %v1418, %v1611
        %v1613 = vpop.f32.mrf.mxu0
        %1614 = vmatprep.mubr.f32.mxu0 %v1326
        %1615 = vmatmul.mubr.f32.gmra.mxu0 %v1325
        %v1616 = vpop.f32.mrf.mxu0
        %v1617 = vadd.f32 %v1418, %v1616
        %v1618 = vpop.f32.mrf.mxu0
        %1619 = vmatprep.mubr.f32.mxu0 %v1330
        %1620 = vmatmul.mubr.f32.gmra.mxu0 %v1329
        %v1621 = vpop.f32.mrf.mxu0
        %v1622 = vadd.f32 %v1418, %v1621
        %v1623 = vpop.f32.mrf.mxu0
        %1624 = vmatprep.mubr.f32.mxu0 %v1334
        %1625 = vmatmul.mubr.f32.gmra.mxu0 %v1333
        %v1626 = vpop.f32.mrf.mxu0
        %v1627 = vadd.f32 %v1418, %v1626
        %v1628 = vpop.f32.mrf.mxu0
        %1629 = vmatprep.mubr.f32.mxu0 %v1338
        %1630 = vmatmul.mubr.f32.gmra.mxu0 %v1337
        %v1631 = vpop.f32.mrf.mxu0
        %v1632 = vadd.f32 %v1418, %v1631
        %v1633 = vpop.f32.mrf.mxu0
        %1634 = vmatprep.mubr.f32.mxu0 %v1342
        %1635 = vmatmul.mubr.f32.gmra.mxu0 %v1341
        %v1636 = vpop.f32.mrf.mxu0
        %v1637 = vadd.f32 %v1418, %v1636
        %v1638 = vpop.f32.mrf.mxu0
        %1639 = vmatprep.mubr.f32.mxu0 %v1346
        %1640 = vmatmul.mubr.f32.gmra.mxu0 %v1345
        %v1641 = vpop.f32.mrf.mxu0
        %v1642 = vadd.f32 %v1418, %v1641
        %v1643 = vpop.f32.mrf.mxu0
        %1644 = vdwg.mxu0
        %1645 = vmatprep.subr.mxu0 0.0
        %1646 = vmatpush1.msra.mxu0 %v1396
        %1647 = vmatprep.subr.mxu0 0.0
        %1648 = vmatpush1.msra.mxu0 %v1395
        %1649 = vmatprep.subr.mxu0 0.0
        %1650 = vmatpush1.msra.mxu0 %v1394
        %1651 = vmatprep.subr.mxu0 0.0
        %1652 = vmatpush1.msra.mxu0 %v1393
        %1653 = vmatprep.subr.mxu0 0.0
        %1654 = vmatpush1.msra.mxu0 %v1392
        %1655 = vmatprep.subr.mxu0 0.0
        %1656 = vmatpush1.msra.mxu0 %v1391
        %1657 = vmatprep.subr.mxu0 0.0
        %1658 = vmatpush1.msra.mxu0 %v1390
        %1659 = vmatprep.subr.mxu0 0.0
        %1660 = vmatpush1.msra.mxu0 %v1389
        %1661 = vmatprep.subr.mxu0 0.0
        %1662 = vmatpush1.msra.mxu0 %v1388
        %1663 = vmatprep.subr.mxu0 0.0
        %1664 = vmatpush1.msra.mxu0 %v1387
        %1665 = vmatprep.subr.mxu0 0.0
        %1666 = vmatpush1.msra.mxu0 %v1386
        %1667 = vmatprep.subr.mxu0 0.0
        %1668 = vmatpush1.msra.mxu0 %v1385
        %1669 = vmatprep.subr.mxu0 0.0
        %1670 = vmatpush1.msra.mxu0 %v1384
        %1671 = vmatprep.subr.mxu0 0.0
        %1672 = vmatpush1.msra.mxu0 %v1383
        %1673 = vmatprep.subr.mxu0 0.0
        %1674 = vmatpush1.msra.mxu0 %v1382
        %1675 = vmatprep.subr.mxu0 0.0
        %1676 = vmatpush1.msra.mxu0 %v1381
        %1677 = vmatprep.subr.mxu0 0.0
        %1678 = vmatpush2.msra.mxu0 %v1412
        %1679 = vmatprep.subr.mxu0 0.0
        %1680 = vmatpush2.msra.mxu0 %v1411
        %1681 = vmatprep.subr.mxu0 0.0
        %1682 = vmatpush2.msra.mxu0 %v1410
        %1683 = vmatprep.subr.mxu0 0.0
        %1684 = vmatpush2.msra.mxu0 %v1409
        %1685 = vmatprep.subr.mxu0 0.0
        %1686 = vmatpush2.msra.mxu0 %v1408
        %1687 = vmatprep.subr.mxu0 0.0
        %1688 = vmatpush2.msra.mxu0 %v1407
        %1689 = vmatprep.subr.mxu0 0.0
        %1690 = vmatpush2.msra.mxu0 %v1406
        %1691 = vmatprep.subr.mxu0 0.0
        %1692 = vmatpush2.msra.mxu0 %v1405
        %1693 = vmatprep.subr.mxu0 0.0
        %1694 = vmatpush2.msra.mxu0 %v1404
        %1695 = vmatprep.subr.mxu0 0.0
        %1696 = vmatpush2.msra.mxu0 %v1403
        %1697 = vmatprep.subr.mxu0 0.0
        %1698 = vmatpush2.msra.mxu0 %v1402
        %1699 = vmatprep.subr.mxu0 0.0
        %1700 = vmatpush2.msra.mxu0 %v1401
        %1701 = vmatprep.subr.mxu0 0.0
        %1702 = vmatpush2.msra.mxu0 %v1400
        %1703 = vmatprep.subr.mxu0 0.0
        %1704 = vmatpush2.msra.mxu0 %v1399
        %1705 = vmatprep.subr.mxu0 0.0
        %1706 = vmatpush2.msra.mxu0 %v1398
        %1707 = vmatprep.subr.mxu0 0.0
        %1708 = vmatpush2.msra.mxu0 %v1397
        %1709 = vmatprep.mubr.f32.mxu0 %v1224
        %1710 = vmatmul.mubr.f32.gmra.mxu0 %v1223
        %v1711 = vpop.f32.mrf.mxu0
        %v1712 = vadd.f32 %v1487, %v1711
        %v1713 = vpop.f32.mrf.mxu0
        %1714 = vmatprep.mubr.f32.mxu0 %v1228
        %1715 = vmatmul.mubr.f32.gmra.mxu0 %v1227
        %v1716 = vpop.f32.mrf.mxu0
        %v1717 = vadd.f32 %v1492, %v1716
        %v1718 = vpop.f32.mrf.mxu0
        %1719 = vmatprep.mubr.f32.mxu0 %v1232
        %1720 = vmatmul.mubr.f32.gmra.mxu0 %v1231
        %v1721 = vpop.f32.mrf.mxu0
        %v1722 = vadd.f32 %v1497, %v1721
        %v1723 = vpop.f32.mrf.mxu0
        %1724 = vmatprep.mubr.f32.mxu0 %v1236
        %1725 = vmatmul.mubr.f32.gmra.mxu0 %v1235
        %v1726 = vpop.f32.mrf.mxu0
        %v1727 = vadd.f32 %v1502, %v1726
        %v1728 = vpop.f32.mrf.mxu0
        %1729 = vmatprep.mubr.f32.mxu0 %v1240
        %1730 = vmatmul.mubr.f32.gmra.mxu0 %v1239
        %v1731 = vpop.f32.mrf.mxu0
        %v1732 = vadd.f32 %v1507, %v1731
        %v1733 = vpop.f32.mrf.mxu0
        %1734 = vmatprep.mubr.f32.mxu0 %v1244
        %1735 = vmatmul.mubr.f32.gmra.mxu0 %v1243
        %v1736 = vpop.f32.mrf.mxu0
        %v1737 = vadd.f32 %v1512, %v1736
        %v1738 = vpop.f32.mrf.mxu0
        %1739 = vmatprep.mubr.f32.mxu0 %v1248
        %1740 = vmatmul.mubr.f32.gmra.mxu0 %v1247
        %v1741 = vpop.f32.mrf.mxu0
        %v1742 = vadd.f32 %v1517, %v1741
        %v1743 = vpop.f32.mrf.mxu0
        %1744 = vmatprep.mubr.f32.mxu0 %v1252
        %1745 = vmatmul.mubr.f32.gmra.mxu0 %v1251
        %v1746 = vpop.f32.mrf.mxu0
        %v1747 = vadd.f32 %v1522, %v1746
        %v1748 = vpop.f32.mrf.mxu0
        %1749 = vmatprep.mubr.f32.mxu0 %v1256
        %1750 = vmatmul.mubr.f32.gmra.mxu0 %v1255
        %v1751 = vpop.f32.mrf.mxu0
        %v1752 = vadd.f32 %v1527, %v1751
        %v1753 = vpop.f32.mrf.mxu0
        %1754 = vmatprep.mubr.f32.mxu0 %v1260
        %1755 = vmatmul.mubr.f32.gmra.mxu0 %v1259
        %v1756 = vpop.f32.mrf.mxu0
        %v1757 = vadd.f32 %v1532, %v1756
        %v1758 = vpop.f32.mrf.mxu0
        %1759 = vmatprep.mubr.f32.mxu0 %v1264
        %1760 = vmatmul.mubr.f32.gmra.mxu0 %v1263
        %v1761 = vpop.f32.mrf.mxu0
        %v1762 = vadd.f32 %v1537, %v1761
        %v1763 = vpop.f32.mrf.mxu0
        %1764 = vmatprep.mubr.f32.mxu0 %v1268
        %1765 = vmatmul.mubr.f32.gmra.mxu0 %v1267
        %v1766 = vpop.f32.mrf.mxu0
        %v1767 = vadd.f32 %v1542, %v1766
        %v1768 = vpop.f32.mrf.mxu0
        %1769 = vmatprep.mubr.f32.mxu0 %v1272
        %1770 = vmatmul.mubr.f32.gmra.mxu0 %v1271
        %v1771 = vpop.f32.mrf.mxu0
        %v1772 = vadd.f32 %v1547, %v1771
        %v1773 = vpop.f32.mrf.mxu0
        %1774 = vmatprep.mubr.f32.mxu0 %v1276
        %1775 = vmatmul.mubr.f32.gmra.mxu0 %v1275
        %v1776 = vpop.f32.mrf.mxu0
        %v1777 = vadd.f32 %v1552, %v1776
        %v1778 = vpop.f32.mrf.mxu0
        %1779 = vmatprep.mubr.f32.mxu0 %v1280
        %1780 = vmatmul.mubr.f32.gmra.mxu0 %v1279
        %v1781 = vpop.f32.mrf.mxu0
        %v1782 = vadd.f32 %v1557, %v1781
        %v1783 = vpop.f32.mrf.mxu0
        %1784 = vmatprep.mubr.f32.mxu0 %v1284
        %1785 = vmatmul.mubr.f32.gmra.mxu0 %v1283
        %v1786 = vpop.f32.mrf.mxu0
        %v1787 = vadd.f32 %v1562, %v1786
        %v1788 = vpop.f32.mrf.mxu0
        %1789 = vmatprep.mubr.f32.mxu0 %v1288
        %1790 = vmatmul.mubr.f32.gmra.mxu0 %v1287
        %v1791 = vpop.f32.mrf.mxu0
        %v1792 = vadd.f32 %v1567, %v1791
        %v1793 = vpop.f32.mrf.mxu0
        %1794 = vmatprep.mubr.f32.mxu0 %v1292
        %1795 = vmatmul.mubr.f32.gmra.mxu0 %v1291
        %v1796 = vpop.f32.mrf.mxu0
        %v1797 = vadd.f32 %v1572, %v1796
        %v1798 = vpop.f32.mrf.mxu0
        %1799 = vmatprep.mubr.f32.mxu0 %v1296
        %1800 = vmatmul.mubr.f32.gmra.mxu0 %v1295
        %v1801 = vpop.f32.mrf.mxu0
        %v1802 = vadd.f32 %v1577, %v1801
        %v1803 = vpop.f32.mrf.mxu0
        %1804 = vmatprep.mubr.f32.mxu0 %v1300
        %1805 = vmatmul.mubr.f32.gmra.mxu0 %v1299
        %v1806 = vpop.f32.mrf.mxu0
        %v1807 = vadd.f32 %v1582, %v1806
        %v1808 = vpop.f32.mrf.mxu0
        %1809 = vmatprep.mubr.f32.mxu0 %v1304
        %1810 = vmatmul.mubr.f32.gmra.mxu0 %v1303
        %v1811 = vpop.f32.mrf.mxu0
        %v1812 = vadd.f32 %v1587, %v1811
        %v1813 = vpop.f32.mrf.mxu0
        %1814 = vmatprep.mubr.f32.mxu0 %v1308
        %1815 = vmatmul.mubr.f32.gmra.mxu0 %v1307
        %v1816 = vpop.f32.mrf.mxu0
        %v1817 = vadd.f32 %v1592, %v1816
        %v1818 = vpop.f32.mrf.mxu0
        %1819 = vmatprep.mubr.f32.mxu0 %v1312
        %1820 = vmatmul.mubr.f32.gmra.mxu0 %v1311
        %v1821 = vpop.f32.mrf.mxu0
        %v1822 = vadd.f32 %v1597, %v1821
        %v1823 = vpop.f32.mrf.mxu0
        %1824 = vmatprep.mubr.f32.mxu0 %v1316
        %1825 = vmatmul.mubr.f32.gmra.mxu0 %v1315
        %v1826 = vpop.f32.mrf.mxu0
        %v1827 = vadd.f32 %v1602, %v1826
        %v1828 = vpop.f32.mrf.mxu0
        %1829 = vmatprep.mubr.f32.mxu0 %v1320
        %1830 = vmatmul.mubr.f32.gmra.mxu0 %v1319
        %v1831 = vpop.f32.mrf.mxu0
        %v1832 = vadd.f32 %v1607, %v1831
        %v1833 = vpop.f32.mrf.mxu0
        %1834 = vmatprep.mubr.f32.mxu0 %v1324
        %1835 = vmatmul.mubr.f32.gmra.mxu0 %v1323
        %v1836 = vpop.f32.mrf.mxu0
        %v1837 = vadd.f32 %v1612, %v1836
        %v1838 = vpop.f32.mrf.mxu0
        %1839 = vmatprep.mubr.f32.mxu0 %v1328
        %1840 = vmatmul.mubr.f32.gmra.mxu0 %v1327
        %v1841 = vpop.f32.mrf.mxu0
        %v1842 = vadd.f32 %v1617, %v1841
        %v1843 = vpop.f32.mrf.mxu0
        %1844 = vmatprep.mubr.f32.mxu0 %v1332
        %1845 = vmatmul.mubr.f32.gmra.mxu0 %v1331
        %v1846 = vpop.f32.mrf.mxu0
        %v1847 = vadd.f32 %v1622, %v1846
        %v1848 = vpop.f32.mrf.mxu0
        %1849 = vmatprep.mubr.f32.mxu0 %v1336
        %1850 = vmatmul.mubr.f32.gmra.mxu0 %v1335
        %v1851 = vpop.f32.mrf.mxu0
        %v1852 = vadd.f32 %v1627, %v1851
        %v1853 = vpop.f32.mrf.mxu0
        %1854 = vmatprep.mubr.f32.mxu0 %v1340
        %1855 = vmatmul.mubr.f32.gmra.mxu0 %v1339
        %v1856 = vpop.f32.mrf.mxu0
        %v1857 = vadd.f32 %v1632, %v1856
        %v1858 = vpop.f32.mrf.mxu0
        %1859 = vmatprep.mubr.f32.mxu0 %v1344
        %1860 = vmatmul.mubr.f32.gmra.mxu0 %v1343
        %v1861 = vpop.f32.mrf.mxu0
        %v1862 = vadd.f32 %v1637, %v1861
        %v1863 = vpop.f32.mrf.mxu0
        %1864 = vmatprep.mubr.f32.mxu0 %v1348
        %1865 = vmatmul.mubr.f32.gmra.mxu0 %v1347
        %v1866 = vpop.f32.mrf.mxu0
        %v1867 = vadd.f32 %v1642, %v1866
        %v1868 = vpop.f32.mrf.mxu0
        %1869 = vdwg.mxu0
        %v1870 = vmax.f32 %v1712, 0.0
        %v1871 = vmax.f32 %v1717, 0.0
        %v1872 = vmax.f32 %v1722, 0.0
        %v1873 = vmax.f32 %v1727, 0.0
        %v1874 = vmax.f32 %v1732, 0.0
        %v1875 = vmax.f32 %v1737, 0.0
        %v1876 = vmax.f32 %v1742, 0.0
        %v1877 = vmax.f32 %v1747, 0.0
        %v1878 = vmax.f32 %v1752, 0.0
        %v1879 = vmax.f32 %v1757, 0.0
        %v1880 = vmax.f32 %v1762, 0.0
        %v1881 = vmax.f32 %v1767, 0.0
        %v1882 = vmax.f32 %v1772, 0.0
        %v1883 = vmax.f32 %v1777, 0.0
        %v1884 = vmax.f32 %v1782, 0.0
        %v1885 = vmax.f32 %v1787, 0.0
        %v1886 = vmax.f32 %v1792, 0.0
        %v1887 = vmax.f32 %v1797, 0.0
        %v1888 = vmax.f32 %v1802, 0.0
        %v1889 = vmax.f32 %v1807, 0.0
        %v1890 = vmax.f32 %v1812, 0.0
        %v1891 = vmax.f32 %v1817, 0.0
        %v1892 = vmax.f32 %v1822, 0.0
        %v1893 = vmax.f32 %v1827, 0.0
        %v1894 = vmax.f32 %v1832, 0.0
        %v1895 = vmax.f32 %v1837, 0.0
        %v1896 = vmax.f32 %v1842, 0.0
        %v1897 = vmax.f32 %v1847, 0.0
        %v1898 = vmax.f32 %v1852, 0.0
        %v1899 = vmax.f32 %v1857, 0.0
        %v1900 = vmax.f32 %v1862, 0.0
        %v1901 = vmax.f32 %v1867, 0.0
        %v1902 = vld [vmem:[#allocation10] sm:$0xff]
        %v1903 = vld [vmem:[#allocation10 + $0x8] sm:$0xff]
        %v1904 = vld [vmem:[#allocation10 + $0x10] sm:$0xff]
        %v1905 = vld [vmem:[#allocation10 + $0x18] sm:$0xff]
        %v1906 = vld [vmem:[#allocation10 + $0x20] sm:$0xff]
        %v1907 = vld [vmem:[#allocation10 + $0x28] sm:$0xff]
        %v1908 = vld [vmem:[#allocation10 + $0x30] sm:$0xff]
        %v1909 = vld [vmem:[#allocation10 + $0x38] sm:$0xff]
        %v1910 = vld [vmem:[#allocation10 + $0x40] sm:$0xff]
        %v1911 = vld [vmem:[#allocation10 + $0x48] sm:$0xff]
        %v1912 = vld [vmem:[#allocation10 + $0x50] sm:$0xff]
        %v1913 = vld [vmem:[#allocation10 + $0x58] sm:$0xff]
        %v1914 = vld [vmem:[#allocation10 + $0x60] sm:$0xff]
        %v1915 = vld [vmem:[#allocation10 + $0x68] sm:$0xff]
        %v1916 = vld [vmem:[#allocation10 + $0x70] sm:$0xff]
        %v1917 = vld [vmem:[#allocation10 + $0x78] sm:$0xff]
        %v1918 = vld [vmem:[%s6] sm:$0x1]
        %v1920 = vlaneseq
        %v1921 = vshrl.u32 %v1920, 7
        %v1922 = vsub.s32 0, %v1921
        %v1923 = vrot.slane %v1918, %v1922
        %1925 = vmatprep.subr.mxu0 0.0
        %1926 = vmatpush1.msra.mxu0 %v1917
        %1927 = vmatprep.subr.mxu0 0.0
        %1928 = vmatpush1.msra.mxu0 %v1916
        %1929 = vmatprep.subr.mxu0 0.0
        %1930 = vmatpush1.msra.mxu0 %v1915
        %1931 = vmatprep.subr.mxu0 0.0
        %1932 = vmatpush1.msra.mxu0 %v1914
        %1933 = vmatprep.subr.mxu0 0.0
        %1934 = vmatpush1.msra.mxu0 %v1913
        %1935 = vmatprep.subr.mxu0 0.0
        %1936 = vmatpush1.msra.mxu0 %v1912
        %1937 = vmatprep.subr.mxu0 0.0
        %1938 = vmatpush1.msra.mxu0 %v1911
        %1939 = vmatprep.subr.mxu0 0.0
        %1940 = vmatpush1.msra.mxu0 %v1910
        %1941 = vmatprep.subr.mxu0 0.0
        %1942 = vmatpush1.msra.mxu0 %v1909
        %1943 = vmatprep.subr.mxu0 0.0
        %1944 = vmatpush1.msra.mxu0 %v1908
        %1945 = vmatprep.subr.mxu0 0.0
        %1946 = vmatpush1.msra.mxu0 %v1907
        %1947 = vmatprep.subr.mxu0 0.0
        %1948 = vmatpush1.msra.mxu0 %v1906
        %1949 = vmatprep.subr.mxu0 0.0
        %1950 = vmatpush1.msra.mxu0 %v1905
        %1951 = vmatprep.subr.mxu0 0.0
        %1952 = vmatpush1.msra.mxu0 %v1904
        %1953 = vmatprep.subr.mxu0 0.0
        %1954 = vmatpush1.msra.mxu0 %v1903
        %1955 = vmatprep.subr.mxu0 0.0
        %1956 = vmatpush1.msra.mxu0 %v1902
        %1957 = vmatprep.subr.mxu0 0.0
        %1958 = vmatpush2.msra.mxu0 0.0
        %1959 = vmatprep.subr.mxu0 0.0
        %1960 = vmatpush2.msra.mxu0 0.0
        %1961 = vmatprep.subr.mxu0 0.0
        %1962 = vmatpush2.msra.mxu0 0.0
        %1963 = vmatprep.subr.mxu0 0.0
        %1964 = vmatpush2.msra.mxu0 0.0
        %1965 = vmatprep.subr.mxu0 0.0
        %1966 = vmatpush2.msra.mxu0 0.0
        %1967 = vmatprep.subr.mxu0 0.0
        %1968 = vmatpush2.msra.mxu0 0.0
        %1969 = vmatprep.subr.mxu0 0.0
        %1970 = vmatpush2.msra.mxu0 0.0
        %1971 = vmatprep.subr.mxu0 0.0
        %1972 = vmatpush2.msra.mxu0 0.0
        %1973 = vmatprep.subr.mxu0 0.0
        %1974 = vmatpush2.msra.mxu0 0.0
        %1975 = vmatprep.subr.mxu0 0.0
        %1976 = vmatpush2.msra.mxu0 0.0
        %1977 = vmatprep.subr.mxu0 0.0
        %1978 = vmatpush2.msra.mxu0 0.0
        %1979 = vmatprep.subr.mxu0 0.0
        %1980 = vmatpush2.msra.mxu0 0.0
        %1981 = vmatprep.subr.mxu0 0.0
        %1982 = vmatpush2.msra.mxu0 0.0
        %1983 = vmatprep.subr.mxu0 0.0
        %1984 = vmatpush2.msra.mxu0 0.0
        %1985 = vmatprep.subr.mxu0 0.0
        %1986 = vmatpush2.msra.mxu0 0.0
        %1987 = vmatprep.subr.mxu0 0.0
        %1988 = vmatpush2.msra.mxu0 0.0
        %1989 = vmatprep.mubr.f32.mxu0 0.0
        %1990 = vmatmul.mubr.f32.gmra.mxu0 %v1870
        %v1991 = vpop.f32.mrf.mxu0
        %v1992 = vadd.f32 %v1923, %v1991
        %v1993 = vpop.f32.mrf.mxu0
        %1994 = vmatprep.mubr.f32.mxu0 0.0
        %1995 = vmatmul.mubr.f32.gmra.mxu0 %v1871
        %v1996 = vpop.f32.mrf.mxu0
        %v1997 = vadd.f32 %v1923, %v1996
        %v1998 = vpop.f32.mrf.mxu0
        %1999 = vmatprep.mubr.f32.mxu0 0.0
        %2000 = vmatmul.mubr.f32.gmra.mxu0 %v1872
        %v2001 = vpop.f32.mrf.mxu0
        %v2002 = vadd.f32 %v1923, %v2001
        %v2003 = vpop.f32.mrf.mxu0
        %2004 = vmatprep.mubr.f32.mxu0 0.0
        %2005 = vmatmul.mubr.f32.gmra.mxu0 %v1873
        %v2006 = vpop.f32.mrf.mxu0
        %v2007 = vadd.f32 %v1923, %v2006
        %v2008 = vpop.f32.mrf.mxu0
        %2009 = vmatprep.mubr.f32.mxu0 0.0
        %2010 = vmatmul.mubr.f32.gmra.mxu0 %v1874
        %v2011 = vpop.f32.mrf.mxu0
        %v2012 = vadd.f32 %v1923, %v2011
        %v2013 = vpop.f32.mrf.mxu0
        %2014 = vmatprep.mubr.f32.mxu0 0.0
        %2015 = vmatmul.mubr.f32.gmra.mxu0 %v1875
        %v2016 = vpop.f32.mrf.mxu0
        %v2017 = vadd.f32 %v1923, %v2016
        %v2018 = vpop.f32.mrf.mxu0
        %2019 = vmatprep.mubr.f32.mxu0 0.0
        %2020 = vmatmul.mubr.f32.gmra.mxu0 %v1876
        %v2021 = vpop.f32.mrf.mxu0
        %v2022 = vadd.f32 %v1923, %v2021
        %v2023 = vpop.f32.mrf.mxu0
        %2024 = vmatprep.mubr.f32.mxu0 0.0
        %2025 = vmatmul.mubr.f32.gmra.mxu0 %v1877
        %v2026 = vpop.f32.mrf.mxu0
        %v2027 = vadd.f32 %v1923, %v2026
        %v2028 = vpop.f32.mrf.mxu0
        %2029 = vmatprep.mubr.f32.mxu0 0.0
        %2030 = vmatmul.mubr.f32.gmra.mxu0 %v1878
        %v2031 = vpop.f32.mrf.mxu0
        %v2032 = vadd.f32 %v1923, %v2031
        %v2033 = vpop.f32.mrf.mxu0
        %2034 = vmatprep.mubr.f32.mxu0 0.0
        %2035 = vmatmul.mubr.f32.gmra.mxu0 %v1879
        %v2036 = vpop.f32.mrf.mxu0
        %v2037 = vadd.f32 %v1923, %v2036
        %v2038 = vpop.f32.mrf.mxu0
        %2039 = vmatprep.mubr.f32.mxu0 0.0
        %2040 = vmatmul.mubr.f32.gmra.mxu0 %v1880
        %v2041 = vpop.f32.mrf.mxu0
        %v2042 = vadd.f32 %v1923, %v2041
        %v2043 = vpop.f32.mrf.mxu0
        %2044 = vmatprep.mubr.f32.mxu0 0.0
        %2045 = vmatmul.mubr.f32.gmra.mxu0 %v1881
        %v2046 = vpop.f32.mrf.mxu0
        %v2047 = vadd.f32 %v1923, %v2046
        %v2048 = vpop.f32.mrf.mxu0
        %2049 = vmatprep.mubr.f32.mxu0 0.0
        %2050 = vmatmul.mubr.f32.gmra.mxu0 %v1882
        %v2051 = vpop.f32.mrf.mxu0
        %v2052 = vadd.f32 %v1923, %v2051
        %v2053 = vpop.f32.mrf.mxu0
        %2054 = vmatprep.mubr.f32.mxu0 0.0
        %2055 = vmatmul.mubr.f32.gmra.mxu0 %v1883
        %v2056 = vpop.f32.mrf.mxu0
        %v2057 = vadd.f32 %v1923, %v2056
        %v2058 = vpop.f32.mrf.mxu0
        %2059 = vmatprep.mubr.f32.mxu0 0.0
        %2060 = vmatmul.mubr.f32.gmra.mxu0 %v1884
        %v2061 = vpop.f32.mrf.mxu0
        %v2062 = vadd.f32 %v1923, %v2061
        %v2063 = vpop.f32.mrf.mxu0
        %2064 = vmatprep.mubr.f32.mxu0 0.0
        %2065 = vmatmul.mubr.f32.gmra.mxu0 %v1885
        %v2066 = vpop.f32.mrf.mxu0
        %v2067 = vadd.f32 %v1923, %v2066
        %v2068 = vpop.f32.mrf.mxu0
        %2069 = vmatprep.mubr.f32.mxu0 0.0
        %2070 = vmatmul.mubr.f32.gmra.mxu0 %v1886
        %v2071 = vpop.f32.mrf.mxu0
        %v2072 = vadd.f32 %v1923, %v2071
        %v2073 = vpop.f32.mrf.mxu0
        %2074 = vmatprep.mubr.f32.mxu0 0.0
        %2075 = vmatmul.mubr.f32.gmra.mxu0 %v1887
        %v2076 = vpop.f32.mrf.mxu0
        %v2077 = vadd.f32 %v1923, %v2076
        %v2078 = vpop.f32.mrf.mxu0
        %2079 = vmatprep.mubr.f32.mxu0 0.0
        %2080 = vmatmul.mubr.f32.gmra.mxu0 %v1888
        %v2081 = vpop.f32.mrf.mxu0
        %v2082 = vadd.f32 %v1923, %v2081
        %v2083 = vpop.f32.mrf.mxu0
        %2084 = vmatprep.mubr.f32.mxu0 0.0
        %2085 = vmatmul.mubr.f32.gmra.mxu0 %v1889
        %v2086 = vpop.f32.mrf.mxu0
        %v2087 = vadd.f32 %v1923, %v2086
        %v2088 = vpop.f32.mrf.mxu0
        %2089 = vmatprep.mubr.f32.mxu0 0.0
        %2090 = vmatmul.mubr.f32.gmra.mxu0 %v1890
        %v2091 = vpop.f32.mrf.mxu0
        %v2092 = vadd.f32 %v1923, %v2091
        %v2093 = vpop.f32.mrf.mxu0
        %2094 = vmatprep.mubr.f32.mxu0 0.0
        %2095 = vmatmul.mubr.f32.gmra.mxu0 %v1891
        %v2096 = vpop.f32.mrf.mxu0
        %v2097 = vadd.f32 %v1923, %v2096
        %v2098 = vpop.f32.mrf.mxu0
        %2099 = vmatprep.mubr.f32.mxu0 0.0
        %2100 = vmatmul.mubr.f32.gmra.mxu0 %v1892
        %v2101 = vpop.f32.mrf.mxu0
        %v2102 = vadd.f32 %v1923, %v2101
        %v2103 = vpop.f32.mrf.mxu0
        %2104 = vmatprep.mubr.f32.mxu0 0.0
        %2105 = vmatmul.mubr.f32.gmra.mxu0 %v1893
        %v2106 = vpop.f32.mrf.mxu0
        %v2107 = vadd.f32 %v1923, %v2106
        %v2108 = vpop.f32.mrf.mxu0
        %2109 = vmatprep.mubr.f32.mxu0 0.0
        %2110 = vmatmul.mubr.f32.gmra.mxu0 %v1894
        %v2111 = vpop.f32.mrf.mxu0
        %v2112 = vadd.f32 %v1923, %v2111
        %v2113 = vpop.f32.mrf.mxu0
        %2114 = vmatprep.mubr.f32.mxu0 0.0
        %2115 = vmatmul.mubr.f32.gmra.mxu0 %v1895
        %v2116 = vpop.f32.mrf.mxu0
        %v2117 = vadd.f32 %v1923, %v2116
        %v2118 = vpop.f32.mrf.mxu0
        %2119 = vmatprep.mubr.f32.mxu0 0.0
        %2120 = vmatmul.mubr.f32.gmra.mxu0 %v1896
        %v2121 = vpop.f32.mrf.mxu0
        %v2122 = vadd.f32 %v1923, %v2121
        %v2123 = vpop.f32.mrf.mxu0
        %2124 = vmatprep.mubr.f32.mxu0 0.0
        %2125 = vmatmul.mubr.f32.gmra.mxu0 %v1897
        %v2126 = vpop.f32.mrf.mxu0
        %v2127 = vadd.f32 %v1923, %v2126
        %v2128 = vpop.f32.mrf.mxu0
        %2129 = vmatprep.mubr.f32.mxu0 0.0
        %2130 = vmatmul.mubr.f32.gmra.mxu0 %v1898
        %v2131 = vpop.f32.mrf.mxu0
        %v2132 = vadd.f32 %v1923, %v2131
        %v2133 = vpop.f32.mrf.mxu0
        %2134 = vmatprep.mubr.f32.mxu0 0.0
        %2135 = vmatmul.mubr.f32.gmra.mxu0 %v1899
        %v2136 = vpop.f32.mrf.mxu0
        %v2137 = vadd.f32 %v1923, %v2136
        %v2138 = vpop.f32.mrf.mxu0
        %2139 = vmatprep.mubr.f32.mxu0 0.0
        %2140 = vmatmul.mubr.f32.gmra.mxu0 %v1900
        %v2141 = vpop.f32.mrf.mxu0
        %v2142 = vadd.f32 %v1923, %v2141
        %v2143 = vpop.f32.mrf.mxu0
        %2144 = vmatprep.mubr.f32.mxu0 0.0
        %2145 = vmatmul.mubr.f32.gmra.mxu0 %v1901
        %v2146 = vpop.f32.mrf.mxu0
        %v2147 = vadd.f32 %v1923, %v2146
        %v2148 = vpop.f32.mrf.mxu0
        %2149 = vdwg.mxu0
        %v2150 = vmax.f32 %v1992, 0.0
        %v2151 = vmax.f32 %v1997, 0.0
        %v2152 = vmax.f32 %v2002, 0.0
        %v2153 = vmax.f32 %v2007, 0.0
        %v2154 = vmax.f32 %v2012, 0.0
        %v2155 = vmax.f32 %v2017, 0.0
        %v2156 = vmax.f32 %v2022, 0.0
        %v2157 = vmax.f32 %v2027, 0.0
        %v2158 = vmax.f32 %v2032, 0.0
        %v2159 = vmax.f32 %v2037, 0.0
        %v2160 = vmax.f32 %v2042, 0.0
        %v2161 = vmax.f32 %v2047, 0.0
        %v2162 = vmax.f32 %v2052, 0.0
        %v2163 = vmax.f32 %v2057, 0.0
        %v2164 = vmax.f32 %v2062, 0.0
        %v2165 = vmax.f32 %v2067, 0.0
        %v2166 = vmax.f32 %v2072, 0.0
        %v2167 = vmax.f32 %v2077, 0.0
        %v2168 = vmax.f32 %v2082, 0.0
        %v2169 = vmax.f32 %v2087, 0.0
        %v2170 = vmax.f32 %v2092, 0.0
        %v2171 = vmax.f32 %v2097, 0.0
        %v2172 = vmax.f32 %v2102, 0.0
        %v2173 = vmax.f32 %v2107, 0.0
        %v2174 = vmax.f32 %v2112, 0.0
        %v2175 = vmax.f32 %v2117, 0.0
        %v2176 = vmax.f32 %v2122, 0.0
        %v2177 = vmax.f32 %v2127, 0.0
        %v2178 = vmax.f32 %v2132, 0.0
        %v2179 = vmax.f32 %v2137, 0.0
        %v2180 = vmax.f32 %v2142, 0.0
        %v2181 = vmax.f32 %v2147, 0.0
        %v2182 = vld [vmem:[#allocation11] sm:$0xff]
        %v2183 = vld [vmem:[#allocation11 + $0x8] sm:$0xff]
        %v2184 = vld [vmem:[#allocation11 + $0x10] sm:$0xff]
        %v2185 = vld [vmem:[#allocation11 + $0x18] sm:$0xff]
        %v2186 = vld [vmem:[#allocation11 + $0x20] sm:$0xff]
        %v2187 = vld [vmem:[#allocation11 + $0x28] sm:$0xff]
        %v2188 = vld [vmem:[#allocation11 + $0x30] sm:$0xff]
        %v2189 = vld [vmem:[#allocation11 + $0x38] sm:$0xff]
        %v2190 = vld [vmem:[#allocation11 + $0x40] sm:$0xff]
        %v2191 = vld [vmem:[#allocation11 + $0x48] sm:$0xff]
        %v2192 = vld [vmem:[#allocation11 + $0x50] sm:$0xff]
        %v2193 = vld [vmem:[#allocation11 + $0x58] sm:$0xff]
        %v2194 = vld [vmem:[#allocation11 + $0x60] sm:$0xff]
        %v2195 = vld [vmem:[#allocation11 + $0x68] sm:$0xff]
        %v2196 = vld [vmem:[#allocation11 + $0x70] sm:$0xff]
        %v2197 = vld [vmem:[#allocation11 + $0x78] sm:$0xff]
        %v2198 = vld [vmem:[#allocation11 + $0x80] sm:$0xff]
        %v2199 = vld [vmem:[#allocation11 + $0x88] sm:$0xff]
        %v2200 = vld [vmem:[#allocation11 + $0x90] sm:$0xff]
        %v2201 = vld [vmem:[#allocation11 + $0x98] sm:$0xff]
        %v2202 = vld [vmem:[#allocation11 + $0xa0] sm:$0xff]
        %v2203 = vld [vmem:[#allocation11 + $0xa8] sm:$0xff]
        %v2204 = vld [vmem:[#allocation11 + $0xb0] sm:$0xff]
        %v2205 = vld [vmem:[#allocation11 + $0xb8] sm:$0xff]
        %v2206 = vld [vmem:[#allocation11 + $0xc0] sm:$0xff]
        %v2207 = vld [vmem:[#allocation11 + $0xc8] sm:$0xff]
        %v2208 = vld [vmem:[#allocation11 + $0xd0] sm:$0xff]
        %v2209 = vld [vmem:[#allocation11 + $0xd8] sm:$0xff]
        %v2210 = vld [vmem:[#allocation11 + $0xe0] sm:$0xff]
        %v2211 = vld [vmem:[#allocation11 + $0xe8] sm:$0xff]
        %v2212 = vld [vmem:[#allocation11 + $0xf0] sm:$0xff]
        %v2213 = vld [vmem:[#allocation11 + $0xf8] sm:$0xff]
        %v2214 = vld [vmem:[#allocation11 + $0x100] sm:$0xff]
        %v2215 = vld [vmem:[#allocation11 + $0x108] sm:$0xff]
        %v2216 = vld [vmem:[#allocation11 + $0x110] sm:$0xff]
        %v2217 = vld [vmem:[#allocation11 + $0x118] sm:$0xff]
        %v2218 = vld [vmem:[#allocation11 + $0x120] sm:$0xff]
        %v2219 = vld [vmem:[#allocation11 + $0x128] sm:$0xff]
        %v2220 = vld [vmem:[#allocation11 + $0x130] sm:$0xff]
        %v2221 = vld [vmem:[#allocation11 + $0x138] sm:$0xff]
        %v2222 = vld [vmem:[#allocation11 + $0x140] sm:$0xff]
        %v2223 = vld [vmem:[#allocation11 + $0x148] sm:$0xff]
        %v2224 = vld [vmem:[#allocation11 + $0x150] sm:$0xff]
        %v2225 = vld [vmem:[#allocation11 + $0x158] sm:$0xff]
        %v2226 = vld [vmem:[#allocation11 + $0x160] sm:$0xff]
        %v2227 = vld [vmem:[#allocation11 + $0x168] sm:$0xff]
        %v2228 = vld [vmem:[#allocation11 + $0x170] sm:$0xff]
        %v2229 = vld [vmem:[#allocation11 + $0x178] sm:$0xff]
        %v2230 = vld [vmem:[#allocation11 + $0x180] sm:$0xff]
        %v2231 = vld [vmem:[#allocation11 + $0x188] sm:$0xff]
        %v2232 = vld [vmem:[#allocation11 + $0x190] sm:$0xff]
        %v2233 = vld [vmem:[#allocation11 + $0x198] sm:$0xff]
        %v2234 = vld [vmem:[#allocation11 + $0x1a0] sm:$0xff]
        %v2235 = vld [vmem:[#allocation11 + $0x1a8] sm:$0xff]
        %v2236 = vld [vmem:[#allocation11 + $0x1b0] sm:$0xff]
        %v2237 = vld [vmem:[#allocation11 + $0x1b8] sm:$0xff]
        %v2238 = vld [vmem:[#allocation11 + $0x1c0] sm:$0xff]
        %v2239 = vld [vmem:[#allocation11 + $0x1c8] sm:$0xff]
        %v2240 = vld [vmem:[#allocation11 + $0x1d0] sm:$0xff]
        %v2241 = vld [vmem:[#allocation11 + $0x1d8] sm:$0xff]
        %v2242 = vld [vmem:[#allocation11 + $0x1e0] sm:$0xff]
        %v2243 = vld [vmem:[#allocation11 + $0x1e8] sm:$0xff]
        %v2244 = vld [vmem:[#allocation11 + $0x1f0] sm:$0xff]
        %v2245 = vld [vmem:[#allocation11 + $0x1f8] sm:$0xff]
        %v2246 = vld [vmem:[%s8] sm:$0xf]
        %v2248 = vlaneseq
        %v2249 = vshrl.u32 %v2248, 7
        %v2250 = vsub.s32 0, %v2249
        %v2251 = vrot.slane %v2246, %v2250
        %v2252 = vlaneseq
        %v2253 = vshrl.u32 %v2252, 7
        %v2254 = vsub.s32 1, %v2253
        %v2255 = vrot.slane %v2246, %v2254
        %v2256 = vlaneseq
        %v2257 = vshrl.u32 %v2256, 7
        %v2258 = vsub.s32 2, %v2257
        %v2259 = vrot.slane %v2246, %v2258
        %v2260 = vlaneseq
        %v2261 = vshrl.u32 %v2260, 7
        %v2262 = vsub.s32 3, %v2261
        %v2263 = vrot.slane %v2246, %v2262
        %2268 = vmatprep.subr.mxu0 %v2243
        %2269 = vmatpush1.msra.mxu0 %v2242
        %2270 = vmatprep.subr.mxu0 %v2239
        %2271 = vmatpush1.msra.mxu0 %v2238
        %2272 = vmatprep.subr.mxu0 %v2235
        %2273 = vmatpush1.msra.mxu0 %v2234
        %2274 = vmatprep.subr.mxu0 %v2231
        %2275 = vmatpush1.msra.mxu0 %v2230
        %2276 = vmatprep.subr.mxu0 %v2227
        %2277 = vmatpush1.msra.mxu0 %v2226
        %2278 = vmatprep.subr.mxu0 %v2223
        %2279 = vmatpush1.msra.mxu0 %v2222
        %2280 = vmatprep.subr.mxu0 %v2219
        %2281 = vmatpush1.msra.mxu0 %v2218
        %2282 = vmatprep.subr.mxu0 %v2215
        %2283 = vmatpush1.msra.mxu0 %v2214
        %2284 = vmatprep.subr.mxu0 %v2211
        %2285 = vmatpush1.msra.mxu0 %v2210
        %2286 = vmatprep.subr.mxu0 %v2207
        %2287 = vmatpush1.msra.mxu0 %v2206
        %2288 = vmatprep.subr.mxu0 %v2203
        %2289 = vmatpush1.msra.mxu0 %v2202
        %2290 = vmatprep.subr.mxu0 %v2199
        %2291 = vmatpush1.msra.mxu0 %v2198
        %2292 = vmatprep.subr.mxu0 %v2195
        %2293 = vmatpush1.msra.mxu0 %v2194
        %2294 = vmatprep.subr.mxu0 %v2191
        %2295 = vmatpush1.msra.mxu0 %v2190
        %2296 = vmatprep.subr.mxu0 %v2187
        %2297 = vmatpush1.msra.mxu0 %v2186
        %2298 = vmatprep.subr.mxu0 %v2183
        %2299 = vmatpush1.msra.mxu0 %v2182
        %2300 = vmatprep.subr.mxu0 0.0
        %2301 = vmatpush2.msra.mxu0 0.0
        %2302 = vmatprep.subr.mxu0 0.0
        %2303 = vmatpush2.msra.mxu0 0.0
        %2304 = vmatprep.subr.mxu0 0.0
        %2305 = vmatpush2.msra.mxu0 0.0
        %2306 = vmatprep.subr.mxu0 0.0
        %2307 = vmatpush2.msra.mxu0 0.0
        %2308 = vmatprep.subr.mxu0 0.0
        %2309 = vmatpush2.msra.mxu0 0.0
        %2310 = vmatprep.subr.mxu0 0.0
        %2311 = vmatpush2.msra.mxu0 0.0
        %2312 = vmatprep.subr.mxu0 0.0
        %2313 = vmatpush2.msra.mxu0 0.0
        %2314 = vmatprep.subr.mxu0 0.0
        %2315 = vmatpush2.msra.mxu0 0.0
        %2316 = vmatprep.subr.mxu0 0.0
        %2317 = vmatpush2.msra.mxu0 0.0
        %2318 = vmatprep.subr.mxu0 0.0
        %2319 = vmatpush2.msra.mxu0 0.0
        %2320 = vmatprep.subr.mxu0 0.0
        %2321 = vmatpush2.msra.mxu0 0.0
        %2322 = vmatprep.subr.mxu0 0.0
        %2323 = vmatpush2.msra.mxu0 0.0
        %2324 = vmatprep.subr.mxu0 0.0
        %2325 = vmatpush2.msra.mxu0 0.0
        %2326 = vmatprep.subr.mxu0 0.0
        %2327 = vmatpush2.msra.mxu0 0.0
        %2328 = vmatprep.subr.mxu0 0.0
        %2329 = vmatpush2.msra.mxu0 0.0
        %2330 = vmatprep.subr.mxu0 0.0
        %2331 = vmatpush2.msra.mxu0 0.0
        %2332 = vmatprep.mubr.f32.mxu0 0.0
        %2333 = vmatmul.mubr.f32.gmra.mxu0 %v2150
        %v2334 = vpop.f32.mrf.mxu0
        %v2335 = vadd.f32 %v2251, %v2334
        %v2336 = vpop.f32.mrf.mxu0
        %v2337 = vadd.f32 %v2255, %v2336
        %2338 = vmatprep.mubr.f32.mxu0 0.0
        %2339 = vmatmul.mubr.f32.gmra.mxu0 %v2151
        %v2340 = vpop.f32.mrf.mxu0
        %v2341 = vadd.f32 %v2251, %v2340
        %v2342 = vpop.f32.mrf.mxu0
        %v2343 = vadd.f32 %v2255, %v2342
        %2344 = vmatprep.mubr.f32.mxu0 0.0
        %2345 = vmatmul.mubr.f32.gmra.mxu0 %v2152
        %v2346 = vpop.f32.mrf.mxu0
        %v2347 = vadd.f32 %v2251, %v2346
        %v2348 = vpop.f32.mrf.mxu0
        %v2349 = vadd.f32 %v2255, %v2348
        %2350 = vmatprep.mubr.f32.mxu0 0.0
        %2351 = vmatmul.mubr.f32.gmra.mxu0 %v2153
        %v2352 = vpop.f32.mrf.mxu0
        %v2353 = vadd.f32 %v2251, %v2352
        %v2354 = vpop.f32.mrf.mxu0
        %v2355 = vadd.f32 %v2255, %v2354
        %2356 = vmatprep.mubr.f32.mxu0 0.0
        %2357 = vmatmul.mubr.f32.gmra.mxu0 %v2154
        %v2358 = vpop.f32.mrf.mxu0
        %v2359 = vadd.f32 %v2251, %v2358
        %v2360 = vpop.f32.mrf.mxu0
        %v2361 = vadd.f32 %v2255, %v2360
        %2362 = vmatprep.mubr.f32.mxu0 0.0
        %2363 = vmatmul.mubr.f32.gmra.mxu0 %v2155
        %v2364 = vpop.f32.mrf.mxu0
        %v2365 = vadd.f32 %v2251, %v2364
        %v2366 = vpop.f32.mrf.mxu0
        %v2367 = vadd.f32 %v2255, %v2366
        %2368 = vmatprep.mubr.f32.mxu0 0.0
        %2369 = vmatmul.mubr.f32.gmra.mxu0 %v2156
        %v2370 = vpop.f32.mrf.mxu0
        %v2371 = vadd.f32 %v2251, %v2370
        %v2372 = vpop.f32.mrf.mxu0
        %v2373 = vadd.f32 %v2255, %v2372
        %2374 = vmatprep.mubr.f32.mxu0 0.0
        %2375 = vmatmul.mubr.f32.gmra.mxu0 %v2157
        %v2376 = vpop.f32.mrf.mxu0
        %v2377 = vadd.f32 %v2251, %v2376
        %v2378 = vpop.f32.mrf.mxu0
        %v2379 = vadd.f32 %v2255, %v2378
        %2380 = vmatprep.mubr.f32.mxu0 0.0
        %2381 = vmatmul.mubr.f32.gmra.mxu0 %v2158
        %v2382 = vpop.f32.mrf.mxu0
        %v2383 = vadd.f32 %v2251, %v2382
        %v2384 = vpop.f32.mrf.mxu0
        %v2385 = vadd.f32 %v2255, %v2384
        %2386 = vmatprep.mubr.f32.mxu0 0.0
        %2387 = vmatmul.mubr.f32.gmra.mxu0 %v2159
        %v2388 = vpop.f32.mrf.mxu0
        %v2389 = vadd.f32 %v2251, %v2388
        %v2390 = vpop.f32.mrf.mxu0
        %v2391 = vadd.f32 %v2255, %v2390
        %2392 = vmatprep.mubr.f32.mxu0 0.0
        %2393 = vmatmul.mubr.f32.gmra.mxu0 %v2160
        %v2394 = vpop.f32.mrf.mxu0
        %v2395 = vadd.f32 %v2251, %v2394
        %v2396 = vpop.f32.mrf.mxu0
        %v2397 = vadd.f32 %v2255, %v2396
        %2398 = vmatprep.mubr.f32.mxu0 0.0
        %2399 = vmatmul.mubr.f32.gmra.mxu0 %v2161
        %v2400 = vpop.f32.mrf.mxu0
        %v2401 = vadd.f32 %v2251, %v2400
        %v2402 = vpop.f32.mrf.mxu0
        %v2403 = vadd.f32 %v2255, %v2402
        %2404 = vmatprep.mubr.f32.mxu0 0.0
        %2405 = vmatmul.mubr.f32.gmra.mxu0 %v2162
        %v2406 = vpop.f32.mrf.mxu0
        %v2407 = vadd.f32 %v2251, %v2406
        %v2408 = vpop.f32.mrf.mxu0
        %v2409 = vadd.f32 %v2255, %v2408
        %2410 = vmatprep.mubr.f32.mxu0 0.0
        %2411 = vmatmul.mubr.f32.gmra.mxu0 %v2163
        %v2412 = vpop.f32.mrf.mxu0
        %v2413 = vadd.f32 %v2251, %v2412
        %v2414 = vpop.f32.mrf.mxu0
        %v2415 = vadd.f32 %v2255, %v2414
        %2416 = vmatprep.mubr.f32.mxu0 0.0
        %2417 = vmatmul.mubr.f32.gmra.mxu0 %v2164
        %v2418 = vpop.f32.mrf.mxu0
        %v2419 = vadd.f32 %v2251, %v2418
        %v2420 = vpop.f32.mrf.mxu0
        %v2421 = vadd.f32 %v2255, %v2420
        %2422 = vmatprep.mubr.f32.mxu0 0.0
        %2423 = vmatmul.mubr.f32.gmra.mxu0 %v2165
        %v2424 = vpop.f32.mrf.mxu0
        %v2425 = vadd.f32 %v2251, %v2424
        %v2426 = vpop.f32.mrf.mxu0
        %v2427 = vadd.f32 %v2255, %v2426
        %2428 = vmatprep.mubr.f32.mxu0 0.0
        %2429 = vmatmul.mubr.f32.gmra.mxu0 %v2166
        %v2430 = vpop.f32.mrf.mxu0
        %v2431 = vadd.f32 %v2251, %v2430
        %v2432 = vpop.f32.mrf.mxu0
        %v2433 = vadd.f32 %v2255, %v2432
        %2434 = vmatprep.mubr.f32.mxu0 0.0
        %2435 = vmatmul.mubr.f32.gmra.mxu0 %v2167
        %v2436 = vpop.f32.mrf.mxu0
        %v2437 = vadd.f32 %v2251, %v2436
        %v2438 = vpop.f32.mrf.mxu0
        %v2439 = vadd.f32 %v2255, %v2438
        %2440 = vmatprep.mubr.f32.mxu0 0.0
        %2441 = vmatmul.mubr.f32.gmra.mxu0 %v2168
        %v2442 = vpop.f32.mrf.mxu0
        %v2443 = vadd.f32 %v2251, %v2442
        %v2444 = vpop.f32.mrf.mxu0
        %v2445 = vadd.f32 %v2255, %v2444
        %2446 = vmatprep.mubr.f32.mxu0 0.0
        %2447 = vmatmul.mubr.f32.gmra.mxu0 %v2169
        %v2448 = vpop.f32.mrf.mxu0
        %v2449 = vadd.f32 %v2251, %v2448
        %v2450 = vpop.f32.mrf.mxu0
        %v2451 = vadd.f32 %v2255, %v2450
        %2452 = vmatprep.mubr.f32.mxu0 0.0
        %2453 = vmatmul.mubr.f32.gmra.mxu0 %v2170
        %v2454 = vpop.f32.mrf.mxu0
        %v2455 = vadd.f32 %v2251, %v2454
        %v2456 = vpop.f32.mrf.mxu0
        %v2457 = vadd.f32 %v2255, %v2456
        %2458 = vmatprep.mubr.f32.mxu0 0.0
        %2459 = vmatmul.mubr.f32.gmra.mxu0 %v2171
        %v2460 = vpop.f32.mrf.mxu0
        %v2461 = vadd.f32 %v2251, %v2460
        %v2462 = vpop.f32.mrf.mxu0
        %v2463 = vadd.f32 %v2255, %v2462
        %2464 = vmatprep.mubr.f32.mxu0 0.0
        %2465 = vmatmul.mubr.f32.gmra.mxu0 %v2172
        %v2466 = vpop.f32.mrf.mxu0
        %v2467 = vadd.f32 %v2251, %v2466
        %v2468 = vpop.f32.mrf.mxu0
        %v2469 = vadd.f32 %v2255, %v2468
        %2470 = vmatprep.mubr.f32.mxu0 0.0
        %2471 = vmatmul.mubr.f32.gmra.mxu0 %v2173
        %v2472 = vpop.f32.mrf.mxu0
        %v2473 = vadd.f32 %v2251, %v2472
        %v2474 = vpop.f32.mrf.mxu0
        %v2475 = vadd.f32 %v2255, %v2474
        %2476 = vmatprep.mubr.f32.mxu0 0.0
        %2477 = vmatmul.mubr.f32.gmra.mxu0 %v2174
        %v2478 = vpop.f32.mrf.mxu0
        %v2479 = vadd.f32 %v2251, %v2478
        %v2480 = vpop.f32.mrf.mxu0
        %v2481 = vadd.f32 %v2255, %v2480
        %2482 = vmatprep.mubr.f32.mxu0 0.0
        %2483 = vmatmul.mubr.f32.gmra.mxu0 %v2175
        %v2484 = vpop.f32.mrf.mxu0
        %v2485 = vadd.f32 %v2251, %v2484
        %v2486 = vpop.f32.mrf.mxu0
        %v2487 = vadd.f32 %v2255, %v2486
        %2488 = vmatprep.mubr.f32.mxu0 0.0
        %2489 = vmatmul.mubr.f32.gmra.mxu0 %v2176
        %v2490 = vpop.f32.mrf.mxu0
        %v2491 = vadd.f32 %v2251, %v2490
        %v2492 = vpop.f32.mrf.mxu0
        %v2493 = vadd.f32 %v2255, %v2492
        %2494 = vmatprep.mubr.f32.mxu0 0.0
        %2495 = vmatmul.mubr.f32.gmra.mxu0 %v2177
        %v2496 = vpop.f32.mrf.mxu0
        %v2497 = vadd.f32 %v2251, %v2496
        %v2498 = vpop.f32.mrf.mxu0
        %v2499 = vadd.f32 %v2255, %v2498
        %2500 = vmatprep.mubr.f32.mxu0 0.0
        %2501 = vmatmul.mubr.f32.gmra.mxu0 %v2178
        %v2502 = vpop.f32.mrf.mxu0
        %v2503 = vadd.f32 %v2251, %v2502
        %v2504 = vpop.f32.mrf.mxu0
        %v2505 = vadd.f32 %v2255, %v2504
        %2506 = vmatprep.mubr.f32.mxu0 0.0
        %2507 = vmatmul.mubr.f32.gmra.mxu0 %v2179
        %v2508 = vpop.f32.mrf.mxu0
        %v2509 = vadd.f32 %v2251, %v2508
        %v2510 = vpop.f32.mrf.mxu0
        %v2511 = vadd.f32 %v2255, %v2510
        %2512 = vmatprep.mubr.f32.mxu0 0.0
        %2513 = vmatmul.mubr.f32.gmra.mxu0 %v2180
        %v2514 = vpop.f32.mrf.mxu0
        %v2515 = vadd.f32 %v2251, %v2514
        %v2516 = vpop.f32.mrf.mxu0
        %v2517 = vadd.f32 %v2255, %v2516
        %2518 = vmatprep.mubr.f32.mxu0 0.0
        %2519 = vmatmul.mubr.f32.gmra.mxu0 %v2181
        %v2520 = vpop.f32.mrf.mxu0
        %v2521 = vadd.f32 %v2251, %v2520
        %v2522 = vpop.f32.mrf.mxu0
        %v2523 = vadd.f32 %v2255, %v2522
        %2524 = vdwg.mxu0
        %2525 = vmatprep.subr.mxu0 %v2245
        %2526 = vmatpush1.msra.mxu0 %v2244
        %2527 = vmatprep.subr.mxu0 %v2241
        %2528 = vmatpush1.msra.mxu0 %v2240
        %2529 = vmatprep.subr.mxu0 %v2237
        %2530 = vmatpush1.msra.mxu0 %v2236
        %2531 = vmatprep.subr.mxu0 %v2233
        %2532 = vmatpush1.msra.mxu0 %v2232
        %2533 = vmatprep.subr.mxu0 %v2229
        %2534 = vmatpush1.msra.mxu0 %v2228
        %2535 = vmatprep.subr.mxu0 %v2225
        %2536 = vmatpush1.msra.mxu0 %v2224
        %2537 = vmatprep.subr.mxu0 %v2221
        %2538 = vmatpush1.msra.mxu0 %v2220
        %2539 = vmatprep.subr.mxu0 %v2217
        %2540 = vmatpush1.msra.mxu0 %v2216
        %2541 = vmatprep.subr.mxu0 %v2213
        %2542 = vmatpush1.msra.mxu0 %v2212
        %2543 = vmatprep.subr.mxu0 %v2209
        %2544 = vmatpush1.msra.mxu0 %v2208
        %2545 = vmatprep.subr.mxu0 %v2205
        %2546 = vmatpush1.msra.mxu0 %v2204
        %2547 = vmatprep.subr.mxu0 %v2201
        %2548 = vmatpush1.msra.mxu0 %v2200
        %2549 = vmatprep.subr.mxu0 %v2197
        %2550 = vmatpush1.msra.mxu0 %v2196
        %2551 = vmatprep.subr.mxu0 %v2193
        %2552 = vmatpush1.msra.mxu0 %v2192
        %2553 = vmatprep.subr.mxu0 %v2189
        %2554 = vmatpush1.msra.mxu0 %v2188
        %2555 = vmatprep.subr.mxu0 %v2185
        %2556 = vmatpush1.msra.mxu0 %v2184
        %2557 = vmatprep.subr.mxu0 0.0
        %2558 = vmatpush2.msra.mxu0 0.0
        %2559 = vmatprep.subr.mxu0 0.0
        %2560 = vmatpush2.msra.mxu0 0.0
        %2561 = vmatprep.subr.mxu0 0.0
        %2562 = vmatpush2.msra.mxu0 0.0
        %2563 = vmatprep.subr.mxu0 0.0
        %2564 = vmatpush2.msra.mxu0 0.0
        %2565 = vmatprep.subr.mxu0 0.0
        %2566 = vmatpush2.msra.mxu0 0.0
        %2567 = vmatprep.subr.mxu0 0.0
        %2568 = vmatpush2.msra.mxu0 0.0
        %2569 = vmatprep.subr.mxu0 0.0
        %2570 = vmatpush2.msra.mxu0 0.0
        %2571 = vmatprep.subr.mxu0 0.0
        %2572 = vmatpush2.msra.mxu0 0.0
        %2573 = vmatprep.subr.mxu0 0.0
        %2574 = vmatpush2.msra.mxu0 0.0
        %2575 = vmatprep.subr.mxu0 0.0
        %2576 = vmatpush2.msra.mxu0 0.0
        %2577 = vmatprep.subr.mxu0 0.0
        %2578 = vmatpush2.msra.mxu0 0.0
        %2579 = vmatprep.subr.mxu0 0.0
        %2580 = vmatpush2.msra.mxu0 0.0
        %2581 = vmatprep.subr.mxu0 0.0
        %2582 = vmatpush2.msra.mxu0 0.0
        %2583 = vmatprep.subr.mxu0 0.0
        %2584 = vmatpush2.msra.mxu0 0.0
        %2585 = vmatprep.subr.mxu0 0.0
        %2586 = vmatpush2.msra.mxu0 0.0
        %2587 = vmatprep.subr.mxu0 0.0
        %2588 = vmatpush2.msra.mxu0 0.0
        %2589 = vmatprep.mubr.f32.mxu0 0.0
        %2590 = vmatmul.mubr.f32.gmra.mxu0 %v2150
        %v2591 = vpop.f32.mrf.mxu0
        %v2592 = vadd.f32 %v2259, %v2591
        %v2593 = vpop.f32.mrf.mxu0
        %v2594 = vadd.f32 %v2263, %v2593
        %2595 = vmatprep.mubr.f32.mxu0 0.0
        %2596 = vmatmul.mubr.f32.gmra.mxu0 %v2151
        %v2597 = vpop.f32.mrf.mxu0
        %v2598 = vadd.f32 %v2259, %v2597
        %v2599 = vpop.f32.mrf.mxu0
        %v2600 = vadd.f32 %v2263, %v2599
        %2601 = vmatprep.mubr.f32.mxu0 0.0
        %2602 = vmatmul.mubr.f32.gmra.mxu0 %v2152
        %v2603 = vpop.f32.mrf.mxu0
        %v2604 = vadd.f32 %v2259, %v2603
        %v2605 = vpop.f32.mrf.mxu0
        %v2606 = vadd.f32 %v2263, %v2605
        %2607 = vmatprep.mubr.f32.mxu0 0.0
        %2608 = vmatmul.mubr.f32.gmra.mxu0 %v2153
        %v2609 = vpop.f32.mrf.mxu0
        %v2610 = vadd.f32 %v2259, %v2609
        %v2611 = vpop.f32.mrf.mxu0
        %v2612 = vadd.f32 %v2263, %v2611
        %2613 = vmatprep.mubr.f32.mxu0 0.0
        %2614 = vmatmul.mubr.f32.gmra.mxu0 %v2154
        %v2615 = vpop.f32.mrf.mxu0
        %v2616 = vadd.f32 %v2259, %v2615
        %v2617 = vpop.f32.mrf.mxu0
        %v2618 = vadd.f32 %v2263, %v2617
        %2619 = vmatprep.mubr.f32.mxu0 0.0
        %2620 = vmatmul.mubr.f32.gmra.mxu0 %v2155
        %v2621 = vpop.f32.mrf.mxu0
        %v2622 = vadd.f32 %v2259, %v2621
        %v2623 = vpop.f32.mrf.mxu0
        %v2624 = vadd.f32 %v2263, %v2623
        %2625 = vmatprep.mubr.f32.mxu0 0.0
        %2626 = vmatmul.mubr.f32.gmra.mxu0 %v2156
        %v2627 = vpop.f32.mrf.mxu0
        %v2628 = vadd.f32 %v2259, %v2627
        %v2629 = vpop.f32.mrf.mxu0
        %v2630 = vadd.f32 %v2263, %v2629
        %2631 = vmatprep.mubr.f32.mxu0 0.0
        %2632 = vmatmul.mubr.f32.gmra.mxu0 %v2157
        %v2633 = vpop.f32.mrf.mxu0
        %v2634 = vadd.f32 %v2259, %v2633
        %v2635 = vpop.f32.mrf.mxu0
        %v2636 = vadd.f32 %v2263, %v2635
        %2637 = vmatprep.mubr.f32.mxu0 0.0
        %2638 = vmatmul.mubr.f32.gmra.mxu0 %v2158
        %v2639 = vpop.f32.mrf.mxu0
        %v2640 = vadd.f32 %v2259, %v2639
        %v2641 = vpop.f32.mrf.mxu0
        %v2642 = vadd.f32 %v2263, %v2641
        %2643 = vmatprep.mubr.f32.mxu0 0.0
        %2644 = vmatmul.mubr.f32.gmra.mxu0 %v2159
        %v2645 = vpop.f32.mrf.mxu0
        %v2646 = vadd.f32 %v2259, %v2645
        %v2647 = vpop.f32.mrf.mxu0
        %v2648 = vadd.f32 %v2263, %v2647
        %2649 = vmatprep.mubr.f32.mxu0 0.0
        %2650 = vmatmul.mubr.f32.gmra.mxu0 %v2160
        %v2651 = vpop.f32.mrf.mxu0
        %v2652 = vadd.f32 %v2259, %v2651
        %v2653 = vpop.f32.mrf.mxu0
        %v2654 = vadd.f32 %v2263, %v2653
        %2655 = vmatprep.mubr.f32.mxu0 0.0
        %2656 = vmatmul.mubr.f32.gmra.mxu0 %v2161
        %v2657 = vpop.f32.mrf.mxu0
        %v2658 = vadd.f32 %v2259, %v2657
        %v2659 = vpop.f32.mrf.mxu0
        %v2660 = vadd.f32 %v2263, %v2659
        %2661 = vmatprep.mubr.f32.mxu0 0.0
        %2662 = vmatmul.mubr.f32.gmra.mxu0 %v2162
        %v2663 = vpop.f32.mrf.mxu0
        %v2664 = vadd.f32 %v2259, %v2663
        %v2665 = vpop.f32.mrf.mxu0
        %v2666 = vadd.f32 %v2263, %v2665
        %2667 = vmatprep.mubr.f32.mxu0 0.0
        %2668 = vmatmul.mubr.f32.gmra.mxu0 %v2163
        %v2669 = vpop.f32.mrf.mxu0
        %v2670 = vadd.f32 %v2259, %v2669
        %v2671 = vpop.f32.mrf.mxu0
        %v2672 = vadd.f32 %v2263, %v2671
        %2673 = vmatprep.mubr.f32.mxu0 0.0
        %2674 = vmatmul.mubr.f32.gmra.mxu0 %v2164
        %v2675 = vpop.f32.mrf.mxu0
        %v2676 = vadd.f32 %v2259, %v2675
        %v2677 = vpop.f32.mrf.mxu0
        %v2678 = vadd.f32 %v2263, %v2677
        %2679 = vmatprep.mubr.f32.mxu0 0.0
        %2680 = vmatmul.mubr.f32.gmra.mxu0 %v2165
        %v2681 = vpop.f32.mrf.mxu0
        %v2682 = vadd.f32 %v2259, %v2681
        %v2683 = vpop.f32.mrf.mxu0
        %v2684 = vadd.f32 %v2263, %v2683
        %2685 = vmatprep.mubr.f32.mxu0 0.0
        %2686 = vmatmul.mubr.f32.gmra.mxu0 %v2166
        %v2687 = vpop.f32.mrf.mxu0
        %v2688 = vadd.f32 %v2259, %v2687
        %v2689 = vpop.f32.mrf.mxu0
        %v2690 = vadd.f32 %v2263, %v2689
        %2691 = vmatprep.mubr.f32.mxu0 0.0
        %2692 = vmatmul.mubr.f32.gmra.mxu0 %v2167
        %v2693 = vpop.f32.mrf.mxu0
        %v2694 = vadd.f32 %v2259, %v2693
        %v2695 = vpop.f32.mrf.mxu0
        %v2696 = vadd.f32 %v2263, %v2695
        %2697 = vmatprep.mubr.f32.mxu0 0.0
        %2698 = vmatmul.mubr.f32.gmra.mxu0 %v2168
        %v2699 = vpop.f32.mrf.mxu0
        %v2700 = vadd.f32 %v2259, %v2699
        %v2701 = vpop.f32.mrf.mxu0
        %v2702 = vadd.f32 %v2263, %v2701
        %2703 = vmatprep.mubr.f32.mxu0 0.0
        %2704 = vmatmul.mubr.f32.gmra.mxu0 %v2169
        %v2705 = vpop.f32.mrf.mxu0
        %v2706 = vadd.f32 %v2259, %v2705
        %v2707 = vpop.f32.mrf.mxu0
        %v2708 = vadd.f32 %v2263, %v2707
        %2709 = vmatprep.mubr.f32.mxu0 0.0
        %2710 = vmatmul.mubr.f32.gmra.mxu0 %v2170
        %v2711 = vpop.f32.mrf.mxu0
        %v2712 = vadd.f32 %v2259, %v2711
        %v2713 = vpop.f32.mrf.mxu0
        %v2714 = vadd.f32 %v2263, %v2713
        %2715 = vmatprep.mubr.f32.mxu0 0.0
        %2716 = vmatmul.mubr.f32.gmra.mxu0 %v2171
        %v2717 = vpop.f32.mrf.mxu0
        %v2718 = vadd.f32 %v2259, %v2717
        %v2719 = vpop.f32.mrf.mxu0
        %v2720 = vadd.f32 %v2263, %v2719
        %2721 = vmatprep.mubr.f32.mxu0 0.0
        %2722 = vmatmul.mubr.f32.gmra.mxu0 %v2172
        %v2723 = vpop.f32.mrf.mxu0
        %v2724 = vadd.f32 %v2259, %v2723
        %v2725 = vpop.f32.mrf.mxu0
        %v2726 = vadd.f32 %v2263, %v2725
        %2727 = vmatprep.mubr.f32.mxu0 0.0
        %2728 = vmatmul.mubr.f32.gmra.mxu0 %v2173
        %v2729 = vpop.f32.mrf.mxu0
        %v2730 = vadd.f32 %v2259, %v2729
        %v2731 = vpop.f32.mrf.mxu0
        %v2732 = vadd.f32 %v2263, %v2731
        %2733 = vmatprep.mubr.f32.mxu0 0.0
        %2734 = vmatmul.mubr.f32.gmra.mxu0 %v2174
        %v2735 = vpop.f32.mrf.mxu0
        %v2736 = vadd.f32 %v2259, %v2735
        %v2737 = vpop.f32.mrf.mxu0
        %v2738 = vadd.f32 %v2263, %v2737
        %2739 = vmatprep.mubr.f32.mxu0 0.0
        %2740 = vmatmul.mubr.f32.gmra.mxu0 %v2175
        %v2741 = vpop.f32.mrf.mxu0
        %v2742 = vadd.f32 %v2259, %v2741
        %v2743 = vpop.f32.mrf.mxu0
        %v2744 = vadd.f32 %v2263, %v2743
        %2745 = vmatprep.mubr.f32.mxu0 0.0
        %2746 = vmatmul.mubr.f32.gmra.mxu0 %v2176
        %v2747 = vpop.f32.mrf.mxu0
        %v2748 = vadd.f32 %v2259, %v2747
        %v2749 = vpop.f32.mrf.mxu0
        %v2750 = vadd.f32 %v2263, %v2749
        %2751 = vmatprep.mubr.f32.mxu0 0.0
        %2752 = vmatmul.mubr.f32.gmra.mxu0 %v2177
        %v2753 = vpop.f32.mrf.mxu0
        %v2754 = vadd.f32 %v2259, %v2753
        %v2755 = vpop.f32.mrf.mxu0
        %v2756 = vadd.f32 %v2263, %v2755
        %2757 = vmatprep.mubr.f32.mxu0 0.0
        %2758 = vmatmul.mubr.f32.gmra.mxu0 %v2178
        %v2759 = vpop.f32.mrf.mxu0
        %v2760 = vadd.f32 %v2259, %v2759
        %v2761 = vpop.f32.mrf.mxu0
        %v2762 = vadd.f32 %v2263, %v2761
        %2763 = vmatprep.mubr.f32.mxu0 0.0
        %2764 = vmatmul.mubr.f32.gmra.mxu0 %v2179
        %v2765 = vpop.f32.mrf.mxu0
        %v2766 = vadd.f32 %v2259, %v2765
        %v2767 = vpop.f32.mrf.mxu0
        %v2768 = vadd.f32 %v2263, %v2767
        %2769 = vmatprep.mubr.f32.mxu0 0.0
        %2770 = vmatmul.mubr.f32.gmra.mxu0 %v2180
        %v2771 = vpop.f32.mrf.mxu0
        %v2772 = vadd.f32 %v2259, %v2771
        %v2773 = vpop.f32.mrf.mxu0
        %v2774 = vadd.f32 %v2263, %v2773
        %2775 = vmatprep.mubr.f32.mxu0 0.0
        %2776 = vmatmul.mubr.f32.gmra.mxu0 %v2181
        %v2777 = vpop.f32.mrf.mxu0
        %v2778 = vadd.f32 %v2259, %v2777
        %v2779 = vpop.f32.mrf.mxu0
        %v2780 = vadd.f32 %v2263, %v2779
        %2781 = vdwg.mxu0
        %v2782 = vmax.f32 %v2335, 0.0
        %v2783 = vmax.f32 %v2337, 0.0
        %v2784 = vmax.f32 %v2592, 0.0
        %v2785 = vmax.f32 %v2594, 0.0
        %v2786 = vmax.f32 %v2341, 0.0
        %v2787 = vmax.f32 %v2343, 0.0
        %v2788 = vmax.f32 %v2598, 0.0
        %v2789 = vmax.f32 %v2600, 0.0
        %v2790 = vmax.f32 %v2347, 0.0
        %v2791 = vmax.f32 %v2349, 0.0
        %v2792 = vmax.f32 %v2604, 0.0
        %v2793 = vmax.f32 %v2606, 0.0
        %v2794 = vmax.f32 %v2353, 0.0
        %v2795 = vmax.f32 %v2355, 0.0
        %v2796 = vmax.f32 %v2610, 0.0
        %v2797 = vmax.f32 %v2612, 0.0
        %v2798 = vmax.f32 %v2359, 0.0
        %v2799 = vmax.f32 %v2361, 0.0
        %v2800 = vmax.f32 %v2616, 0.0
        %v2801 = vmax.f32 %v2618, 0.0
        %v2802 = vmax.f32 %v2365, 0.0
        %v2803 = vmax.f32 %v2367, 0.0
        %v2804 = vmax.f32 %v2622, 0.0
        %v2805 = vmax.f32 %v2624, 0.0
        %v2806 = vmax.f32 %v2371, 0.0
        %v2807 = vmax.f32 %v2373, 0.0
        %v2808 = vmax.f32 %v2628, 0.0
        %v2809 = vmax.f32 %v2630, 0.0
        %v2810 = vmax.f32 %v2377, 0.0
        %v2811 = vmax.f32 %v2379, 0.0
        %v2812 = vmax.f32 %v2634, 0.0
        %v2813 = vmax.f32 %v2636, 0.0
        %v2814 = vmax.f32 %v2383, 0.0
        %v2815 = vmax.f32 %v2385, 0.0
        %v2816 = vmax.f32 %v2640, 0.0
        %v2817 = vmax.f32 %v2642, 0.0
        %v2818 = vmax.f32 %v2389, 0.0
        %v2819 = vmax.f32 %v2391, 0.0
        %v2820 = vmax.f32 %v2646, 0.0
        %v2821 = vmax.f32 %v2648, 0.0
        %v2822 = vmax.f32 %v2395, 0.0
        %v2823 = vmax.f32 %v2397, 0.0
        %v2824 = vmax.f32 %v2652, 0.0
        %v2825 = vmax.f32 %v2654, 0.0
        %v2826 = vmax.f32 %v2401, 0.0
        %v2827 = vmax.f32 %v2403, 0.0
        %v2828 = vmax.f32 %v2658, 0.0
        %v2829 = vmax.f32 %v2660, 0.0
        %v2830 = vmax.f32 %v2407, 0.0
        %v2831 = vmax.f32 %v2409, 0.0
        %v2832 = vmax.f32 %v2664, 0.0
        %v2833 = vmax.f32 %v2666, 0.0
        %v2834 = vmax.f32 %v2413, 0.0
        %v2835 = vmax.f32 %v2415, 0.0
        %v2836 = vmax.f32 %v2670, 0.0
        %v2837 = vmax.f32 %v2672, 0.0
        %v2838 = vmax.f32 %v2419, 0.0
        %v2839 = vmax.f32 %v2421, 0.0
        %v2840 = vmax.f32 %v2676, 0.0
        %v2841 = vmax.f32 %v2678, 0.0
        %v2842 = vmax.f32 %v2425, 0.0
        %v2843 = vmax.f32 %v2427, 0.0
        %v2844 = vmax.f32 %v2682, 0.0
        %v2845 = vmax.f32 %v2684, 0.0
        %v2846 = vmax.f32 %v2431, 0.0
        %v2847 = vmax.f32 %v2433, 0.0
        %v2848 = vmax.f32 %v2688, 0.0
        %v2849 = vmax.f32 %v2690, 0.0
        %v2850 = vmax.f32 %v2437, 0.0
        %v2851 = vmax.f32 %v2439, 0.0
        %v2852 = vmax.f32 %v2694, 0.0
        %v2853 = vmax.f32 %v2696, 0.0
        %v2854 = vmax.f32 %v2443, 0.0
        %v2855 = vmax.f32 %v2445, 0.0
        %v2856 = vmax.f32 %v2700, 0.0
        %v2857 = vmax.f32 %v2702, 0.0
        %v2858 = vmax.f32 %v2449, 0.0
        %v2859 = vmax.f32 %v2451, 0.0
        %v2860 = vmax.f32 %v2706, 0.0
        %v2861 = vmax.f32 %v2708, 0.0
        %v2862 = vmax.f32 %v2455, 0.0
        %v2863 = vmax.f32 %v2457, 0.0
        %v2864 = vmax.f32 %v2712, 0.0
        %v2865 = vmax.f32 %v2714, 0.0
        %v2866 = vmax.f32 %v2461, 0.0
        %v2867 = vmax.f32 %v2463, 0.0
        %v2868 = vmax.f32 %v2718, 0.0
        %v2869 = vmax.f32 %v2720, 0.0
        %v2870 = vmax.f32 %v2467, 0.0
        %v2871 = vmax.f32 %v2469, 0.0
        %v2872 = vmax.f32 %v2724, 0.0
        %v2873 = vmax.f32 %v2726, 0.0
        %v2874 = vmax.f32 %v2473, 0.0
        %v2875 = vmax.f32 %v2475, 0.0
        %v2876 = vmax.f32 %v2730, 0.0
        %v2877 = vmax.f32 %v2732, 0.0
        %v2878 = vmax.f32 %v2479, 0.0
        %v2879 = vmax.f32 %v2481, 0.0
        %v2880 = vmax.f32 %v2736, 0.0
        %v2881 = vmax.f32 %v2738, 0.0
        %v2882 = vmax.f32 %v2485, 0.0
        %v2883 = vmax.f32 %v2487, 0.0
        %v2884 = vmax.f32 %v2742, 0.0
        %v2885 = vmax.f32 %v2744, 0.0
        %v2886 = vmax.f32 %v2491, 0.0
        %v2887 = vmax.f32 %v2493, 0.0
        %v2888 = vmax.f32 %v2748, 0.0
        %v2889 = vmax.f32 %v2750, 0.0
        %v2890 = vmax.f32 %v2497, 0.0
        %v2891 = vmax.f32 %v2499, 0.0
        %v2892 = vmax.f32 %v2754, 0.0
        %v2893 = vmax.f32 %v2756, 0.0
        %v2894 = vmax.f32 %v2503, 0.0
        %v2895 = vmax.f32 %v2505, 0.0
        %v2896 = vmax.f32 %v2760, 0.0
        %v2897 = vmax.f32 %v2762, 0.0
        %v2898 = vmax.f32 %v2509, 0.0
        %v2899 = vmax.f32 %v2511, 0.0
        %v2900 = vmax.f32 %v2766, 0.0
        %v2901 = vmax.f32 %v2768, 0.0
        %v2902 = vmax.f32 %v2515, 0.0
        %v2903 = vmax.f32 %v2517, 0.0
        %v2904 = vmax.f32 %v2772, 0.0
        %v2905 = vmax.f32 %v2774, 0.0
        %v2906 = vmax.f32 %v2521, 0.0
        %v2907 = vmax.f32 %v2523, 0.0
        %v2908 = vmax.f32 %v2778, 0.0
        %v2909 = vmax.f32 %v2780, 0.0
        %v2910 = vld [vmem:[#allocation13] sm:$0xff]
        %v2911 = vld [vmem:[#allocation13 + $0x8] sm:$0xff]
        %v2912 = vld [vmem:[#allocation13 + $0x10] sm:$0xff]
        %v2913 = vld [vmem:[#allocation13 + $0x18] sm:$0xff]
        %v2914 = vld [vmem:[#allocation13 + $0x20] sm:$0xff]
        %v2915 = vld [vmem:[#allocation13 + $0x28] sm:$0xff]
        %v2916 = vld [vmem:[#allocation13 + $0x30] sm:$0xff]
        %v2917 = vld [vmem:[#allocation13 + $0x38] sm:$0xff]
        %v2918 = vld [vmem:[#allocation13 + $0x40] sm:$0xff]
        %v2919 = vld [vmem:[#allocation13 + $0x48] sm:$0xff]
        %v2920 = vld [vmem:[#allocation13 + $0x50] sm:$0xff]
        %v2921 = vld [vmem:[#allocation13 + $0x58] sm:$0xff]
        %v2922 = vld [vmem:[#allocation13 + $0x60] sm:$0xff]
        %v2923 = vld [vmem:[#allocation13 + $0x68] sm:$0xff]
        %v2924 = vld [vmem:[#allocation13 + $0x70] sm:$0xff]
        %v2925 = vld [vmem:[#allocation13 + $0x78] sm:$0xff]
        %v2926 = vld [vmem:[#allocation13 + $0x80] sm:$0xff]
        %v2927 = vld [vmem:[#allocation13 + $0x88] sm:$0xff]
        %v2928 = vld [vmem:[#allocation13 + $0x90] sm:$0xff]
        %v2929 = vld [vmem:[#allocation13 + $0x98] sm:$0xff]
        %v2930 = vld [vmem:[#allocation13 + $0xa0] sm:$0xff]
        %v2931 = vld [vmem:[#allocation13 + $0xa8] sm:$0xff]
        %v2932 = vld [vmem:[#allocation13 + $0xb0] sm:$0xff]
        %v2933 = vld [vmem:[#allocation13 + $0xb8] sm:$0xff]
        %v2934 = vld [vmem:[#allocation13 + $0xc0] sm:$0xff]
        %v2935 = vld [vmem:[#allocation13 + $0xc8] sm:$0xff]
        %v2936 = vld [vmem:[#allocation13 + $0xd0] sm:$0xff]
        %v2937 = vld [vmem:[#allocation13 + $0xd8] sm:$0xff]
        %v2938 = vld [vmem:[#allocation13 + $0xe0] sm:$0xff]
        %v2939 = vld [vmem:[#allocation13 + $0xe8] sm:$0xff]
        %v2940 = vld [vmem:[#allocation13 + $0xf0] sm:$0xff]
        %v2941 = vld [vmem:[#allocation13 + $0xf8] sm:$0xff]
        %v2942 = vld [vmem:[#allocation13 + $0x100] sm:$0xff]
        %v2943 = vld [vmem:[#allocation13 + $0x108] sm:$0xff]
        %v2944 = vld [vmem:[#allocation13 + $0x110] sm:$0xff]
        %v2945 = vld [vmem:[#allocation13 + $0x118] sm:$0xff]
        %v2946 = vld [vmem:[#allocation13 + $0x120] sm:$0xff]
        %v2947 = vld [vmem:[#allocation13 + $0x128] sm:$0xff]
        %v2948 = vld [vmem:[#allocation13 + $0x130] sm:$0xff]
        %v2949 = vld [vmem:[#allocation13 + $0x138] sm:$0xff]
        %v2950 = vld [vmem:[#allocation13 + $0x140] sm:$0xff]
        %v2951 = vld [vmem:[#allocation13 + $0x148] sm:$0xff]
        %v2952 = vld [vmem:[#allocation13 + $0x150] sm:$0xff]
        %v2953 = vld [vmem:[#allocation13 + $0x158] sm:$0xff]
        %v2954 = vld [vmem:[#allocation13 + $0x160] sm:$0xff]
        %v2955 = vld [vmem:[#allocation13 + $0x168] sm:$0xff]
        %v2956 = vld [vmem:[#allocation13 + $0x170] sm:$0xff]
        %v2957 = vld [vmem:[#allocation13 + $0x178] sm:$0xff]
        %v2958 = vld [vmem:[#allocation13 + $0x180] sm:$0xff]
        %v2959 = vld [vmem:[#allocation13 + $0x188] sm:$0xff]
        %v2960 = vld [vmem:[#allocation13 + $0x190] sm:$0xff]
        %v2961 = vld [vmem:[#allocation13 + $0x198] sm:$0xff]
        %v2962 = vld [vmem:[#allocation13 + $0x1a0] sm:$0xff]
        %v2963 = vld [vmem:[#allocation13 + $0x1a8] sm:$0xff]
        %v2964 = vld [vmem:[#allocation13 + $0x1b0] sm:$0xff]
        %v2965 = vld [vmem:[#allocation13 + $0x1b8] sm:$0xff]
        %v2966 = vld [vmem:[#allocation13 + $0x1c0] sm:$0xff]
        %v2967 = vld [vmem:[#allocation13 + $0x1c8] sm:$0xff]
        %v2968 = vld [vmem:[#allocation13 + $0x1d0] sm:$0xff]
        %v2969 = vld [vmem:[#allocation13 + $0x1d8] sm:$0xff]
        %v2970 = vld [vmem:[#allocation13 + $0x1e0] sm:$0xff]
        %v2971 = vld [vmem:[#allocation13 + $0x1e8] sm:$0xff]
        %v2972 = vld [vmem:[#allocation13 + $0x1f0] sm:$0xff]
        %v2973 = vld [vmem:[#allocation13 + $0x1f8] sm:$0xff]
        %v2974 = vld [vmem:[#allocation13 + $0x200] sm:$0xff]
        %v2975 = vld [vmem:[#allocation13 + $0x208] sm:$0xff]
        %v2976 = vld [vmem:[#allocation13 + $0x210] sm:$0xff]
        %v2977 = vld [vmem:[#allocation13 + $0x218] sm:$0xff]
        %v2978 = vld [vmem:[#allocation13 + $0x220] sm:$0xff]
        %v2979 = vld [vmem:[#allocation13 + $0x228] sm:$0xff]
        %v2980 = vld [vmem:[#allocation13 + $0x230] sm:$0xff]
        %v2981 = vld [vmem:[#allocation13 + $0x238] sm:$0xff]
        %v2982 = vld [vmem:[#allocation13 + $0x240] sm:$0xff]
        %v2983 = vld [vmem:[#allocation13 + $0x248] sm:$0xff]
        %v2984 = vld [vmem:[#allocation13 + $0x250] sm:$0xff]
        %v2985 = vld [vmem:[#allocation13 + $0x258] sm:$0xff]
        %v2986 = vld [vmem:[#allocation13 + $0x260] sm:$0xff]
        %v2987 = vld [vmem:[#allocation13 + $0x268] sm:$0xff]
        %v2988 = vld [vmem:[#allocation13 + $0x270] sm:$0xff]
        %v2989 = vld [vmem:[#allocation13 + $0x278] sm:$0xff]
        %v2990 = vld [vmem:[#allocation13 + $0x280] sm:$0xff]
        %v2991 = vld [vmem:[#allocation13 + $0x288] sm:$0xff]
        %v2992 = vld [vmem:[#allocation13 + $0x290] sm:$0xff]
        %v2993 = vld [vmem:[#allocation13 + $0x298] sm:$0xff]
        %v2994 = vld [vmem:[#allocation13 + $0x2a0] sm:$0xff]
        %v2995 = vld [vmem:[#allocation13 + $0x2a8] sm:$0xff]
        %v2996 = vld [vmem:[#allocation13 + $0x2b0] sm:$0xff]
        %v2997 = vld [vmem:[#allocation13 + $0x2b8] sm:$0xff]
        %v2998 = vld [vmem:[#allocation13 + $0x2c0] sm:$0xff]
        %v2999 = vld [vmem:[#allocation13 + $0x2c8] sm:$0xff]
        %v3000 = vld [vmem:[#allocation13 + $0x2d0] sm:$0xff]
        %v3001 = vld [vmem:[#allocation13 + $0x2d8] sm:$0xff]
        %v3002 = vld [vmem:[#allocation13 + $0x2e0] sm:$0xff]
        %v3003 = vld [vmem:[#allocation13 + $0x2e8] sm:$0xff]
        %v3004 = vld [vmem:[#allocation13 + $0x2f0] sm:$0xff]
        %v3005 = vld [vmem:[#allocation13 + $0x2f8] sm:$0xff]
        %v3006 = vld [vmem:[#allocation13 + $0x300] sm:$0xff]
        %v3007 = vld [vmem:[#allocation13 + $0x308] sm:$0xff]
        %v3008 = vld [vmem:[#allocation13 + $0x310] sm:$0xff]
        %v3009 = vld [vmem:[#allocation13 + $0x318] sm:$0xff]
        %v3010 = vld [vmem:[#allocation13 + $0x320] sm:$0xff]
        %v3011 = vld [vmem:[#allocation13 + $0x328] sm:$0xff]
        %v3012 = vld [vmem:[#allocation13 + $0x330] sm:$0xff]
        %v3013 = vld [vmem:[#allocation13 + $0x338] sm:$0xff]
        %v3014 = vld [vmem:[#allocation13 + $0x340] sm:$0xff]
        %v3015 = vld [vmem:[#allocation13 + $0x348] sm:$0xff]
        %v3016 = vld [vmem:[#allocation13 + $0x350] sm:$0xff]
        %v3017 = vld [vmem:[#allocation13 + $0x358] sm:$0xff]
        %v3018 = vld [vmem:[#allocation13 + $0x360] sm:$0xff]
        %v3019 = vld [vmem:[#allocation13 + $0x368] sm:$0xff]
        %v3020 = vld [vmem:[#allocation13 + $0x370] sm:$0xff]
        %v3021 = vld [vmem:[#allocation13 + $0x378] sm:$0xff]
        %v3022 = vld [vmem:[#allocation13 + $0x380] sm:$0xff]
        %v3023 = vld [vmem:[#allocation13 + $0x388] sm:$0xff]
        %v3024 = vld [vmem:[#allocation13 + $0x390] sm:$0xff]
        %v3025 = vld [vmem:[#allocation13 + $0x398] sm:$0xff]
        %v3026 = vld [vmem:[#allocation13 + $0x3a0] sm:$0xff]
        %v3027 = vld [vmem:[#allocation13 + $0x3a8] sm:$0xff]
        %v3028 = vld [vmem:[#allocation13 + $0x3b0] sm:$0xff]
        %v3029 = vld [vmem:[#allocation13 + $0x3b8] sm:$0xff]
        %v3030 = vld [vmem:[#allocation13 + $0x3c0] sm:$0xff]
        %v3031 = vld [vmem:[#allocation13 + $0x3c8] sm:$0xff]
        %v3032 = vld [vmem:[#allocation13 + $0x3d0] sm:$0xff]
        %v3033 = vld [vmem:[#allocation13 + $0x3d8] sm:$0xff]
        %v3034 = vld [vmem:[#allocation13 + $0x3e0] sm:$0xff]
        %v3035 = vld [vmem:[#allocation13 + $0x3e8] sm:$0xff]
        %v3036 = vld [vmem:[#allocation13 + $0x3f0] sm:$0xff]
        %v3037 = vld [vmem:[#allocation13 + $0x3f8] sm:$0xff]
        %v3038 = vld [vmem:[%s10] sm:$0x3]
        %v3040 = vlaneseq
        %v3041 = vshrl.u32 %v3040, 7
        %v3042 = vsub.s32 0, %v3041
        %v3043 = vrot.slane %v3038, %v3042
        %v3044 = vlaneseq
        %v3045 = vshrl.u32 %v3044, 7
        %v3046 = vsub.s32 1, %v3045
        %v3047 = vrot.slane %v3038, %v3046
        %3050 = vmatprep.subr.mxu0 %v2941
        %3051 = vmatpush1.msra.mxu0 %v2940
        %3052 = vmatprep.subr.mxu0 %v2939
        %3053 = vmatpush1.msra.mxu0 %v2938
        %3054 = vmatprep.subr.mxu0 %v2937
        %3055 = vmatpush1.msra.mxu0 %v2936
        %3056 = vmatprep.subr.mxu0 %v2935
        %3057 = vmatpush1.msra.mxu0 %v2934
        %3058 = vmatprep.subr.mxu0 %v2933
        %3059 = vmatpush1.msra.mxu0 %v2932
        %3060 = vmatprep.subr.mxu0 %v2931
        %3061 = vmatpush1.msra.mxu0 %v2930
        %3062 = vmatprep.subr.mxu0 %v2929
        %3063 = vmatpush1.msra.mxu0 %v2928
        %3064 = vmatprep.subr.mxu0 %v2927
        %3065 = vmatpush1.msra.mxu0 %v2926
        %3066 = vmatprep.subr.mxu0 %v2925
        %3067 = vmatpush1.msra.mxu0 %v2924
        %3068 = vmatprep.subr.mxu0 %v2923
        %3069 = vmatpush1.msra.mxu0 %v2922
        %3070 = vmatprep.subr.mxu0 %v2921
        %3071 = vmatpush1.msra.mxu0 %v2920
        %3072 = vmatprep.subr.mxu0 %v2919
        %3073 = vmatpush1.msra.mxu0 %v2918
        %3074 = vmatprep.subr.mxu0 %v2917
        %3075 = vmatpush1.msra.mxu0 %v2916
        %3076 = vmatprep.subr.mxu0 %v2915
        %3077 = vmatpush1.msra.mxu0 %v2914
        %3078 = vmatprep.subr.mxu0 %v2913
        %3079 = vmatpush1.msra.mxu0 %v2912
        %3080 = vmatprep.subr.mxu0 %v2911
        %3081 = vmatpush1.msra.mxu0 %v2910
        %3082 = vmatprep.subr.mxu0 %v2973
        %3083 = vmatpush2.msra.mxu0 %v2972
        %3084 = vmatprep.subr.mxu0 %v2971
        %3085 = vmatpush2.msra.mxu0 %v2970
        %3086 = vmatprep.subr.mxu0 %v2969
        %3087 = vmatpush2.msra.mxu0 %v2968
        %3088 = vmatprep.subr.mxu0 %v2967
        %3089 = vmatpush2.msra.mxu0 %v2966
        %3090 = vmatprep.subr.mxu0 %v2965
        %3091 = vmatpush2.msra.mxu0 %v2964
        %3092 = vmatprep.subr.mxu0 %v2963
        %3093 = vmatpush2.msra.mxu0 %v2962
        %3094 = vmatprep.subr.mxu0 %v2961
        %3095 = vmatpush2.msra.mxu0 %v2960
        %3096 = vmatprep.subr.mxu0 %v2959
        %3097 = vmatpush2.msra.mxu0 %v2958
        %3098 = vmatprep.subr.mxu0 %v2957
        %3099 = vmatpush2.msra.mxu0 %v2956
        %3100 = vmatprep.subr.mxu0 %v2955
        %3101 = vmatpush2.msra.mxu0 %v2954
        %3102 = vmatprep.subr.mxu0 %v2953
        %3103 = vmatpush2.msra.mxu0 %v2952
        %3104 = vmatprep.subr.mxu0 %v2951
        %3105 = vmatpush2.msra.mxu0 %v2950
        %3106 = vmatprep.subr.mxu0 %v2949
        %3107 = vmatpush2.msra.mxu0 %v2948
        %3108 = vmatprep.subr.mxu0 %v2947
        %3109 = vmatpush2.msra.mxu0 %v2946
        %3110 = vmatprep.subr.mxu0 %v2945
        %3111 = vmatpush2.msra.mxu0 %v2944
        %3112 = vmatprep.subr.mxu0 %v2943
        %3113 = vmatpush2.msra.mxu0 %v2942
        %3114 = vmatprep.mubr.f32.mxu0 %v2783
        %3115 = vmatmul.mubr.f32.gmra.mxu0 %v2782
        %v3116 = vpop.f32.mrf.mxu0
        %v3117 = vadd.f32 %v3043, %v3116
        %v3118 = vpop.f32.mrf.mxu0
        %v3119 = vadd.f32 %v3047, %v3118
        %3120 = vmatprep.mubr.f32.mxu0 %v2787
        %3121 = vmatmul.mubr.f32.gmra.mxu0 %v2786
        %v3122 = vpop.f32.mrf.mxu0
        %v3123 = vadd.f32 %v3043, %v3122
        %v3124 = vpop.f32.mrf.mxu0
        %v3125 = vadd.f32 %v3047, %v3124
        %3126 = vmatprep.mubr.f32.mxu0 %v2791
        %3127 = vmatmul.mubr.f32.gmra.mxu0 %v2790
        %v3128 = vpop.f32.mrf.mxu0
        %v3129 = vadd.f32 %v3043, %v3128
        %v3130 = vpop.f32.mrf.mxu0
        %v3131 = vadd.f32 %v3047, %v3130
        %3132 = vmatprep.mubr.f32.mxu0 %v2795
        %3133 = vmatmul.mubr.f32.gmra.mxu0 %v2794
        %v3134 = vpop.f32.mrf.mxu0
        %v3135 = vadd.f32 %v3043, %v3134
        %v3136 = vpop.f32.mrf.mxu0
        %v3137 = vadd.f32 %v3047, %v3136
        %3138 = vmatprep.mubr.f32.mxu0 %v2799
        %3139 = vmatmul.mubr.f32.gmra.mxu0 %v2798
        %v3140 = vpop.f32.mrf.mxu0
        %v3141 = vadd.f32 %v3043, %v3140
        %v3142 = vpop.f32.mrf.mxu0
        %v3143 = vadd.f32 %v3047, %v3142
        %3144 = vmatprep.mubr.f32.mxu0 %v2803
        %3145 = vmatmul.mubr.f32.gmra.mxu0 %v2802
        %v3146 = vpop.f32.mrf.mxu0
        %v3147 = vadd.f32 %v3043, %v3146
        %v3148 = vpop.f32.mrf.mxu0
        %v3149 = vadd.f32 %v3047, %v3148
        %3150 = vmatprep.mubr.f32.mxu0 %v2807
        %3151 = vmatmul.mubr.f32.gmra.mxu0 %v2806
        %v3152 = vpop.f32.mrf.mxu0
        %v3153 = vadd.f32 %v3043, %v3152
        %v3154 = vpop.f32.mrf.mxu0
        %v3155 = vadd.f32 %v3047, %v3154
        %3156 = vmatprep.mubr.f32.mxu0 %v2811
        %3157 = vmatmul.mubr.f32.gmra.mxu0 %v2810
        %v3158 = vpop.f32.mrf.mxu0
        %v3159 = vadd.f32 %v3043, %v3158
        %v3160 = vpop.f32.mrf.mxu0
        %v3161 = vadd.f32 %v3047, %v3160
        %3162 = vmatprep.mubr.f32.mxu0 %v2815
        %3163 = vmatmul.mubr.f32.gmra.mxu0 %v2814
        %v3164 = vpop.f32.mrf.mxu0
        %v3165 = vadd.f32 %v3043, %v3164
        %v3166 = vpop.f32.mrf.mxu0
        %v3167 = vadd.f32 %v3047, %v3166
        %3168 = vmatprep.mubr.f32.mxu0 %v2819
        %3169 = vmatmul.mubr.f32.gmra.mxu0 %v2818
        %v3170 = vpop.f32.mrf.mxu0
        %v3171 = vadd.f32 %v3043, %v3170
        %v3172 = vpop.f32.mrf.mxu0
        %v3173 = vadd.f32 %v3047, %v3172
        %3174 = vmatprep.mubr.f32.mxu0 %v2823
        %3175 = vmatmul.mubr.f32.gmra.mxu0 %v2822
        %v3176 = vpop.f32.mrf.mxu0
        %v3177 = vadd.f32 %v3043, %v3176
        %v3178 = vpop.f32.mrf.mxu0
        %v3179 = vadd.f32 %v3047, %v3178
        %3180 = vmatprep.mubr.f32.mxu0 %v2827
        %3181 = vmatmul.mubr.f32.gmra.mxu0 %v2826
        %v3182 = vpop.f32.mrf.mxu0
        %v3183 = vadd.f32 %v3043, %v3182
        %v3184 = vpop.f32.mrf.mxu0
        %v3185 = vadd.f32 %v3047, %v3184
        %3186 = vmatprep.mubr.f32.mxu0 %v2831
        %3187 = vmatmul.mubr.f32.gmra.mxu0 %v2830
        %v3188 = vpop.f32.mrf.mxu0
        %v3189 = vadd.f32 %v3043, %v3188
        %v3190 = vpop.f32.mrf.mxu0
        %v3191 = vadd.f32 %v3047, %v3190
        %3192 = vmatprep.mubr.f32.mxu0 %v2835
        %3193 = vmatmul.mubr.f32.gmra.mxu0 %v2834
        %v3194 = vpop.f32.mrf.mxu0
        %v3195 = vadd.f32 %v3043, %v3194
        %v3196 = vpop.f32.mrf.mxu0
        %v3197 = vadd.f32 %v3047, %v3196
        %3198 = vmatprep.mubr.f32.mxu0 %v2839
        %3199 = vmatmul.mubr.f32.gmra.mxu0 %v2838
        %v3200 = vpop.f32.mrf.mxu0
        %v3201 = vadd.f32 %v3043, %v3200
        %v3202 = vpop.f32.mrf.mxu0
        %v3203 = vadd.f32 %v3047, %v3202
        %3204 = vmatprep.mubr.f32.mxu0 %v2843
        %3205 = vmatmul.mubr.f32.gmra.mxu0 %v2842
        %v3206 = vpop.f32.mrf.mxu0
        %v3207 = vadd.f32 %v3043, %v3206
        %v3208 = vpop.f32.mrf.mxu0
        %v3209 = vadd.f32 %v3047, %v3208
        %3210 = vmatprep.mubr.f32.mxu0 %v2847
        %3211 = vmatmul.mubr.f32.gmra.mxu0 %v2846
        %v3212 = vpop.f32.mrf.mxu0
        %v3213 = vadd.f32 %v3043, %v3212
        %v3214 = vpop.f32.mrf.mxu0
        %v3215 = vadd.f32 %v3047, %v3214
        %3216 = vmatprep.mubr.f32.mxu0 %v2851
        %3217 = vmatmul.mubr.f32.gmra.mxu0 %v2850
        %v3218 = vpop.f32.mrf.mxu0
        %v3219 = vadd.f32 %v3043, %v3218
        %v3220 = vpop.f32.mrf.mxu0
        %v3221 = vadd.f32 %v3047, %v3220
        %3222 = vmatprep.mubr.f32.mxu0 %v2855
        %3223 = vmatmul.mubr.f32.gmra.mxu0 %v2854
        %v3224 = vpop.f32.mrf.mxu0
        %v3225 = vadd.f32 %v3043, %v3224
        %v3226 = vpop.f32.mrf.mxu0
        %v3227 = vadd.f32 %v3047, %v3226
        %3228 = vmatprep.mubr.f32.mxu0 %v2859
        %3229 = vmatmul.mubr.f32.gmra.mxu0 %v2858
        %v3230 = vpop.f32.mrf.mxu0
        %v3231 = vadd.f32 %v3043, %v3230
        %v3232 = vpop.f32.mrf.mxu0
        %v3233 = vadd.f32 %v3047, %v3232
        %3234 = vmatprep.mubr.f32.mxu0 %v2863
        %3235 = vmatmul.mubr.f32.gmra.mxu0 %v2862
        %v3236 = vpop.f32.mrf.mxu0
        %v3237 = vadd.f32 %v3043, %v3236
        %v3238 = vpop.f32.mrf.mxu0
        %v3239 = vadd.f32 %v3047, %v3238
        %3240 = vmatprep.mubr.f32.mxu0 %v2867
        %3241 = vmatmul.mubr.f32.gmra.mxu0 %v2866
        %v3242 = vpop.f32.mrf.mxu0
        %v3243 = vadd.f32 %v3043, %v3242
        %v3244 = vpop.f32.mrf.mxu0
        %v3245 = vadd.f32 %v3047, %v3244
        %3246 = vmatprep.mubr.f32.mxu0 %v2871
        %3247 = vmatmul.mubr.f32.gmra.mxu0 %v2870
        %v3248 = vpop.f32.mrf.mxu0
        %v3249 = vadd.f32 %v3043, %v3248
        %v3250 = vpop.f32.mrf.mxu0
        %v3251 = vadd.f32 %v3047, %v3250
        %3252 = vmatprep.mubr.f32.mxu0 %v2875
        %3253 = vmatmul.mubr.f32.gmra.mxu0 %v2874
        %v3254 = vpop.f32.mrf.mxu0
        %v3255 = vadd.f32 %v3043, %v3254
        %v3256 = vpop.f32.mrf.mxu0
        %v3257 = vadd.f32 %v3047, %v3256
        %3258 = vmatprep.mubr.f32.mxu0 %v2879
        %3259 = vmatmul.mubr.f32.gmra.mxu0 %v2878
        %v3260 = vpop.f32.mrf.mxu0
        %v3261 = vadd.f32 %v3043, %v3260
        %v3262 = vpop.f32.mrf.mxu0
        %v3263 = vadd.f32 %v3047, %v3262
        %3264 = vmatprep.mubr.f32.mxu0 %v2883
        %3265 = vmatmul.mubr.f32.gmra.mxu0 %v2882
        %v3266 = vpop.f32.mrf.mxu0
        %v3267 = vadd.f32 %v3043, %v3266
        %v3268 = vpop.f32.mrf.mxu0
        %v3269 = vadd.f32 %v3047, %v3268
        %3270 = vmatprep.mubr.f32.mxu0 %v2887
        %3271 = vmatmul.mubr.f32.gmra.mxu0 %v2886
        %v3272 = vpop.f32.mrf.mxu0
        %v3273 = vadd.f32 %v3043, %v3272
        %v3274 = vpop.f32.mrf.mxu0
        %v3275 = vadd.f32 %v3047, %v3274
        %3276 = vmatprep.mubr.f32.mxu0 %v2891
        %3277 = vmatmul.mubr.f32.gmra.mxu0 %v2890
        %v3278 = vpop.f32.mrf.mxu0
        %v3279 = vadd.f32 %v3043, %v3278
        %v3280 = vpop.f32.mrf.mxu0
        %v3281 = vadd.f32 %v3047, %v3280
        %3282 = vmatprep.mubr.f32.mxu0 %v2895
        %3283 = vmatmul.mubr.f32.gmra.mxu0 %v2894
        %v3284 = vpop.f32.mrf.mxu0
        %v3285 = vadd.f32 %v3043, %v3284
        %v3286 = vpop.f32.mrf.mxu0
        %v3287 = vadd.f32 %v3047, %v3286
        %3288 = vmatprep.mubr.f32.mxu0 %v2899
        %3289 = vmatmul.mubr.f32.gmra.mxu0 %v2898
        %v3290 = vpop.f32.mrf.mxu0
        %v3291 = vadd.f32 %v3043, %v3290
        %v3292 = vpop.f32.mrf.mxu0
        %v3293 = vadd.f32 %v3047, %v3292
        %3294 = vmatprep.mubr.f32.mxu0 %v2903
        %3295 = vmatmul.mubr.f32.gmra.mxu0 %v2902
        %v3296 = vpop.f32.mrf.mxu0
        %v3297 = vadd.f32 %v3043, %v3296
        %v3298 = vpop.f32.mrf.mxu0
        %v3299 = vadd.f32 %v3047, %v3298
        %3300 = vmatprep.mubr.f32.mxu0 %v2907
        %3301 = vmatmul.mubr.f32.gmra.mxu0 %v2906
        %v3302 = vpop.f32.mrf.mxu0
        %v3303 = vadd.f32 %v3043, %v3302
        %v3304 = vpop.f32.mrf.mxu0
        %v3305 = vadd.f32 %v3047, %v3304
        %3306 = vdwg.mxu0
        %3307 = vmatprep.subr.mxu0 %v3005
        %3308 = vmatpush1.msra.mxu0 %v3004
        %3309 = vmatprep.subr.mxu0 %v3003
        %3310 = vmatpush1.msra.mxu0 %v3002
        %3311 = vmatprep.subr.mxu0 %v3001
        %3312 = vmatpush1.msra.mxu0 %v3000
        %3313 = vmatprep.subr.mxu0 %v2999
        %3314 = vmatpush1.msra.mxu0 %v2998
        %3315 = vmatprep.subr.mxu0 %v2997
        %3316 = vmatpush1.msra.mxu0 %v2996
        %3317 = vmatprep.subr.mxu0 %v2995
        %3318 = vmatpush1.msra.mxu0 %v2994
        %3319 = vmatprep.subr.mxu0 %v2993
        %3320 = vmatpush1.msra.mxu0 %v2992
        %3321 = vmatprep.subr.mxu0 %v2991
        %3322 = vmatpush1.msra.mxu0 %v2990
        %3323 = vmatprep.subr.mxu0 %v2989
        %3324 = vmatpush1.msra.mxu0 %v2988
        %3325 = vmatprep.subr.mxu0 %v2987
        %3326 = vmatpush1.msra.mxu0 %v2986
        %3327 = vmatprep.subr.mxu0 %v2985
        %3328 = vmatpush1.msra.mxu0 %v2984
        %3329 = vmatprep.subr.mxu0 %v2983
        %3330 = vmatpush1.msra.mxu0 %v2982
        %3331 = vmatprep.subr.mxu0 %v2981
        %3332 = vmatpush1.msra.mxu0 %v2980
        %3333 = vmatprep.subr.mxu0 %v2979
        %3334 = vmatpush1.msra.mxu0 %v2978
        %3335 = vmatprep.subr.mxu0 %v2977
        %3336 = vmatpush1.msra.mxu0 %v2976
        %3337 = vmatprep.subr.mxu0 %v2975
        %3338 = vmatpush1.msra.mxu0 %v2974
        %3339 = vmatprep.subr.mxu0 %v3037
        %3340 = vmatpush2.msra.mxu0 %v3036
        %3341 = vmatprep.subr.mxu0 %v3035
        %3342 = vmatpush2.msra.mxu0 %v3034
        %3343 = vmatprep.subr.mxu0 %v3033
        %3344 = vmatpush2.msra.mxu0 %v3032
        %3345 = vmatprep.subr.mxu0 %v3031
        %3346 = vmatpush2.msra.mxu0 %v3030
        %3347 = vmatprep.subr.mxu0 %v3029
        %3348 = vmatpush2.msra.mxu0 %v3028
        %3349 = vmatprep.subr.mxu0 %v3027
        %3350 = vmatpush2.msra.mxu0 %v3026
        %3351 = vmatprep.subr.mxu0 %v3025
        %3352 = vmatpush2.msra.mxu0 %v3024
        %3353 = vmatprep.subr.mxu0 %v3023
        %3354 = vmatpush2.msra.mxu0 %v3022
        %3355 = vmatprep.subr.mxu0 %v3021
        %3356 = vmatpush2.msra.mxu0 %v3020
        %3357 = vmatprep.subr.mxu0 %v3019
        %3358 = vmatpush2.msra.mxu0 %v3018
        %3359 = vmatprep.subr.mxu0 %v3017
        %3360 = vmatpush2.msra.mxu0 %v3016
        %3361 = vmatprep.subr.mxu0 %v3015
        %3362 = vmatpush2.msra.mxu0 %v3014
        %3363 = vmatprep.subr.mxu0 %v3013
        %3364 = vmatpush2.msra.mxu0 %v3012
        %3365 = vmatprep.subr.mxu0 %v3011
        %3366 = vmatpush2.msra.mxu0 %v3010
        %3367 = vmatprep.subr.mxu0 %v3009
        %3368 = vmatpush2.msra.mxu0 %v3008
        %3369 = vmatprep.subr.mxu0 %v3007
        %3370 = vmatpush2.msra.mxu0 %v3006
        %3371 = vmatprep.mubr.f32.mxu0 %v2785
        %3372 = vmatmul.mubr.f32.gmra.mxu0 %v2784
        %v3373 = vpop.f32.mrf.mxu0
        %v3374 = vadd.f32 %v3117, %v3373
        %v3375 = vpop.f32.mrf.mxu0
        %v3376 = vadd.f32 %v3119, %v3375
        %3377 = vmatprep.mubr.f32.mxu0 %v2789
        %3378 = vmatmul.mubr.f32.gmra.mxu0 %v2788
        %v3379 = vpop.f32.mrf.mxu0
        %v3380 = vadd.f32 %v3123, %v3379
        %v3381 = vpop.f32.mrf.mxu0
        %v3382 = vadd.f32 %v3125, %v3381
        %3383 = vmatprep.mubr.f32.mxu0 %v2793
        %3384 = vmatmul.mubr.f32.gmra.mxu0 %v2792
        %v3385 = vpop.f32.mrf.mxu0
        %v3386 = vadd.f32 %v3129, %v3385
        %v3387 = vpop.f32.mrf.mxu0
        %v3388 = vadd.f32 %v3131, %v3387
        %3389 = vmatprep.mubr.f32.mxu0 %v2797
        %3390 = vmatmul.mubr.f32.gmra.mxu0 %v2796
        %v3391 = vpop.f32.mrf.mxu0
        %v3392 = vadd.f32 %v3135, %v3391
        %v3393 = vpop.f32.mrf.mxu0
        %v3394 = vadd.f32 %v3137, %v3393
        %3395 = vmatprep.mubr.f32.mxu0 %v2801
        %3396 = vmatmul.mubr.f32.gmra.mxu0 %v2800
        %v3397 = vpop.f32.mrf.mxu0
        %v3398 = vadd.f32 %v3141, %v3397
        %v3399 = vpop.f32.mrf.mxu0
        %v3400 = vadd.f32 %v3143, %v3399
        %3401 = vmatprep.mubr.f32.mxu0 %v2805
        %3402 = vmatmul.mubr.f32.gmra.mxu0 %v2804
        %v3403 = vpop.f32.mrf.mxu0
        %v3404 = vadd.f32 %v3147, %v3403
        %v3405 = vpop.f32.mrf.mxu0
        %v3406 = vadd.f32 %v3149, %v3405
        %3407 = vmatprep.mubr.f32.mxu0 %v2809
        %3408 = vmatmul.mubr.f32.gmra.mxu0 %v2808
        %v3409 = vpop.f32.mrf.mxu0
        %v3410 = vadd.f32 %v3153, %v3409
        %v3411 = vpop.f32.mrf.mxu0
        %v3412 = vadd.f32 %v3155, %v3411
        %3413 = vmatprep.mubr.f32.mxu0 %v2813
        %3414 = vmatmul.mubr.f32.gmra.mxu0 %v2812
        %v3415 = vpop.f32.mrf.mxu0
        %v3416 = vadd.f32 %v3159, %v3415
        %v3417 = vpop.f32.mrf.mxu0
        %v3418 = vadd.f32 %v3161, %v3417
        %3419 = vmatprep.mubr.f32.mxu0 %v2817
        %3420 = vmatmul.mubr.f32.gmra.mxu0 %v2816
        %v3421 = vpop.f32.mrf.mxu0
        %v3422 = vadd.f32 %v3165, %v3421
        %v3423 = vpop.f32.mrf.mxu0
        %v3424 = vadd.f32 %v3167, %v3423
        %3425 = vmatprep.mubr.f32.mxu0 %v2821
        %3426 = vmatmul.mubr.f32.gmra.mxu0 %v2820
        %v3427 = vpop.f32.mrf.mxu0
        %v3428 = vadd.f32 %v3171, %v3427
        %v3429 = vpop.f32.mrf.mxu0
        %v3430 = vadd.f32 %v3173, %v3429
        %3431 = vmatprep.mubr.f32.mxu0 %v2825
        %3432 = vmatmul.mubr.f32.gmra.mxu0 %v2824
        %v3433 = vpop.f32.mrf.mxu0
        %v3434 = vadd.f32 %v3177, %v3433
        %v3435 = vpop.f32.mrf.mxu0
        %v3436 = vadd.f32 %v3179, %v3435
        %3437 = vmatprep.mubr.f32.mxu0 %v2829
        %3438 = vmatmul.mubr.f32.gmra.mxu0 %v2828
        %v3439 = vpop.f32.mrf.mxu0
        %v3440 = vadd.f32 %v3183, %v3439
        %v3441 = vpop.f32.mrf.mxu0
        %v3442 = vadd.f32 %v3185, %v3441
        %3443 = vmatprep.mubr.f32.mxu0 %v2833
        %3444 = vmatmul.mubr.f32.gmra.mxu0 %v2832
        %v3445 = vpop.f32.mrf.mxu0
        %v3446 = vadd.f32 %v3189, %v3445
        %v3447 = vpop.f32.mrf.mxu0
        %v3448 = vadd.f32 %v3191, %v3447
        %3449 = vmatprep.mubr.f32.mxu0 %v2837
        %3450 = vmatmul.mubr.f32.gmra.mxu0 %v2836
        %v3451 = vpop.f32.mrf.mxu0
        %v3452 = vadd.f32 %v3195, %v3451
        %v3453 = vpop.f32.mrf.mxu0
        %v3454 = vadd.f32 %v3197, %v3453
        %3455 = vmatprep.mubr.f32.mxu0 %v2841
        %3456 = vmatmul.mubr.f32.gmra.mxu0 %v2840
        %v3457 = vpop.f32.mrf.mxu0
        %v3458 = vadd.f32 %v3201, %v3457
        %v3459 = vpop.f32.mrf.mxu0
        %v3460 = vadd.f32 %v3203, %v3459
        %3461 = vmatprep.mubr.f32.mxu0 %v2845
        %3462 = vmatmul.mubr.f32.gmra.mxu0 %v2844
        %v3463 = vpop.f32.mrf.mxu0
        %v3464 = vadd.f32 %v3207, %v3463
        %v3465 = vpop.f32.mrf.mxu0
        %v3466 = vadd.f32 %v3209, %v3465
        %3467 = vmatprep.mubr.f32.mxu0 %v2849
        %3468 = vmatmul.mubr.f32.gmra.mxu0 %v2848
        %v3469 = vpop.f32.mrf.mxu0
        %v3470 = vadd.f32 %v3213, %v3469
        %v3471 = vpop.f32.mrf.mxu0
        %v3472 = vadd.f32 %v3215, %v3471
        %3473 = vmatprep.mubr.f32.mxu0 %v2853
        %3474 = vmatmul.mubr.f32.gmra.mxu0 %v2852
        %v3475 = vpop.f32.mrf.mxu0
        %v3476 = vadd.f32 %v3219, %v3475
        %v3477 = vpop.f32.mrf.mxu0
        %v3478 = vadd.f32 %v3221, %v3477
        %3479 = vmatprep.mubr.f32.mxu0 %v2857
        %3480 = vmatmul.mubr.f32.gmra.mxu0 %v2856
        %v3481 = vpop.f32.mrf.mxu0
        %v3482 = vadd.f32 %v3225, %v3481
        %v3483 = vpop.f32.mrf.mxu0
        %v3484 = vadd.f32 %v3227, %v3483
        %3485 = vmatprep.mubr.f32.mxu0 %v2861
        %3486 = vmatmul.mubr.f32.gmra.mxu0 %v2860
        %v3487 = vpop.f32.mrf.mxu0
        %v3488 = vadd.f32 %v3231, %v3487
        %v3489 = vpop.f32.mrf.mxu0
        %v3490 = vadd.f32 %v3233, %v3489
        %3491 = vmatprep.mubr.f32.mxu0 %v2865
        %3492 = vmatmul.mubr.f32.gmra.mxu0 %v2864
        %v3493 = vpop.f32.mrf.mxu0
        %v3494 = vadd.f32 %v3237, %v3493
        %v3495 = vpop.f32.mrf.mxu0
        %v3496 = vadd.f32 %v3239, %v3495
        %3497 = vmatprep.mubr.f32.mxu0 %v2869
        %3498 = vmatmul.mubr.f32.gmra.mxu0 %v2868
        %v3499 = vpop.f32.mrf.mxu0
        %v3500 = vadd.f32 %v3243, %v3499
        %v3501 = vpop.f32.mrf.mxu0
        %v3502 = vadd.f32 %v3245, %v3501
        %3503 = vmatprep.mubr.f32.mxu0 %v2873
        %3504 = vmatmul.mubr.f32.gmra.mxu0 %v2872
        %v3505 = vpop.f32.mrf.mxu0
        %v3506 = vadd.f32 %v3249, %v3505
        %v3507 = vpop.f32.mrf.mxu0
        %v3508 = vadd.f32 %v3251, %v3507
        %3509 = vmatprep.mubr.f32.mxu0 %v2877
        %3510 = vmatmul.mubr.f32.gmra.mxu0 %v2876
        %v3511 = vpop.f32.mrf.mxu0
        %v3512 = vadd.f32 %v3255, %v3511
        %v3513 = vpop.f32.mrf.mxu0
        %v3514 = vadd.f32 %v3257, %v3513
        %3515 = vmatprep.mubr.f32.mxu0 %v2881
        %3516 = vmatmul.mubr.f32.gmra.mxu0 %v2880
        %v3517 = vpop.f32.mrf.mxu0
        %v3518 = vadd.f32 %v3261, %v3517
        %v3519 = vpop.f32.mrf.mxu0
        %v3520 = vadd.f32 %v3263, %v3519
        %3521 = vmatprep.mubr.f32.mxu0 %v2885
        %3522 = vmatmul.mubr.f32.gmra.mxu0 %v2884
        %v3523 = vpop.f32.mrf.mxu0
        %v3524 = vadd.f32 %v3267, %v3523
        %v3525 = vpop.f32.mrf.mxu0
        %v3526 = vadd.f32 %v3269, %v3525
        %3527 = vmatprep.mubr.f32.mxu0 %v2889
        %3528 = vmatmul.mubr.f32.gmra.mxu0 %v2888
        %v3529 = vpop.f32.mrf.mxu0
        %v3530 = vadd.f32 %v3273, %v3529
        %v3531 = vpop.f32.mrf.mxu0
        %v3532 = vadd.f32 %v3275, %v3531
        %3533 = vmatprep.mubr.f32.mxu0 %v2893
        %3534 = vmatmul.mubr.f32.gmra.mxu0 %v2892
        %v3535 = vpop.f32.mrf.mxu0
        %v3536 = vadd.f32 %v3279, %v3535
        %v3537 = vpop.f32.mrf.mxu0
        %v3538 = vadd.f32 %v3281, %v3537
        %3539 = vmatprep.mubr.f32.mxu0 %v2897
        %3540 = vmatmul.mubr.f32.gmra.mxu0 %v2896
        %v3541 = vpop.f32.mrf.mxu0
        %v3542 = vadd.f32 %v3285, %v3541
        %v3543 = vpop.f32.mrf.mxu0
        %v3544 = vadd.f32 %v3287, %v3543
        %3545 = vmatprep.mubr.f32.mxu0 %v2901
        %3546 = vmatmul.mubr.f32.gmra.mxu0 %v2900
        %v3547 = vpop.f32.mrf.mxu0
        %v3548 = vadd.f32 %v3291, %v3547
        %v3549 = vpop.f32.mrf.mxu0
        %v3550 = vadd.f32 %v3293, %v3549
        %3551 = vmatprep.mubr.f32.mxu0 %v2905
        %3552 = vmatmul.mubr.f32.gmra.mxu0 %v2904
        %v3553 = vpop.f32.mrf.mxu0
        %v3554 = vadd.f32 %v3297, %v3553
        %v3555 = vpop.f32.mrf.mxu0
        %v3556 = vadd.f32 %v3299, %v3555
        %3557 = vmatprep.mubr.f32.mxu0 %v2909
        %3558 = vmatmul.mubr.f32.gmra.mxu0 %v2908
        %v3559 = vpop.f32.mrf.mxu0
        %v3560 = vadd.f32 %v3303, %v3559
        %v3561 = vpop.f32.mrf.mxu0
        %v3562 = vadd.f32 %v3305, %v3561
        %3563 = vdwg.mxu0
        %3564 = vst [vmem:[%s490] sm:$0xff] %v3374
        %3565 = vst [vmem:[%s490 + $0x8] sm:$0xff] %v3376
        %3566 = vst [vmem:[%s490 + $0x10] sm:$0xff] %v3380
        %3567 = vst [vmem:[%s490 + $0x18] sm:$0xff] %v3382
        %3568 = vst [vmem:[%s490 + $0x20] sm:$0xff] %v3386
        %3569 = vst [vmem:[%s490 + $0x28] sm:$0xff] %v3388
        %3570 = vst [vmem:[%s490 + $0x30] sm:$0xff] %v3392
        %3571 = vst [vmem:[%s490 + $0x38] sm:$0xff] %v3394
        %3572 = vst [vmem:[%s490 + $0x40] sm:$0xff] %v3398
        %3573 = vst [vmem:[%s490 + $0x48] sm:$0xff] %v3400
        %3574 = vst [vmem:[%s490 + $0x50] sm:$0xff] %v3404
        %3575 = vst [vmem:[%s490 + $0x58] sm:$0xff] %v3406
        %3576 = vst [vmem:[%s490 + $0x60] sm:$0xff] %v3410
        %3577 = vst [vmem:[%s490 + $0x68] sm:$0xff] %v3412
        %3578 = vst [vmem:[%s490 + $0x70] sm:$0xff] %v3416
        %3579 = vst [vmem:[%s490 + $0x78] sm:$0xff] %v3418
        %3580 = vst [vmem:[%s490 + $0x80] sm:$0xff] %v3422
        %3581 = vst [vmem:[%s490 + $0x88] sm:$0xff] %v3424
        %3582 = vst [vmem:[%s490 + $0x90] sm:$0xff] %v3428
        %3583 = vst [vmem:[%s490 + $0x98] sm:$0xff] %v3430
        %3584 = vst [vmem:[%s490 + $0xa0] sm:$0xff] %v3434
        %3585 = vst [vmem:[%s490 + $0xa8] sm:$0xff] %v3436
        %3586 = vst [vmem:[%s490 + $0xb0] sm:$0xff] %v3440
        %3587 = vst [vmem:[%s490 + $0xb8] sm:$0xff] %v3442
        %3588 = vst [vmem:[%s490 + $0xc0] sm:$0xff] %v3446
        %3589 = vst [vmem:[%s490 + $0xc8] sm:$0xff] %v3448
        %3590 = vst [vmem:[%s490 + $0xd0] sm:$0xff] %v3452
        %3591 = vst [vmem:[%s490 + $0xd8] sm:$0xff] %v3454
        %3592 = vst [vmem:[%s490 + $0xe0] sm:$0xff] %v3458
        %3593 = vst [vmem:[%s490 + $0xe8] sm:$0xff] %v3460
        %3594 = vst [vmem:[%s490 + $0xf0] sm:$0xff] %v3464
        %3595 = vst [vmem:[%s490 + $0xf8] sm:$0xff] %v3466
        %3596 = vst [vmem:[%s490 + $0x100] sm:$0xff] %v3470
        %3597 = vst [vmem:[%s490 + $0x108] sm:$0xff] %v3472
        %3598 = vst [vmem:[%s490 + $0x110] sm:$0xff] %v3476
        %3599 = vst [vmem:[%s490 + $0x118] sm:$0xff] %v3478
        %3600 = vst [vmem:[%s490 + $0x120] sm:$0xff] %v3482
        %3601 = vst [vmem:[%s490 + $0x128] sm:$0xff] %v3484
        %3602 = vst [vmem:[%s490 + $0x130] sm:$0xff] %v3488
        %3603 = vst [vmem:[%s490 + $0x138] sm:$0xff] %v3490
        %3604 = vst [vmem:[%s490 + $0x140] sm:$0xff] %v3494
        %3605 = vst [vmem:[%s490 + $0x148] sm:$0xff] %v3496
        %3606 = vst [vmem:[%s490 + $0x150] sm:$0xff] %v3500
        %3607 = vst [vmem:[%s490 + $0x158] sm:$0xff] %v3502
        %3608 = vst [vmem:[%s490 + $0x160] sm:$0xff] %v3506
        %3609 = vst [vmem:[%s490 + $0x168] sm:$0xff] %v3508
        %3610 = vst [vmem:[%s490 + $0x170] sm:$0xff] %v3512
        %3611 = vst [vmem:[%s490 + $0x178] sm:$0xff] %v3514
        %3612 = vst [vmem:[%s490 + $0x180] sm:$0xff] %v3518
        %3613 = vst [vmem:[%s490 + $0x188] sm:$0xff] %v3520
        %3614 = vst [vmem:[%s490 + $0x190] sm:$0xff] %v3524
        %3615 = vst [vmem:[%s490 + $0x198] sm:$0xff] %v3526
        %3616 = vst [vmem:[%s490 + $0x1a0] sm:$0xff] %v3530
        %3617 = vst [vmem:[%s490 + $0x1a8] sm:$0xff] %v3532
        %3618 = vst [vmem:[%s490 + $0x1b0] sm:$0xff] %v3536
        %3619 = vst [vmem:[%s490 + $0x1b8] sm:$0xff] %v3538
        %3620 = vst [vmem:[%s490 + $0x1c0] sm:$0xff] %v3542
        %3621 = vst [vmem:[%s490 + $0x1c8] sm:$0xff] %v3544
        %3622 = vst [vmem:[%s490 + $0x1d0] sm:$0xff] %v3548
        %3623 = vst [vmem:[%s490 + $0x1d8] sm:$0xff] %v3550
        %3624 = vst [vmem:[%s490 + $0x1e0] sm:$0xff] %v3554
        %3625 = vst [vmem:[%s490 + $0x1e8] sm:$0xff] %v3556
        %3626 = vst [vmem:[%s490 + $0x1f0] sm:$0xff] %v3560
        %3627 = vst [vmem:[%s490 + $0x1f8] sm:$0xff] %v3562
        %s3628 = sand.u32 %s275, 1
        %s3629 = scalar_lea.sflag [#allocation4], %s3628
        %s3630 = sand.u32 %s275, 1
        %s3631 = smul.addr %s3630, 512
        %s3632 = scalar_lea.vmem [#allocation14], %s3631
        // Predicated region
        $region93: #{tpu_custom_call.1} parent=63 // pred_check
          %p3633 = pneg %p285
        $region94: #{tpu_custom_call.1} parent=63 // pred_check_branch
          %3635 = sbr.rel (%p3633) target = $region96
        $region95: #{tpu_custom_call.1} parent=63 // pred_region
          %s3636 = smul.u32 32, %s31
          %s3638 = ssub.s32 8192, 8192
          %3639 = vsyncadd %s3629, %s3638
          %s3640 = smul.addr %s3636, 2
          %s3641 = smul.addr %s3640, 128
          %s3642 = scalar_lea.hbm %s11, %s3641
          %s3643 = sshll.u32 %s3632, 4
          %s3644 = int_to_ptr.vmem [resolvable:$true] %s3643
          %3649 = dma.vmem_to_hbm [thread:$0]  %s3644, 8192, %s3642, %s3629, 256, 256, 16
        $region96: #{tpu_custom_call.1} parent=63 // pred_fallthru
          _
      $region64: #{tpu_custom_call.1} parent=5 // pred_fallthru
        _
      %p3650 = scmp.le.s32.totalorder 2, %s26
      // Predicated region
      $region97: #{tpu_custom_call.1} parent=5 // pred_check
        %p3651 = pneg %p3650
      $region98: #{tpu_custom_call.1} parent=5 // pred_check_branch
        %3653 = sbr.rel (%p3651) target = $region100
      $region99: #{tpu_custom_call.1} parent=5 // pred_region
        %s3654 = ssub.s32 %s26, 2
        // Predicated region
        $region101: #{tpu_custom_call.1} parent=99 // pred_check
          %p3655 = pneg %p291
        $region102: #{tpu_custom_call.1} parent=99 // pred_check_branch
          %3657 = sbr.rel (%p3655) target = $region104
        $region103: #{tpu_custom_call.1} parent=99 // pred_region
          %s3658 = sand.u32 %s276, 1
          %s3659 = scalar_lea.sflag [#allocation4], %s3658
          %s3660 = sand.u32 %s276, 1
          %s3661 = smul.addr %s3660, 512
          %s3662 = scalar_lea.vmem [#allocation14], %s3661
          %3663 = dma.done %s3659, 8192
        $region104: #{tpu_custom_call.1} parent=99 // pred_fallthru
          _
      $region100: #{tpu_custom_call.1} parent=5 // pred_fallthru
        _
    $region6: #{tpu_custom_call.1} parent=1 // loop_footer
      %s30 = sadd.s32 1, %s26
    $region7: #{tpu_custom_call.1} parent=1 // loop_footer_branch
      %25 = sbr.rel target = $region3
    $region8: #{tpu_custom_call.1} parent=1 // loop_exit
      _
    %3664 = vsyncpa [#allocation3], 1
    %s3665 = scalar_lea.sflag [#allocation3], 1
    %3666 = vsyncpa %s3665, 1
    %3667 = vsyncpa [#allocation6], 1
    %3668 = vsyncpa [#allocation9], 1
    %3669 = vsyncpa [#allocation12], 1
    %3670 = vsyncpa [#allocation4], 1
    %s3671 = scalar_lea.sflag [#allocation4], 1
    %3672 = vsyncpa %s3671, 1

// kernel: tpu_custom_call.1
$region0: #{tpu_custom_call.1}
  #allocation0 [shape = 'u32[]', space=smem, size = 0x4, offset = 0x4, fixed_abs, tag = 'smem constant byte address 0x4 - core index']
  #allocation1 [shape = 'u32[144,128]{1,0:T(1,128)}', space=vmem, size = 0x12000, scoped, tag = 'internal scratch']
  %s0 = inlined_call_operand.hbm [shape: f32[512,256], index: 0, kind: input, shape index: {}]
  %s1 = inlined_call_operand.hbm [shape: f32[256,512], index: 1, kind: input, shape index: {}]
  %s2 = inlined_call_operand.hbm [shape: f32[1,512], index: 2, kind: input, shape index: {}]
  %s3 = inlined_call_operand.hbm [shape: f32[512,128], index: 3, kind: input, shape index: {}]
  %s4 = inlined_call_operand.vmem [shape: f32[1,128], index: 4, kind: input, shape index: {}]
  %s5 = inlined_call_operand.hbm [shape: f32[128,128], index: 5, kind: input, shape index: {}]
  %s6 = inlined_call_operand.vmem [shape: f32[1,128], index: 6, kind: input, shape index: {}]
  %s7 = inlined_call_operand.hbm [shape: f32[128,512], index: 7, kind: input, shape index: {}]
  %s8 = inlined_call_operand.vmem [shape: f32[1,512], index: 8, kind: input, shape index: {}]
  %s9 = inlined_call_operand.hbm [shape: f32[512,256], index: 9, kind: input, shape index: {}]
  %s10 = inlined_call_operand.vmem [shape: f32[1,256], index: 10, kind: input, shape index: {}]
  %s11 = inlined_call_operand.hbm [shape: f32[512,256], index: 11, kind: output, shape index: {}]
  %s12 = sld [smem:[#allocation0]]
  $region105: #{tpu_custom_call.1} parent=0
    _
  %s14 = ssub.s32 1, %s12
  %s15 = scalar_select 0, %s14, %s12
  $region1: #{tpu_custom_call.1} parent=0
    #allocation2 [shape = 'u8[524288]{0}', space=vmem, size = 0x80000, scoped, tag = 'input window, operand 0']
    #allocation3 [shape = 's32[2]{0}', space=sflag, size = 0x8, scoped, tag = 'scoped memory for tpu_custom_call.1']
    #allocation4 [shape = 's32[2]{0}', space=sflag, size = 0x8, scoped, tag = 'scoped memory for tpu_custom_call.1']
    #allocation5 [shape = 'u8[524288]{0}', space=vmem, size = 0x80000, scoped, tag = 'input window, operand 1, single buffered']
    #allocation6 [shape = 's32[1]{0}', space=sflag, size = 0x4, scoped, tag = 'scoped memory for tpu_custom_call.1']
    #allocation7 [shape = 'u8[2048]{0}', space=vmem, size = 0x800, scoped, tag = 'input window, operand 2, single buffered']
    #allocation8 [shape = 'u8[262144]{0}', space=vmem, size = 0x40000, scoped, tag = 'input window, operand 3, single buffered']
    #allocation9 [shape = 's32[1]{0}', space=sflag, size = 0x4, scoped, tag = 'scoped memory for tpu_custom_call.1']
    #allocation10 [shape = 'u8[65536]{0}', space=vmem, size = 0x10000, scoped, tag = 'input window, operand 5, single buffered']
    #allocation11 [shape = 'u8[262144]{0}', space=vmem, size = 0x40000, scoped, tag = 'input window, operand 7, single buffered']
    #allocation12 [shape = 's32[1]{0}', space=sflag, size = 0x4, scoped, tag = 'scoped memory for tpu_custom_call.1']
    #allocation13 [shape = 'u8[524288]{0}', space=vmem, size = 0x80000, scoped, tag = 'input window, operand 9, single buffered']
    #allocation14 [shape = 'u8[524288]{0}', space=vmem, size = 0x80000, scoped, tag = 'output window, operand 0']
    %16 = vsyncpa [#allocation3], 0
    %s17 = scalar_lea.sflag [#allocation3], 1
    %18 = vsyncpa %s17, 0
    %19 = vsyncpa [#allocation6], 0
    %20 = vsyncpa [#allocation9], 0
    %21 = vsyncpa [#allocation12], 0
    %22 = vsyncpa [#allocation4], 0
    %s23 = scalar_lea.sflag [#allocation4], 1
    %24 = vsyncpa %s23, 0
    loop: start=0, step=1, limit=4
    $region2: #{tpu_custom_call.1} parent=1 // loop_pre_header
      _
    $region3: #{tpu_custom_call.1} parent=1 // loop_header
      %s26 = sphi 0, %s30
      %p27 = scmp.ge.s32.totalorder %s26, 4
      %s36 = sphi 0, %s38
      %s39 = sphi 0, %s36
      %s40 = sphi 0, %s39
      %s56 = sphi 0, %s40
      %s60 = sphi 0, %s60
      %s62 = sphi 0, %s60
      %s63 = sphi 0, %s62
      %s77 = sphi 0, %s63
      %s81 = sphi 0, %s81
      %s83 = sphi 0, %s81
      %s84 = sphi 0, %s83
      %s98 = sphi 0, %s84
      %s102 = sphi 0, %s102
      %s104 = sphi 0, %s102
      %s105 = sphi 0, %s104
      %s119 = sphi 0, %s105
      %s123 = sphi 0, %s123
      %s125 = sphi 0, %s123
      %s126 = sphi 0, %s125
      %s140 = sphi 0, %s126
      %s144 = sphi 0, %s144
      %s146 = sphi 0, %s144
      %s147 = sphi 0, %s146
      %s161 = sphi 0, %s147
      %s165 = sphi 0, %s165
      %s167 = sphi 0, %s165
      %s168 = sphi 0, %s167
      %s182 = sphi 0, %s168
      %s186 = sphi 0, %s186
      %s188 = sphi 0, %s186
      %s189 = sphi 0, %s188
      %s203 = sphi 0, %s189
      %s207 = sphi 0, %s207
      %s209 = sphi 0, %s207
      %s210 = sphi 0, %s209
      %s224 = sphi 0, %s210
      %s228 = sphi 0, %s228
      %s230 = sphi 0, %s228
      %s231 = sphi 0, %s230
      %s245 = sphi 0, %s231
      %s249 = sphi 0, %s249
      %s251 = sphi 0, %s249
      %s252 = sphi 0, %s251
      %s266 = sphi 0, %s252
      %s272 = sphi 0, %s274
      %s275 = sphi 0, %s272
      %s276 = sphi 0, %s275
      %s292 = sphi 0, %s276
    $region4: #{tpu_custom_call.1} parent=1 // loop_header_branch
      %29 = sbr.rel (%p27) target = $region8
    $region5: #{tpu_custom_call.1} parent=1 // loop_body
      %s31 = ssub.s32 %s26, 1
      %s32 = ssub.s32 %s26, 2
      %s33 = sadd.s32 %s26, 1
      %s34 = ssub.s32 %s26, %s33
      %p35 = scmp.eq.s32.totalorder %s34, 0
      %s37 = sadd.s32 %s36, 1
      %s38 = scalar_select %p35, %s36, %s37
      %p41 = pneg %p35
      %p42 = scmp.eq.s32.totalorder %s26, 1
      %p43 = por %p41, %p42
      %p44 = scmp.ne.s32.totalorder %s36, %s39
      %p45 = scmp.eq.s32.totalorder %s26, 0
      %p46 = por %p44, %p45
      %p47 = scmp.ne.s32.totalorder %s36, %s39
      %p48 = scmp.eq.s32.totalorder %s31, 1
      %p49 = por %p47, %p48
      %p50 = scmp.ne.s32.totalorder %s39, %s40
      %p51 = scmp.eq.s32.totalorder %s31, 0
      %p52 = por %p50, %p51
      %p53 = scmp.ne.s32.totalorder %s39, %s40
      %p54 = scmp.eq.s32.totalorder %s32, 1
      %p55 = por %p53, %p54
      %p57 = scmp.ne.s32.totalorder %s40, %s56
      %p58 = scmp.eq.s32.totalorder %s32, 0
      %p59 = por %p57, %p58
      %s61 = sadd.s32 %s60, 1
      %p64 = scmp.eq.s32.totalorder %s26, 1
      %p65 = scmp.ne.s32.totalorder %s60, %s62
      %p66 = scmp.eq.s32.totalorder %s26, 0
      %p67 = por %p65, %p66
      %p68 = scmp.ne.s32.totalorder %s60, %s62
      %p69 = scmp.eq.s32.totalorder %s31, 1
      %p70 = por %p68, %p69
      %p71 = scmp.ne.s32.totalorder %s62, %s63
      %p72 = scmp.eq.s32.totalorder %s31, 0
      %p73 = por %p71, %p72
      %p74 = scmp.ne.s32.totalorder %s62, %s63
      %p75 = scmp.eq.s32.totalorder %s32, 1
      %p76 = por %p74, %p75
      %p78 = scmp.ne.s32.totalorder %s63, %s77
      %p79 = scmp.eq.s32.totalorder %s32, 0
      %p80 = por %p78, %p79
      %s82 = sadd.s32 %s81, 1
      %p85 = scmp.eq.s32.totalorder %s26, 1
      %p86 = scmp.ne.s32.totalorder %s81, %s83
      %p87 = scmp.eq.s32.totalorder %s26, 0
      %p88 = por %p86, %p87
      %p89 = scmp.ne.s32.totalorder %s81, %s83
      %p90 = scmp.eq.s32.totalorder %s31, 1
      %p91 = por %p89, %p90
      %p92 = scmp.ne.s32.totalorder %s83, %s84
      %p93 = scmp.eq.s32.totalorder %s31, 0
      %p94 = por %p92, %p93
      %p95 = scmp.ne.s32.totalorder %s83, %s84
      %p96 = scmp.eq.s32.totalorder %s32, 1
      %p97 = por %p95, %p96
      %p99 = scmp.ne.s32.totalorder %s84, %s98
      %p100 = scmp.eq.s32.totalorder %s32, 0
      %p101 = por %p99, %p100
      %s103 = sadd.s32 %s102, 1
      %p106 = scmp.eq.s32.totalorder %s26, 1
      %p107 = scmp.ne.s32.totalorder %s102, %s104
      %p108 = scmp.eq.s32.totalorder %s26, 0
      %p109 = por %p107, %p108
      %p110 = scmp.ne.s32.totalorder %s102, %s104
      %p111 = scmp.eq.s32.totalorder %s31, 1
      %p112 = por %p110, %p111
      %p113 = scmp.ne.s32.totalorder %s104, %s105
      %p114 = scmp.eq.s32.totalorder %s31, 0
      %p115 = por %p113, %p114
      %p116 = scmp.ne.s32.totalorder %s104, %s105
      %p117 = scmp.eq.s32.totalorder %s32, 1
      %p118 = por %p116, %p117
      %p120 = scmp.ne.s32.totalorder %s105, %s119
      %p121 = scmp.eq.s32.totalorder %s32, 0
      %p122 = por %p120, %p121
      %s124 = sadd.s32 %s123, 1
      %p127 = scmp.eq.s32.totalorder %s26, 1
      %p128 = scmp.ne.s32.totalorder %s123, %s125
      %p129 = scmp.eq.s32.totalorder %s26, 0
      %p130 = por %p128, %p129
      %p131 = scmp.ne.s32.totalorder %s123, %s125
      %p132 = scmp.eq.s32.totalorder %s31, 1
      %p133 = por %p131, %p132
      %p134 = scmp.ne.s32.totalorder %s125, %s126
      %p135 = scmp.eq.s32.totalorder %s31, 0
      %p136 = por %p134, %p135
      %p137 = scmp.ne.s32.totalorder %s125, %s126
      %p138 = scmp.eq.s32.totalorder %s32, 1
      %p139 = por %p137, %p138
      %p141 = scmp.ne.s32.totalorder %s126, %s140
      %p142 = scmp.eq.s32.totalorder %s32, 0
      %p143 = por %p141, %p142
      %s145 = sadd.s32 %s144, 1
      %p148 = scmp.eq.s32.totalorder %s26, 1
      %p149 = scmp.ne.s32.totalorder %s144, %s146
      %p150 = scmp.eq.s32.totalorder %s26, 0
      %p151 = por %p149, %p150
      %p152 = scmp.ne.s32.totalorder %s144, %s146
      %p153 = scmp.eq.s32.totalorder %s31, 1
      %p154 = por %p152, %p153
      %p155 = scmp.ne.s32.totalorder %s146, %s147
      %p156 = scmp.eq.s32.totalorder %s31, 0
      %p157 = por %p155, %p156
      %p158 = scmp.ne.s32.totalorder %s146, %s147
      %p159 = scmp.eq.s32.totalorder %s32, 1
      %p160 = por %p158, %p159
      %p162 = scmp.ne.s32.totalorder %s147, %s161
      %p163 = scmp.eq.s32.totalorder %s32, 0
      %p164 = por %p162, %p163
      %s166 = sadd.s32 %s165, 1
      %p169 = scmp.eq.s32.totalorder %s26, 1
      %p170 = scmp.ne.s32.totalorder %s165, %s167
      %p171 = scmp.eq.s32.totalorder %s26, 0
      %p172 = por %p170, %p171
      %p173 = scmp.ne.s32.totalorder %s165, %s167
      %p174 = scmp.eq.s32.totalorder %s31, 1
      %p175 = por %p173, %p174
      %p176 = scmp.ne.s32.totalorder %s167, %s168
      %p177 = scmp.eq.s32.totalorder %s31, 0
      %p178 = por %p176, %p177
      %p179 = scmp.ne.s32.totalorder %s167, %s168
      %p180 = scmp.eq.s32.totalorder %s32, 1
      %p181 = por %p179, %p180
      %p183 = scmp.ne.s32.totalorder %s168, %s182
      %p184 = scmp.eq.s32.totalorder %s32, 0
      %p185 = por %p183, %p184
      %s187 = sadd.s32 %s186, 1
      %p190 = scmp.eq.s32.totalorder %s26, 1
      %p191 = scmp.ne.s32.totalorder %s186, %s188
      %p192 = scmp.eq.s32.totalorder %s26, 0
      %p193 = por %p191, %p192
      %p194 = scmp.ne.s32.totalorder %s186, %s188
      %p195 = scmp.eq.s32.totalorder %s31, 1
      %p196 = por %p194, %p195
      %p197 = scmp.ne.s32.totalorder %s188, %s189
      %p198 = scmp.eq.s32.totalorder %s31, 0
      %p199 = por %p197, %p198
      %p200 = scmp.ne.s32.totalorder %s188, %s189
      %p201 = scmp.eq.s32.totalorder %s32, 1
      %p202 = por %p200, %p201
      %p204 = scmp.ne.s32.totalorder %s189, %s203
      %p205 = scmp.eq.s32.totalorder %s32, 0
      %p206 = por %p204, %p205
      %s208 = sadd.s32 %s207, 1
      %p211 = scmp.eq.s32.totalorder %s26, 1
      %p212 = scmp.ne.s32.totalorder %s207, %s209
      %p213 = scmp.eq.s32.totalorder %s26, 0
      %p214 = por %p212, %p213
      %p215 = scmp.ne.s32.totalorder %s207, %s209
      %p216 = scmp.eq.s32.totalorder %s31, 1
      %p217 = por %p215, %p216
      %p218 = scmp.ne.s32.totalorder %s209, %s210
      %p219 = scmp.eq.s32.totalorder %s31, 0
      %p220 = por %p218, %p219
      %p221 = scmp.ne.s32.totalorder %s209, %s210
      %p222 = scmp.eq.s32.totalorder %s32, 1
      %p223 = por %p221, %p222
      %p225 = scmp.ne.s32.totalorder %s210, %s224
      %p226 = scmp.eq.s32.totalorder %s32, 0
      %p227 = por %p225, %p226
      %s229 = sadd.s32 %s228, 1
      %p232 = scmp.eq.s32.totalorder %s26, 1
      %p233 = scmp.ne.s32.totalorder %s228, %s230
      %p234 = scmp.eq.s32.totalorder %s26, 0
      %p235 = por %p233, %p234
      %p236 = scmp.ne.s32.totalorder %s228, %s230
      %p237 = scmp.eq.s32.totalorder %s31, 1
      %p238 = por %p236, %p237
      %p239 = scmp.ne.s32.totalorder %s230, %s231
      %p240 = scmp.eq.s32.totalorder %s31, 0
      %p241 = por %p239, %p240
      %p242 = scmp.ne.s32.totalorder %s230, %s231
      %p243 = scmp.eq.s32.totalorder %s32, 1
      %p244 = por %p242, %p243
      %p246 = scmp.ne.s32.totalorder %s231, %s245
      %p247 = scmp.eq.s32.totalorder %s32, 0
      %p248 = por %p246, %p247
      %s250 = sadd.s32 %s249, 1
      %p253 = scmp.eq.s32.totalorder %s26, 1
      %p254 = scmp.ne.s32.totalorder %s249, %s251
      %p255 = scmp.eq.s32.totalorder %s26, 0
      %p256 = por %p254, %p255
      %p257 = scmp.ne.s32.totalorder %s249, %s251
      %p258 = scmp.eq.s32.totalorder %s31, 1
      %p259 = por %p257, %p258
      %p260 = scmp.ne.s32.totalorder %s251, %s252
      %p261 = scmp.eq.s32.totalorder %s31, 0
      %p262 = por %p260, %p261
      %p263 = scmp.ne.s32.totalorder %s251, %s252
      %p264 = scmp.eq.s32.totalorder %s32, 1
      %p265 = por %p263, %p264
      %p267 = scmp.ne.s32.totalorder %s252, %s266
      %p268 = scmp.eq.s32.totalorder %s32, 0
      %p269 = por %p267, %p268
      %s270 = ssub.s32 %s26, %s33
      %p271 = scmp.eq.s32.totalorder %s270, 0
      %s273 = sadd.s32 %s272, 1
      %s274 = scalar_select %p271, %s272, %s273
      %p277 = pneg %p271
      %p278 = scmp.eq.s32.totalorder %s26, 1
      %p279 = por %p277, %p278
      %p280 = scmp.ne.s32.totalorder %s272, %s275
      %p281 = scmp.eq.s32.totalorder %s26, 0
      %p282 = por %p280, %p281
      %p283 = scmp.ne.s32.totalorder %s272, %s275
      %p284 = scmp.eq.s32.totalorder %s31, 1
      %p285 = por %p283, %p284
      %p286 = scmp.ne.s32.totalorder %s275, %s276
      %p287 = scmp.eq.s32.totalorder %s31, 0
      %p288 = por %p286, %p287
      %p289 = scmp.ne.s32.totalorder %s275, %s276
      %p290 = scmp.eq.s32.totalorder %s32, 1
      %p291 = por %p289, %p290
      %p293 = scmp.ne.s32.totalorder %s276, %s292
      %p294 = scmp.eq.s32.totalorder %s32, 0
      %p295 = por %p293, %p294
      %p296 = scmp.le.s32.totalorder 1, %s26
      %p297 = scmp.lt.s32.totalorder %s26, 3
      %p298 = pnand %p296, %p297
      %p299 = pneg %p298
      // Predicated region
      $region9: #{tpu_custom_call.1} parent=5 // pred_check
        _
      $region10: #{tpu_custom_call.1} parent=5 // pred_check_branch
        %301 = sbr.rel (%p298) target = $region12
      $region11: #{tpu_custom_call.1} parent=5 // pred_region
        %s302 = ssub.s32 %s26, 1
        // Predicated region
        $region13: #{tpu_custom_call.1} parent=11 // pred_check
          %p303 = pneg %p73
        $region14: #{tpu_custom_call.1} parent=11 // pred_check_branch
          %305 = sbr.rel (%p303) target = $region16
        $region15: #{tpu_custom_call.1} parent=11 // pred_region
          %s307 = ssub.s32 16384, 16384
          %308 = vsyncadd [#allocation6], %s307
          %s309 = sshll.u32 [#allocation5], 4
          %s310 = int_to_ptr.vmem [resolvable:$true] %s309
          %315 = dma.hbm_to_vmem [thread:$0]  %s1, 16384, %s310, [#allocation6], 512, 512, 32
        $region16: #{tpu_custom_call.1} parent=11 // pred_fallthru
          _
        // Predicated region
        $region17: #{tpu_custom_call.1} parent=11 // pred_check
          %p316 = pneg %p94
        $region18: #{tpu_custom_call.1} parent=11 // pred_check_branch
          %318 = sbr.rel (%p316) target = $region20
        $region19: #{tpu_custom_call.1} parent=11 // pred_region
          %s320 = ssub.s32 64, 64
          %321 = vsyncadd [#allocation6], %s320
          %s323 = sshll.u32 [#allocation7], 4
          %s324 = int_to_ptr.vmem [resolvable:$true] %s323
          %326 = dma.hbm_to_vmem [thread:$0]  %s2, 64, %s324, [#allocation6]
        $region20: #{tpu_custom_call.1} parent=11 // pred_fallthru
          _
        // Predicated region
        $region21: #{tpu_custom_call.1} parent=11 // pred_check
          %p327 = pneg %p115
        $region22: #{tpu_custom_call.1} parent=11 // pred_check_branch
          %329 = sbr.rel (%p327) target = $region24
        $region23: #{tpu_custom_call.1} parent=11 // pred_region
          %s331 = ssub.s32 8192, 8192
          %332 = vsyncadd [#allocation9], %s331
          %s333 = sshll.u32 [#allocation8], 4
          %s334 = int_to_ptr.vmem [resolvable:$true] %s333
          %339 = dma.hbm_to_vmem [thread:$0]  %s3, 8192, %s334, [#allocation9], 128, 128, 8
        $region24: #{tpu_custom_call.1} parent=11 // pred_fallthru
          _
        // Predicated region
        $region25: #{tpu_custom_call.1} parent=11 // pred_check
          %p340 = pneg %p136
        $region26: #{tpu_custom_call.1} parent=11 // pred_check_branch
          %342 = sbr.rel (%p340) target = $region28
        $region27: #{tpu_custom_call.1} parent=11 // pred_region
          _
        $region28: #{tpu_custom_call.1} parent=11 // pred_fallthru
          _
        // Predicated region
        $region29: #{tpu_custom_call.1} parent=11 // pred_check
          %p343 = pneg %p157
        $region30: #{tpu_custom_call.1} parent=11 // pred_check_branch
          %345 = sbr.rel (%p343) target = $region32
        $region31: #{tpu_custom_call.1} parent=11 // pred_region
          %s347 = ssub.s32 2048, 2048
          %348 = vsyncadd [#allocation9], %s347
          %s349 = sshll.u32 [#allocation10], 4
          %s350 = int_to_ptr.vmem [resolvable:$true] %s349
          %355 = dma.hbm_to_vmem [thread:$0]  %s5, 2048, %s350, [#allocation9], 128, 128, 8
        $region32: #{tpu_custom_call.1} parent=11 // pred_fallthru
          _
        // Predicated region
        $region33: #{tpu_custom_call.1} parent=11 // pred_check
          %p356 = pneg %p178
        $region34: #{tpu_custom_call.1} parent=11 // pred_check_branch
          %358 = sbr.rel (%p356) target = $region36
        $region35: #{tpu_custom_call.1} parent=11 // pred_region
          _
        $region36: #{tpu_custom_call.1} parent=11 // pred_fallthru
          _
        // Predicated region
        $region37: #{tpu_custom_call.1} parent=11 // pred_check
          %p359 = pneg %p199
        $region38: #{tpu_custom_call.1} parent=11 // pred_check_branch
          %361 = sbr.rel (%p359) target = $region40
        $region39: #{tpu_custom_call.1} parent=11 // pred_region
          %s363 = ssub.s32 8192, 8192
          %364 = vsyncadd [#allocation12], %s363
          %s365 = sshll.u32 [#allocation11], 4
          %s366 = int_to_ptr.vmem [resolvable:$true] %s365
          %371 = dma.hbm_to_vmem [thread:$0]  %s7, 8192, %s366, [#allocation12], 512, 512, 32
        $region40: #{tpu_custom_call.1} parent=11 // pred_fallthru
          _
        // Predicated region
        $region41: #{tpu_custom_call.1} parent=11 // pred_check
          %p372 = pneg %p220
        $region42: #{tpu_custom_call.1} parent=11 // pred_check_branch
          %374 = sbr.rel (%p372) target = $region44
        $region43: #{tpu_custom_call.1} parent=11 // pred_region
          _
        $region44: #{tpu_custom_call.1} parent=11 // pred_fallthru
          _
        // Predicated region
        $region45: #{tpu_custom_call.1} parent=11 // pred_check
          %p375 = pneg %p241
        $region46: #{tpu_custom_call.1} parent=11 // pred_check_branch
          %377 = sbr.rel (%p375) target = $region48
        $region47: #{tpu_custom_call.1} parent=11 // pred_region
          %s379 = ssub.s32 16384, 16384
          %380 = vsyncadd [#allocation12], %s379
          %s381 = sshll.u32 [#allocation13], 4
          %s382 = int_to_ptr.vmem [resolvable:$true] %s381
          %387 = dma.hbm_to_vmem [thread:$0]  %s9, 16384, %s382, [#allocation12], 256, 256, 16
        $region48: #{tpu_custom_call.1} parent=11 // pred_fallthru
          _
        // Predicated region
        $region49: #{tpu_custom_call.1} parent=11 // pred_check
          %p388 = pneg %p262
        $region50: #{tpu_custom_call.1} parent=11 // pred_check_branch
          %390 = sbr.rel (%p388) target = $region52
        $region51: #{tpu_custom_call.1} parent=11 // pred_region
          _
        $region52: #{tpu_custom_call.1} parent=11 // pred_fallthru
          _
      $region12: #{tpu_custom_call.1} parent=5 // pred_fallthru
        _
      %p391 = scmp.lt.s32.totalorder %s26, 2
      // Predicated region
      $region53: #{tpu_custom_call.1} parent=5 // pred_check
        %p392 = pneg %p391
      $region54: #{tpu_custom_call.1} parent=5 // pred_check_branch
        %394 = sbr.rel (%p392) target = $region56
      $region55: #{tpu_custom_call.1} parent=5 // pred_region
        // Predicated region
        $region57: #{tpu_custom_call.1} parent=55 // pred_check
          %p395 = pneg %p46
        $region58: #{tpu_custom_call.1} parent=55 // pred_check_branch
          %397 = sbr.rel (%p395) target = $region60
        $region59: #{tpu_custom_call.1} parent=55 // pred_region
          %s398 = sand.u32 %s36, 1
          %s399 = scalar_lea.sflag [#allocation3], %s398
          %s400 = sand.u32 %s36, 1
          %s401 = smul.addr %s400, 512
          %s402 = scalar_lea.vmem [#allocation2], %s401
          %s403 = smul.u32 32, %s26
          %s405 = ssub.s32 8192, 8192
          %406 = vsyncadd %s399, %s405
          %s407 = smul.addr %s403, 2
          %s408 = smul.addr %s407, 128
          %s409 = scalar_lea.hbm %s0, %s408
          %s410 = sshll.u32 %s402, 4
          %s411 = int_to_ptr.vmem [resolvable:$true] %s410
          %416 = dma.hbm_to_vmem [thread:$0]  %s409, 8192, %s411, %s399, 256, 256, 16
        $region60: #{tpu_custom_call.1} parent=55 // pred_fallthru
          _
      $region56: #{tpu_custom_call.1} parent=5 // pred_fallthru
        _
      %p417 = scmp.le.s32.totalorder 1, %s26
      %p418 = scmp.lt.s32.totalorder %s26, 3
      %p419 = pnand %p417, %p418
      %p420 = pneg %p419
      // Predicated region
      $region61: #{tpu_custom_call.1} parent=5 // pred_check
        _
      $region62: #{tpu_custom_call.1} parent=5 // pred_check_branch
        %422 = sbr.rel (%p419) target = $region64
      $region63: #{tpu_custom_call.1} parent=5 // pred_region
        %s423 = ssub.s32 %s26, 1
        %s424 = sand.u32 %s39, 1
        %s425 = scalar_lea.sflag [#allocation3], %s424
        %s426 = sand.u32 %s39, 1
        %s427 = smul.addr %s426, 512
        %s428 = scalar_lea.vmem [#allocation2], %s427
        // Predicated region
        $region65: #{tpu_custom_call.1} parent=63 // pred_check
          %p429 = pneg %p52
        $region66: #{tpu_custom_call.1} parent=63 // pred_check_branch
          %431 = sbr.rel (%p429) target = $region68
        $region67: #{tpu_custom_call.1} parent=63 // pred_region
          %432 = dma.done %s425, 8192
        $region68: #{tpu_custom_call.1} parent=63 // pred_fallthru
          _
        // Predicated region
        $region69: #{tpu_custom_call.1} parent=63 // pred_check
          %p433 = pneg %p73
        $region70: #{tpu_custom_call.1} parent=63 // pred_check_branch
          %435 = sbr.rel (%p433) target = $region72
        $region71: #{tpu_custom_call.1} parent=63 // pred_region
          %436 = dma.done [#allocation6], 16384
        $region72: #{tpu_custom_call.1} parent=63 // pred_fallthru
          _
        // Predicated region
        $region73: #{tpu_custom_call.1} parent=63 // pred_check
          %p437 = pneg %p94
        $region74: #{tpu_custom_call.1} parent=63 // pred_check_branch
          %439 = sbr.rel (%p437) target = $region76
        $region75: #{tpu_custom_call.1} parent=63 // pred_region
          %440 = dma.done [#allocation6], 64
        $region76: #{tpu_custom_call.1} parent=63 // pred_fallthru
          _
        // Predicated region
        $region77: #{tpu_custom_call.1} parent=63 // pred_check
          %p441 = pneg %p115
        $region78: #{tpu_custom_call.1} parent=63 // pred_check_branch
          %443 = sbr.rel (%p441) target = $region80
        $region79: #{tpu_custom_call.1} parent=63 // pred_region
          %444 = dma.done [#allocation9], 8192
        $region80: #{tpu_custom_call.1} parent=63 // pred_fallthru
          _
        // Predicated region
        $region81: #{tpu_custom_call.1} parent=63 // pred_check
          %p445 = pneg %p157
        $region82: #{tpu_custom_call.1} parent=63 // pred_check_branch
          %447 = sbr.rel (%p445) target = $region84
        $region83: #{tpu_custom_call.1} parent=63 // pred_region
          %448 = dma.done [#allocation9], 2048
        $region84: #{tpu_custom_call.1} parent=63 // pred_fallthru
          _
        // Predicated region
        $region85: #{tpu_custom_call.1} parent=63 // pred_check
          %p449 = pneg %p199
        $region86: #{tpu_custom_call.1} parent=63 // pred_check_branch
          %451 = sbr.rel (%p449) target = $region88
        $region87: #{tpu_custom_call.1} parent=63 // pred_region
          %452 = dma.done [#allocation12], 8192
        $region88: #{tpu_custom_call.1} parent=63 // pred_fallthru
          _
        // Predicated region
        $region89: #{tpu_custom_call.1} parent=63 // pred_check
          %p453 = pneg %p241
        $region90: #{tpu_custom_call.1} parent=63 // pred_check_branch
          %455 = sbr.rel (%p453) target = $region92
        $region91: #{tpu_custom_call.1} parent=63 // pred_region
          %456 = dma.done [#allocation12], 16384
        $region92: #{tpu_custom_call.1} parent=63 // pred_fallthru
          _
        %s457 = sand.u32 %s39, 1
        %s458 = scalar_lea.sflag [#allocation3], %s457
        %s459 = sand.u32 %s39, 1
        %s460 = smul.addr %s459, 512
        %s461 = scalar_lea.vmem [#allocation2], %s460
        %p462 = pneg %p52
        %p463 = pneg %p49
        %p464 = pneg %p73
        %p465 = pneg %p70
        %p466 = pneg %p94
        %p467 = pneg %p91
        %p468 = pneg %p115
        %p469 = pneg %p112
        %p470 = pneg %p136
        %p471 = pneg %p133
        %p472 = pneg %p157
        %p473 = pneg %p154
        %p474 = pneg %p178
        %p475 = pneg %p175
        %p476 = pneg %p199
        %p477 = pneg %p196
        %p478 = pneg %p220
        %p479 = pneg %p217
        %p480 = pneg %p241
        %p481 = pneg %p238
        %p482 = pneg %p262
        %p483 = pneg %p259
        %p484 = pneg %p288
        %p485 = pneg %p285
        %s486 = sand.u32 %s275, 1
        %s487 = scalar_lea.sflag [#allocation4], %s486
        %s488 = sand.u32 %s275, 1
        %s489 = smul.addr %s488, 512
        %s490 = scalar_lea.vmem [#allocation14], %s489
        %s491 = smul.u32 32, %s31
        %s492 = smul.u32 32, %s31
        %v493 = vld [vmem:[%s428] sm:$0xff]
        %v494 = vld [vmem:[%s428 + $0x8] sm:$0xff]
        %v495 = vld [vmem:[%s428 + $0x10] sm:$0xff]
        %v496 = vld [vmem:[%s428 + $0x18] sm:$0xff]
        %v497 = vld [vmem:[%s428 + $0x20] sm:$0xff]
        %v498 = vld [vmem:[%s428 + $0x28] sm:$0xff]
        %v499 = vld [vmem:[%s428 + $0x30] sm:$0xff]
        %v500 = vld [vmem:[%s428 + $0x38] sm:$0xff]
        %v501 = vld [vmem:[%s428 + $0x40] sm:$0xff]
        %v502 = vld [vmem:[%s428 + $0x48] sm:$0xff]
        %v503 = vld [vmem:[%s428 + $0x50] sm:$0xff]
        %v504 = vld [vmem:[%s428 + $0x58] sm:$0xff]
        %v505 = vld [vmem:[%s428 + $0x60] sm:$0xff]
        %v506 = vld [vmem:[%s428 + $0x68] sm:$0xff]
        %v507 = vld [vmem:[%s428 + $0x70] sm:$0xff]
        %v508 = vld [vmem:[%s428 + $0x78] sm:$0xff]
        %v509 = vld [vmem:[%s428 + $0x80] sm:$0xff]
        %v510 = vld [vmem:[%s428 + $0x88] sm:$0xff]
        %v511 = vld [vmem:[%s428 + $0x90] sm:$0xff]
        %v512 = vld [vmem:[%s428 + $0x98] sm:$0xff]
        %v513 = vld [vmem:[%s428 + $0xa0] sm:$0xff]
        %v514 = vld [vmem:[%s428 + $0xa8] sm:$0xff]
        %v515 = vld [vmem:[%s428 + $0xb0] sm:$0xff]
        %v516 = vld [vmem:[%s428 + $0xb8] sm:$0xff]
        %v517 = vld [vmem:[%s428 + $0xc0] sm:$0xff]
        %v518 = vld [vmem:[%s428 + $0xc8] sm:$0xff]
        %v519 = vld [vmem:[%s428 + $0xd0] sm:$0xff]
        %v520 = vld [vmem:[%s428 + $0xd8] sm:$0xff]
        %v521 = vld [vmem:[%s428 + $0xe0] sm:$0xff]
        %v522 = vld [vmem:[%s428 + $0xe8] sm:$0xff]
        %v523 = vld [vmem:[%s428 + $0xf0] sm:$0xff]
        %v524 = vld [vmem:[%s428 + $0xf8] sm:$0xff]
        %v525 = vld [vmem:[%s428 + $0x100] sm:$0xff]
        %v526 = vld [vmem:[%s428 + $0x108] sm:$0xff]
        %v527 = vld [vmem:[%s428 + $0x110] sm:$0xff]
        %v528 = vld [vmem:[%s428 + $0x118] sm:$0xff]
        %v529 = vld [vmem:[%s428 + $0x120] sm:$0xff]
        %v530 = vld [vmem:[%s428 + $0x128] sm:$0xff]
        %v531 = vld [vmem:[%s428 + $0x130] sm:$0xff]
        %v532 = vld [vmem:[%s428 + $0x138] sm:$0xff]
        %v533 = vld [vmem:[%s428 + $0x140] sm:$0xff]
        %v534 = vld [vmem:[%s428 + $0x148] sm:$0xff]
        %v535 = vld [vmem:[%s428 + $0x150] sm:$0xff]
        %v536 = vld [vmem:[%s428 + $0x158] sm:$0xff]
        %v537 = vld [vmem:[%s428 + $0x160] sm:$0xff]
        %v538 = vld [vmem:[%s428 + $0x168] sm:$0xff]
        %v539 = vld [vmem:[%s428 + $0x170] sm:$0xff]
        %v540 = vld [vmem:[%s428 + $0x178] sm:$0xff]
        %v541 = vld [vmem:[%s428 + $0x180] sm:$0xff]
        %v542 = vld [vmem:[%s428 + $0x188] sm:$0xff]
        %v543 = vld [vmem:[%s428 + $0x190] sm:$0xff]
        %v544 = vld [vmem:[%s428 + $0x198] sm:$0xff]
        %v545 = vld [vmem:[%s428 + $0x1a0] sm:$0xff]
        %v546 = vld [vmem:[%s428 + $0x1a8] sm:$0xff]
        %v547 = vld [vmem:[%s428 + $0x1b0] sm:$0xff]
        %v548 = vld [vmem:[%s428 + $0x1b8] sm:$0xff]
        %v549 = vld [vmem:[%s428 + $0x1c0] sm:$0xff]
        %v550 = vld [vmem:[%s428 + $0x1c8] sm:$0xff]
        %v551 = vld [vmem:[%s428 + $0x1d0] sm:$0xff]
        %v552 = vld [vmem:[%s428 + $0x1d8] sm:$0xff]
        %v553 = vld [vmem:[%s428 + $0x1e0] sm:$0xff]
        %v554 = vld [vmem:[%s428 + $0x1e8] sm:$0xff]
        %v555 = vld [vmem:[%s428 + $0x1f0] sm:$0xff]
        %v556 = vld [vmem:[%s428 + $0x1f8] sm:$0xff]
        %v557 = vld [vmem:[#allocation5] sm:$0xff]
        %v558 = vld [vmem:[#allocation5 + $0x8] sm:$0xff]
        %v559 = vld [vmem:[#allocation5 + $0x10] sm:$0xff]
        %v560 = vld [vmem:[#allocation5 + $0x18] sm:$0xff]
        %v561 = vld [vmem:[#allocation5 + $0x20] sm:$0xff]
        %v562 = vld [vmem:[#allocation5 + $0x28] sm:$0xff]
        %v563 = vld [vmem:[#allocation5 + $0x30] sm:$0xff]
        %v564 = vld [vmem:[#allocation5 + $0x38] sm:$0xff]
        %v565 = vld [vmem:[#allocation5 + $0x40] sm:$0xff]
        %v566 = vld [vmem:[#allocation5 + $0x48] sm:$0xff]
        %v567 = vld [vmem:[#allocation5 + $0x50] sm:$0xff]
        %v568 = vld [vmem:[#allocation5 + $0x58] sm:$0xff]
        %v569 = vld [vmem:[#allocation5 + $0x60] sm:$0xff]
        %v570 = vld [vmem:[#allocation5 + $0x68] sm:$0xff]
        %v571 = vld [vmem:[#allocation5 + $0x70] sm:$0xff]
        %v572 = vld [vmem:[#allocation5 + $0x78] sm:$0xff]
        %v573 = vld [vmem:[#allocation5 + $0x80] sm:$0xff]
        %v574 = vld [vmem:[#allocation5 + $0x88] sm:$0xff]
        %v575 = vld [vmem:[#allocation5 + $0x90] sm:$0xff]
        %v576 = vld [vmem:[#allocation5 + $0x98] sm:$0xff]
        %v577 = vld [vmem:[#allocation5 + $0xa0] sm:$0xff]
        %v578 = vld [vmem:[#allocation5 + $0xa8] sm:$0xff]
        %v579 = vld [vmem:[#allocation5 + $0xb0] sm:$0xff]
        %v580 = vld [vmem:[#allocation5 + $0xb8] sm:$0xff]
        %v581 = vld [vmem:[#allocation5 + $0xc0] sm:$0xff]
        %v582 = vld [vmem:[#allocation5 + $0xc8] sm:$0xff]
        %v583 = vld [vmem:[#allocation5 + $0xd0] sm:$0xff]
        %v584 = vld [vmem:[#allocation5 + $0xd8] sm:$0xff]
        %v585 = vld [vmem:[#allocation5 + $0xe0] sm:$0xff]
        %v586 = vld [vmem:[#allocation5 + $0xe8] sm:$0xff]
        %v587 = vld [vmem:[#allocation5 + $0xf0] sm:$0xff]
        %v588 = vld [vmem:[#allocation5 + $0xf8] sm:$0xff]
        %v589 = vld [vmem:[#allocation5 + $0x100] sm:$0xff]
        %v590 = vld [vmem:[#allocation5 + $0x108] sm:$0xff]
        %v591 = vld [vmem:[#allocation5 + $0x110] sm:$0xff]
        %v592 = vld [vmem:[#allocation5 + $0x118] sm:$0xff]
        %v593 = vld [vmem:[#allocation5 + $0x120] sm:$0xff]
        %v594 = vld [vmem:[#allocation5 + $0x128] sm:$0xff]
        %v595 = vld [vmem:[#allocation5 + $0x130] sm:$0xff]
        %v596 = vld [vmem:[#allocation5 + $0x138] sm:$0xff]
        %v597 = vld [vmem:[#allocation5 + $0x140] sm:$0xff]
        %v598 = vld [vmem:[#allocation5 + $0x148] sm:$0xff]
        %v599 = vld [vmem:[#allocation5 + $0x150] sm:$0xff]
        %v600 = vld [vmem:[#allocation5 + $0x158] sm:$0xff]
        %v601 = vld [vmem:[#allocation5 + $0x160] sm:$0xff]
        %v602 = vld [vmem:[#allocation5 + $0x168] sm:$0xff]
        %v603 = vld [vmem:[#allocation5 + $0x170] sm:$0xff]
        %v604 = vld [vmem:[#allocation5 + $0x178] sm:$0xff]
        %v605 = vld [vmem:[#allocation5 + $0x180] sm:$0xff]
        %v606 = vld [vmem:[#allocation5 + $0x188] sm:$0xff]
        %v607 = vld [vmem:[#allocation5 + $0x190] sm:$0xff]
        %v608 = vld [vmem:[#allocation5 + $0x198] sm:$0xff]
        %v609 = vld [vmem:[#allocation5 + $0x1a0] sm:$0xff]
        %v610 = vld [vmem:[#allocation5 + $0x1a8] sm:$0xff]
        %v611 = vld [vmem:[#allocation5 + $0x1b0] sm:$0xff]
        %v612 = vld [vmem:[#allocation5 + $0x1b8] sm:$0xff]
        %v613 = vld [vmem:[#allocation5 + $0x1c0] sm:$0xff]
        %v614 = vld [vmem:[#allocation5 + $0x1c8] sm:$0xff]
        %v615 = vld [vmem:[#allocation5 + $0x1d0] sm:$0xff]
        %v616 = vld [vmem:[#allocation5 + $0x1d8] sm:$0xff]
        %v617 = vld [vmem:[#allocation5 + $0x1e0] sm:$0xff]
        %v618 = vld [vmem:[#allocation5 + $0x1e8] sm:$0xff]
        %v619 = vld [vmem:[#allocation5 + $0x1f0] sm:$0xff]
        %v620 = vld [vmem:[#allocation5 + $0x1f8] sm:$0xff]
        %v621 = vld [vmem:[#allocation5 + $0x200] sm:$0xff]
        %v622 = vld [vmem:[#allocation5 + $0x208] sm:$0xff]
        %v623 = vld [vmem:[#allocation5 + $0x210] sm:$0xff]
        %v624 = vld [vmem:[#allocation5 + $0x218] sm:$0xff]
        %v625 = vld [vmem:[#allocation5 + $0x220] sm:$0xff]
        %v626 = vld [vmem:[#allocation5 + $0x228] sm:$0xff]
        %v627 = vld [vmem:[#allocation5 + $0x230] sm:$0xff]
        %v628 = vld [vmem:[#allocation5 + $0x238] sm:$0xff]
        %v629 = vld [vmem:[#allocation5 + $0x240] sm:$0xff]
        %v630 = vld [vmem:[#allocation5 + $0x248] sm:$0xff]
        %v631 = vld [vmem:[#allocation5 + $0x250] sm:$0xff]
        %v632 = vld [vmem:[#allocation5 + $0x258] sm:$0xff]
        %v633 = vld [vmem:[#allocation5 + $0x260] sm:$0xff]
        %v634 = vld [vmem:[#allocation5 + $0x268] sm:$0xff]
        %v635 = vld [vmem:[#allocation5 + $0x270] sm:$0xff]
        %v636 = vld [vmem:[#allocation5 + $0x278] sm:$0xff]
        %v637 = vld [vmem:[#allocation5 + $0x280] sm:$0xff]
        %v638 = vld [vmem:[#allocation5 + $0x288] sm:$0xff]
        %v639 = vld [vmem:[#allocation5 + $0x290] sm:$0xff]
        %v640 = vld [vmem:[#allocation5 + $0x298] sm:$0xff]
        %v641 = vld [vmem:[#allocation5 + $0x2a0] sm:$0xff]
        %v642 = vld [vmem:[#allocation5 + $0x2a8] sm:$0xff]
        %v643 = vld [vmem:[#allocation5 + $0x2b0] sm:$0xff]
        %v644 = vld [vmem:[#allocation5 + $0x2b8] sm:$0xff]
        %v645 = vld [vmem:[#allocation5 + $0x2c0] sm:$0xff]
        %v646 = vld [vmem:[#allocation5 + $0x2c8] sm:$0xff]
        %v647 = vld [vmem:[#allocation5 + $0x2d0] sm:$0xff]
        %v648 = vld [vmem:[#allocation5 + $0x2d8] sm:$0xff]
        %v649 = vld [vmem:[#allocation5 + $0x2e0] sm:$0xff]
        %v650 = vld [vmem:[#allocation5 + $0x2e8] sm:$0xff]
        %v651 = vld [vmem:[#allocation5 + $0x2f0] sm:$0xff]
        %v652 = vld [vmem:[#allocation5 + $0x2f8] sm:$0xff]
        %v653 = vld [vmem:[#allocation5 + $0x300] sm:$0xff]
        %v654 = vld [vmem:[#allocation5 + $0x308] sm:$0xff]
        %v655 = vld [vmem:[#allocation5 + $0x310] sm:$0xff]
        %v656 = vld [vmem:[#allocation5 + $0x318] sm:$0xff]
        %v657 = vld [vmem:[#allocation5 + $0x320] sm:$0xff]
        %v658 = vld [vmem:[#allocation5 + $0x328] sm:$0xff]
        %v659 = vld [vmem:[#allocation5 + $0x330] sm:$0xff]
        %v660 = vld [vmem:[#allocation5 + $0x338] sm:$0xff]
        %v661 = vld [vmem:[#allocation5 + $0x340] sm:$0xff]
        %v662 = vld [vmem:[#allocation5 + $0x348] sm:$0xff]
        %v663 = vld [vmem:[#allocation5 + $0x350] sm:$0xff]
        %v664 = vld [vmem:[#allocation5 + $0x358] sm:$0xff]
        %v665 = vld [vmem:[#allocation5 + $0x360] sm:$0xff]
        %v666 = vld [vmem:[#allocation5 + $0x368] sm:$0xff]
        %v667 = vld [vmem:[#allocation5 + $0x370] sm:$0xff]
        %v668 = vld [vmem:[#allocation5 + $0x378] sm:$0xff]
        %v669 = vld [vmem:[#allocation5 + $0x380] sm:$0xff]
        %v670 = vld [vmem:[#allocation5 + $0x388] sm:$0xff]
        %v671 = vld [vmem:[#allocation5 + $0x390] sm:$0xff]
        %v672 = vld [vmem:[#allocation5 + $0x398] sm:$0xff]
        %v673 = vld [vmem:[#allocation5 + $0x3a0] sm:$0xff]
        %v674 = vld [vmem:[#allocation5 + $0x3a8] sm:$0xff]
        %v675 = vld [vmem:[#allocation5 + $0x3b0] sm:$0xff]
        %v676 = vld [vmem:[#allocation5 + $0x3b8] sm:$0xff]
        %v677 = vld [vmem:[#allocation5 + $0x3c0] sm:$0xff]
        %v678 = vld [vmem:[#allocation5 + $0x3c8] sm:$0xff]
        %v679 = vld [vmem:[#allocation5 + $0x3d0] sm:$0xff]
        %v680 = vld [vmem:[#allocation5 + $0x3d8] sm:$0xff]
        %v681 = vld [vmem:[#allocation5 + $0x3e0] sm:$0xff]
        %v682 = vld [vmem:[#allocation5 + $0x3e8] sm:$0xff]
        %v683 = vld [vmem:[#allocation5 + $0x3f0] sm:$0xff]
        %v684 = vld [vmem:[#allocation5 + $0x3f8] sm:$0xff]
        %v685 = vld [vmem:[#allocation7] sm:$0xf]
        %v687 = vlaneseq
        %v688 = vshrl.u32 %v687, 7
        %v689 = vsub.s32 0, %v688
        %v690 = vrot.slane %v685, %v689
        %v691 = vlaneseq
        %v692 = vshrl.u32 %v691, 7
        %v693 = vsub.s32 1, %v692
        %v694 = vrot.slane %v685, %v693
        %v695 = vlaneseq
        %v696 = vshrl.u32 %v695, 7
        %v697 = vsub.s32 2, %v696
        %v698 = vrot.slane %v685, %v697
        %v699 = vlaneseq
        %v700 = vshrl.u32 %v699, 7
        %v701 = vsub.s32 3, %v700
        %v702 = vrot.slane %v685, %v701
        %707 = vmatprep.subr.mxu0 %v618
        %708 = vmatpush1.msra.mxu0 %v617
        %709 = vmatprep.subr.mxu0 %v614
        %710 = vmatpush1.msra.mxu0 %v613
        %711 = vmatprep.subr.mxu0 %v610
        %712 = vmatpush1.msra.mxu0 %v609
        %713 = vmatprep.subr.mxu0 %v606
        %714 = vmatpush1.msra.mxu0 %v605
        %715 = vmatprep.subr.mxu0 %v602
        %716 = vmatpush1.msra.mxu0 %v601
        %717 = vmatprep.subr.mxu0 %v598
        %718 = vmatpush1.msra.mxu0 %v597
        %719 = vmatprep.subr.mxu0 %v594
        %720 = vmatpush1.msra.mxu0 %v593
        %721 = vmatprep.subr.mxu0 %v590
        %722 = vmatpush1.msra.mxu0 %v589
        %723 = vmatprep.subr.mxu0 %v586
        %724 = vmatpush1.msra.mxu0 %v585
        %725 = vmatprep.subr.mxu0 %v582
        %726 = vmatpush1.msra.mxu0 %v581
        %727 = vmatprep.subr.mxu0 %v578
        %728 = vmatpush1.msra.mxu0 %v577
        %729 = vmatprep.subr.mxu0 %v574
        %730 = vmatpush1.msra.mxu0 %v573
        %731 = vmatprep.subr.mxu0 %v570
        %732 = vmatpush1.msra.mxu0 %v569
        %733 = vmatprep.subr.mxu0 %v566
        %734 = vmatpush1.msra.mxu0 %v565
        %735 = vmatprep.subr.mxu0 %v562
        %736 = vmatpush1.msra.mxu0 %v561
        %737 = vmatprep.subr.mxu0 %v558
        %738 = vmatpush1.msra.mxu0 %v557
        %739 = vmatprep.subr.mxu0 %v682
        %740 = vmatpush2.msra.mxu0 %v681
        %741 = vmatprep.subr.mxu0 %v678
        %742 = vmatpush2.msra.mxu0 %v677
        %743 = vmatprep.subr.mxu0 %v674
        %744 = vmatpush2.msra.mxu0 %v673
        %745 = vmatprep.subr.mxu0 %v670
        %746 = vmatpush2.msra.mxu0 %v669
        %747 = vmatprep.subr.mxu0 %v666
        %748 = vmatpush2.msra.mxu0 %v665
        %749 = vmatprep.subr.mxu0 %v662
        %750 = vmatpush2.msra.mxu0 %v661
        %751 = vmatprep.subr.mxu0 %v658
        %752 = vmatpush2.msra.mxu0 %v657
        %753 = vmatprep.subr.mxu0 %v654
        %754 = vmatpush2.msra.mxu0 %v653
        %755 = vmatprep.subr.mxu0 %v650
        %756 = vmatpush2.msra.mxu0 %v649
        %757 = vmatprep.subr.mxu0 %v646
        %758 = vmatpush2.msra.mxu0 %v645
        %759 = vmatprep.subr.mxu0 %v642
        %760 = vmatpush2.msra.mxu0 %v641
        %761 = vmatprep.subr.mxu0 %v638
        %762 = vmatpush2.msra.mxu0 %v637
        %763 = vmatprep.subr.mxu0 %v634
        %764 = vmatpush2.msra.mxu0 %v633
        %765 = vmatprep.subr.mxu0 %v630
        %766 = vmatpush2.msra.mxu0 %v629
        %767 = vmatprep.subr.mxu0 %v626
        %768 = vmatpush2.msra.mxu0 %v625
        %769 = vmatprep.subr.mxu0 %v622
        %770 = vmatpush2.msra.mxu0 %v621
        %771 = vmatprep.mubr.f32.mxu0 %v494
        %772 = vmatmul.mubr.f32.gmra.mxu0 %v493
        %v773 = vpop.f32.mrf.mxu0
        %v774 = vadd.f32 %v690, %v773
        %v775 = vpop.f32.mrf.mxu0
        %v776 = vadd.f32 %v694, %v775
        %777 = vmatprep.mubr.f32.mxu0 %v496
        %778 = vmatmul.mubr.f32.gmra.mxu0 %v495
        %v779 = vpop.f32.mrf.mxu0
        %v780 = vadd.f32 %v690, %v779
        %v781 = vpop.f32.mrf.mxu0
        %v782 = vadd.f32 %v694, %v781
        %783 = vmatprep.mubr.f32.mxu0 %v498
        %784 = vmatmul.mubr.f32.gmra.mxu0 %v497
        %v785 = vpop.f32.mrf.mxu0
        %v786 = vadd.f32 %v690, %v785
        %v787 = vpop.f32.mrf.mxu0
        %v788 = vadd.f32 %v694, %v787
        %789 = vmatprep.mubr.f32.mxu0 %v500
        %790 = vmatmul.mubr.f32.gmra.mxu0 %v499
        %v791 = vpop.f32.mrf.mxu0
        %v792 = vadd.f32 %v690, %v791
        %v793 = vpop.f32.mrf.mxu0
        %v794 = vadd.f32 %v694, %v793
        %795 = vmatprep.mubr.f32.mxu0 %v502
        %796 = vmatmul.mubr.f32.gmra.mxu0 %v501
        %v797 = vpop.f32.mrf.mxu0
        %v798 = vadd.f32 %v690, %v797
        %v799 = vpop.f32.mrf.mxu0
        %v800 = vadd.f32 %v694, %v799
        %801 = vmatprep.mubr.f32.mxu0 %v504
        %802 = vmatmul.mubr.f32.gmra.mxu0 %v503
        %v803 = vpop.f32.mrf.mxu0
        %v804 = vadd.f32 %v690, %v803
        %v805 = vpop.f32.mrf.mxu0
        %v806 = vadd.f32 %v694, %v805
        %807 = vmatprep.mubr.f32.mxu0 %v506
        %808 = vmatmul.mubr.f32.gmra.mxu0 %v505
        %v809 = vpop.f32.mrf.mxu0
        %v810 = vadd.f32 %v690, %v809
        %v811 = vpop.f32.mrf.mxu0
        %v812 = vadd.f32 %v694, %v811
        %813 = vmatprep.mubr.f32.mxu0 %v508
        %814 = vmatmul.mubr.f32.gmra.mxu0 %v507
        %v815 = vpop.f32.mrf.mxu0
        %v816 = vadd.f32 %v690, %v815
        %v817 = vpop.f32.mrf.mxu0
        %v818 = vadd.f32 %v694, %v817
        %819 = vmatprep.mubr.f32.mxu0 %v510
        %820 = vmatmul.mubr.f32.gmra.mxu0 %v509
        %v821 = vpop.f32.mrf.mxu0
        %v822 = vadd.f32 %v690, %v821
        %v823 = vpop.f32.mrf.mxu0
        %v824 = vadd.f32 %v694, %v823
        %825 = vmatprep.mubr.f32.mxu0 %v512
        %826 = vmatmul.mubr.f32.gmra.mxu0 %v511
        %v827 = vpop.f32.mrf.mxu0
        %v828 = vadd.f32 %v690, %v827
        %v829 = vpop.f32.mrf.mxu0
        %v830 = vadd.f32 %v694, %v829
        %831 = vmatprep.mubr.f32.mxu0 %v514
        %832 = vmatmul.mubr.f32.gmra.mxu0 %v513
        %v833 = vpop.f32.mrf.mxu0
        %v834 = vadd.f32 %v690, %v833
        %v835 = vpop.f32.mrf.mxu0
        %v836 = vadd.f32 %v694, %v835
        %837 = vmatprep.mubr.f32.mxu0 %v516
        %838 = vmatmul.mubr.f32.gmra.mxu0 %v515
        %v839 = vpop.f32.mrf.mxu0
        %v840 = vadd.f32 %v690, %v839
        %v841 = vpop.f32.mrf.mxu0
        %v842 = vadd.f32 %v694, %v841
        %843 = vmatprep.mubr.f32.mxu0 %v518
        %844 = vmatmul.mubr.f32.gmra.mxu0 %v517
        %v845 = vpop.f32.mrf.mxu0
        %v846 = vadd.f32 %v690, %v845
        %v847 = vpop.f32.mrf.mxu0
        %v848 = vadd.f32 %v694, %v847
        %849 = vmatprep.mubr.f32.mxu0 %v520
        %850 = vmatmul.mubr.f32.gmra.mxu0 %v519
        %v851 = vpop.f32.mrf.mxu0
        %v852 = vadd.f32 %v690, %v851
        %v853 = vpop.f32.mrf.mxu0
        %v854 = vadd.f32 %v694, %v853
        %855 = vmatprep.mubr.f32.mxu0 %v522
        %856 = vmatmul.mubr.f32.gmra.mxu0 %v521
        %v857 = vpop.f32.mrf.mxu0
        %v858 = vadd.f32 %v690, %v857
        %v859 = vpop.f32.mrf.mxu0
        %v860 = vadd.f32 %v694, %v859
        %861 = vmatprep.mubr.f32.mxu0 %v524
        %862 = vmatmul.mubr.f32.gmra.mxu0 %v523
        %v863 = vpop.f32.mrf.mxu0
        %v864 = vadd.f32 %v690, %v863
        %v865 = vpop.f32.mrf.mxu0
        %v866 = vadd.f32 %v694, %v865
        %867 = vmatprep.mubr.f32.mxu0 %v526
        %868 = vmatmul.mubr.f32.gmra.mxu0 %v525
        %v869 = vpop.f32.mrf.mxu0
        %v870 = vadd.f32 %v690, %v869
        %v871 = vpop.f32.mrf.mxu0
        %v872 = vadd.f32 %v694, %v871
        %873 = vmatprep.mubr.f32.mxu0 %v528
        %874 = vmatmul.mubr.f32.gmra.mxu0 %v527
        %v875 = vpop.f32.mrf.mxu0
        %v876 = vadd.f32 %v690, %v875
        %v877 = vpop.f32.mrf.mxu0
        %v878 = vadd.f32 %v694, %v877
        %879 = vmatprep.mubr.f32.mxu0 %v530
        %880 = vmatmul.mubr.f32.gmra.mxu0 %v529
        %v881 = vpop.f32.mrf.mxu0
        %v882 = vadd.f32 %v690, %v881
        %v883 = vpop.f32.mrf.mxu0
        %v884 = vadd.f32 %v694, %v883
        %885 = vmatprep.mubr.f32.mxu0 %v532
        %886 = vmatmul.mubr.f32.gmra.mxu0 %v531
        %v887 = vpop.f32.mrf.mxu0
        %v888 = vadd.f32 %v690, %v887
        %v889 = vpop.f32.mrf.mxu0
        %v890 = vadd.f32 %v694, %v889
        %891 = vmatprep.mubr.f32.mxu0 %v534
        %892 = vmatmul.mubr.f32.gmra.mxu0 %v533
        %v893 = vpop.f32.mrf.mxu0
        %v894 = vadd.f32 %v690, %v893
        %v895 = vpop.f32.mrf.mxu0
        %v896 = vadd.f32 %v694, %v895
        %897 = vmatprep.mubr.f32.mxu0 %v536
        %898 = vmatmul.mubr.f32.gmra.mxu0 %v535
        %v899 = vpop.f32.mrf.mxu0
        %v900 = vadd.f32 %v690, %v899
        %v901 = vpop.f32.mrf.mxu0
        %v902 = vadd.f32 %v694, %v901
        %903 = vmatprep.mubr.f32.mxu0 %v538
        %904 = vmatmul.mubr.f32.gmra.mxu0 %v537
        %v905 = vpop.f32.mrf.mxu0
        %v906 = vadd.f32 %v690, %v905
        %v907 = vpop.f32.mrf.mxu0
        %v908 = vadd.f32 %v694, %v907
        %909 = vmatprep.mubr.f32.mxu0 %v540
        %910 = vmatmul.mubr.f32.gmra.mxu0 %v539
        %v911 = vpop.f32.mrf.mxu0
        %v912 = vadd.f32 %v690, %v911
        %v913 = vpop.f32.mrf.mxu0
        %v914 = vadd.f32 %v694, %v913
        %915 = vmatprep.mubr.f32.mxu0 %v542
        %916 = vmatmul.mubr.f32.gmra.mxu0 %v541
        %v917 = vpop.f32.mrf.mxu0
        %v918 = vadd.f32 %v690, %v917
        %v919 = vpop.f32.mrf.mxu0
        %v920 = vadd.f32 %v694, %v919
        %921 = vmatprep.mubr.f32.mxu0 %v544
        %922 = vmatmul.mubr.f32.gmra.mxu0 %v543
        %v923 = vpop.f32.mrf.mxu0
        %v924 = vadd.f32 %v690, %v923
        %v925 = vpop.f32.mrf.mxu0
        %v926 = vadd.f32 %v694, %v925
        %927 = vmatprep.mubr.f32.mxu0 %v546
        %928 = vmatmul.mubr.f32.gmra.mxu0 %v545
        %v929 = vpop.f32.mrf.mxu0
        %v930 = vadd.f32 %v690, %v929
        %v931 = vpop.f32.mrf.mxu0
        %v932 = vadd.f32 %v694, %v931
        %933 = vmatprep.mubr.f32.mxu0 %v548
        %934 = vmatmul.mubr.f32.gmra.mxu0 %v547
        %v935 = vpop.f32.mrf.mxu0
        %v936 = vadd.f32 %v690, %v935
        %v937 = vpop.f32.mrf.mxu0
        %v938 = vadd.f32 %v694, %v937
        %939 = vmatprep.mubr.f32.mxu0 %v550
        %940 = vmatmul.mubr.f32.gmra.mxu0 %v549
        %v941 = vpop.f32.mrf.mxu0
        %v942 = vadd.f32 %v690, %v941
        %v943 = vpop.f32.mrf.mxu0
        %v944 = vadd.f32 %v694, %v943
        %945 = vmatprep.mubr.f32.mxu0 %v552
        %946 = vmatmul.mubr.f32.gmra.mxu0 %v551
        %v947 = vpop.f32.mrf.mxu0
        %v948 = vadd.f32 %v690, %v947
        %v949 = vpop.f32.mrf.mxu0
        %v950 = vadd.f32 %v694, %v949
        %951 = vmatprep.mubr.f32.mxu0 %v554
        %952 = vmatmul.mubr.f32.gmra.mxu0 %v553
        %v953 = vpop.f32.mrf.mxu0
        %v954 = vadd.f32 %v690, %v953
        %v955 = vpop.f32.mrf.mxu0
        %v956 = vadd.f32 %v694, %v955
        %957 = vmatprep.mubr.f32.mxu0 %v556
        %958 = vmatmul.mubr.f32.gmra.mxu0 %v555
        %v959 = vpop.f32.mrf.mxu0
        %v960 = vadd.f32 %v690, %v959
        %v961 = vpop.f32.mrf.mxu0
        %v962 = vadd.f32 %v694, %v961
        %963 = vdwg.mxu0
        %964 = vmatprep.subr.mxu0 %v620
        %965 = vmatpush1.msra.mxu0 %v619
        %966 = vmatprep.subr.mxu0 %v616
        %967 = vmatpush1.msra.mxu0 %v615
        %968 = vmatprep.subr.mxu0 %v612
        %969 = vmatpush1.msra.mxu0 %v611
        %970 = vmatprep.subr.mxu0 %v608
        %971 = vmatpush1.msra.mxu0 %v607
        %972 = vmatprep.subr.mxu0 %v604
        %973 = vmatpush1.msra.mxu0 %v603
        %974 = vmatprep.subr.mxu0 %v600
        %975 = vmatpush1.msra.mxu0 %v599
        %976 = vmatprep.subr.mxu0 %v596
        %977 = vmatpush1.msra.mxu0 %v595
        %978 = vmatprep.subr.mxu0 %v592
        %979 = vmatpush1.msra.mxu0 %v591
        %980 = vmatprep.subr.mxu0 %v588
        %981 = vmatpush1.msra.mxu0 %v587
        %982 = vmatprep.subr.mxu0 %v584
        %983 = vmatpush1.msra.mxu0 %v583
        %984 = vmatprep.subr.mxu0 %v580
        %985 = vmatpush1.msra.mxu0 %v579
        %986 = vmatprep.subr.mxu0 %v576
        %987 = vmatpush1.msra.mxu0 %v575
        %988 = vmatprep.subr.mxu0 %v572
        %989 = vmatpush1.msra.mxu0 %v571
        %990 = vmatprep.subr.mxu0 %v568
        %991 = vmatpush1.msra.mxu0 %v567
        %992 = vmatprep.subr.mxu0 %v564
        %993 = vmatpush1.msra.mxu0 %v563
        %994 = vmatprep.subr.mxu0 %v560
        %995 = vmatpush1.msra.mxu0 %v559
        %996 = vmatprep.subr.mxu0 %v684
        %997 = vmatpush2.msra.mxu0 %v683
        %998 = vmatprep.subr.mxu0 %v680
        %999 = vmatpush2.msra.mxu0 %v679
        %1000 = vmatprep.subr.mxu0 %v676
        %1001 = vmatpush2.msra.mxu0 %v675
        %1002 = vmatprep.subr.mxu0 %v672
        %1003 = vmatpush2.msra.mxu0 %v671
        %1004 = vmatprep.subr.mxu0 %v668
        %1005 = vmatpush2.msra.mxu0 %v667
        %1006 = vmatprep.subr.mxu0 %v664
        %1007 = vmatpush2.msra.mxu0 %v663
        %1008 = vmatprep.subr.mxu0 %v660
        %1009 = vmatpush2.msra.mxu0 %v659
        %1010 = vmatprep.subr.mxu0 %v656
        %1011 = vmatpush2.msra.mxu0 %v655
        %1012 = vmatprep.subr.mxu0 %v652
        %1013 = vmatpush2.msra.mxu0 %v651
        %1014 = vmatprep.subr.mxu0 %v648
        %1015 = vmatpush2.msra.mxu0 %v647
        %1016 = vmatprep.subr.mxu0 %v644
        %1017 = vmatpush2.msra.mxu0 %v643
        %1018 = vmatprep.subr.mxu0 %v640
        %1019 = vmatpush2.msra.mxu0 %v639
        %1020 = vmatprep.subr.mxu0 %v636
        %1021 = vmatpush2.msra.mxu0 %v635
        %1022 = vmatprep.subr.mxu0 %v632
        %1023 = vmatpush2.msra.mxu0 %v631
        %1024 = vmatprep.subr.mxu0 %v628
        %1025 = vmatpush2.msra.mxu0 %v627
        %1026 = vmatprep.subr.mxu0 %v624
        %1027 = vmatpush2.msra.mxu0 %v623
        %1028 = vmatprep.mubr.f32.mxu0 %v494
        %1029 = vmatmul.mubr.f32.gmra.mxu0 %v493
        %v1030 = vpop.f32.mrf.mxu0
        %v1031 = vadd.f32 %v698, %v1030
        %v1032 = vpop.f32.mrf.mxu0
        %v1033 = vadd.f32 %v702, %v1032
        %1034 = vmatprep.mubr.f32.mxu0 %v496
        %1035 = vmatmul.mubr.f32.gmra.mxu0 %v495
        %v1036 = vpop.f32.mrf.mxu0
        %v1037 = vadd.f32 %v698, %v1036
        %v1038 = vpop.f32.mrf.mxu0
        %v1039 = vadd.f32 %v702, %v1038
        %1040 = vmatprep.mubr.f32.mxu0 %v498
        %1041 = vmatmul.mubr.f32.gmra.mxu0 %v497
        %v1042 = vpop.f32.mrf.mxu0
        %v1043 = vadd.f32 %v698, %v1042
        %v1044 = vpop.f32.mrf.mxu0
        %v1045 = vadd.f32 %v702, %v1044
        %1046 = vmatprep.mubr.f32.mxu0 %v500
        %1047 = vmatmul.mubr.f32.gmra.mxu0 %v499
        %v1048 = vpop.f32.mrf.mxu0
        %v1049 = vadd.f32 %v698, %v1048
        %v1050 = vpop.f32.mrf.mxu0
        %v1051 = vadd.f32 %v702, %v1050
        %1052 = vmatprep.mubr.f32.mxu0 %v502
        %1053 = vmatmul.mubr.f32.gmra.mxu0 %v501
        %v1054 = vpop.f32.mrf.mxu0
        %v1055 = vadd.f32 %v698, %v1054
        %v1056 = vpop.f32.mrf.mxu0
        %v1057 = vadd.f32 %v702, %v1056
        %1058 = vmatprep.mubr.f32.mxu0 %v504
        %1059 = vmatmul.mubr.f32.gmra.mxu0 %v503
        %v1060 = vpop.f32.mrf.mxu0
        %v1061 = vadd.f32 %v698, %v1060
        %v1062 = vpop.f32.mrf.mxu0
        %v1063 = vadd.f32 %v702, %v1062
        %1064 = vmatprep.mubr.f32.mxu0 %v506
        %1065 = vmatmul.mubr.f32.gmra.mxu0 %v505
        %v1066 = vpop.f32.mrf.mxu0
        %v1067 = vadd.f32 %v698, %v1066
        %v1068 = vpop.f32.mrf.mxu0
        %v1069 = vadd.f32 %v702, %v1068
        %1070 = vmatprep.mubr.f32.mxu0 %v508
        %1071 = vmatmul.mubr.f32.gmra.mxu0 %v507
        %v1072 = vpop.f32.mrf.mxu0
        %v1073 = vadd.f32 %v698, %v1072
        %v1074 = vpop.f32.mrf.mxu0
        %v1075 = vadd.f32 %v702, %v1074
        %1076 = vmatprep.mubr.f32.mxu0 %v510
        %1077 = vmatmul.mubr.f32.gmra.mxu0 %v509
        %v1078 = vpop.f32.mrf.mxu0
        %v1079 = vadd.f32 %v698, %v1078
        %v1080 = vpop.f32.mrf.mxu0
        %v1081 = vadd.f32 %v702, %v1080
        %1082 = vmatprep.mubr.f32.mxu0 %v512
        %1083 = vmatmul.mubr.f32.gmra.mxu0 %v511
        %v1084 = vpop.f32.mrf.mxu0
        %v1085 = vadd.f32 %v698, %v1084
        %v1086 = vpop.f32.mrf.mxu0
        %v1087 = vadd.f32 %v702, %v1086
        %1088 = vmatprep.mubr.f32.mxu0 %v514
        %1089 = vmatmul.mubr.f32.gmra.mxu0 %v513
        %v1090 = vpop.f32.mrf.mxu0
        %v1091 = vadd.f32 %v698, %v1090
        %v1092 = vpop.f32.mrf.mxu0
        %v1093 = vadd.f32 %v702, %v1092
        %1094 = vmatprep.mubr.f32.mxu0 %v516
        %1095 = vmatmul.mubr.f32.gmra.mxu0 %v515
        %v1096 = vpop.f32.mrf.mxu0
        %v1097 = vadd.f32 %v698, %v1096
        %v1098 = vpop.f32.mrf.mxu0
        %v1099 = vadd.f32 %v702, %v1098
        %1100 = vmatprep.mubr.f32.mxu0 %v518
        %1101 = vmatmul.mubr.f32.gmra.mxu0 %v517
        %v1102 = vpop.f32.mrf.mxu0
        %v1103 = vadd.f32 %v698, %v1102
        %v1104 = vpop.f32.mrf.mxu0
        %v1105 = vadd.f32 %v702, %v1104
        %1106 = vmatprep.mubr.f32.mxu0 %v520
        %1107 = vmatmul.mubr.f32.gmra.mxu0 %v519
        %v1108 = vpop.f32.mrf.mxu0
        %v1109 = vadd.f32 %v698, %v1108
        %v1110 = vpop.f32.mrf.mxu0
        %v1111 = vadd.f32 %v702, %v1110
        %1112 = vmatprep.mubr.f32.mxu0 %v522
        %1113 = vmatmul.mubr.f32.gmra.mxu0 %v521
        %v1114 = vpop.f32.mrf.mxu0
        %v1115 = vadd.f32 %v698, %v1114
        %v1116 = vpop.f32.mrf.mxu0
        %v1117 = vadd.f32 %v702, %v1116
        %1118 = vmatprep.mubr.f32.mxu0 %v524
        %1119 = vmatmul.mubr.f32.gmra.mxu0 %v523
        %v1120 = vpop.f32.mrf.mxu0
        %v1121 = vadd.f32 %v698, %v1120
        %v1122 = vpop.f32.mrf.mxu0
        %v1123 = vadd.f32 %v702, %v1122
        %1124 = vmatprep.mubr.f32.mxu0 %v526
        %1125 = vmatmul.mubr.f32.gmra.mxu0 %v525
        %v1126 = vpop.f32.mrf.mxu0
        %v1127 = vadd.f32 %v698, %v1126
        %v1128 = vpop.f32.mrf.mxu0
        %v1129 = vadd.f32 %v702, %v1128
        %1130 = vmatprep.mubr.f32.mxu0 %v528
        %1131 = vmatmul.mubr.f32.gmra.mxu0 %v527
        %v1132 = vpop.f32.mrf.mxu0
        %v1133 = vadd.f32 %v698, %v1132
        %v1134 = vpop.f32.mrf.mxu0
        %v1135 = vadd.f32 %v702, %v1134
        %1136 = vmatprep.mubr.f32.mxu0 %v530
        %1137 = vmatmul.mubr.f32.gmra.mxu0 %v529
        %v1138 = vpop.f32.mrf.mxu0
        %v1139 = vadd.f32 %v698, %v1138
        %v1140 = vpop.f32.mrf.mxu0
        %v1141 = vadd.f32 %v702, %v1140
        %1142 = vmatprep.mubr.f32.mxu0 %v532
        %1143 = vmatmul.mubr.f32.gmra.mxu0 %v531
        %v1144 = vpop.f32.mrf.mxu0
        %v1145 = vadd.f32 %v698, %v1144
        %v1146 = vpop.f32.mrf.mxu0
        %v1147 = vadd.f32 %v702, %v1146
        %1148 = vmatprep.mubr.f32.mxu0 %v534
        %1149 = vmatmul.mubr.f32.gmra.mxu0 %v533
        %v1150 = vpop.f32.mrf.mxu0
        %v1151 = vadd.f32 %v698, %v1150
        %v1152 = vpop.f32.mrf.mxu0
        %v1153 = vadd.f32 %v702, %v1152
        %1154 = vmatprep.mubr.f32.mxu0 %v536
        %1155 = vmatmul.mubr.f32.gmra.mxu0 %v535
        %v1156 = vpop.f32.mrf.mxu0
        %v1157 = vadd.f32 %v698, %v1156
        %v1158 = vpop.f32.mrf.mxu0
        %v1159 = vadd.f32 %v702, %v1158
        %1160 = vmatprep.mubr.f32.mxu0 %v538
        %1161 = vmatmul.mubr.f32.gmra.mxu0 %v537
        %v1162 = vpop.f32.mrf.mxu0
        %v1163 = vadd.f32 %v698, %v1162
        %v1164 = vpop.f32.mrf.mxu0
        %v1165 = vadd.f32 %v702, %v1164
        %1166 = vmatprep.mubr.f32.mxu0 %v540
        %1167 = vmatmul.mubr.f32.gmra.mxu0 %v539
        %v1168 = vpop.f32.mrf.mxu0
        %v1169 = vadd.f32 %v698, %v1168
        %v1170 = vpop.f32.mrf.mxu0
        %v1171 = vadd.f32 %v702, %v1170
        %1172 = vmatprep.mubr.f32.mxu0 %v542
        %1173 = vmatmul.mubr.f32.gmra.mxu0 %v541
        %v1174 = vpop.f32.mrf.mxu0
        %v1175 = vadd.f32 %v698, %v1174
        %v1176 = vpop.f32.mrf.mxu0
        %v1177 = vadd.f32 %v702, %v1176
        %1178 = vmatprep.mubr.f32.mxu0 %v544
        %1179 = vmatmul.mubr.f32.gmra.mxu0 %v543
        %v1180 = vpop.f32.mrf.mxu0
        %v1181 = vadd.f32 %v698, %v1180
        %v1182 = vpop.f32.mrf.mxu0
        %v1183 = vadd.f32 %v702, %v1182
        %1184 = vmatprep.mubr.f32.mxu0 %v546
        %1185 = vmatmul.mubr.f32.gmra.mxu0 %v545
        %v1186 = vpop.f32.mrf.mxu0
        %v1187 = vadd.f32 %v698, %v1186
        %v1188 = vpop.f32.mrf.mxu0
        %v1189 = vadd.f32 %v702, %v1188
        %1190 = vmatprep.mubr.f32.mxu0 %v548
        %1191 = vmatmul.mubr.f32.gmra.mxu0 %v547
        %v1192 = vpop.f32.mrf.mxu0
        %v1193 = vadd.f32 %v698, %v1192
        %v1194 = vpop.f32.mrf.mxu0
        %v1195 = vadd.f32 %v702, %v1194
        %1196 = vmatprep.mubr.f32.mxu0 %v550
        %1197 = vmatmul.mubr.f32.gmra.mxu0 %v549
        %v1198 = vpop.f32.mrf.mxu0
        %v1199 = vadd.f32 %v698, %v1198
        %v1200 = vpop.f32.mrf.mxu0
        %v1201 = vadd.f32 %v702, %v1200
        %1202 = vmatprep.mubr.f32.mxu0 %v552
        %1203 = vmatmul.mubr.f32.gmra.mxu0 %v551
        %v1204 = vpop.f32.mrf.mxu0
        %v1205 = vadd.f32 %v698, %v1204
        %v1206 = vpop.f32.mrf.mxu0
        %v1207 = vadd.f32 %v702, %v1206
        %1208 = vmatprep.mubr.f32.mxu0 %v554
        %1209 = vmatmul.mubr.f32.gmra.mxu0 %v553
        %v1210 = vpop.f32.mrf.mxu0
        %v1211 = vadd.f32 %v698, %v1210
        %v1212 = vpop.f32.mrf.mxu0
        %v1213 = vadd.f32 %v702, %v1212
        %1214 = vmatprep.mubr.f32.mxu0 %v556
        %1215 = vmatmul.mubr.f32.gmra.mxu0 %v555
        %v1216 = vpop.f32.mrf.mxu0
        %v1217 = vadd.f32 %v698, %v1216
        %v1218 = vpop.f32.mrf.mxu0
        %v1219 = vadd.f32 %v702, %v1218
        %1220 = vdwg.mxu0
        %v1221 = vmax.f32 %v774, 0.0
        %v1222 = vmax.f32 %v776, 0.0
        %v1223 = vmax.f32 %v1031, 0.0
        %v1224 = vmax.f32 %v1033, 0.0
        %v1225 = vmax.f32 %v780, 0.0
        %v1226 = vmax.f32 %v782, 0.0
        %v1227 = vmax.f32 %v1037, 0.0
        %v1228 = vmax.f32 %v1039, 0.0
        %v1229 = vmax.f32 %v786, 0.0
        %v1230 = vmax.f32 %v788, 0.0
        %v1231 = vmax.f32 %v1043, 0.0
        %v1232 = vmax.f32 %v1045, 0.0
        %v1233 = vmax.f32 %v792, 0.0
        %v1234 = vmax.f32 %v794, 0.0
        %v1235 = vmax.f32 %v1049, 0.0
        %v1236 = vmax.f32 %v1051, 0.0
        %v1237 = vmax.f32 %v798, 0.0
        %v1238 = vmax.f32 %v800, 0.0
        %v1239 = vmax.f32 %v1055, 0.0
        %v1240 = vmax.f32 %v1057, 0.0
        %v1241 = vmax.f32 %v804, 0.0
        %v1242 = vmax.f32 %v806, 0.0
        %v1243 = vmax.f32 %v1061, 0.0
        %v1244 = vmax.f32 %v1063, 0.0
        %v1245 = vmax.f32 %v810, 0.0
        %v1246 = vmax.f32 %v812, 0.0
        %v1247 = vmax.f32 %v1067, 0.0
        %v1248 = vmax.f32 %v1069, 0.0
        %v1249 = vmax.f32 %v816, 0.0
        %v1250 = vmax.f32 %v818, 0.0
        %v1251 = vmax.f32 %v1073, 0.0
        %v1252 = vmax.f32 %v1075, 0.0
        %v1253 = vmax.f32 %v822, 0.0
        %v1254 = vmax.f32 %v824, 0.0
        %v1255 = vmax.f32 %v1079, 0.0
        %v1256 = vmax.f32 %v1081, 0.0
        %v1257 = vmax.f32 %v828, 0.0
        %v1258 = vmax.f32 %v830, 0.0
        %v1259 = vmax.f32 %v1085, 0.0
        %v1260 = vmax.f32 %v1087, 0.0
        %v1261 = vmax.f32 %v834, 0.0
        %v1262 = vmax.f32 %v836, 0.0
        %v1263 = vmax.f32 %v1091, 0.0
        %v1264 = vmax.f32 %v1093, 0.0
        %v1265 = vmax.f32 %v840, 0.0
        %v1266 = vmax.f32 %v842, 0.0
        %v1267 = vmax.f32 %v1097, 0.0
        %v1268 = vmax.f32 %v1099, 0.0
        %v1269 = vmax.f32 %v846, 0.0
        %v1270 = vmax.f32 %v848, 0.0
        %v1271 = vmax.f32 %v1103, 0.0
        %v1272 = vmax.f32 %v1105, 0.0
        %v1273 = vmax.f32 %v852, 0.0
        %v1274 = vmax.f32 %v854, 0.0
        %v1275 = vmax.f32 %v1109, 0.0
        %v1276 = vmax.f32 %v1111, 0.0
        %v1277 = vmax.f32 %v858, 0.0
        %v1278 = vmax.f32 %v860, 0.0
        %v1279 = vmax.f32 %v1115, 0.0
        %v1280 = vmax.f32 %v1117, 0.0
        %v1281 = vmax.f32 %v864, 0.0
        %v1282 = vmax.f32 %v866, 0.0
        %v1283 = vmax.f32 %v1121, 0.0
        %v1284 = vmax.f32 %v1123, 0.0
        %v1285 = vmax.f32 %v870, 0.0
        %v1286 = vmax.f32 %v872, 0.0
        %v1287 = vmax.f32 %v1127, 0.0
        %v1288 = vmax.f32 %v1129, 0.0
        %v1289 = vmax.f32 %v876, 0.0
        %v1290 = vmax.f32 %v878, 0.0
        %v1291 = vmax.f32 %v1133, 0.0
        %v1292 = vmax.f32 %v1135, 0.0
        %v1293 = vmax.f32 %v882, 0.0
        %v1294 = vmax.f32 %v884, 0.0
        %v1295 = vmax.f32 %v1139, 0.0
        %v1296 = vmax.f32 %v1141, 0.0
        %v1297 = vmax.f32 %v888, 0.0
        %v1298 = vmax.f32 %v890, 0.0
        %v1299 = vmax.f32 %v1145, 0.0
        %v1300 = vmax.f32 %v1147, 0.0
        %v1301 = vmax.f32 %v894, 0.0
        %v1302 = vmax.f32 %v896, 0.0
        %v1303 = vmax.f32 %v1151, 0.0
        %v1304 = vmax.f32 %v1153, 0.0
        %v1305 = vmax.f32 %v900, 0.0
        %v1306 = vmax.f32 %v902, 0.0
        %v1307 = vmax.f32 %v1157, 0.0
        %v1308 = vmax.f32 %v1159, 0.0
        %v1309 = vmax.f32 %v906, 0.0
        %v1310 = vmax.f32 %v908, 0.0
        %v1311 = vmax.f32 %v1163, 0.0
        %v1312 = vmax.f32 %v1165, 0.0
        %v1313 = vmax.f32 %v912, 0.0
        %v1314 = vmax.f32 %v914, 0.0
        %v1315 = vmax.f32 %v1169, 0.0
        %v1316 = vmax.f32 %v1171, 0.0
        %v1317 = vmax.f32 %v918, 0.0
        %v1318 = vmax.f32 %v920, 0.0
        %v1319 = vmax.f32 %v1175, 0.0
        %v1320 = vmax.f32 %v1177, 0.0
        %v1321 = vmax.f32 %v924, 0.0
        %v1322 = vmax.f32 %v926, 0.0
        %v1323 = vmax.f32 %v1181, 0.0
        %v1324 = vmax.f32 %v1183, 0.0
        %v1325 = vmax.f32 %v930, 0.0
        %v1326 = vmax.f32 %v932, 0.0
        %v1327 = vmax.f32 %v1187, 0.0
        %v1328 = vmax.f32 %v1189, 0.0
        %v1329 = vmax.f32 %v936, 0.0
        %v1330 = vmax.f32 %v938, 0.0
        %v1331 = vmax.f32 %v1193, 0.0
        %v1332 = vmax.f32 %v1195, 0.0
        %v1333 = vmax.f32 %v942, 0.0
        %v1334 = vmax.f32 %v944, 0.0
        %v1335 = vmax.f32 %v1199, 0.0
        %v1336 = vmax.f32 %v1201, 0.0
        %v1337 = vmax.f32 %v948, 0.0
        %v1338 = vmax.f32 %v950, 0.0
        %v1339 = vmax.f32 %v1205, 0.0
        %v1340 = vmax.f32 %v1207, 0.0
        %v1341 = vmax.f32 %v954, 0.0
        %v1342 = vmax.f32 %v956, 0.0
        %v1343 = vmax.f32 %v1211, 0.0
        %v1344 = vmax.f32 %v1213, 0.0
        %v1345 = vmax.f32 %v960, 0.0
        %v1346 = vmax.f32 %v962, 0.0
        %v1347 = vmax.f32 %v1217, 0.0
        %v1348 = vmax.f32 %v1219, 0.0
        %v1349 = vld [vmem:[#allocation8] sm:$0xff]
        %v1350 = vld [vmem:[#allocation8 + $0x8] sm:$0xff]
        %v1351 = vld [vmem:[#allocation8 + $0x10] sm:$0xff]
        %v1352 = vld [vmem:[#allocation8 + $0x18] sm:$0xff]
        %v1353 = vld [vmem:[#allocation8 + $0x20] sm:$0xff]
        %v1354 = vld [vmem:[#allocation8 + $0x28] sm:$0xff]
        %v1355 = vld [vmem:[#allocation8 + $0x30] sm:$0xff]
        %v1356 = vld [vmem:[#allocation8 + $0x38] sm:$0xff]
        %v1357 = vld [vmem:[#allocation8 + $0x40] sm:$0xff]
        %v1358 = vld [vmem:[#allocation8 + $0x48] sm:$0xff]
        %v1359 = vld [vmem:[#allocation8 + $0x50] sm:$0xff]
        %v1360 = vld [vmem:[#allocation8 + $0x58] sm:$0xff]
        %v1361 = vld [vmem:[#allocation8 + $0x60] sm:$0xff]
        %v1362 = vld [vmem:[#allocation8 + $0x68] sm:$0xff]
        %v1363 = vld [vmem:[#allocation8 + $0x70] sm:$0xff]
        %v1364 = vld [vmem:[#allocation8 + $0x78] sm:$0xff]
        %v1365 = vld [vmem:[#allocation8 + $0x80] sm:$0xff]
        %v1366 = vld [vmem:[#allocation8 + $0x88] sm:$0xff]
        %v1367 = vld [vmem:[#allocation8 + $0x90] sm:$0xff]
        %v1368 = vld [vmem:[#allocation8 + $0x98] sm:$0xff]
        %v1369 = vld [vmem:[#allocation8 + $0xa0] sm:$0xff]
        %v1370 = vld [vmem:[#allocation8 + $0xa8] sm:$0xff]
        %v1371 = vld [vmem:[#allocation8 + $0xb0] sm:$0xff]
        %v1372 = vld [vmem:[#allocation8 + $0xb8] sm:$0xff]
        %v1373 = vld [vmem:[#allocation8 + $0xc0] sm:$0xff]
        %v1374 = vld [vmem:[#allocation8 + $0xc8] sm:$0xff]
        %v1375 = vld [vmem:[#allocation8 + $0xd0] sm:$0xff]
        %v1376 = vld [vmem:[#allocation8 + $0xd8] sm:$0xff]
        %v1377 = vld [vmem:[#allocation8 + $0xe0] sm:$0xff]
        %v1378 = vld [vmem:[#allocation8 + $0xe8] sm:$0xff]
        %v1379 = vld [vmem:[#allocation8 + $0xf0] sm:$0xff]
        %v1380 = vld [vmem:[#allocation8 + $0xf8] sm:$0xff]
        %v1381 = vld [vmem:[#allocation8 + $0x100] sm:$0xff]
        %v1382 = vld [vmem:[#allocation8 + $0x108] sm:$0xff]
        %v1383 = vld [vmem:[#allocation8 + $0x110] sm:$0xff]
        %v1384 = vld [vmem:[#allocation8 + $0x118] sm:$0xff]
        %v1385 = vld [vmem:[#allocation8 + $0x120] sm:$0xff]
        %v1386 = vld [vmem:[#allocation8 + $0x128] sm:$0xff]
        %v1387 = vld [vmem:[#allocation8 + $0x130] sm:$0xff]
        %v1388 = vld [vmem:[#allocation8 + $0x138] sm:$0xff]
        %v1389 = vld [vmem:[#allocation8 + $0x140] sm:$0xff]
        %v1390 = vld [vmem:[#allocation8 + $0x148] sm:$0xff]
        %v1391 = vld [vmem:[#allocation8 + $0x150] sm:$0xff]
        %v1392 = vld [vmem:[#allocation8 + $0x158] sm:$0xff]
        %v1393 = vld [vmem:[#allocation8 + $0x160] sm:$0xff]
        %v1394 = vld [vmem:[#allocation8 + $0x168] sm:$0xff]
        %v1395 = vld [vmem:[#allocation8 + $0x170] sm:$0xff]
        %v1396 = vld [vmem:[#allocation8 + $0x178] sm:$0xff]
        %v1397 = vld [vmem:[#allocation8 + $0x180] sm:$0xff]
        %v1398 = vld [vmem:[#allocation8 + $0x188] sm:$0xff]
        %v1399 = vld [vmem:[#allocation8 + $0x190] sm:$0xff]
        %v1400 = vld [vmem:[#allocation8 + $0x198] sm:$0xff]
        %v1401 = vld [vmem:[#allocation8 + $0x1a0] sm:$0xff]
        %v1402 = vld [vmem:[#allocation8 + $0x1a8] sm:$0xff]
        %v1403 = vld [vmem:[#allocation8 + $0x1b0] sm:$0xff]
        %v1404 = vld [vmem:[#allocation8 + $0x1b8] sm:$0xff]
        %v1405 = vld [vmem:[#allocation8 + $0x1c0] sm:$0xff]
        %v1406 = vld [vmem:[#allocation8 + $0x1c8] sm:$0xff]
        %v1407 = vld [vmem:[#allocation8 + $0x1d0] sm:$0xff]
        %v1408 = vld [vmem:[#allocation8 + $0x1d8] sm:$0xff]
        %v1409 = vld [vmem:[#allocation8 + $0x1e0] sm:$0xff]
        %v1410 = vld [vmem:[#allocation8 + $0x1e8] sm:$0xff]
        %v1411 = vld [vmem:[#allocation8 + $0x1f0] sm:$0xff]
        %v1412 = vld [vmem:[#allocation8 + $0x1f8] sm:$0xff]
        %v1413 = vld [vmem:[%s4] sm:$0x1]
        %v1415 = vlaneseq
        %v1416 = vshrl.u32 %v1415, 7
        %v1417 = vsub.s32 0, %v1416
        %v1418 = vrot.slane %v1413, %v1417
        %1420 = vmatprep.subr.mxu0 0.0
        %1421 = vmatpush1.msra.mxu0 %v1364
        %1422 = vmatprep.subr.mxu0 0.0
        %1423 = vmatpush1.msra.mxu0 %v1363
        %1424 = vmatprep.subr.mxu0 0.0
        %1425 = vmatpush1.msra.mxu0 %v1362
        %1426 = vmatprep.subr.mxu0 0.0
        %1427 = vmatpush1.msra.mxu0 %v1361
        %1428 = vmatprep.subr.mxu0 0.0
        %1429 = vmatpush1.msra.mxu0 %v1360
        %1430 = vmatprep.subr.mxu0 0.0
        %1431 = vmatpush1.msra.mxu0 %v1359
        %1432 = vmatprep.subr.mxu0 0.0
        %1433 = vmatpush1.msra.mxu0 %v1358
        %1434 = vmatprep.subr.mxu0 0.0
        %1435 = vmatpush1.msra.mxu0 %v1357
        %1436 = vmatprep.subr.mxu0 0.0
        %1437 = vmatpush1.msra.mxu0 %v1356
        %1438 = vmatprep.subr.mxu0 0.0
        %1439 = vmatpush1.msra.mxu0 %v1355
        %1440 = vmatprep.subr.mxu0 0.0
        %1441 = vmatpush1.msra.mxu0 %v1354
        %1442 = vmatprep.subr.mxu0 0.0
        %1443 = vmatpush1.msra.mxu0 %v1353
        %1444 = vmatprep.subr.mxu0 0.0
        %1445 = vmatpush1.msra.mxu0 %v1352
        %1446 = vmatprep.subr.mxu0 0.0
        %1447 = vmatpush1.msra.mxu0 %v1351
        %1448 = vmatprep.subr.mxu0 0.0
        %1449 = vmatpush1.msra.mxu0 %v1350
        %1450 = vmatprep.subr.mxu0 0.0
        %1451 = vmatpush1.msra.mxu0 %v1349
        %1452 = vmatprep.subr.mxu0 0.0
        %1453 = vmatpush2.msra.mxu0 %v1380
        %1454 = vmatprep.subr.mxu0 0.0
        %1455 = vmatpush2.msra.mxu0 %v1379
        %1456 = vmatprep.subr.mxu0 0.0
        %1457 = vmatpush2.msra.mxu0 %v1378
        %1458 = vmatprep.subr.mxu0 0.0
        %1459 = vmatpush2.msra.mxu0 %v1377
        %1460 = vmatprep.subr.mxu0 0.0
        %1461 = vmatpush2.msra.mxu0 %v1376
        %1462 = vmatprep.subr.mxu0 0.0
        %1463 = vmatpush2.msra.mxu0 %v1375
        %1464 = vmatprep.subr.mxu0 0.0
        %1465 = vmatpush2.msra.mxu0 %v1374
        %1466 = vmatprep.subr.mxu0 0.0
        %1467 = vmatpush2.msra.mxu0 %v1373
        %1468 = vmatprep.subr.mxu0 0.0
        %1469 = vmatpush2.msra.mxu0 %v1372
        %1470 = vmatprep.subr.mxu0 0.0
        %1471 = vmatpush2.msra.mxu0 %v1371
        %1472 = vmatprep.subr.mxu0 0.0
        %1473 = vmatpush2.msra.mxu0 %v1370
        %1474 = vmatprep.subr.mxu0 0.0
        %1475 = vmatpush2.msra.mxu0 %v1369
        %1476 = vmatprep.subr.mxu0 0.0
        %1477 = vmatpush2.msra.mxu0 %v1368
        %1478 = vmatprep.subr.mxu0 0.0
        %1479 = vmatpush2.msra.mxu0 %v1367
        %1480 = vmatprep.subr.mxu0 0.0
        %1481 = vmatpush2.msra.mxu0 %v1366
        %1482 = vmatprep.subr.mxu0 0.0
        %1483 = vmatpush2.msra.mxu0 %v1365
        %1484 = vmatprep.mubr.f32.mxu0 %v1222
        %1485 = vmatmul.mubr.f32.gmra.mxu0 %v1221
        %v1486 = vpop.f32.mrf.mxu0
        %v1487 = vadd.f32 %v1418, %v1486
        %v1488 = vpop.f32.mrf.mxu0
        %1489 = vmatprep.mubr.f32.mxu0 %v1226
        %1490 = vmatmul.mubr.f32.gmra.mxu0 %v1225
        %v1491 = vpop.f32.mrf.mxu0
        %v1492 = vadd.f32 %v1418, %v1491
        %v1493 = vpop.f32.mrf.mxu0
        %1494 = vmatprep.mubr.f32.mxu0 %v1230
        %1495 = vmatmul.mubr.f32.gmra.mxu0 %v1229
        %v1496 = vpop.f32.mrf.mxu0
        %v1497 = vadd.f32 %v1418, %v1496
        %v1498 = vpop.f32.mrf.mxu0
        %1499 = vmatprep.mubr.f32.mxu0 %v1234
        %1500 = vmatmul.mubr.f32.gmra.mxu0 %v1233
        %v1501 = vpop.f32.mrf.mxu0
        %v1502 = vadd.f32 %v1418, %v1501
        %v1503 = vpop.f32.mrf.mxu0
        %1504 = vmatprep.mubr.f32.mxu0 %v1238
        %1505 = vmatmul.mubr.f32.gmra.mxu0 %v1237
        %v1506 = vpop.f32.mrf.mxu0
        %v1507 = vadd.f32 %v1418, %v1506
        %v1508 = vpop.f32.mrf.mxu0
        %1509 = vmatprep.mubr.f32.mxu0 %v1242
        %1510 = vmatmul.mubr.f32.gmra.mxu0 %v1241
        %v1511 = vpop.f32.mrf.mxu0
        %v1512 = vadd.f32 %v1418, %v1511
        %v1513 = vpop.f32.mrf.mxu0
        %1514 = vmatprep.mubr.f32.mxu0 %v1246
        %1515 = vmatmul.mubr.f32.gmra.mxu0 %v1245
        %v1516 = vpop.f32.mrf.mxu0
        %v1517 = vadd.f32 %v1418, %v1516
        %v1518 = vpop.f32.mrf.mxu0
        %1519 = vmatprep.mubr.f32.mxu0 %v1250
        %1520 = vmatmul.mubr.f32.gmra.mxu0 %v1249
        %v1521 = vpop.f32.mrf.mxu0
        %v1522 = vadd.f32 %v1418, %v1521
        %v1523 = vpop.f32.mrf.mxu0
        %1524 = vmatprep.mubr.f32.mxu0 %v1254
        %1525 = vmatmul.mubr.f32.gmra.mxu0 %v1253
        %v1526 = vpop.f32.mrf.mxu0
        %v1527 = vadd.f32 %v1418, %v1526
        %v1528 = vpop.f32.mrf.mxu0
        %1529 = vmatprep.mubr.f32.mxu0 %v1258
        %1530 = vmatmul.mubr.f32.gmra.mxu0 %v1257
        %v1531 = vpop.f32.mrf.mxu0
        %v1532 = vadd.f32 %v1418, %v1531
        %v1533 = vpop.f32.mrf.mxu0
        %1534 = vmatprep.mubr.f32.mxu0 %v1262
        %1535 = vmatmul.mubr.f32.gmra.mxu0 %v1261
        %v1536 = vpop.f32.mrf.mxu0
        %v1537 = vadd.f32 %v1418, %v1536
        %v1538 = vpop.f32.mrf.mxu0
        %1539 = vmatprep.mubr.f32.mxu0 %v1266
        %1540 = vmatmul.mubr.f32.gmra.mxu0 %v1265
        %v1541 = vpop.f32.mrf.mxu0
        %v1542 = vadd.f32 %v1418, %v1541
        %v1543 = vpop.f32.mrf.mxu0
        %1544 = vmatprep.mubr.f32.mxu0 %v1270
        %1545 = vmatmul.mubr.f32.gmra.mxu0 %v1269
        %v1546 = vpop.f32.mrf.mxu0
        %v1547 = vadd.f32 %v1418, %v1546
        %v1548 = vpop.f32.mrf.mxu0
        %1549 = vmatprep.mubr.f32.mxu0 %v1274
        %1550 = vmatmul.mubr.f32.gmra.mxu0 %v1273
        %v1551 = vpop.f32.mrf.mxu0
        %v1552 = vadd.f32 %v1418, %v1551
        %v1553 = vpop.f32.mrf.mxu0
        %1554 = vmatprep.mubr.f32.mxu0 %v1278
        %1555 = vmatmul.mubr.f32.gmra.mxu0 %v1277
        %v1556 = vpop.f32.mrf.mxu0
        %v1557 = vadd.f32 %v1418, %v1556
        %v1558 = vpop.f32.mrf.mxu0
        %1559 = vmatprep.mubr.f32.mxu0 %v1282
        %1560 = vmatmul.mubr.f32.gmra.mxu0 %v1281
        %v1561 = vpop.f32.mrf.mxu0
        %v1562 = vadd.f32 %v1418, %v1561
        %v1563 = vpop.f32.mrf.mxu0
        %1564 = vmatprep.mubr.f32.mxu0 %v1286
        %1565 = vmatmul.mubr.f32.gmra.mxu0 %v1285
        %v1566 = vpop.f32.mrf.mxu0
        %v1567 = vadd.f32 %v1418, %v1566
        %v1568 = vpop.f32.mrf.mxu0
        %1569 = vmatprep.mubr.f32.mxu0 %v1290
        %1570 = vmatmul.mubr.f32.gmra.mxu0 %v1289
        %v1571 = vpop.f32.mrf.mxu0
        %v1572 = vadd.f32 %v1418, %v1571
        %v1573 = vpop.f32.mrf.mxu0
        %1574 = vmatprep.mubr.f32.mxu0 %v1294
        %1575 = vmatmul.mubr.f32.gmra.mxu0 %v1293
        %v1576 = vpop.f32.mrf.mxu0
        %v1577 = vadd.f32 %v1418, %v1576
        %v1578 = vpop.f32.mrf.mxu0
        %1579 = vmatprep.mubr.f32.mxu0 %v1298
        %1580 = vmatmul.mubr.f32.gmra.mxu0 %v1297
        %v1581 = vpop.f32.mrf.mxu0
        %v1582 = vadd.f32 %v1418, %v1581
        %v1583 = vpop.f32.mrf.mxu0
        %1584 = vmatprep.mubr.f32.mxu0 %v1302
        %1585 = vmatmul.mubr.f32.gmra.mxu0 %v1301
        %v1586 = vpop.f32.mrf.mxu0
        %v1587 = vadd.f32 %v1418, %v1586
        %v1588 = vpop.f32.mrf.mxu0
        %1589 = vmatprep.mubr.f32.mxu0 %v1306
        %1590 = vmatmul.mubr.f32.gmra.mxu0 %v1305
        %v1591 = vpop.f32.mrf.mxu0
        %v1592 = vadd.f32 %v1418, %v1591
        %v1593 = vpop.f32.mrf.mxu0
        %1594 = vmatprep.mubr.f32.mxu0 %v1310
        %1595 = vmatmul.mubr.f32.gmra.mxu0 %v1309
        %v1596 = vpop.f32.mrf.mxu0
        %v1597 = vadd.f32 %v1418, %v1596
        %v1598 = vpop.f32.mrf.mxu0
        %1599 = vmatprep.mubr.f32.mxu0 %v1314
        %1600 = vmatmul.mubr.f32.gmra.mxu0 %v1313
        %v1601 = vpop.f32.mrf.mxu0
        %v1602 = vadd.f32 %v1418, %v1601
        %v1603 = vpop.f32.mrf.mxu0
        %1604 = vmatprep.mubr.f32.mxu0 %v1318
        %1605 = vmatmul.mubr.f32.gmra.mxu0 %v1317
        %v1606 = vpop.f32.mrf.mxu0
        %v1607 = vadd.f32 %v1418, %v1606
        %v1608 = vpop.f32.mrf.mxu0
        %1609 = vmatprep.mubr.f32.mxu0 %v1322
        %1610 = vmatmul.mubr.f32.gmra.mxu0 %v1321
        %v1611 = vpop.f32.mrf.mxu0
        %v1612 = vadd.f32 %v1418, %v1611
        %v1613 = vpop.f32.mrf.mxu0
        %1614 = vmatprep.mubr.f32.mxu0 %v1326
        %1615 = vmatmul.mubr.f32.gmra.mxu0 %v1325
        %v1616 = vpop.f32.mrf.mxu0
        %v1617 = vadd.f32 %v1418, %v1616
        %v1618 = vpop.f32.mrf.mxu0
        %1619 = vmatprep.mubr.f32.mxu0 %v1330
        %1620 = vmatmul.mubr.f32.gmra.mxu0 %v1329
        %v1621 = vpop.f32.mrf.mxu0
        %v1622 = vadd.f32 %v1418, %v1621
        %v1623 = vpop.f32.mrf.mxu0
        %1624 = vmatprep.mubr.f32.mxu0 %v1334
        %1625 = vmatmul.mubr.f32.gmra.mxu0 %v1333
        %v1626 = vpop.f32.mrf.mxu0
        %v1627 = vadd.f32 %v1418, %v1626
        %v1628 = vpop.f32.mrf.mxu0
        %1629 = vmatprep.mubr.f32.mxu0 %v1338
        %1630 = vmatmul.mubr.f32.gmra.mxu0 %v1337
        %v1631 = vpop.f32.mrf.mxu0
        %v1632 = vadd.f32 %v1418, %v1631
        %v1633 = vpop.f32.mrf.mxu0
        %1634 = vmatprep.mubr.f32.mxu0 %v1342
        %1635 = vmatmul.mubr.f32.gmra.mxu0 %v1341
        %v1636 = vpop.f32.mrf.mxu0
        %v1637 = vadd.f32 %v1418, %v1636
        %v1638 = vpop.f32.mrf.mxu0
        %1639 = vmatprep.mubr.f32.mxu0 %v1346
        %1640 = vmatmul.mubr.f32.gmra.mxu0 %v1345
        %v1641 = vpop.f32.mrf.mxu0
        %v1642 = vadd.f32 %v1418, %v1641
        %v1643 = vpop.f32.mrf.mxu0
        %1644 = vdwg.mxu0
        %1645 = vmatprep.subr.mxu0 0.0
        %1646 = vmatpush1.msra.mxu0 %v1396
        %1647 = vmatprep.subr.mxu0 0.0
        %1648 = vmatpush1.msra.mxu0 %v1395
        %1649 = vmatprep.subr.mxu0 0.0
        %1650 = vmatpush1.msra.mxu0 %v1394
        %1651 = vmatprep.subr.mxu0 0.0
        %1652 = vmatpush1.msra.mxu0 %v1393
        %1653 = vmatprep.subr.mxu0 0.0
        %1654 = vmatpush1.msra.mxu0 %v1392
        %1655 = vmatprep.subr.mxu0 0.0
        %1656 = vmatpush1.msra.mxu0 %v1391
        %1657 = vmatprep.subr.mxu0 0.0
        %1658 = vmatpush1.msra.mxu0 %v1390
        %1659 = vmatprep.subr.mxu0 0.0
        %1660 = vmatpush1.msra.mxu0 %v1389
        %1661 = vmatprep.subr.mxu0 0.0
        %1662 = vmatpush1.msra.mxu0 %v1388
        %1663 = vmatprep.subr.mxu0 0.0
        %1664 = vmatpush1.msra.mxu0 %v1387
        %1665 = vmatprep.subr.mxu0 0.0
        %1666 = vmatpush1.msra.mxu0 %v1386
        %1667 = vmatprep.subr.mxu0 0.0
        %1668 = vmatpush1.msra.mxu0 %v1385
        %1669 = vmatprep.subr.mxu0 0.0
        %1670 = vmatpush1.msra.mxu0 %v1384
        %1671 = vmatprep.subr.mxu0 0.0
        %1672 = vmatpush1.msra.mxu0 %v1383
        %1673 = vmatprep.subr.mxu0 0.0
        %1674 = vmatpush1.msra.mxu0 %v1382
        %1675 = vmatprep.subr.mxu0 0.0
        %1676 = vmatpush1.msra.mxu0 %v1381
        %1677 = vmatprep.subr.mxu0 0.0
        %1678 = vmatpush2.msra.mxu0 %v1412
        %1679 = vmatprep.subr.mxu0 0.0
        %1680 = vmatpush2.msra.mxu0 %v1411
        %1681 = vmatprep.subr.mxu0 0.0
        %1682 = vmatpush2.msra.mxu0 %v1410
        %1683 = vmatprep.subr.mxu0 0.0
        %1684 = vmatpush2.msra.mxu0 %v1409
        %1685 = vmatprep.subr.mxu0 0.0
        %1686 = vmatpush2.msra.mxu0 %v1408
        %1687 = vmatprep.subr.mxu0 0.0
        %1688 = vmatpush2.msra.mxu0 %v1407
        %1689 = vmatprep.subr.mxu0 0.0
        %1690 = vmatpush2.msra.mxu0 %v1406
        %1691 = vmatprep.subr.mxu0 0.0
        %1692 = vmatpush2.msra.mxu0 %v1405
        %1693 = vmatprep.subr.mxu0 0.0
        %1694 = vmatpush2.msra.mxu0 %v1404
        %1695 = vmatprep.subr.mxu0 0.0
        %1696 = vmatpush2.msra.mxu0 %v1403
        %1697 = vmatprep.subr.mxu0 0.0
        %1698 = vmatpush2.msra.mxu0 %v1402
        %1699 = vmatprep.subr.mxu0 0.0
        %1700 = vmatpush2.msra.mxu0 %v1401
        %1701 = vmatprep.subr.mxu0 0.0
        %1702 = vmatpush2.msra.mxu0 %v1400
        %1703 = vmatprep.subr.mxu0 0.0
        %1704 = vmatpush2.msra.mxu0 %v1399
        %1705 = vmatprep.subr.mxu0 0.0
        %1706 = vmatpush2.msra.mxu0 %v1398
        %1707 = vmatprep.subr.mxu0 0.0
        %1708 = vmatpush2.msra.mxu0 %v1397
        %1709 = vmatprep.mubr.f32.mxu0 %v1224
        %1710 = vmatmul.mubr.f32.gmra.mxu0 %v1223
        %v1711 = vpop.f32.mrf.mxu0
        %v1712 = vadd.f32 %v1487, %v1711
        %v1713 = vpop.f32.mrf.mxu0
        %1714 = vmatprep.mubr.f32.mxu0 %v1228
        %1715 = vmatmul.mubr.f32.gmra.mxu0 %v1227
        %v1716 = vpop.f32.mrf.mxu0
        %v1717 = vadd.f32 %v1492, %v1716
        %v1718 = vpop.f32.mrf.mxu0
        %1719 = vmatprep.mubr.f32.mxu0 %v1232
        %1720 = vmatmul.mubr.f32.gmra.mxu0 %v1231
        %v1721 = vpop.f32.mrf.mxu0
        %v1722 = vadd.f32 %v1497, %v1721
        %v1723 = vpop.f32.mrf.mxu0
        %1724 = vmatprep.mubr.f32.mxu0 %v1236
        %1725 = vmatmul.mubr.f32.gmra.mxu0 %v1235
        %v1726 = vpop.f32.mrf.mxu0
        %v1727 = vadd.f32 %v1502, %v1726
        %v1728 = vpop.f32.mrf.mxu0
        %1729 = vmatprep.mubr.f32.mxu0 %v1240
        %1730 = vmatmul.mubr.f32.gmra.mxu0 %v1239
        %v1731 = vpop.f32.mrf.mxu0
        %v1732 = vadd.f32 %v1507, %v1731
        %v1733 = vpop.f32.mrf.mxu0
        %1734 = vmatprep.mubr.f32.mxu0 %v1244
        %1735 = vmatmul.mubr.f32.gmra.mxu0 %v1243
        %v1736 = vpop.f32.mrf.mxu0
        %v1737 = vadd.f32 %v1512, %v1736
        %v1738 = vpop.f32.mrf.mxu0
        %1739 = vmatprep.mubr.f32.mxu0 %v1248
        %1740 = vmatmul.mubr.f32.gmra.mxu0 %v1247
        %v1741 = vpop.f32.mrf.mxu0
        %v1742 = vadd.f32 %v1517, %v1741
        %v1743 = vpop.f32.mrf.mxu0
        %1744 = vmatprep.mubr.f32.mxu0 %v1252
        %1745 = vmatmul.mubr.f32.gmra.mxu0 %v1251
        %v1746 = vpop.f32.mrf.mxu0
        %v1747 = vadd.f32 %v1522, %v1746
        %v1748 = vpop.f32.mrf.mxu0
        %1749 = vmatprep.mubr.f32.mxu0 %v1256
        %1750 = vmatmul.mubr.f32.gmra.mxu0 %v1255
        %v1751 = vpop.f32.mrf.mxu0
        %v1752 = vadd.f32 %v1527, %v1751
        %v1753 = vpop.f32.mrf.mxu0
        %1754 = vmatprep.mubr.f32.mxu0 %v1260
        %1755 = vmatmul.mubr.f32.gmra.mxu0 %v1259
        %v1756 = vpop.f32.mrf.mxu0
        %v1757 = vadd.f32 %v1532, %v1756
        %v1758 = vpop.f32.mrf.mxu0
        %1759 = vmatprep.mubr.f32.mxu0 %v1264
        %1760 = vmatmul.mubr.f32.gmra.mxu0 %v1263
        %v1761 = vpop.f32.mrf.mxu0
        %v1762 = vadd.f32 %v1537, %v1761
        %v1763 = vpop.f32.mrf.mxu0
        %1764 = vmatprep.mubr.f32.mxu0 %v1268
        %1765 = vmatmul.mubr.f32.gmra.mxu0 %v1267
        %v1766 = vpop.f32.mrf.mxu0
        %v1767 = vadd.f32 %v1542, %v1766
        %v1768 = vpop.f32.mrf.mxu0
        %1769 = vmatprep.mubr.f32.mxu0 %v1272
        %1770 = vmatmul.mubr.f32.gmra.mxu0 %v1271
        %v1771 = vpop.f32.mrf.mxu0
        %v1772 = vadd.f32 %v1547, %v1771
        %v1773 = vpop.f32.mrf.mxu0
        %1774 = vmatprep.mubr.f32.mxu0 %v1276
        %1775 = vmatmul.mubr.f32.gmra.mxu0 %v1275
        %v1776 = vpop.f32.mrf.mxu0
        %v1777 = vadd.f32 %v1552, %v1776
        %v1778 = vpop.f32.mrf.mxu0
        %1779 = vmatprep.mubr.f32.mxu0 %v1280
        %1780 = vmatmul.mubr.f32.gmra.mxu0 %v1279
        %v1781 = vpop.f32.mrf.mxu0
        %v1782 = vadd.f32 %v1557, %v1781
        %v1783 = vpop.f32.mrf.mxu0
        %1784 = vmatprep.mubr.f32.mxu0 %v1284
        %1785 = vmatmul.mubr.f32.gmra.mxu0 %v1283
        %v1786 = vpop.f32.mrf.mxu0
        %v1787 = vadd.f32 %v1562, %v1786
        %v1788 = vpop.f32.mrf.mxu0
        %1789 = vmatprep.mubr.f32.mxu0 %v1288
        %1790 = vmatmul.mubr.f32.gmra.mxu0 %v1287
        %v1791 = vpop.f32.mrf.mxu0
        %v1792 = vadd.f32 %v1567, %v1791
        %v1793 = vpop.f32.mrf.mxu0
        %1794 = vmatprep.mubr.f32.mxu0 %v1292
        %1795 = vmatmul.mubr.f32.gmra.mxu0 %v1291
        %v1796 = vpop.f32.mrf.mxu0
        %v1797 = vadd.f32 %v1572, %v1796
        %v1798 = vpop.f32.mrf.mxu0
        %1799 = vmatprep.mubr.f32.mxu0 %v1296
        %1800 = vmatmul.mubr.f32.gmra.mxu0 %v1295
        %v1801 = vpop.f32.mrf.mxu0
        %v1802 = vadd.f32 %v1577, %v1801
        %v1803 = vpop.f32.mrf.mxu0
        %1804 = vmatprep.mubr.f32.mxu0 %v1300
        %1805 = vmatmul.mubr.f32.gmra.mxu0 %v1299
        %v1806 = vpop.f32.mrf.mxu0
        %v1807 = vadd.f32 %v1582, %v1806
        %v1808 = vpop.f32.mrf.mxu0
        %1809 = vmatprep.mubr.f32.mxu0 %v1304
        %1810 = vmatmul.mubr.f32.gmra.mxu0 %v1303
        %v1811 = vpop.f32.mrf.mxu0
        %v1812 = vadd.f32 %v1587, %v1811
        %v1813 = vpop.f32.mrf.mxu0
        %1814 = vmatprep.mubr.f32.mxu0 %v1308
        %1815 = vmatmul.mubr.f32.gmra.mxu0 %v1307
        %v1816 = vpop.f32.mrf.mxu0
        %v1817 = vadd.f32 %v1592, %v1816
        %v1818 = vpop.f32.mrf.mxu0
        %1819 = vmatprep.mubr.f32.mxu0 %v1312
        %1820 = vmatmul.mubr.f32.gmra.mxu0 %v1311
        %v1821 = vpop.f32.mrf.mxu0
        %v1822 = vadd.f32 %v1597, %v1821
        %v1823 = vpop.f32.mrf.mxu0
        %1824 = vmatprep.mubr.f32.mxu0 %v1316
        %1825 = vmatmul.mubr.f32.gmra.mxu0 %v1315
        %v1826 = vpop.f32.mrf.mxu0
        %v1827 = vadd.f32 %v1602, %v1826
        %v1828 = vpop.f32.mrf.mxu0
        %1829 = vmatprep.mubr.f32.mxu0 %v1320
        %1830 = vmatmul.mubr.f32.gmra.mxu0 %v1319
        %v1831 = vpop.f32.mrf.mxu0
        %v1832 = vadd.f32 %v1607, %v1831
        %v1833 = vpop.f32.mrf.mxu0
        %1834 = vmatprep.mubr.f32.mxu0 %v1324
        %1835 = vmatmul.mubr.f32.gmra.mxu0 %v1323
        %v1836 = vpop.f32.mrf.mxu0
        %v1837 = vadd.f32 %v1612, %v1836
        %v1838 = vpop.f32.mrf.mxu0
        %1839 = vmatprep.mubr.f32.mxu0 %v1328
        %1840 = vmatmul.mubr.f32.gmra.mxu0 %v1327
        %v1841 = vpop.f32.mrf.mxu0
        %v1842 = vadd.f32 %v1617, %v1841
        %v1843 = vpop.f32.mrf.mxu0
        %1844 = vmatprep.mubr.f32.mxu0 %v1332
        %1845 = vmatmul.mubr.f32.gmra.mxu0 %v1331
        %v1846 = vpop.f32.mrf.mxu0
        %v1847 = vadd.f32 %v1622, %v1846
        %v1848 = vpop.f32.mrf.mxu0
        %1849 = vmatprep.mubr.f32.mxu0 %v1336
        %1850 = vmatmul.mubr.f32.gmra.mxu0 %v1335
        %v1851 = vpop.f32.mrf.mxu0
        %v1852 = vadd.f32 %v1627, %v1851
        %v1853 = vpop.f32.mrf.mxu0
        %1854 = vmatprep.mubr.f32.mxu0 %v1340
        %1855 = vmatmul.mubr.f32.gmra.mxu0 %v1339
        %v1856 = vpop.f32.mrf.mxu0
        %v1857 = vadd.f32 %v1632, %v1856
        %v1858 = vpop.f32.mrf.mxu0
        %1859 = vmatprep.mubr.f32.mxu0 %v1344
        %1860 = vmatmul.mubr.f32.gmra.mxu0 %v1343
        %v1861 = vpop.f32.mrf.mxu0
        %v1862 = vadd.f32 %v1637, %v1861
        %v1863 = vpop.f32.mrf.mxu0
        %1864 = vmatprep.mubr.f32.mxu0 %v1348
        %1865 = vmatmul.mubr.f32.gmra.mxu0 %v1347
        %v1866 = vpop.f32.mrf.mxu0
        %v1867 = vadd.f32 %v1642, %v1866
        %v1868 = vpop.f32.mrf.mxu0
        %1869 = vdwg.mxu0
        %v1870 = vmax.f32 %v1712, 0.0
        %v1871 = vmax.f32 %v1717, 0.0
        %v1872 = vmax.f32 %v1722, 0.0
        %v1873 = vmax.f32 %v1727, 0.0
        %v1874 = vmax.f32 %v1732, 0.0
        %v1875 = vmax.f32 %v1737, 0.0
        %v1876 = vmax.f32 %v1742, 0.0
        %v1877 = vmax.f32 %v1747, 0.0
        %v1878 = vmax.f32 %v1752, 0.0
        %v1879 = vmax.f32 %v1757, 0.0
        %v1880 = vmax.f32 %v1762, 0.0
        %v1881 = vmax.f32 %v1767, 0.0
        %v1882 = vmax.f32 %v1772, 0.0
        %v1883 = vmax.f32 %v1777, 0.0
        %v1884 = vmax.f32 %v1782, 0.0
        %v1885 = vmax.f32 %v1787, 0.0
        %v1886 = vmax.f32 %v1792, 0.0
        %v1887 = vmax.f32 %v1797, 0.0
        %v1888 = vmax.f32 %v1802, 0.0
        %v1889 = vmax.f32 %v1807, 0.0
        %v1890 = vmax.f32 %v1812, 0.0
        %v1891 = vmax.f32 %v1817, 0.0
        %v1892 = vmax.f32 %v1822, 0.0
        %v1893 = vmax.f32 %v1827, 0.0
        %v1894 = vmax.f32 %v1832, 0.0
        %v1895 = vmax.f32 %v1837, 0.0
        %v1896 = vmax.f32 %v1842, 0.0
        %v1897 = vmax.f32 %v1847, 0.0
        %v1898 = vmax.f32 %v1852, 0.0
        %v1899 = vmax.f32 %v1857, 0.0
        %v1900 = vmax.f32 %v1862, 0.0
        %v1901 = vmax.f32 %v1867, 0.0
        %v1902 = vld [vmem:[#allocation10] sm:$0xff]
        %v1903 = vld [vmem:[#allocation10 + $0x8] sm:$0xff]
        %v1904 = vld [vmem:[#allocation10 + $0x10] sm:$0xff]
        %v1905 = vld [vmem:[#allocation10 + $0x18] sm:$0xff]
        %v1906 = vld [vmem:[#allocation10 + $0x20] sm:$0xff]
        %v1907 = vld [vmem:[#allocation10 + $0x28] sm:$0xff]
        %v1908 = vld [vmem:[#allocation10 + $0x30] sm:$0xff]
        %v1909 = vld [vmem:[#allocation10 + $0x38] sm:$0xff]
        %v1910 = vld [vmem:[#allocation10 + $0x40] sm:$0xff]
        %v1911 = vld [vmem:[#allocation10 + $0x48] sm:$0xff]
        %v1912 = vld [vmem:[#allocation10 + $0x50] sm:$0xff]
        %v1913 = vld [vmem:[#allocation10 + $0x58] sm:$0xff]
        %v1914 = vld [vmem:[#allocation10 + $0x60] sm:$0xff]
        %v1915 = vld [vmem:[#allocation10 + $0x68] sm:$0xff]
        %v1916 = vld [vmem:[#allocation10 + $0x70] sm:$0xff]
        %v1917 = vld [vmem:[#allocation10 + $0x78] sm:$0xff]
        %v1918 = vld [vmem:[%s6] sm:$0x1]
        %v1920 = vlaneseq
        %v1921 = vshrl.u32 %v1920, 7
        %v1922 = vsub.s32 0, %v1921
        %v1923 = vrot.slane %v1918, %v1922
        %1925 = vmatprep.subr.mxu0 0.0
        %1926 = vmatpush1.msra.mxu0 %v1917
        %1927 = vmatprep.subr.mxu0 0.0
        %1928 = vmatpush1.msra.mxu0 %v1916
        %1929 = vmatprep.subr.mxu0 0.0
        %1930 = vmatpush1.msra.mxu0 %v1915
        %1931 = vmatprep.subr.mxu0 0.0
        %1932 = vmatpush1.msra.mxu0 %v1914
        %1933 = vmatprep.subr.mxu0 0.0
        %1934 = vmatpush1.msra.mxu0 %v1913
        %1935 = vmatprep.subr.mxu0 0.0
        %1936 = vmatpush1.msra.mxu0 %v1912
        %1937 = vmatprep.subr.mxu0 0.0
        %1938 = vmatpush1.msra.mxu0 %v1911
        %1939 = vmatprep.subr.mxu0 0.0
        %1940 = vmatpush1.msra.mxu0 %v1910
        %1941 = vmatprep.subr.mxu0 0.0
        %1942 = vmatpush1.msra.mxu0 %v1909
        %1943 = vmatprep.subr.mxu0 0.0
        %1944 = vmatpush1.msra.mxu0 %v1908
        %1945 = vmatprep.subr.mxu0 0.0
        %1946 = vmatpush1.msra.mxu0 %v1907
        %1947 = vmatprep.subr.mxu0 0.0
        %1948 = vmatpush1.msra.mxu0 %v1906
        %1949 = vmatprep.subr.mxu0 0.0
        %1950 = vmatpush1.msra.mxu0 %v1905
        %1951 = vmatprep.subr.mxu0 0.0
        %1952 = vmatpush1.msra.mxu0 %v1904
        %1953 = vmatprep.subr.mxu0 0.0
        %1954 = vmatpush1.msra.mxu0 %v1903
        %1955 = vmatprep.subr.mxu0 0.0
        %1956 = vmatpush1.msra.mxu0 %v1902
        %1957 = vmatprep.subr.mxu0 0.0
        %1958 = vmatpush2.msra.mxu0 0.0
        %1959 = vmatprep.subr.mxu0 0.0
        %1960 = vmatpush2.msra.mxu0 0.0
        %1961 = vmatprep.subr.mxu0 0.0
        %1962 = vmatpush2.msra.mxu0 0.0
        %1963 = vmatprep.subr.mxu0 0.0
        %1964 = vmatpush2.msra.mxu0 0.0
        %1965 = vmatprep.subr.mxu0 0.0
        %1966 = vmatpush2.msra.mxu0 0.0
        %1967 = vmatprep.subr.mxu0 0.0
        %1968 = vmatpush2.msra.mxu0 0.0
        %1969 = vmatprep.subr.mxu0 0.0
        %1970 = vmatpush2.msra.mxu0 0.0
        %1971 = vmatprep.subr.mxu0 0.0
        %1972 = vmatpush2.msra.mxu0 0.0
        %1973 = vmatprep.subr.mxu0 0.0
        %1974 = vmatpush2.msra.mxu0 0.0
        %1975 = vmatprep.subr.mxu0 0.0
        %1976 = vmatpush2.msra.mxu0 0.0
        %1977 = vmatprep.subr.mxu0 0.0
        %1978 = vmatpush2.msra.mxu0 0.0
        %1979 = vmatprep.subr.mxu0 0.0
        %1980 = vmatpush2.msra.mxu0 0.0
        %1981 = vmatprep.subr.mxu0 0.0
        %1982 = vmatpush2.msra.mxu0 0.0
        %1983 = vmatprep.subr.mxu0 0.0
        %1984 = vmatpush2.msra.mxu0 0.0
        %1985 = vmatprep.subr.mxu0 0.0
        %1986 = vmatpush2.msra.mxu0 0.0
        %1987 = vmatprep.subr.mxu0 0.0
        %1988 = vmatpush2.msra.mxu0 0.0
        %1989 = vmatprep.mubr.f32.mxu0 0.0
        %1990 = vmatmul.mubr.f32.gmra.mxu0 %v1870
        %v1991 = vpop.f32.mrf.mxu0
        %v1992 = vadd.f32 %v1923, %v1991
        %v1993 = vpop.f32.mrf.mxu0
        %1994 = vmatprep.mubr.f32.mxu0 0.0
        %1995 = vmatmul.mubr.f32.gmra.mxu0 %v1871
        %v1996 = vpop.f32.mrf.mxu0
        %v1997 = vadd.f32 %v1923, %v1996
        %v1998 = vpop.f32.mrf.mxu0
        %1999 = vmatprep.mubr.f32.mxu0 0.0
        %2000 = vmatmul.mubr.f32.gmra.mxu0 %v1872
        %v2001 = vpop.f32.mrf.mxu0
        %v2002 = vadd.f32 %v1923, %v2001
        %v2003 = vpop.f32.mrf.mxu0
        %2004 = vmatprep.mubr.f32.mxu0 0.0
        %2005 = vmatmul.mubr.f32.gmra.mxu0 %v1873
        %v2006 = vpop.f32.mrf.mxu0
        %v2007 = vadd.f32 %v1923, %v2006
        %v2008 = vpop.f32.mrf.mxu0
        %2009 = vmatprep.mubr.f32.mxu0 0.0
        %2010 = vmatmul.mubr.f32.gmra.mxu0 %v1874
        %v2011 = vpop.f32.mrf.mxu0
        %v2012 = vadd.f32 %v1923, %v2011
        %v2013 = vpop.f32.mrf.mxu0
        %2014 = vmatprep.mubr.f32.mxu0 0.0
        %2015 = vmatmul.mubr.f32.gmra.mxu0 %v1875
        %v2016 = vpop.f32.mrf.mxu0
        %v2017 = vadd.f32 %v1923, %v2016
        %v2018 = vpop.f32.mrf.mxu0
        %2019 = vmatprep.mubr.f32.mxu0 0.0
        %2020 = vmatmul.mubr.f32.gmra.mxu0 %v1876
        %v2021 = vpop.f32.mrf.mxu0
        %v2022 = vadd.f32 %v1923, %v2021
        %v2023 = vpop.f32.mrf.mxu0
        %2024 = vmatprep.mubr.f32.mxu0 0.0
        %2025 = vmatmul.mubr.f32.gmra.mxu0 %v1877
        %v2026 = vpop.f32.mrf.mxu0
        %v2027 = vadd.f32 %v1923, %v2026
        %v2028 = vpop.f32.mrf.mxu0
        %2029 = vmatprep.mubr.f32.mxu0 0.0
        %2030 = vmatmul.mubr.f32.gmra.mxu0 %v1878
        %v2031 = vpop.f32.mrf.mxu0
        %v2032 = vadd.f32 %v1923, %v2031
        %v2033 = vpop.f32.mrf.mxu0
        %2034 = vmatprep.mubr.f32.mxu0 0.0
        %2035 = vmatmul.mubr.f32.gmra.mxu0 %v1879
        %v2036 = vpop.f32.mrf.mxu0
        %v2037 = vadd.f32 %v1923, %v2036
        %v2038 = vpop.f32.mrf.mxu0
        %2039 = vmatprep.mubr.f32.mxu0 0.0
        %2040 = vmatmul.mubr.f32.gmra.mxu0 %v1880
        %v2041 = vpop.f32.mrf.mxu0
        %v2042 = vadd.f32 %v1923, %v2041
        %v2043 = vpop.f32.mrf.mxu0
        %2044 = vmatprep.mubr.f32.mxu0 0.0
        %2045 = vmatmul.mubr.f32.gmra.mxu0 %v1881
        %v2046 = vpop.f32.mrf.mxu0
        %v2047 = vadd.f32 %v1923, %v2046
        %v2048 = vpop.f32.mrf.mxu0
        %2049 = vmatprep.mubr.f32.mxu0 0.0
        %2050 = vmatmul.mubr.f32.gmra.mxu0 %v1882
        %v2051 = vpop.f32.mrf.mxu0
        %v2052 = vadd.f32 %v1923, %v2051
        %v2053 = vpop.f32.mrf.mxu0
        %2054 = vmatprep.mubr.f32.mxu0 0.0
        %2055 = vmatmul.mubr.f32.gmra.mxu0 %v1883
        %v2056 = vpop.f32.mrf.mxu0
        %v2057 = vadd.f32 %v1923, %v2056
        %v2058 = vpop.f32.mrf.mxu0
        %2059 = vmatprep.mubr.f32.mxu0 0.0
        %2060 = vmatmul.mubr.f32.gmra.mxu0 %v1884
        %v2061 = vpop.f32.mrf.mxu0
        %v2062 = vadd.f32 %v1923, %v2061
        %v2063 = vpop.f32.mrf.mxu0
        %2064 = vmatprep.mubr.f32.mxu0 0.0
        %2065 = vmatmul.mubr.f32.gmra.mxu0 %v1885
        %v2066 = vpop.f32.mrf.mxu0
        %v2067 = vadd.f32 %v1923, %v2066
        %v2068 = vpop.f32.mrf.mxu0
        %2069 = vmatprep.mubr.f32.mxu0 0.0
        %2070 = vmatmul.mubr.f32.gmra.mxu0 %v1886
        %v2071 = vpop.f32.mrf.mxu0
        %v2072 = vadd.f32 %v1923, %v2071
        %v2073 = vpop.f32.mrf.mxu0
        %2074 = vmatprep.mubr.f32.mxu0 0.0
        %2075 = vmatmul.mubr.f32.gmra.mxu0 %v1887
        %v2076 = vpop.f32.mrf.mxu0
        %v2077 = vadd.f32 %v1923, %v2076
        %v2078 = vpop.f32.mrf.mxu0
        %2079 = vmatprep.mubr.f32.mxu0 0.0
        %2080 = vmatmul.mubr.f32.gmra.mxu0 %v1888
        %v2081 = vpop.f32.mrf.mxu0
        %v2082 = vadd.f32 %v1923, %v2081
        %v2083 = vpop.f32.mrf.mxu0
        %2084 = vmatprep.mubr.f32.mxu0 0.0
        %2085 = vmatmul.mubr.f32.gmra.mxu0 %v1889
        %v2086 = vpop.f32.mrf.mxu0
        %v2087 = vadd.f32 %v1923, %v2086
        %v2088 = vpop.f32.mrf.mxu0
        %2089 = vmatprep.mubr.f32.mxu0 0.0
        %2090 = vmatmul.mubr.f32.gmra.mxu0 %v1890
        %v2091 = vpop.f32.mrf.mxu0
        %v2092 = vadd.f32 %v1923, %v2091
        %v2093 = vpop.f32.mrf.mxu0
        %2094 = vmatprep.mubr.f32.mxu0 0.0
        %2095 = vmatmul.mubr.f32.gmra.mxu0 %v1891
        %v2096 = vpop.f32.mrf.mxu0
        %v2097 = vadd.f32 %v1923, %v2096
        %v2098 = vpop.f32.mrf.mxu0
        %2099 = vmatprep.mubr.f32.mxu0 0.0
        %2100 = vmatmul.mubr.f32.gmra.mxu0 %v1892
        %v2101 = vpop.f32.mrf.mxu0
        %v2102 = vadd.f32 %v1923, %v2101
        %v2103 = vpop.f32.mrf.mxu0
        %2104 = vmatprep.mubr.f32.mxu0 0.0
        %2105 = vmatmul.mubr.f32.gmra.mxu0 %v1893
        %v2106 = vpop.f32.mrf.mxu0
        %v2107 = vadd.f32 %v1923, %v2106
        %v2108 = vpop.f32.mrf.mxu0
        %2109 = vmatprep.mubr.f32.mxu0 0.0
        %2110 = vmatmul.mubr.f32.gmra.mxu0 %v1894
        %v2111 = vpop.f32.mrf.mxu0
        %v2112 = vadd.f32 %v1923, %v2111
        %v2113 = vpop.f32.mrf.mxu0
        %2114 = vmatprep.mubr.f32.mxu0 0.0
        %2115 = vmatmul.mubr.f32.gmra.mxu0 %v1895
        %v2116 = vpop.f32.mrf.mxu0
        %v2117 = vadd.f32 %v1923, %v2116
        %v2118 = vpop.f32.mrf.mxu0
        %2119 = vmatprep.mubr.f32.mxu0 0.0
        %2120 = vmatmul.mubr.f32.gmra.mxu0 %v1896
        %v2121 = vpop.f32.mrf.mxu0
        %v2122 = vadd.f32 %v1923, %v2121
        %v2123 = vpop.f32.mrf.mxu0
        %2124 = vmatprep.mubr.f32.mxu0 0.0
        %2125 = vmatmul.mubr.f32.gmra.mxu0 %v1897
        %v2126 = vpop.f32.mrf.mxu0
        %v2127 = vadd.f32 %v1923, %v2126
        %v2128 = vpop.f32.mrf.mxu0
        %2129 = vmatprep.mubr.f32.mxu0 0.0
        %2130 = vmatmul.mubr.f32.gmra.mxu0 %v1898
        %v2131 = vpop.f32.mrf.mxu0
        %v2132 = vadd.f32 %v1923, %v2131
        %v2133 = vpop.f32.mrf.mxu0
        %2134 = vmatprep.mubr.f32.mxu0 0.0
        %2135 = vmatmul.mubr.f32.gmra.mxu0 %v1899
        %v2136 = vpop.f32.mrf.mxu0
        %v2137 = vadd.f32 %v1923, %v2136
        %v2138 = vpop.f32.mrf.mxu0
        %2139 = vmatprep.mubr.f32.mxu0 0.0
        %2140 = vmatmul.mubr.f32.gmra.mxu0 %v1900
        %v2141 = vpop.f32.mrf.mxu0
        %v2142 = vadd.f32 %v1923, %v2141
        %v2143 = vpop.f32.mrf.mxu0
        %2144 = vmatprep.mubr.f32.mxu0 0.0
        %2145 = vmatmul.mubr.f32.gmra.mxu0 %v1901
        %v2146 = vpop.f32.mrf.mxu0
        %v2147 = vadd.f32 %v1923, %v2146
        %v2148 = vpop.f32.mrf.mxu0
        %2149 = vdwg.mxu0
        %v2150 = vmax.f32 %v1992, 0.0
        %v2151 = vmax.f32 %v1997, 0.0
        %v2152 = vmax.f32 %v2002, 0.0
        %v2153 = vmax.f32 %v2007, 0.0
        %v2154 = vmax.f32 %v2012, 0.0
        %v2155 = vmax.f32 %v2017, 0.0
        %v2156 = vmax.f32 %v2022, 0.0
        %v2157 = vmax.f32 %v2027, 0.0
        %v2158 = vmax.f32 %v2032, 0.0
        %v2159 = vmax.f32 %v2037, 0.0
        %v2160 = vmax.f32 %v2042, 0.0
        %v2161 = vmax.f32 %v2047, 0.0
        %v2162 = vmax.f32 %v2052, 0.0
        %v2163 = vmax.f32 %v2057, 0.0
        %v2164 = vmax.f32 %v2062, 0.0
        %v2165 = vmax.f32 %v2067, 0.0
        %v2166 = vmax.f32 %v2072, 0.0
        %v2167 = vmax.f32 %v2077, 0.0
        %v2168 = vmax.f32 %v2082, 0.0
        %v2169 = vmax.f32 %v2087, 0.0
        %v2170 = vmax.f32 %v2092, 0.0
        %v2171 = vmax.f32 %v2097, 0.0
        %v2172 = vmax.f32 %v2102, 0.0
        %v2173 = vmax.f32 %v2107, 0.0
        %v2174 = vmax.f32 %v2112, 0.0
        %v2175 = vmax.f32 %v2117, 0.0
        %v2176 = vmax.f32 %v2122, 0.0
        %v2177 = vmax.f32 %v2127, 0.0
        %v2178 = vmax.f32 %v2132, 0.0
        %v2179 = vmax.f32 %v2137, 0.0
        %v2180 = vmax.f32 %v2142, 0.0
        %v2181 = vmax.f32 %v2147, 0.0
        %v2182 = vld [vmem:[#allocation11] sm:$0xff]
        %v2183 = vld [vmem:[#allocation11 + $0x8] sm:$0xff]
        %v2184 = vld [vmem:[#allocation11 + $0x10] sm:$0xff]
        %v2185 = vld [vmem:[#allocation11 + $0x18] sm:$0xff]
        %v2186 = vld [vmem:[#allocation11 + $0x20] sm:$0xff]
        %v2187 = vld [vmem:[#allocation11 + $0x28] sm:$0xff]
        %v2188 = vld [vmem:[#allocation11 + $0x30] sm:$0xff]
        %v2189 = vld [vmem:[#allocation11 + $0x38] sm:$0xff]
        %v2190 = vld [vmem:[#allocation11 + $0x40] sm:$0xff]
        %v2191 = vld [vmem:[#allocation11 + $0x48] sm:$0xff]
        %v2192 = vld [vmem:[#allocation11 + $0x50] sm:$0xff]
        %v2193 = vld [vmem:[#allocation11 + $0x58] sm:$0xff]
        %v2194 = vld [vmem:[#allocation11 + $0x60] sm:$0xff]
        %v2195 = vld [vmem:[#allocation11 + $0x68] sm:$0xff]
        %v2196 = vld [vmem:[#allocation11 + $0x70] sm:$0xff]
        %v2197 = vld [vmem:[#allocation11 + $0x78] sm:$0xff]
        %v2198 = vld [vmem:[#allocation11 + $0x80] sm:$0xff]
        %v2199 = vld [vmem:[#allocation11 + $0x88] sm:$0xff]
        %v2200 = vld [vmem:[#allocation11 + $0x90] sm:$0xff]
        %v2201 = vld [vmem:[#allocation11 + $0x98] sm:$0xff]
        %v2202 = vld [vmem:[#allocation11 + $0xa0] sm:$0xff]
        %v2203 = vld [vmem:[#allocation11 + $0xa8] sm:$0xff]
        %v2204 = vld [vmem:[#allocation11 + $0xb0] sm:$0xff]
        %v2205 = vld [vmem:[#allocation11 + $0xb8] sm:$0xff]
        %v2206 = vld [vmem:[#allocation11 + $0xc0] sm:$0xff]
        %v2207 = vld [vmem:[#allocation11 + $0xc8] sm:$0xff]
        %v2208 = vld [vmem:[#allocation11 + $0xd0] sm:$0xff]
        %v2209 = vld [vmem:[#allocation11 + $0xd8] sm:$0xff]
        %v2210 = vld [vmem:[#allocation11 + $0xe0] sm:$0xff]
        %v2211 = vld [vmem:[#allocation11 + $0xe8] sm:$0xff]
        %v2212 = vld [vmem:[#allocation11 + $0xf0] sm:$0xff]
        %v2213 = vld [vmem:[#allocation11 + $0xf8] sm:$0xff]
        %v2214 = vld [vmem:[#allocation11 + $0x100] sm:$0xff]
        %v2215 = vld [vmem:[#allocation11 + $0x108] sm:$0xff]
        %v2216 = vld [vmem:[#allocation11 + $0x110] sm:$0xff]
        %v2217 = vld [vmem:[#allocation11 + $0x118] sm:$0xff]
        %v2218 = vld [vmem:[#allocation11 + $0x120] sm:$0xff]
        %v2219 = vld [vmem:[#allocation11 + $0x128] sm:$0xff]
        %v2220 = vld [vmem:[#allocation11 + $0x130] sm:$0xff]
        %v2221 = vld [vmem:[#allocation11 + $0x138] sm:$0xff]
        %v2222 = vld [vmem:[#allocation11 + $0x140] sm:$0xff]
        %v2223 = vld [vmem:[#allocation11 + $0x148] sm:$0xff]
        %v2224 = vld [vmem:[#allocation11 + $0x150] sm:$0xff]
        %v2225 = vld [vmem:[#allocation11 + $0x158] sm:$0xff]
        %v2226 = vld [vmem:[#allocation11 + $0x160] sm:$0xff]
        %v2227 = vld [vmem:[#allocation11 + $0x168] sm:$0xff]
        %v2228 = vld [vmem:[#allocation11 + $0x170] sm:$0xff]
        %v2229 = vld [vmem:[#allocation11 + $0x178] sm:$0xff]
        %v2230 = vld [vmem:[#allocation11 + $0x180] sm:$0xff]
        %v2231 = vld [vmem:[#allocation11 + $0x188] sm:$0xff]
        %v2232 = vld [vmem:[#allocation11 + $0x190] sm:$0xff]
        %v2233 = vld [vmem:[#allocation11 + $0x198] sm:$0xff]
        %v2234 = vld [vmem:[#allocation11 + $0x1a0] sm:$0xff]
        %v2235 = vld [vmem:[#allocation11 + $0x1a8] sm:$0xff]
        %v2236 = vld [vmem:[#allocation11 + $0x1b0] sm:$0xff]
        %v2237 = vld [vmem:[#allocation11 + $0x1b8] sm:$0xff]
        %v2238 = vld [vmem:[#allocation11 + $0x1c0] sm:$0xff]
        %v2239 = vld [vmem:[#allocation11 + $0x1c8] sm:$0xff]
        %v2240 = vld [vmem:[#allocation11 + $0x1d0] sm:$0xff]
        %v2241 = vld [vmem:[#allocation11 + $0x1d8] sm:$0xff]
        %v2242 = vld [vmem:[#allocation11 + $0x1e0] sm:$0xff]
        %v2243 = vld [vmem:[#allocation11 + $0x1e8] sm:$0xff]
        %v2244 = vld [vmem:[#allocation11 + $0x1f0] sm:$0xff]
        %v2245 = vld [vmem:[#allocation11 + $0x1f8] sm:$0xff]
        %v2246 = vld [vmem:[%s8] sm:$0xf]
        %v2248 = vlaneseq
        %v2249 = vshrl.u32 %v2248, 7
        %v2250 = vsub.s32 0, %v2249
        %v2251 = vrot.slane %v2246, %v2250
        %v2252 = vlaneseq
        %v2253 = vshrl.u32 %v2252, 7
        %v2254 = vsub.s32 1, %v2253
        %v2255 = vrot.slane %v2246, %v2254
        %v2256 = vlaneseq
        %v2257 = vshrl.u32 %v2256, 7
        %v2258 = vsub.s32 2, %v2257
        %v2259 = vrot.slane %v2246, %v2258
        %v2260 = vlaneseq
        %v2261 = vshrl.u32 %v2260, 7
        %v2262 = vsub.s32 3, %v2261
        %v2263 = vrot.slane %v2246, %v2262
        %2268 = vmatprep.subr.mxu0 %v2243
        %2269 = vmatpush1.msra.mxu0 %v2242
        %2270 = vmatprep.subr.mxu0 %v2239
        %2271 = vmatpush1.msra.mxu0 %v2238
        %2272 = vmatprep.subr.mxu0 %v2235
        %2273 = vmatpush1.msra.mxu0 %v2234
        %2274 = vmatprep.subr.mxu0 %v2231
        %2275 = vmatpush1.msra.mxu0 %v2230
        %2276 = vmatprep.subr.mxu0 %v2227
        %2277 = vmatpush1.msra.mxu0 %v2226
        %2278 = vmatprep.subr.mxu0 %v2223
        %2279 = vmatpush1.msra.mxu0 %v2222
        %2280 = vmatprep.subr.mxu0 %v2219
        %2281 = vmatpush1.msra.mxu0 %v2218
        %2282 = vmatprep.subr.mxu0 %v2215
        %2283 = vmatpush1.msra.mxu0 %v2214
        %2284 = vmatprep.subr.mxu0 %v2211
        %2285 = vmatpush1.msra.mxu0 %v2210
        %2286 = vmatprep.subr.mxu0 %v2207
        %2287 = vmatpush1.msra.mxu0 %v2206
        %2288 = vmatprep.subr.mxu0 %v2203
        %2289 = vmatpush1.msra.mxu0 %v2202
        %2290 = vmatprep.subr.mxu0 %v2199
        %2291 = vmatpush1.msra.mxu0 %v2198
        %2292 = vmatprep.subr.mxu0 %v2195
        %2293 = vmatpush1.msra.mxu0 %v2194
        %2294 = vmatprep.subr.mxu0 %v2191
        %2295 = vmatpush1.msra.mxu0 %v2190
        %2296 = vmatprep.subr.mxu0 %v2187
        %2297 = vmatpush1.msra.mxu0 %v2186
        %2298 = vmatprep.subr.mxu0 %v2183
        %2299 = vmatpush1.msra.mxu0 %v2182
        %2300 = vmatprep.subr.mxu0 0.0
        %2301 = vmatpush2.msra.mxu0 0.0
        %2302 = vmatprep.subr.mxu0 0.0
        %2303 = vmatpush2.msra.mxu0 0.0
        %2304 = vmatprep.subr.mxu0 0.0
        %2305 = vmatpush2.msra.mxu0 0.0
        %2306 = vmatprep.subr.mxu0 0.0
        %2307 = vmatpush2.msra.mxu0 0.0
        %2308 = vmatprep.subr.mxu0 0.0
        %2309 = vmatpush2.msra.mxu0 0.0
        %2310 = vmatprep.subr.mxu0 0.0
        %2311 = vmatpush2.msra.mxu0 0.0
        %2312 = vmatprep.subr.mxu0 0.0
        %2313 = vmatpush2.msra.mxu0 0.0
        %2314 = vmatprep.subr.mxu0 0.0
        %2315 = vmatpush2.msra.mxu0 0.0
        %2316 = vmatprep.subr.mxu0 0.0
        %2317 = vmatpush2.msra.mxu0 0.0
        %2318 = vmatprep.subr.mxu0 0.0
        %2319 = vmatpush2.msra.mxu0 0.0
        %2320 = vmatprep.subr.mxu0 0.0
        %2321 = vmatpush2.msra.mxu0 0.0
        %2322 = vmatprep.subr.mxu0 0.0
        %2323 = vmatpush2.msra.mxu0 0.0
        %2324 = vmatprep.subr.mxu0 0.0
        %2325 = vmatpush2.msra.mxu0 0.0
        %2326 = vmatprep.subr.mxu0 0.0
        %2327 = vmatpush2.msra.mxu0 0.0
        %2328 = vmatprep.subr.mxu0 0.0
        %2329 = vmatpush2.msra.mxu0 0.0
        %2330 = vmatprep.subr.mxu0 0.0
        %2331 = vmatpush2.msra.mxu0 0.0
        %2332 = vmatprep.mubr.f32.mxu0 0.0
        %2333 = vmatmul.mubr.f32.gmra.mxu0 %v2150
        %v2334 = vpop.f32.mrf.mxu0
        %v2335 = vadd.f32 %v2251, %v2334
        %v2336 = vpop.f32.mrf.mxu0
        %v2337 = vadd.f32 %v2255, %v2336
        %2338 = vmatprep.mubr.f32.mxu0 0.0
        %2339 = vmatmul.mubr.f32.gmra.mxu0 %v2151
        %v2340 = vpop.f32.mrf.mxu0
        %v2341 = vadd.f32 %v2251, %v2340
        %v2342 = vpop.f32.mrf.mxu0
        %v2343 = vadd.f32 %v2255, %v2342
        %2344 = vmatprep.mubr.f32.mxu0 0.0
        %2345 = vmatmul.mubr.f32.gmra.mxu0 %v2152
        %v2346 = vpop.f32.mrf.mxu0
        %v2347 = vadd.f32 %v2251, %v2346
        %v2348 = vpop.f32.mrf.mxu0
        %v2349 = vadd.f32 %v2255, %v2348
        %2350 = vmatprep.mubr.f32.mxu0 0.0
        %2351 = vmatmul.mubr.f32.gmra.mxu0 %v2153
        %v2352 = vpop.f32.mrf.mxu0
        %v2353 = vadd.f32 %v2251, %v2352
        %v2354 = vpop.f32.mrf.mxu0
        %v2355 = vadd.f32 %v2255, %v2354
        %2356 = vmatprep.mubr.f32.mxu0 0.0
        %2357 = vmatmul.mubr.f32.gmra.mxu0 %v2154
        %v2358 = vpop.f32.mrf.mxu0
        %v2359 = vadd.f32 %v2251, %v2358
        %v2360 = vpop.f32.mrf.mxu0
        %v2361 = vadd.f32 %v2255, %v2360
        %2362 = vmatprep.mubr.f32.mxu0 0.0
        %2363 = vmatmul.mubr.f32.gmra.mxu0 %v2155
        %v2364 = vpop.f32.mrf.mxu0
        %v2365 = vadd.f32 %v2251, %v2364
        %v2366 = vpop.f32.mrf.mxu0
        %v2367 = vadd.f32 %v2255, %v2366
        %2368 = vmatprep.mubr.f32.mxu0 0.0
        %2369 = vmatmul.mubr.f32.gmra.mxu0 %v2156
        %v2370 = vpop.f32.mrf.mxu0
        %v2371 = vadd.f32 %v2251, %v2370
        %v2372 = vpop.f32.mrf.mxu0
        %v2373 = vadd.f32 %v2255, %v2372
        %2374 = vmatprep.mubr.f32.mxu0 0.0
        %2375 = vmatmul.mubr.f32.gmra.mxu0 %v2157
        %v2376 = vpop.f32.mrf.mxu0
        %v2377 = vadd.f32 %v2251, %v2376
        %v2378 = vpop.f32.mrf.mxu0
        %v2379 = vadd.f32 %v2255, %v2378
        %2380 = vmatprep.mubr.f32.mxu0 0.0
        %2381 = vmatmul.mubr.f32.gmra.mxu0 %v2158
        %v2382 = vpop.f32.mrf.mxu0
        %v2383 = vadd.f32 %v2251, %v2382
        %v2384 = vpop.f32.mrf.mxu0
        %v2385 = vadd.f32 %v2255, %v2384
        %2386 = vmatprep.mubr.f32.mxu0 0.0
        %2387 = vmatmul.mubr.f32.gmra.mxu0 %v2159
        %v2388 = vpop.f32.mrf.mxu0
        %v2389 = vadd.f32 %v2251, %v2388
        %v2390 = vpop.f32.mrf.mxu0
        %v2391 = vadd.f32 %v2255, %v2390
        %2392 = vmatprep.mubr.f32.mxu0 0.0
        %2393 = vmatmul.mubr.f32.gmra.mxu0 %v2160
        %v2394 = vpop.f32.mrf.mxu0
        %v2395 = vadd.f32 %v2251, %v2394
        %v2396 = vpop.f32.mrf.mxu0
        %v2397 = vadd.f32 %v2255, %v2396
        %2398 = vmatprep.mubr.f32.mxu0 0.0
        %2399 = vmatmul.mubr.f32.gmra.mxu0 %v2161
        %v2400 = vpop.f32.mrf.mxu0
        %v2401 = vadd.f32 %v2251, %v2400
        %v2402 = vpop.f32.mrf.mxu0
        %v2403 = vadd.f32 %v2255, %v2402
        %2404 = vmatprep.mubr.f32.mxu0 0.0
        %2405 = vmatmul.mubr.f32.gmra.mxu0 %v2162
        %v2406 = vpop.f32.mrf.mxu0
        %v2407 = vadd.f32 %v2251, %v2406
        %v2408 = vpop.f32.mrf.mxu0
        %v2409 = vadd.f32 %v2255, %v2408
        %2410 = vmatprep.mubr.f32.mxu0 0.0
        %2411 = vmatmul.mubr.f32.gmra.mxu0 %v2163
        %v2412 = vpop.f32.mrf.mxu0
        %v2413 = vadd.f32 %v2251, %v2412
        %v2414 = vpop.f32.mrf.mxu0
        %v2415 = vadd.f32 %v2255, %v2414
        %2416 = vmatprep.mubr.f32.mxu0 0.0
        %2417 = vmatmul.mubr.f32.gmra.mxu0 %v2164
        %v2418 = vpop.f32.mrf.mxu0
        %v2419 = vadd.f32 %v2251, %v2418
        %v2420 = vpop.f32.mrf.mxu0
        %v2421 = vadd.f32 %v2255, %v2420
        %2422 = vmatprep.mubr.f32.mxu0 0.0
        %2423 = vmatmul.mubr.f32.gmra.mxu0 %v2165
        %v2424 = vpop.f32.mrf.mxu0
        %v2425 = vadd.f32 %v2251, %v2424
        %v2426 = vpop.f32.mrf.mxu0
        %v2427 = vadd.f32 %v2255, %v2426
        %2428 = vmatprep.mubr.f32.mxu0 0.0
        %2429 = vmatmul.mubr.f32.gmra.mxu0 %v2166
        %v2430 = vpop.f32.mrf.mxu0
        %v2431 = vadd.f32 %v2251, %v2430
        %v2432 = vpop.f32.mrf.mxu0
        %v2433 = vadd.f32 %v2255, %v2432
        %2434 = vmatprep.mubr.f32.mxu0 0.0
        %2435 = vmatmul.mubr.f32.gmra.mxu0 %v2167
        %v2436 = vpop.f32.mrf.mxu0
        %v2437 = vadd.f32 %v2251, %v2436
        %v2438 = vpop.f32.mrf.mxu0
        %v2439 = vadd.f32 %v2255, %v2438
        %2440 = vmatprep.mubr.f32.mxu0 0.0
        %2441 = vmatmul.mubr.f32.gmra.mxu0 %v2168
        %v2442 = vpop.f32.mrf.mxu0
        %v2443 = vadd.f32 %v2251, %v2442
        %v2444 = vpop.f32.mrf.mxu0
        %v2445 = vadd.f32 %v2255, %v2444
        %2446 = vmatprep.mubr.f32.mxu0 0.0
        %2447 = vmatmul.mubr.f32.gmra.mxu0 %v2169
        %v2448 = vpop.f32.mrf.mxu0
        %v2449 = vadd.f32 %v2251, %v2448
        %v2450 = vpop.f32.mrf.mxu0
        %v2451 = vadd.f32 %v2255, %v2450
        %2452 = vmatprep.mubr.f32.mxu0 0.0
        %2453 = vmatmul.mubr.f32.gmra.mxu0 %v2170
        %v2454 = vpop.f32.mrf.mxu0
        %v2455 = vadd.f32 %v2251, %v2454
        %v2456 = vpop.f32.mrf.mxu0
        %v2457 = vadd.f32 %v2255, %v2456
        %2458 = vmatprep.mubr.f32.mxu0 0.0
        %2459 = vmatmul.mubr.f32.gmra.mxu0 %v2171
        %v2460 = vpop.f32.mrf.mxu0
        %v2461 = vadd.f32 %v2251, %v2460
        %v2462 = vpop.f32.mrf.mxu0
        %v2463 = vadd.f32 %v2255, %v2462
        %2464 = vmatprep.mubr.f32.mxu0 0.0
        %2465 = vmatmul.mubr.f32.gmra.mxu0 %v2172
        %v2466 = vpop.f32.mrf.mxu0
        %v2467 = vadd.f32 %v2251, %v2466
        %v2468 = vpop.f32.mrf.mxu0
        %v2469 = vadd.f32 %v2255, %v2468
        %2470 = vmatprep.mubr.f32.mxu0 0.0
        %2471 = vmatmul.mubr.f32.gmra.mxu0 %v2173
        %v2472 = vpop.f32.mrf.mxu0
        %v2473 = vadd.f32 %v2251, %v2472
        %v2474 = vpop.f32.mrf.mxu0
        %v2475 = vadd.f32 %v2255, %v2474
        %2476 = vmatprep.mubr.f32.mxu0 0.0
        %2477 = vmatmul.mubr.f32.gmra.mxu0 %v2174
        %v2478 = vpop.f32.mrf.mxu0
        %v2479 = vadd.f32 %v2251, %v2478
        %v2480 = vpop.f32.mrf.mxu0
        %v2481 = vadd.f32 %v2255, %v2480
        %2482 = vmatprep.mubr.f32.mxu0 0.0
        %2483 = vmatmul.mubr.f32.gmra.mxu0 %v2175
        %v2484 = vpop.f32.mrf.mxu0
        %v2485 = vadd.f32 %v2251, %v2484
        %v2486 = vpop.f32.mrf.mxu0
        %v2487 = vadd.f32 %v2255, %v2486
        %2488 = vmatprep.mubr.f32.mxu0 0.0
        %2489 = vmatmul.mubr.f32.gmra.mxu0 %v2176
        %v2490 = vpop.f32.mrf.mxu0
        %v2491 = vadd.f32 %v2251, %v2490
        %v2492 = vpop.f32.mrf.mxu0
        %v2493 = vadd.f32 %v2255, %v2492
        %2494 = vmatprep.mubr.f32.mxu0 0.0
        %2495 = vmatmul.mubr.f32.gmra.mxu0 %v2177
        %v2496 = vpop.f32.mrf.mxu0
        %v2497 = vadd.f32 %v2251, %v2496
        %v2498 = vpop.f32.mrf.mxu0
        %v2499 = vadd.f32 %v2255, %v2498
        %2500 = vmatprep.mubr.f32.mxu0 0.0
        %2501 = vmatmul.mubr.f32.gmra.mxu0 %v2178
        %v2502 = vpop.f32.mrf.mxu0
        %v2503 = vadd.f32 %v2251, %v2502
        %v2504 = vpop.f32.mrf.mxu0
        %v2505 = vadd.f32 %v2255, %v2504
        %2506 = vmatprep.mubr.f32.mxu0 0.0
        %2507 = vmatmul.mubr.f32.gmra.mxu0 %v2179
        %v2508 = vpop.f32.mrf.mxu0
        %v2509 = vadd.f32 %v2251, %v2508
        %v2510 = vpop.f32.mrf.mxu0
        %v2511 = vadd.f32 %v2255, %v2510
        %2512 = vmatprep.mubr.f32.mxu0 0.0
        %2513 = vmatmul.mubr.f32.gmra.mxu0 %v2180
        %v2514 = vpop.f32.mrf.mxu0
        %v2515 = vadd.f32 %v2251, %v2514
        %v2516 = vpop.f32.mrf.mxu0
        %v2517 = vadd.f32 %v2255, %v2516
        %2518 = vmatprep.mubr.f32.mxu0 0.0
        %2519 = vmatmul.mubr.f32.gmra.mxu0 %v2181
        %v2520 = vpop.f32.mrf.mxu0
        %v2521 = vadd.f32 %v2251, %v2520
        %v2522 = vpop.f32.mrf.mxu0
        %v2523 = vadd.f32 %v2255, %v2522
        %2524 = vdwg.mxu0
        %2525 = vmatprep.subr.mxu0 %v2245
        %2526 = vmatpush1.msra.mxu0 %v2244
        %2527 = vmatprep.subr.mxu0 %v2241
        %2528 = vmatpush1.msra.mxu0 %v2240
        %2529 = vmatprep.subr.mxu0 %v2237
        %2530 = vmatpush1.msra.mxu0 %v2236
        %2531 = vmatprep.subr.mxu0 %v2233
        %2532 = vmatpush1.msra.mxu0 %v2232
        %2533 = vmatprep.subr.mxu0 %v2229
        %2534 = vmatpush1.msra.mxu0 %v2228
        %2535 = vmatprep.subr.mxu0 %v2225
        %2536 = vmatpush1.msra.mxu0 %v2224
        %2537 = vmatprep.subr.mxu0 %v2221
        %2538 = vmatpush1.msra.mxu0 %v2220
        %2539 = vmatprep.subr.mxu0 %v2217
        %2540 = vmatpush1.msra.mxu0 %v2216
        %2541 = vmatprep.subr.mxu0 %v2213
        %2542 = vmatpush1.msra.mxu0 %v2212
        %2543 = vmatprep.subr.mxu0 %v2209
        %2544 = vmatpush1.msra.mxu0 %v2208
        %2545 = vmatprep.subr.mxu0 %v2205
        %2546 = vmatpush1.msra.mxu0 %v2204
        %2547 = vmatprep.subr.mxu0 %v2201
        %2548 = vmatpush1.msra.mxu0 %v2200
        %2549 = vmatprep.subr.mxu0 %v2197
        %2550 = vmatpush1.msra.mxu0 %v2196
        %2551 = vmatprep.subr.mxu0 %v2193
        %2552 = vmatpush1.msra.mxu0 %v2192
        %2553 = vmatprep.subr.mxu0 %v2189
        %2554 = vmatpush1.msra.mxu0 %v2188
        %2555 = vmatprep.subr.mxu0 %v2185
        %2556 = vmatpush1.msra.mxu0 %v2184
        %2557 = vmatprep.subr.mxu0 0.0
        %2558 = vmatpush2.msra.mxu0 0.0
        %2559 = vmatprep.subr.mxu0 0.0
        %2560 = vmatpush2.msra.mxu0 0.0
        %2561 = vmatprep.subr.mxu0 0.0
        %2562 = vmatpush2.msra.mxu0 0.0
        %2563 = vmatprep.subr.mxu0 0.0
        %2564 = vmatpush2.msra.mxu0 0.0
        %2565 = vmatprep.subr.mxu0 0.0
        %2566 = vmatpush2.msra.mxu0 0.0
        %2567 = vmatprep.subr.mxu0 0.0
        %2568 = vmatpush2.msra.mxu0 0.0
        %2569 = vmatprep.subr.mxu0 0.0
        %2570 = vmatpush2.msra.mxu0 0.0
        %2571 = vmatprep.subr.mxu0 0.0
        %2572 = vmatpush2.msra.mxu0 0.0
        %2573 = vmatprep.subr.mxu0 0.0
        %2574 = vmatpush2.msra.mxu0 0.0
        %2575 = vmatprep.subr.mxu0 0.0
        %2576 = vmatpush2.msra.mxu0 0.0
        %2577 = vmatprep.subr.mxu0 0.0
        %2578 = vmatpush2.msra.mxu0 0.0
        %2579 = vmatprep.subr.mxu0 0.0
        %2580 = vmatpush2.msra.mxu0 0.0
        %2581 = vmatprep.subr.mxu0 0.0
        %2582 = vmatpush2.msra.mxu0 0.0
        %2583 = vmatprep.subr.mxu0 0.0
        %2584 = vmatpush2.msra.mxu0 0.0
        %2585 = vmatprep.subr.mxu0 0.0
        %2586 = vmatpush2.msra.mxu0 0.0
        %2587 = vmatprep.subr.mxu0 0.0
        %2588 = vmatpush2.msra.mxu0 0.0
        %2589 = vmatprep.mubr.f32.mxu0 0.0
        %2590 = vmatmul.mubr.f32.gmra.mxu0 %v2150
        %v2591 = vpop.f32.mrf.mxu0
        %v2592 = vadd.f32 %v2259, %v2591
        %v2593 = vpop.f32.mrf.mxu0
        %v2594 = vadd.f32 %v2263, %v2593
        %2595 = vmatprep.mubr.f32.mxu0 0.0
        %2596 = vmatmul.mubr.f32.gmra.mxu0 %v2151
        %v2597 = vpop.f32.mrf.mxu0
        %v2598 = vadd.f32 %v2259, %v2597
        %v2599 = vpop.f32.mrf.mxu0
        %v2600 = vadd.f32 %v2263, %v2599
        %2601 = vmatprep.mubr.f32.mxu0 0.0
        %2602 = vmatmul.mubr.f32.gmra.mxu0 %v2152
        %v2603 = vpop.f32.mrf.mxu0
        %v2604 = vadd.f32 %v2259, %v2603
        %v2605 = vpop.f32.mrf.mxu0
        %v2606 = vadd.f32 %v2263, %v2605
        %2607 = vmatprep.mubr.f32.mxu0 0.0
        %2608 = vmatmul.mubr.f32.gmra.mxu0 %v2153
        %v2609 = vpop.f32.mrf.mxu0
        %v2610 = vadd.f32 %v2259, %v2609
        %v2611 = vpop.f32.mrf.mxu0
        %v2612 = vadd.f32 %v2263, %v2611
        %2613 = vmatprep.mubr.f32.mxu0 0.0
        %2614 = vmatmul.mubr.f32.gmra.mxu0 %v2154
        %v2615 = vpop.f32.mrf.mxu0
        %v2616 = vadd.f32 %v2259, %v2615
        %v2617 = vpop.f32.mrf.mxu0
        %v2618 = vadd.f32 %v2263, %v2617
        %2619 = vmatprep.mubr.f32.mxu0 0.0
        %2620 = vmatmul.mubr.f32.gmra.mxu0 %v2155
        %v2621 = vpop.f32.mrf.mxu0
        %v2622 = vadd.f32 %v2259, %v2621
        %v2623 = vpop.f32.mrf.mxu0
        %v2624 = vadd.f32 %v2263, %v2623
        %2625 = vmatprep.mubr.f32.mxu0 0.0
        %2626 = vmatmul.mubr.f32.gmra.mxu0 %v2156
        %v2627 = vpop.f32.mrf.mxu0
        %v2628 = vadd.f32 %v2259, %v2627
        %v2629 = vpop.f32.mrf.mxu0
        %v2630 = vadd.f32 %v2263, %v2629
        %2631 = vmatprep.mubr.f32.mxu0 0.0
        %2632 = vmatmul.mubr.f32.gmra.mxu0 %v2157
        %v2633 = vpop.f32.mrf.mxu0
        %v2634 = vadd.f32 %v2259, %v2633
        %v2635 = vpop.f32.mrf.mxu0
        %v2636 = vadd.f32 %v2263, %v2635
        %2637 = vmatprep.mubr.f32.mxu0 0.0
        %2638 = vmatmul.mubr.f32.gmra.mxu0 %v2158
        %v2639 = vpop.f32.mrf.mxu0
        %v2640 = vadd.f32 %v2259, %v2639
        %v2641 = vpop.f32.mrf.mxu0
        %v2642 = vadd.f32 %v2263, %v2641
        %2643 = vmatprep.mubr.f32.mxu0 0.0
        %2644 = vmatmul.mubr.f32.gmra.mxu0 %v2159
        %v2645 = vpop.f32.mrf.mxu0
        %v2646 = vadd.f32 %v2259, %v2645
        %v2647 = vpop.f32.mrf.mxu0
        %v2648 = vadd.f32 %v2263, %v2647
        %2649 = vmatprep.mubr.f32.mxu0 0.0
        %2650 = vmatmul.mubr.f32.gmra.mxu0 %v2160
        %v2651 = vpop.f32.mrf.mxu0
        %v2652 = vadd.f32 %v2259, %v2651
        %v2653 = vpop.f32.mrf.mxu0
        %v2654 = vadd.f32 %v2263, %v2653
        %2655 = vmatprep.mubr.f32.mxu0 0.0
        %2656 = vmatmul.mubr.f32.gmra.mxu0 %v2161
        %v2657 = vpop.f32.mrf.mxu0
        %v2658 = vadd.f32 %v2259, %v2657
        %v2659 = vpop.f32.mrf.mxu0
        %v2660 = vadd.f32 %v2263, %v2659
        %2661 = vmatprep.mubr.f32.mxu0 0.0
        %2662 = vmatmul.mubr.f32.gmra.mxu0 %v2162
        %v2663 = vpop.f32.mrf.mxu0
        %v2664 = vadd.f32 %v2259, %v2663
        %v2665 = vpop.f32.mrf.mxu0
        %v2666 = vadd.f32 %v2263, %v2665
        %2667 = vmatprep.mubr.f32.mxu0 0.0
        %2668 = vmatmul.mubr.f32.gmra.mxu0 %v2163
        %v2669 = vpop.f32.mrf.mxu0
        %v2670 = vadd.f32 %v2259, %v2669
        %v2671 = vpop.f32.mrf.mxu0
        %v2672 = vadd.f32 %v2263, %v2671
        %2673 = vmatprep.mubr.f32.mxu0 0.0
        %2674 = vmatmul.mubr.f32.gmra.mxu0 %v2164
        %v2675 = vpop.f32.mrf.mxu0
        %v2676 = vadd.f32 %v2259, %v2675
        %v2677 = vpop.f32.mrf.mxu0
        %v2678 = vadd.f32 %v2263, %v2677
        %2679 = vmatprep.mubr.f32.mxu0 0.0
        %2680 = vmatmul.mubr.f32.gmra.mxu0 %v2165
        %v2681 = vpop.f32.mrf.mxu0
        %v2682 = vadd.f32 %v2259, %v2681
        %v2683 = vpop.f32.mrf.mxu0
        %v2684 = vadd.f32 %v2263, %v2683
        %2685 = vmatprep.mubr.f32.mxu0 0.0
        %2686 = vmatmul.mubr.f32.gmra.mxu0 %v2166
        %v2687 = vpop.f32.mrf.mxu0
        %v2688 = vadd.f32 %v2259, %v2687
        %v2689 = vpop.f32.mrf.mxu0
        %v2690 = vadd.f32 %v2263, %v2689
        %2691 = vmatprep.mubr.f32.mxu0 0.0
        %2692 = vmatmul.mubr.f32.gmra.mxu0 %v2167
        %v2693 = vpop.f32.mrf.mxu0
        %v2694 = vadd.f32 %v2259, %v2693
        %v2695 = vpop.f32.mrf.mxu0
        %v2696 = vadd.f32 %v2263, %v2695
        %2697 = vmatprep.mubr.f32.mxu0 0.0
        %2698 = vmatmul.mubr.f32.gmra.mxu0 %v2168
        %v2699 = vpop.f32.mrf.mxu0
        %v2700 = vadd.f32 %v2259, %v2699
        %v2701 = vpop.f32.mrf.mxu0
        %v2702 = vadd.f32 %v2263, %v2701
        %2703 = vmatprep.mubr.f32.mxu0 0.0
        %2704 = vmatmul.mubr.f32.gmra.mxu0 %v2169
        %v2705 = vpop.f32.mrf.mxu0
        %v2706 = vadd.f32 %v2259, %v2705
        %v2707 = vpop.f32.mrf.mxu0
        %v2708 = vadd.f32 %v2263, %v2707
        %2709 = vmatprep.mubr.f32.mxu0 0.0
        %2710 = vmatmul.mubr.f32.gmra.mxu0 %v2170
        %v2711 = vpop.f32.mrf.mxu0
        %v2712 = vadd.f32 %v2259, %v2711
        %v2713 = vpop.f32.mrf.mxu0
        %v2714 = vadd.f32 %v2263, %v2713
        %2715 = vmatprep.mubr.f32.mxu0 0.0
        %2716 = vmatmul.mubr.f32.gmra.mxu0 %v2171
        %v2717 = vpop.f32.mrf.mxu0
        %v2718 = vadd.f32 %v2259, %v2717
        %v2719 = vpop.f32.mrf.mxu0
        %v2720 = vadd.f32 %v2263, %v2719
        %2721 = vmatprep.mubr.f32.mxu0 0.0
        %2722 = vmatmul.mubr.f32.gmra.mxu0 %v2172
        %v2723 = vpop.f32.mrf.mxu0
        %v2724 = vadd.f32 %v2259, %v2723
        %v2725 = vpop.f32.mrf.mxu0
        %v2726 = vadd.f32 %v2263, %v2725
        %2727 = vmatprep.mubr.f32.mxu0 0.0
        %2728 = vmatmul.mubr.f32.gmra.mxu0 %v2173
        %v2729 = vpop.f32.mrf.mxu0
        %v2730 = vadd.f32 %v2259, %v2729
        %v2731 = vpop.f32.mrf.mxu0
        %v2732 = vadd.f32 %v2263, %v2731
        %2733 = vmatprep.mubr.f32.mxu0 0.0
        %2734 = vmatmul.mubr.f32.gmra.mxu0 %v2174
        %v2735 = vpop.f32.mrf.mxu0
        %v2736 = vadd.f32 %v2259, %v2735
        %v2737 = vpop.f32.mrf.mxu0
        %v2738 = vadd.f32 %v2263, %v2737
        %2739 = vmatprep.mubr.f32.mxu0 0.0
        %2740 = vmatmul.mubr.f32.gmra.mxu0 %v2175
        %v2741 = vpop.f32.mrf.mxu0
        %v2742 = vadd.f32 %v2259, %v2741
        %v2743 = vpop.f32.mrf.mxu0
        %v2744 = vadd.f32 %v2263, %v2743
        %2745 = vmatprep.mubr.f32.mxu0 0.0
        %2746 = vmatmul.mubr.f32.gmra.mxu0 %v2176
        %v2747 = vpop.f32.mrf.mxu0
        %v2748 = vadd.f32 %v2259, %v2747
        %v2749 = vpop.f32.mrf.mxu0
        %v2750 = vadd.f32 %v2263, %v2749
        %2751 = vmatprep.mubr.f32.mxu0 0.0
        %2752 = vmatmul.mubr.f32.gmra.mxu0 %v2177
        %v2753 = vpop.f32.mrf.mxu0
        %v2754 = vadd.f32 %v2259, %v2753
        %v2755 = vpop.f32.mrf.mxu0
        %v2756 = vadd.f32 %v2263, %v2755
        %2757 = vmatprep.mubr.f32.mxu0 0.0
        %2758 = vmatmul.mubr.f32.gmra.mxu0 %v2178
        %v2759 = vpop.f32.mrf.mxu0
        %v2760 = vadd.f32 %v2259, %v2759
        %v2761 = vpop.f32.mrf.mxu0
        %v2762 = vadd.f32 %v2263, %v2761
        %2763 = vmatprep.mubr.f32.mxu0 0.0
        %2764 = vmatmul.mubr.f32.gmra.mxu0 %v2179
        %v2765 = vpop.f32.mrf.mxu0
        %v2766 = vadd.f32 %v2259, %v2765
        %v2767 = vpop.f32.mrf.mxu0
        %v2768 = vadd.f32 %v2263, %v2767
        %2769 = vmatprep.mubr.f32.mxu0 0.0
        %2770 = vmatmul.mubr.f32.gmra.mxu0 %v2180
        %v2771 = vpop.f32.mrf.mxu0
        %v2772 = vadd.f32 %v2259, %v2771
        %v2773 = vpop.f32.mrf.mxu0
        %v2774 = vadd.f32 %v2263, %v2773
        %2775 = vmatprep.mubr.f32.mxu0 0.0
        %2776 = vmatmul.mubr.f32.gmra.mxu0 %v2181
        %v2777 = vpop.f32.mrf.mxu0
        %v2778 = vadd.f32 %v2259, %v2777
        %v2779 = vpop.f32.mrf.mxu0
        %v2780 = vadd.f32 %v2263, %v2779
        %2781 = vdwg.mxu0
        %v2782 = vmax.f32 %v2335, 0.0
        %v2783 = vmax.f32 %v2337, 0.0
        %v2784 = vmax.f32 %v2592, 0.0
        %v2785 = vmax.f32 %v2594, 0.0
        %v2786 = vmax.f32 %v2341, 0.0
        %v2787 = vmax.f32 %v2343, 0.0
        %v2788 = vmax.f32 %v2598, 0.0
        %v2789 = vmax.f32 %v2600, 0.0
        %v2790 = vmax.f32 %v2347, 0.0
        %v2791 = vmax.f32 %v2349, 0.0
        %v2792 = vmax.f32 %v2604, 0.0
        %v2793 = vmax.f32 %v2606, 0.0
        %v2794 = vmax.f32 %v2353, 0.0
        %v2795 = vmax.f32 %v2355, 0.0
        %v2796 = vmax.f32 %v2610, 0.0
        %v2797 = vmax.f32 %v2612, 0.0
        %v2798 = vmax.f32 %v2359, 0.0
        %v2799 = vmax.f32 %v2361, 0.0
        %v2800 = vmax.f32 %v2616, 0.0
        %v2801 = vmax.f32 %v2618, 0.0
        %v2802 = vmax.f32 %v2365, 0.0
        %v2803 = vmax.f32 %v2367, 0.0
        %v2804 = vmax.f32 %v2622, 0.0
        %v2805 = vmax.f32 %v2624, 0.0
        %v2806 = vmax.f32 %v2371, 0.0
        %v2807 = vmax.f32 %v2373, 0.0
        %v2808 = vmax.f32 %v2628, 0.0
        %v2809 = vmax.f32 %v2630, 0.0
        %v2810 = vmax.f32 %v2377, 0.0
        %v2811 = vmax.f32 %v2379, 0.0
        %v2812 = vmax.f32 %v2634, 0.0
        %v2813 = vmax.f32 %v2636, 0.0
        %v2814 = vmax.f32 %v2383, 0.0
        %v2815 = vmax.f32 %v2385, 0.0
        %v2816 = vmax.f32 %v2640, 0.0
        %v2817 = vmax.f32 %v2642, 0.0
        %v2818 = vmax.f32 %v2389, 0.0
        %v2819 = vmax.f32 %v2391, 0.0
        %v2820 = vmax.f32 %v2646, 0.0
        %v2821 = vmax.f32 %v2648, 0.0
        %v2822 = vmax.f32 %v2395, 0.0
        %v2823 = vmax.f32 %v2397, 0.0
        %v2824 = vmax.f32 %v2652, 0.0
        %v2825 = vmax.f32 %v2654, 0.0
        %v2826 = vmax.f32 %v2401, 0.0
        %v2827 = vmax.f32 %v2403, 0.0
        %v2828 = vmax.f32 %v2658, 0.0
        %v2829 = vmax.f32 %v2660, 0.0
        %v2830 = vmax.f32 %v2407, 0.0
        %v2831 = vmax.f32 %v2409, 0.0
        %v2832 = vmax.f32 %v2664, 0.0
        %v2833 = vmax.f32 %v2666, 0.0
        %v2834 = vmax.f32 %v2413, 0.0
        %v2835 = vmax.f32 %v2415, 0.0
        %v2836 = vmax.f32 %v2670, 0.0
        %v2837 = vmax.f32 %v2672, 0.0
        %v2838 = vmax.f32 %v2419, 0.0
        %v2839 = vmax.f32 %v2421, 0.0
        %v2840 = vmax.f32 %v2676, 0.0
        %v2841 = vmax.f32 %v2678, 0.0
        %v2842 = vmax.f32 %v2425, 0.0
        %v2843 = vmax.f32 %v2427, 0.0
        %v2844 = vmax.f32 %v2682, 0.0
        %v2845 = vmax.f32 %v2684, 0.0
        %v2846 = vmax.f32 %v2431, 0.0
        %v2847 = vmax.f32 %v2433, 0.0
        %v2848 = vmax.f32 %v2688, 0.0
        %v2849 = vmax.f32 %v2690, 0.0
        %v2850 = vmax.f32 %v2437, 0.0
        %v2851 = vmax.f32 %v2439, 0.0
        %v2852 = vmax.f32 %v2694, 0.0
        %v2853 = vmax.f32 %v2696, 0.0
        %v2854 = vmax.f32 %v2443, 0.0
        %v2855 = vmax.f32 %v2445, 0.0
        %v2856 = vmax.f32 %v2700, 0.0
        %v2857 = vmax.f32 %v2702, 0.0
        %v2858 = vmax.f32 %v2449, 0.0
        %v2859 = vmax.f32 %v2451, 0.0
        %v2860 = vmax.f32 %v2706, 0.0
        %v2861 = vmax.f32 %v2708, 0.0
        %v2862 = vmax.f32 %v2455, 0.0
        %v2863 = vmax.f32 %v2457, 0.0
        %v2864 = vmax.f32 %v2712, 0.0
        %v2865 = vmax.f32 %v2714, 0.0
        %v2866 = vmax.f32 %v2461, 0.0
        %v2867 = vmax.f32 %v2463, 0.0
        %v2868 = vmax.f32 %v2718, 0.0
        %v2869 = vmax.f32 %v2720, 0.0
        %v2870 = vmax.f32 %v2467, 0.0
        %v2871 = vmax.f32 %v2469, 0.0
        %v2872 = vmax.f32 %v2724, 0.0
        %v2873 = vmax.f32 %v2726, 0.0
        %v2874 = vmax.f32 %v2473, 0.0
        %v2875 = vmax.f32 %v2475, 0.0
        %v2876 = vmax.f32 %v2730, 0.0
        %v2877 = vmax.f32 %v2732, 0.0
        %v2878 = vmax.f32 %v2479, 0.0
        %v2879 = vmax.f32 %v2481, 0.0
        %v2880 = vmax.f32 %v2736, 0.0
        %v2881 = vmax.f32 %v2738, 0.0
        %v2882 = vmax.f32 %v2485, 0.0
        %v2883 = vmax.f32 %v2487, 0.0
        %v2884 = vmax.f32 %v2742, 0.0
        %v2885 = vmax.f32 %v2744, 0.0
        %v2886 = vmax.f32 %v2491, 0.0
        %v2887 = vmax.f32 %v2493, 0.0
        %v2888 = vmax.f32 %v2748, 0.0
        %v2889 = vmax.f32 %v2750, 0.0
        %v2890 = vmax.f32 %v2497, 0.0
        %v2891 = vmax.f32 %v2499, 0.0
        %v2892 = vmax.f32 %v2754, 0.0
        %v2893 = vmax.f32 %v2756, 0.0
        %v2894 = vmax.f32 %v2503, 0.0
        %v2895 = vmax.f32 %v2505, 0.0
        %v2896 = vmax.f32 %v2760, 0.0
        %v2897 = vmax.f32 %v2762, 0.0
        %v2898 = vmax.f32 %v2509, 0.0
        %v2899 = vmax.f32 %v2511, 0.0
        %v2900 = vmax.f32 %v2766, 0.0
        %v2901 = vmax.f32 %v2768, 0.0
        %v2902 = vmax.f32 %v2515, 0.0
        %v2903 = vmax.f32 %v2517, 0.0
        %v2904 = vmax.f32 %v2772, 0.0
        %v2905 = vmax.f32 %v2774, 0.0
        %v2906 = vmax.f32 %v2521, 0.0
        %v2907 = vmax.f32 %v2523, 0.0
        %v2908 = vmax.f32 %v2778, 0.0
        %v2909 = vmax.f32 %v2780, 0.0
        %v2910 = vld [vmem:[#allocation13] sm:$0xff]
        %v2911 = vld [vmem:[#allocation13 + $0x8] sm:$0xff]
        %v2912 = vld [vmem:[#allocation13 + $0x10] sm:$0xff]
        %v2913 = vld [vmem:[#allocation13 + $0x18] sm:$0xff]
        %v2914 = vld [vmem:[#allocation13 + $0x20] sm:$0xff]
        %v2915 = vld [vmem:[#allocation13 + $0x28] sm:$0xff]
        %v2916 = vld [vmem:[#allocation13 + $0x30] sm:$0xff]
        %v2917 = vld [vmem:[#allocation13 + $0x38] sm:$0xff]
        %v2918 = vld [vmem:[#allocation13 + $0x40] sm:$0xff]
        %v2919 = vld [vmem:[#allocation13 + $0x48] sm:$0xff]
        %v2920 = vld [vmem:[#allocation13 + $0x50] sm:$0xff]
        %v2921 = vld [vmem:[#allocation13 + $0x58] sm:$0xff]
        %v2922 = vld [vmem:[#allocation13 + $0x60] sm:$0xff]
        %v2923 = vld [vmem:[#allocation13 + $0x68] sm:$0xff]
        %v2924 = vld [vmem:[#allocation13 + $0x70] sm:$0xff]
        %v2925 = vld [vmem:[#allocation13 + $0x78] sm:$0xff]
        %v2926 = vld [vmem:[#allocation13 + $0x80] sm:$0xff]
        %v2927 = vld [vmem:[#allocation13 + $0x88] sm:$0xff]
        %v2928 = vld [vmem:[#allocation13 + $0x90] sm:$0xff]
        %v2929 = vld [vmem:[#allocation13 + $0x98] sm:$0xff]
        %v2930 = vld [vmem:[#allocation13 + $0xa0] sm:$0xff]
        %v2931 = vld [vmem:[#allocation13 + $0xa8] sm:$0xff]
        %v2932 = vld [vmem:[#allocation13 + $0xb0] sm:$0xff]
        %v2933 = vld [vmem:[#allocation13 + $0xb8] sm:$0xff]
        %v2934 = vld [vmem:[#allocation13 + $0xc0] sm:$0xff]
        %v2935 = vld [vmem:[#allocation13 + $0xc8] sm:$0xff]
        %v2936 = vld [vmem:[#allocation13 + $0xd0] sm:$0xff]
        %v2937 = vld [vmem:[#allocation13 + $0xd8] sm:$0xff]
        %v2938 = vld [vmem:[#allocation13 + $0xe0] sm:$0xff]
        %v2939 = vld [vmem:[#allocation13 + $0xe8] sm:$0xff]
        %v2940 = vld [vmem:[#allocation13 + $0xf0] sm:$0xff]
        %v2941 = vld [vmem:[#allocation13 + $0xf8] sm:$0xff]
        %v2942 = vld [vmem:[#allocation13 + $0x100] sm:$0xff]
        %v2943 = vld [vmem:[#allocation13 + $0x108] sm:$0xff]
        %v2944 = vld [vmem:[#allocation13 + $0x110] sm:$0xff]
        %v2945 = vld [vmem:[#allocation13 + $0x118] sm:$0xff]
        %v2946 = vld [vmem:[#allocation13 + $0x120] sm:$0xff]
        %v2947 = vld [vmem:[#allocation13 + $0x128] sm:$0xff]
        %v2948 = vld [vmem:[#allocation13 + $0x130] sm:$0xff]
        %v2949 = vld [vmem:[#allocation13 + $0x138] sm:$0xff]
        %v2950 = vld [vmem:[#allocation13 + $0x140] sm:$0xff]
        %v2951 = vld [vmem:[#allocation13 + $0x148] sm:$0xff]
        %v2952 = vld [vmem:[#allocation13 + $0x150] sm:$0xff]
        %v2953 = vld [vmem:[#allocation13 + $0x158] sm:$0xff]
        %v2954 = vld [vmem:[#allocation13 + $0x160] sm:$0xff]
        %v2955 = vld [vmem:[#allocation13 + $0x168] sm:$0xff]
        %v2956 = vld [vmem:[#allocation13 + $0x170] sm:$0xff]
        %v2957 = vld [vmem:[#allocation13 + $0x178] sm:$0xff]
        %v2958 = vld [vmem:[#allocation13 + $0x180] sm:$0xff]
        %v2959 = vld [vmem:[#allocation13 + $0x188] sm:$0xff]
        %v2960 = vld [vmem:[#allocation13 + $0x190] sm:$0xff]
        %v2961 = vld [vmem:[#allocation13 + $0x198] sm:$0xff]
        %v2962 = vld [vmem:[#allocation13 + $0x1a0] sm:$0xff]
        %v2963 = vld [vmem:[#allocation13 + $0x1a8] sm:$0xff]
        %v2964 = vld [vmem:[#allocation13 + $0x1b0] sm:$0xff]
        %v2965 = vld [vmem:[#allocation13 + $0x1b8] sm:$0xff]
        %v2966 = vld [vmem:[#allocation13 + $0x1c0] sm:$0xff]
        %v2967 = vld [vmem:[#allocation13 + $0x1c8] sm:$0xff]
        %v2968 = vld [vmem:[#allocation13 + $0x1d0] sm:$0xff]
        %v2969 = vld [vmem:[#allocation13 + $0x1d8] sm:$0xff]
        %v2970 = vld [vmem:[#allocation13 + $0x1e0] sm:$0xff]
        %v2971 = vld [vmem:[#allocation13 + $0x1e8] sm:$0xff]
        %v2972 = vld [vmem:[#allocation13 + $0x1f0] sm:$0xff]
        %v2973 = vld [vmem:[#allocation13 + $0x1f8] sm:$0xff]
        %v2974 = vld [vmem:[#allocation13 + $0x200] sm:$0xff]
        %v2975 = vld [vmem:[#allocation13 + $0x208] sm:$0xff]
        %v2976 = vld [vmem:[#allocation13 + $0x210] sm:$0xff]
        %v2977 = vld [vmem:[#allocation13 + $0x218] sm:$0xff]
        %v2978 = vld [vmem:[#allocation13 + $0x220] sm:$0xff]
        %v2979 = vld [vmem:[#allocation13 + $0x228] sm:$0xff]
        %v2980 = vld [vmem:[#allocation13 + $0x230] sm:$0xff]
        %v2981 = vld [vmem:[#allocation13 + $0x238] sm:$0xff]
        %v2982 = vld [vmem:[#allocation13 + $0x240] sm:$0xff]
        %v2983 = vld [vmem:[#allocation13 + $0x248] sm:$0xff]
        %v2984 = vld [vmem:[#allocation13 + $0x250] sm:$0xff]
        %v2985 = vld [vmem:[#allocation13 + $0x258] sm:$0xff]
        %v2986 = vld [vmem:[#allocation13 + $0x260] sm:$0xff]
        %v2987 = vld [vmem:[#allocation13 + $0x268] sm:$0xff]
        %v2988 = vld [vmem:[#allocation13 + $0x270] sm:$0xff]
        %v2989 = vld [vmem:[#allocation13 + $0x278] sm:$0xff]
        %v2990 = vld [vmem:[#allocation13 + $0x280] sm:$0xff]
        %v2991 = vld [vmem:[#allocation13 + $0x288] sm:$0xff]
        %v2992 = vld [vmem:[#allocation13 + $0x290] sm:$0xff]
        %v2993 = vld [vmem:[#allocation13 + $0x298] sm:$0xff]
        %v2994 = vld [vmem:[#allocation13 + $0x2a0] sm:$0xff]
        %v2995 = vld [vmem:[#allocation13 + $0x2a8] sm:$0xff]
        %v2996 = vld [vmem:[#allocation13 + $0x2b0] sm:$0xff]
        %v2997 = vld [vmem:[#allocation13 + $0x2b8] sm:$0xff]
        %v2998 = vld [vmem:[#allocation13 + $0x2c0] sm:$0xff]
        %v2999 = vld [vmem:[#allocation13 + $0x2c8] sm:$0xff]
        %v3000 = vld [vmem:[#allocation13 + $0x2d0] sm:$0xff]
        %v3001 = vld [vmem:[#allocation13 + $0x2d8] sm:$0xff]
        %v3002 = vld [vmem:[#allocation13 + $0x2e0] sm:$0xff]
        %v3003 = vld [vmem:[#allocation13 + $0x2e8] sm:$0xff]
        %v3004 = vld [vmem:[#allocation13 + $0x2f0] sm:$0xff]
        %v3005 = vld [vmem:[#allocation13 + $0x2f8] sm:$0xff]
        %v3006 = vld [vmem:[#allocation13 + $0x300] sm:$0xff]
        %v3007 = vld [vmem:[#allocation13 + $0x308] sm:$0xff]
        %v3008 = vld [vmem:[#allocation13 + $0x310] sm:$0xff]
        %v3009 = vld [vmem:[#allocation13 + $0x318] sm:$0xff]
        %v3010 = vld [vmem:[#allocation13 + $0x320] sm:$0xff]
        %v3011 = vld [vmem:[#allocation13 + $0x328] sm:$0xff]
        %v3012 = vld [vmem:[#allocation13 + $0x330] sm:$0xff]
        %v3013 = vld [vmem:[#allocation13 + $0x338] sm:$0xff]
        %v3014 = vld [vmem:[#allocation13 + $0x340] sm:$0xff]
        %v3015 = vld [vmem:[#allocation13 + $0x348] sm:$0xff]
        %v3016 = vld [vmem:[#allocation13 + $0x350] sm:$0xff]
        %v3017 = vld [vmem:[#allocation13 + $0x358] sm:$0xff]
        %v3018 = vld [vmem:[#allocation13 + $0x360] sm:$0xff]
        %v3019 = vld [vmem:[#allocation13 + $0x368] sm:$0xff]
        %v3020 = vld [vmem:[#allocation13 + $0x370] sm:$0xff]
        %v3021 = vld [vmem:[#allocation13 + $0x378] sm:$0xff]
        %v3022 = vld [vmem:[#allocation13 + $0x380] sm:$0xff]
        %v3023 = vld [vmem:[#allocation13 + $0x388] sm:$0xff]
        %v3024 = vld [vmem:[#allocation13 + $0x390] sm:$0xff]
        %v3025 = vld [vmem:[#allocation13 + $0x398] sm:$0xff]
        %v3026 = vld [vmem:[#allocation13 + $0x3a0] sm:$0xff]
        %v3027 = vld [vmem:[#allocation13 + $0x3a8] sm:$0xff]
        %v3028 = vld [vmem:[#allocation13 + $0x3b0] sm:$0xff]
        %v3029 = vld [vmem:[#allocation13 + $0x3b8] sm:$0xff]
        %v3030 = vld [vmem:[#allocation13 + $0x3c0] sm:$0xff]
        %v3031 = vld [vmem:[#allocation13 + $0x3c8] sm:$0xff]
        %v3032 = vld [vmem:[#allocation13 + $0x3d0] sm:$0xff]
        %v3033 = vld [vmem:[#allocation13 + $0x3d8] sm:$0xff]
        %v3034 = vld [vmem:[#allocation13 + $0x3e0] sm:$0xff]
        %v3035 = vld [vmem:[#allocation13 + $0x3e8] sm:$0xff]
        %v3036 = vld [vmem:[#allocation13 + $0x3f0] sm:$0xff]
        %v3037 = vld [vmem:[#allocation13 + $0x3f8] sm:$0xff]
        %v3038 = vld [vmem:[%s10] sm:$0x3]
        %v3040 = vlaneseq
        %v3041 = vshrl.u32 %v3040, 7
        %v3042 = vsub.s32 0, %v3041
        %v3043 = vrot.slane %v3038, %v3042
        %v3044 = vlaneseq
        %v3045 = vshrl.u32 %v3044, 7
        %v3046 = vsub.s32 1, %v3045
        %v3047 = vrot.slane %v3038, %v3046
        %3050 = vmatprep.subr.mxu0 %v2941
        %3051 = vmatpush1.msra.mxu0 %v2940
        %3052 = vmatprep.subr.mxu0 %v2939
        %3053 = vmatpush1.msra.mxu0 %v2938
        %3054 = vmatprep.subr.mxu0 %v2937
        %3055 = vmatpush1.msra.mxu0 %v2936
        %3056 = vmatprep.subr.mxu0 %v2935
        %3057 = vmatpush1.msra.mxu0 %v2934
        %3058 = vmatprep.subr.mxu0 %v2933
        %3059 = vmatpush1.msra.mxu0 %v2932
        %3060 = vmatprep.subr.mxu0 %v2931
        %3061 = vmatpush1.msra.mxu0 %v2930
        %3062 = vmatprep.subr.mxu0 %v2929
        %3063 = vmatpush1.msra.mxu0 %v2928
        %3064 = vmatprep.subr.mxu0 %v2927
        %3065 = vmatpush1.msra.mxu0 %v2926
        %3066 = vmatprep.subr.mxu0 %v2925
        %3067 = vmatpush1.msra.mxu0 %v2924
        %3068 = vmatprep.subr.mxu0 %v2923
        %3069 = vmatpush1.msra.mxu0 %v2922
        %3070 = vmatprep.subr.mxu0 %v2921
        %3071 = vmatpush1.msra.mxu0 %v2920
        %3072 = vmatprep.subr.mxu0 %v2919
        %3073 = vmatpush1.msra.mxu0 %v2918
        %3074 = vmatprep.subr.mxu0 %v2917
        %3075 = vmatpush1.msra.mxu0 %v2916
        %3076 = vmatprep.subr.mxu0 %v2915
        %3077 = vmatpush1.msra.mxu0 %v2914
        %3078 = vmatprep.subr.mxu0 %v2913
        %3079 = vmatpush1.msra.mxu0 %v2912
        %3080 = vmatprep.subr.mxu0 %v2911
        %3081 = vmatpush1.msra.mxu0 %v2910
        %3082 = vmatprep.subr.mxu0 %v2973
        %3083 = vmatpush2.msra.mxu0 %v2972
        %3084 = vmatprep.subr.mxu0 %v2971
        %3085 = vmatpush2.msra.mxu0 %v2970
        %3086 = vmatprep.subr.mxu0 %v2969
        %3087 = vmatpush2.msra.mxu0 %v2968
        %3088 = vmatprep.subr.mxu0 %v2967
        %3089 = vmatpush2.msra.mxu0 %v2966
        %3090 = vmatprep.subr.mxu0 %v2965
        %3091 = vmatpush2.msra.mxu0 %v2964
        %3092 = vmatprep.subr.mxu0 %v2963
        %3093 = vmatpush2.msra.mxu0 %v2962
        %3094 = vmatprep.subr.mxu0 %v2961
        %3095 = vmatpush2.msra.mxu0 %v2960
        %3096 = vmatprep.subr.mxu0 %v2959
        %3097 = vmatpush2.msra.mxu0 %v2958
        %3098 = vmatprep.subr.mxu0 %v2957
        %3099 = vmatpush2.msra.mxu0 %v2956
        %3100 = vmatprep.subr.mxu0 %v2955
        %3101 = vmatpush2.msra.mxu0 %v2954
        %3102 = vmatprep.subr.mxu0 %v2953
        %3103 = vmatpush2.msra.mxu0 %v2952
        %3104 = vmatprep.subr.mxu0 %v2951
        %3105 = vmatpush2.msra.mxu0 %v2950
        %3106 = vmatprep.subr.mxu0 %v2949
        %3107 = vmatpush2.msra.mxu0 %v2948
        %3108 = vmatprep.subr.mxu0 %v2947
        %3109 = vmatpush2.msra.mxu0 %v2946
        %3110 = vmatprep.subr.mxu0 %v2945
        %3111 = vmatpush2.msra.mxu0 %v2944
        %3112 = vmatprep.subr.mxu0 %v2943
        %3113 = vmatpush2.msra.mxu0 %v2942
        %3114 = vmatprep.mubr.f32.mxu0 %v2783
        %3115 = vmatmul.mubr.f32.gmra.mxu0 %v2782
        %v3116 = vpop.f32.mrf.mxu0
        %v3117 = vadd.f32 %v3043, %v3116
        %v3118 = vpop.f32.mrf.mxu0
        %v3119 = vadd.f32 %v3047, %v3118
        %3120 = vmatprep.mubr.f32.mxu0 %v2787
        %3121 = vmatmul.mubr.f32.gmra.mxu0 %v2786
        %v3122 = vpop.f32.mrf.mxu0
        %v3123 = vadd.f32 %v3043, %v3122
        %v3124 = vpop.f32.mrf.mxu0
        %v3125 = vadd.f32 %v3047, %v3124
        %3126 = vmatprep.mubr.f32.mxu0 %v2791
        %3127 = vmatmul.mubr.f32.gmra.mxu0 %v2790
        %v3128 = vpop.f32.mrf.mxu0
        %v3129 = vadd.f32 %v3043, %v3128
        %v3130 = vpop.f32.mrf.mxu0
        %v3131 = vadd.f32 %v3047, %v3130
        %3132 = vmatprep.mubr.f32.mxu0 %v2795
        %3133 = vmatmul.mubr.f32.gmra.mxu0 %v2794
        %v3134 = vpop.f32.mrf.mxu0
        %v3135 = vadd.f32 %v3043, %v3134
        %v3136 = vpop.f32.mrf.mxu0
        %v3137 = vadd.f32 %v3047, %v3136
        %3138 = vmatprep.mubr.f32.mxu0 %v2799
        %3139 = vmatmul.mubr.f32.gmra.mxu0 %v2798
        %v3140 = vpop.f32.mrf.mxu0
        %v3141 = vadd.f32 %v3043, %v3140
        %v3142 = vpop.f32.mrf.mxu0
        %v3143 = vadd.f32 %v3047, %v3142
        %3144 = vmatprep.mubr.f32.mxu0 %v2803
        %3145 = vmatmul.mubr.f32.gmra.mxu0 %v2802
        %v3146 = vpop.f32.mrf.mxu0
        %v3147 = vadd.f32 %v3043, %v3146
        %v3148 = vpop.f32.mrf.mxu0
        %v3149 = vadd.f32 %v3047, %v3148
        %3150 = vmatprep.mubr.f32.mxu0 %v2807
        %3151 = vmatmul.mubr.f32.gmra.mxu0 %v2806
        %v3152 = vpop.f32.mrf.mxu0
        %v3153 = vadd.f32 %v3043, %v3152
        %v3154 = vpop.f32.mrf.mxu0
        %v3155 = vadd.f32 %v3047, %v3154
        %3156 = vmatprep.mubr.f32.mxu0 %v2811
        %3157 = vmatmul.mubr.f32.gmra.mxu0 %v2810
        %v3158 = vpop.f32.mrf.mxu0
        %v3159 = vadd.f32 %v3043, %v3158
        %v3160 = vpop.f32.mrf.mxu0
        %v3161 = vadd.f32 %v3047, %v3160
        %3162 = vmatprep.mubr.f32.mxu0 %v2815
        %3163 = vmatmul.mubr.f32.gmra.mxu0 %v2814
        %v3164 = vpop.f32.mrf.mxu0
        %v3165 = vadd.f32 %v3043, %v3164
        %v3166 = vpop.f32.mrf.mxu0
        %v3167 = vadd.f32 %v3047, %v3166
        %3168 = vmatprep.mubr.f32.mxu0 %v2819
        %3169 = vmatmul.mubr.f32.gmra.mxu0 %v2818
        %v3170 = vpop.f32.mrf.mxu0
        %v3171 = vadd.f32 %v3043, %v3170
        %v3172 = vpop.f32.mrf.mxu0
        %v3173 = vadd.f32 %v3047, %v3172
        %3174 = vmatprep.mubr.f32.mxu0 %v2823
        %3175 = vmatmul.mubr.f32.gmra.mxu0 %v2822
        %v3176 = vpop.f32.mrf.mxu0
        %v3177 = vadd.f32 %v3043, %v3176
        %v3178 = vpop.f32.mrf.mxu0
        %v3179 = vadd.f32 %v3047, %v3178
        %3180 = vmatprep.mubr.f32.mxu0 %v2827
        %3181 = vmatmul.mubr.f32.gmra.mxu0 %v2826
        %v3182 = vpop.f32.mrf.mxu0
        %v3183 = vadd.f32 %v3043, %v3182
        %v3184 = vpop.f32.mrf.mxu0
        %v3185 = vadd.f32 %v3047, %v3184
        %3186 = vmatprep.mubr.f32.mxu0 %v2831
        %3187 = vmatmul.mubr.f32.gmra.mxu0 %v2830
        %v3188 = vpop.f32.mrf.mxu0
        %v3189 = vadd.f32 %v3043, %v3188
        %v3190 = vpop.f32.mrf.mxu0
        %v3191 = vadd.f32 %v3047, %v3190
        %3192 = vmatprep.mubr.f32.mxu0 %v2835
        %3193 = vmatmul.mubr.f32.gmra.mxu0 %v2834
        %v3194 = vpop.f32.mrf.mxu0
        %v3195 = vadd.f32 %v3043, %v3194
        %v3196 = vpop.f32.mrf.mxu0
        %v3197 = vadd.f32 %v3047, %v3196
        %3198 = vmatprep.mubr.f32.mxu0 %v2839
        %3199 = vmatmul.mubr.f32.gmra.mxu0 %v2838
        %v3200 = vpop.f32.mrf.mxu0
        %v3201 = vadd.f32 %v3043, %v3200
        %v3202 = vpop.f32.mrf.mxu0
        %v3203 = vadd.f32 %v3047, %v3202
        %3204 = vmatprep.mubr.f32.mxu0 %v2843
        %3205 = vmatmul.mubr.f32.gmra.mxu0 %v2842
        %v3206 = vpop.f32.mrf.mxu0
        %v3207 = vadd.f32 %v3043, %v3206
        %v3208 = vpop.f32.mrf.mxu0
        %v3209 = vadd.f32 %v3047, %v3208
        %3210 = vmatprep.mubr.f32.mxu0 %v2847
        %3211 = vmatmul.mubr.f32.gmra.mxu0 %v2846
        %v3212 = vpop.f32.mrf.mxu0
        %v3213 = vadd.f32 %v3043, %v3212
        %v3214 = vpop.f32.mrf.mxu0
        %v3215 = vadd.f32 %v3047, %v3214
        %3216 = vmatprep.mubr.f32.mxu0 %v2851
        %3217 = vmatmul.mubr.f32.gmra.mxu0 %v2850
        %v3218 = vpop.f32.mrf.mxu0
        %v3219 = vadd.f32 %v3043, %v3218
        %v3220 = vpop.f32.mrf.mxu0
        %v3221 = vadd.f32 %v3047, %v3220
        %3222 = vmatprep.mubr.f32.mxu0 %v2855
        %3223 = vmatmul.mubr.f32.gmra.mxu0 %v2854
        %v3224 = vpop.f32.mrf.mxu0
        %v3225 = vadd.f32 %v3043, %v3224
        %v3226 = vpop.f32.mrf.mxu0
        %v3227 = vadd.f32 %v3047, %v3226
        %3228 = vmatprep.mubr.f32.mxu0 %v2859
        %3229 = vmatmul.mubr.f32.gmra.mxu0 %v2858
        %v3230 = vpop.f32.mrf.mxu0
        %v3231 = vadd.f32 %v3043, %v3230
        %v3232 = vpop.f32.mrf.mxu0
        %v3233 = vadd.f32 %v3047, %v3232
        %3234 = vmatprep.mubr.f32.mxu0 %v2863
        %3235 = vmatmul.mubr.f32.gmra.mxu0 %v2862
        %v3236 = vpop.f32.mrf.mxu0
        %v3237 = vadd.f32 %v3043, %v3236
        %v3238 = vpop.f32.mrf.mxu0
        %v3239 = vadd.f32 %v3047, %v3238
        %3240 = vmatprep.mubr.f32.mxu0 %v2867
        %3241 = vmatmul.mubr.f32.gmra.mxu0 %v2866
        %v3242 = vpop.f32.mrf.mxu0
        %v3243 = vadd.f32 %v3043, %v3242
        %v3244 = vpop.f32.mrf.mxu0
        %v3245 = vadd.f32 %v3047, %v3244
        %3246 = vmatprep.mubr.f32.mxu0 %v2871
        %3247 = vmatmul.mubr.f32.gmra.mxu0 %v2870
        %v3248 = vpop.f32.mrf.mxu0
        %v3249 = vadd.f32 %v3043, %v3248
        %v3250 = vpop.f32.mrf.mxu0
        %v3251 = vadd.f32 %v3047, %v3250
        %3252 = vmatprep.mubr.f32.mxu0 %v2875
        %3253 = vmatmul.mubr.f32.gmra.mxu0 %v2874
        %v3254 = vpop.f32.mrf.mxu0
        %v3255 = vadd.f32 %v3043, %v3254
        %v3256 = vpop.f32.mrf.mxu0
        %v3257 = vadd.f32 %v3047, %v3256
        %3258 = vmatprep.mubr.f32.mxu0 %v2879
        %3259 = vmatmul.mubr.f32.gmra.mxu0 %v2878
        %v3260 = vpop.f32.mrf.mxu0
        %v3261 = vadd.f32 %v3043, %v3260
        %v3262 = vpop.f32.mrf.mxu0
        %v3263 = vadd.f32 %v3047, %v3262
        %3264 = vmatprep.mubr.f32.mxu0 %v2883
        %3265 = vmatmul.mubr.f32.gmra.mxu0 %v2882
        %v3266 = vpop.f32.mrf.mxu0
        %v3267 = vadd.f32 %v3043, %v3266
        %v3268 = vpop.f32.mrf.mxu0
        %v3269 = vadd.f32 %v3047, %v3268
        %3270 = vmatprep.mubr.f32.mxu0 %v2887
        %3271 = vmatmul.mubr.f32.gmra.mxu0 %v2886
        %v3272 = vpop.f32.mrf.mxu0
        %v3273 = vadd.f32 %v3043, %v3272
        %v3274 = vpop.f32.mrf.mxu0
        %v3275 = vadd.f32 %v3047, %v3274
        %3276 = vmatprep.mubr.f32.mxu0 %v2891
        %3277 = vmatmul.mubr.f32.gmra.mxu0 %v2890
        %v3278 = vpop.f32.mrf.mxu0
        %v3279 = vadd.f32 %v3043, %v3278
        %v3280 = vpop.f32.mrf.mxu0
        %v3281 = vadd.f32 %v3047, %v3280
        %3282 = vmatprep.mubr.f32.mxu0 %v2895
        %3283 = vmatmul.mubr.f32.gmra.mxu0 %v2894
        %v3284 = vpop.f32.mrf.mxu0
        %v3285 = vadd.f32 %v3043, %v3284
        %v3286 = vpop.f32.mrf.mxu0
        %v3287 = vadd.f32 %v3047, %v3286
        %3288 = vmatprep.mubr.f32.mxu0 %v2899
        %3289 = vmatmul.mubr.f32.gmra.mxu0 %v2898
        %v3290 = vpop.f32.mrf.mxu0
        %v3291 = vadd.f32 %v3043, %v3290
        %v3292 = vpop.f32.mrf.mxu0
        %v3293 = vadd.f32 %v3047, %v3292
        %3294 = vmatprep.mubr.f32.mxu0 %v2903
        %3295 = vmatmul.mubr.f32.gmra.mxu0 %v2902
        %v3296 = vpop.f32.mrf.mxu0
        %v3297 = vadd.f32 %v3043, %v3296
        %v3298 = vpop.f32.mrf.mxu0
        %v3299 = vadd.f32 %v3047, %v3298
        %3300 = vmatprep.mubr.f32.mxu0 %v2907
        %3301 = vmatmul.mubr.f32.gmra.mxu0 %v2906
        %v3302 = vpop.f32.mrf.mxu0
        %v3303 = vadd.f32 %v3043, %v3302
        %v3304 = vpop.f32.mrf.mxu0
        %v3305 = vadd.f32 %v3047, %v3304
        %3306 = vdwg.mxu0
        %3307 = vmatprep.subr.mxu0 %v3005
        %3308 = vmatpush1.msra.mxu0 %v3004
        %3309 = vmatprep.subr.mxu0 %v3003
        %3310 = vmatpush1.msra.mxu0 %v3002
        %3311 = vmatprep.subr.mxu0 %v3001
        %3312 = vmatpush1.msra.mxu0 %v3000
        %3313 = vmatprep.subr.mxu0 %v2999
        %3314 = vmatpush1.msra.mxu0 %v2998
        %3315 = vmatprep.subr.mxu0 %v2997
        %3316 = vmatpush1.msra.mxu0 %v2996
        %3317 = vmatprep.subr.mxu0 %v2995
        %3318 = vmatpush1.msra.mxu0 %v2994
        %3319 = vmatprep.subr.mxu0 %v2993
        %3320 = vmatpush1.msra.mxu0 %v2992
        %3321 = vmatprep.subr.mxu0 %v2991
        %3322 = vmatpush1.msra.mxu0 %v2990
        %3323 = vmatprep.subr.mxu0 %v2989
        %3324 = vmatpush1.msra.mxu0 %v2988
        %3325 = vmatprep.subr.mxu0 %v2987
        %3326 = vmatpush1.msra.mxu0 %v2986
        %3327 = vmatprep.subr.mxu0 %v2985
        %3328 = vmatpush1.msra.mxu0 %v2984
        %3329 = vmatprep.subr.mxu0 %v2983
        %3330 = vmatpush1.msra.mxu0 %v2982
        %3331 = vmatprep.subr.mxu0 %v2981
        %3332 = vmatpush1.msra.mxu0 %v2980
        %3333 = vmatprep.subr.mxu0 %v2979
        %3334 = vmatpush1.msra.mxu0 %v2978
        %3335 = vmatprep.subr.mxu0 %v2977
        %3336 = vmatpush1.msra.mxu0 %v2976
        %3337 = vmatprep.subr.mxu0 %v2975
        %3338 = vmatpush1.msra.mxu0 %v2974
        %3339 = vmatprep.subr.mxu0 %v3037
        %3340 = vmatpush2.msra.mxu0 %v3036
        %3341 = vmatprep.subr.mxu0 %v3035
        %3342 = vmatpush2.msra.mxu0 %v3034
        %3343 = vmatprep.subr.mxu0 %v3033
        %3344 = vmatpush2.msra.mxu0 %v3032
        %3345 = vmatprep.subr.mxu0 %v3031
        %3346 = vmatpush2.msra.mxu0 %v3030
        %3347 = vmatprep.subr.mxu0 %v3029
        %3348 = vmatpush2.msra.mxu0 %v3028
        %3349 = vmatprep.subr.mxu0 %v3027
        %3350 = vmatpush2.msra.mxu0 %v3026
        %3351 = vmatprep.subr.mxu0 %v3025
        %3352 = vmatpush2.msra.mxu0 %v3024
        %3353 = vmatprep.subr.mxu0 %v3023
        %3354 = vmatpush2.msra.mxu0 %v3022
        %3355 = vmatprep.subr.mxu0 %v3021
        %3356 = vmatpush2.msra.mxu0 %v3020
        %3357 = vmatprep.subr.mxu0 %v3019
        %3358 = vmatpush2.msra.mxu0 %v3018
        %3359 = vmatprep.subr.mxu0 %v3017
        %3360 = vmatpush2.msra.mxu0 %v3016
        %3361 = vmatprep.subr.mxu0 %v3015
        %3362 = vmatpush2.msra.mxu0 %v3014
        %3363 = vmatprep.subr.mxu0 %v3013
        %3364 = vmatpush2.msra.mxu0 %v3012
        %3365 = vmatprep.subr.mxu0 %v3011
        %3366 = vmatpush2.msra.mxu0 %v3010
        %3367 = vmatprep.subr.mxu0 %v3009
        %3368 = vmatpush2.msra.mxu0 %v3008
        %3369 = vmatprep.subr.mxu0 %v3007
        %3370 = vmatpush2.msra.mxu0 %v3006
        %3371 = vmatprep.mubr.f32.mxu0 %v2785
        %3372 = vmatmul.mubr.f32.gmra.mxu0 %v2784
        %v3373 = vpop.f32.mrf.mxu0
        %v3374 = vadd.f32 %v3117, %v3373
        %v3375 = vpop.f32.mrf.mxu0
        %v3376 = vadd.f32 %v3119, %v3375
        %3377 = vmatprep.mubr.f32.mxu0 %v2789
        %3378 = vmatmul.mubr.f32.gmra.mxu0 %v2788
        %v3379 = vpop.f32.mrf.mxu0
        %v3380 = vadd.f32 %v3123, %v3379
        %v3381 = vpop.f32.mrf.mxu0
        %v3382 = vadd.f32 %v3125, %v3381
        %3383 = vmatprep.mubr.f32.mxu0 %v2793
        %3384 = vmatmul.mubr.f32.gmra.mxu0 %v2792
        %v3385 = vpop.f32.mrf.mxu0
        %v3386 = vadd.f32 %v3129, %v3385
        %v3387 = vpop.f32.mrf.mxu0
        %v3388 = vadd.f32 %v3131, %v3387
        %3389 = vmatprep.mubr.f32.mxu0 %v2797
        %3390 = vmatmul.mubr.f32.gmra.mxu0 %v2796
        %v3391 = vpop.f32.mrf.mxu0
        %v3392 = vadd.f32 %v3135, %v3391
        %v3393 = vpop.f32.mrf.mxu0
        %v3394 = vadd.f32 %v3137, %v3393
        %3395 = vmatprep.mubr.f32.mxu0 %v2801
        %3396 = vmatmul.mubr.f32.gmra.mxu0 %v2800
        %v3397 = vpop.f32.mrf.mxu0
        %v3398 = vadd.f32 %v3141, %v3397
        %v3399 = vpop.f32.mrf.mxu0
        %v3400 = vadd.f32 %v3143, %v3399
        %3401 = vmatprep.mubr.f32.mxu0 %v2805
        %3402 = vmatmul.mubr.f32.gmra.mxu0 %v2804
        %v3403 = vpop.f32.mrf.mxu0
        %v3404 = vadd.f32 %v3147, %v3403
        %v3405 = vpop.f32.mrf.mxu0
        %v3406 = vadd.f32 %v3149, %v3405
        %3407 = vmatprep.mubr.f32.mxu0 %v2809
        %3408 = vmatmul.mubr.f32.gmra.mxu0 %v2808
        %v3409 = vpop.f32.mrf.mxu0
        %v3410 = vadd.f32 %v3153, %v3409
        %v3411 = vpop.f32.mrf.mxu0
        %v3412 = vadd.f32 %v3155, %v3411
        %3413 = vmatprep.mubr.f32.mxu0 %v2813
        %3414 = vmatmul.mubr.f32.gmra.mxu0 %v2812
        %v3415 = vpop.f32.mrf.mxu0
        %v3416 = vadd.f32 %v3159, %v3415
        %v3417 = vpop.f32.mrf.mxu0
        %v3418 = vadd.f32 %v3161, %v3417
        %3419 = vmatprep.mubr.f32.mxu0 %v2817
        %3420 = vmatmul.mubr.f32.gmra.mxu0 %v2816
        %v3421 = vpop.f32.mrf.mxu0
        %v3422 = vadd.f32 %v3165, %v3421
        %v3423 = vpop.f32.mrf.mxu0
        %v3424 = vadd.f32 %v3167, %v3423
        %3425 = vmatprep.mubr.f32.mxu0 %v2821
        %3426 = vmatmul.mubr.f32.gmra.mxu0 %v2820
        %v3427 = vpop.f32.mrf.mxu0
        %v3428 = vadd.f32 %v3171, %v3427
        %v3429 = vpop.f32.mrf.mxu0
        %v3430 = vadd.f32 %v3173, %v3429
        %3431 = vmatprep.mubr.f32.mxu0 %v2825
        %3432 = vmatmul.mubr.f32.gmra.mxu0 %v2824
        %v3433 = vpop.f32.mrf.mxu0
        %v3434 = vadd.f32 %v3177, %v3433
        %v3435 = vpop.f32.mrf.mxu0
        %v3436 = vadd.f32 %v3179, %v3435
        %3437 = vmatprep.mubr.f32.mxu0 %v2829
        %3438 = vmatmul.mubr.f32.gmra.mxu0 %v2828
        %v3439 = vpop.f32.mrf.mxu0
        %v3440 = vadd.f32 %v3183, %v3439
        %v3441 = vpop.f32.mrf.mxu0
        %v3442 = vadd.f32 %v3185, %v3441
        %3443 = vmatprep.mubr.f32.mxu0 %v2833
        %3444 = vmatmul.mubr.f32.gmra.mxu0 %v2832
        %v3445 = vpop.f32.mrf.mxu0
        %v3446 = vadd.f32 %v3189, %v3445
        %v3447 = vpop.f32.mrf.mxu0
        %v3448 = vadd.f32 %v3191, %v3447
        %3449 = vmatprep.mubr.f32.mxu0 %v2837
        %3450 = vmatmul.mubr.f32.gmra.mxu0 %v2836
        %v3451 = vpop.f32.mrf.mxu0
        %v3452 = vadd.f32 %v3195, %v3451
        %v3453 = vpop.f32.mrf.mxu0
        %v3454 = vadd.f32 %v3197, %v3453
        %3455 = vmatprep.mubr.f32.mxu0 %v2841
        %3456 = vmatmul.mubr.f32.gmra.mxu0 %v2840
        %v3457 = vpop.f32.mrf.mxu0
        %v3458 = vadd.f32 %v3201, %v3457
        %v3459 = vpop.f32.mrf.mxu0
        %v3460 = vadd.f32 %v3203, %v3459
        %3461 = vmatprep.mubr.f32.mxu0 %v2845
        %3462 = vmatmul.mubr.f32.gmra.mxu0 %v2844
        %v3463 = vpop.f32.mrf.mxu0
        %v3464 = vadd.f32 %v3207, %v3463
        %v3465 = vpop.f32.mrf.mxu0
        %v3466 = vadd.f32 %v3209, %v3465
        %3467 = vmatprep.mubr.f32.mxu0 %v2849
        %3468 = vmatmul.mubr.f32.gmra.mxu0 %v2848
        %v3469 = vpop.f32.mrf.mxu0
        %v3470 = vadd.f32 %v3213, %v3469
        %v3471 = vpop.f32.mrf.mxu0
        %v3472 = vadd.f32 %v3215, %v3471
        %3473 = vmatprep.mubr.f32.mxu0 %v2853
        %3474 = vmatmul.mubr.f32.gmra.mxu0 %v2852
        %v3475 = vpop.f32.mrf.mxu0
        %v3476 = vadd.f32 %v3219, %v3475
        %v3477 = vpop.f32.mrf.mxu0
        %v3478 = vadd.f32 %v3221, %v3477
        %3479 = vmatprep.mubr.f32.mxu0 %v2857
        %3480 = vmatmul.mubr.f32.gmra.mxu0 %v2856
        %v3481 = vpop.f32.mrf.mxu0
        %v3482 = vadd.f32 %v3225, %v3481
        %v3483 = vpop.f32.mrf.mxu0
        %v3484 = vadd.f32 %v3227, %v3483
        %3485 = vmatprep.mubr.f32.mxu0 %v2861
        %3486 = vmatmul.mubr.f32.gmra.mxu0 %v2860
        %v3487 = vpop.f32.mrf.mxu0
        %v3488 = vadd.f32 %v3231, %v3487
        %v3489 = vpop.f32.mrf.mxu0
        %v3490 = vadd.f32 %v3233, %v3489
        %3491 = vmatprep.mubr.f32.mxu0 %v2865
        %3492 = vmatmul.mubr.f32.gmra.mxu0 %v2864
        %v3493 = vpop.f32.mrf.mxu0
        %v3494 = vadd.f32 %v3237, %v3493
        %v3495 = vpop.f32.mrf.mxu0
        %v3496 = vadd.f32 %v3239, %v3495
        %3497 = vmatprep.mubr.f32.mxu0 %v2869
        %3498 = vmatmul.mubr.f32.gmra.mxu0 %v2868
        %v3499 = vpop.f32.mrf.mxu0
        %v3500 = vadd.f32 %v3243, %v3499
        %v3501 = vpop.f32.mrf.mxu0
        %v3502 = vadd.f32 %v3245, %v3501
        %3503 = vmatprep.mubr.f32.mxu0 %v2873
        %3504 = vmatmul.mubr.f32.gmra.mxu0 %v2872
        %v3505 = vpop.f32.mrf.mxu0
        %v3506 = vadd.f32 %v3249, %v3505
        %v3507 = vpop.f32.mrf.mxu0
        %v3508 = vadd.f32 %v3251, %v3507
        %3509 = vmatprep.mubr.f32.mxu0 %v2877
        %3510 = vmatmul.mubr.f32.gmra.mxu0 %v2876
        %v3511 = vpop.f32.mrf.mxu0
        %v3512 = vadd.f32 %v3255, %v3511
        %v3513 = vpop.f32.mrf.mxu0
        %v3514 = vadd.f32 %v3257, %v3513
        %3515 = vmatprep.mubr.f32.mxu0 %v2881
        %3516 = vmatmul.mubr.f32.gmra.mxu0 %v2880
        %v3517 = vpop.f32.mrf.mxu0
        %v3518 = vadd.f32 %v3261, %v3517
        %v3519 = vpop.f32.mrf.mxu0
        %v3520 = vadd.f32 %v3263, %v3519
        %3521 = vmatprep.mubr.f32.mxu0 %v2885
        %3522 = vmatmul.mubr.f32.gmra.mxu0 %v2884
        %v3523 = vpop.f32.mrf.mxu0
        %v3524 = vadd.f32 %v3267, %v3523
        %v3525 = vpop.f32.mrf.mxu0
        %v3526 = vadd.f32 %v3269, %v3525
        %3527 = vmatprep.mubr.f32.mxu0 %v2889
        %3528 = vmatmul.mubr.f32.gmra.mxu0 %v2888
        %v3529 = vpop.f32.mrf.mxu0
        %v3530 = vadd.f32 %v3273, %v3529
        %v3531 = vpop.f32.mrf.mxu0
        %v3532 = vadd.f32 %v3275, %v3531
        %3533 = vmatprep.mubr.f32.mxu0 %v2893
        %3534 = vmatmul.mubr.f32.gmra.mxu0 %v2892
        %v3535 = vpop.f32.mrf.mxu0
        %v3536 = vadd.f32 %v3279, %v3535
        %v3537 = vpop.f32.mrf.mxu0
        %v3538 = vadd.f32 %v3281, %v3537
        %3539 = vmatprep.mubr.f32.mxu0 %v2897
        %3540 = vmatmul.mubr.f32.gmra.mxu0 %v2896
        %v3541 = vpop.f32.mrf.mxu0
        %v3542 = vadd.f32 %v3285, %v3541
        %v3543 = vpop.f32.mrf.mxu0
        %v3544 = vadd.f32 %v3287, %v3543
        %3545 = vmatprep.mubr.f32.mxu0 %v2901
        %3546 = vmatmul.mubr.f32.gmra.mxu0 %v2900
        %v3547 = vpop.f32.mrf.mxu0
        %v3548 = vadd.f32 %v3291, %v3547
        %v3549 = vpop.f32.mrf.mxu0
        %v3550 = vadd.f32 %v3293, %v3549
        %3551 = vmatprep.mubr.f32.mxu0 %v2905
        %3552 = vmatmul.mubr.f32.gmra.mxu0 %v2904
        %v3553 = vpop.f32.mrf.mxu0
        %v3554 = vadd.f32 %v3297, %v3553
        %v3555 = vpop.f32.mrf.mxu0
        %v3556 = vadd.f32 %v3299, %v3555
        %3557 = vmatprep.mubr.f32.mxu0 %v2909
        %3558 = vmatmul.mubr.f32.gmra.mxu0 %v2908
        %v3559 = vpop.f32.mrf.mxu0
        %v3560 = vadd.f32 %v3303, %v3559
        %v3561 = vpop.f32.mrf.mxu0
        %v3562 = vadd.f32 %v3305, %v3561
        %3563 = vdwg.mxu0
        %3564 = vst [vmem:[%s490] sm:$0xff] %v3374
        %3565 = vst [vmem:[%s490 + $0x8] sm:$0xff] %v3376
        %3566 = vst [vmem:[%s490 + $0x10] sm:$0xff] %v3380
        %3567 = vst [vmem:[%s490 + $0x18] sm:$0xff] %v3382
        %3568 = vst [vmem:[%s490 + $0x20] sm:$0xff] %v3386
        %3569 = vst [vmem:[%s490 + $0x28] sm:$0xff] %v3388
        %3570 = vst [vmem:[%s490 + $0x30] sm:$0xff] %v3392
        %3571 = vst [vmem:[%s490 + $0x38] sm:$0xff] %v3394
        %3572 = vst [vmem:[%s490 + $0x40] sm:$0xff] %v3398
        %3573 = vst [vmem:[%s490 + $0x48] sm:$0xff] %v3400
        %3574 = vst [vmem:[%s490 + $0x50] sm:$0xff] %v3404
        %3575 = vst [vmem:[%s490 + $0x58] sm:$0xff] %v3406
        %3576 = vst [vmem:[%s490 + $0x60] sm:$0xff] %v3410
        %3577 = vst [vmem:[%s490 + $0x68] sm:$0xff] %v3412
        %3578 = vst [vmem:[%s490 + $0x70] sm:$0xff] %v3416
        %3579 = vst [vmem:[%s490 + $0x78] sm:$0xff] %v3418
        %3580 = vst [vmem:[%s490 + $0x80] sm:$0xff] %v3422
        %3581 = vst [vmem:[%s490 + $0x88] sm:$0xff] %v3424
        %3582 = vst [vmem:[%s490 + $0x90] sm:$0xff] %v3428
        %3583 = vst [vmem:[%s490 + $0x98] sm:$0xff] %v3430
        %3584 = vst [vmem:[%s490 + $0xa0] sm:$0xff] %v3434
        %3585 = vst [vmem:[%s490 + $0xa8] sm:$0xff] %v3436
        %3586 = vst [vmem:[%s490 + $0xb0] sm:$0xff] %v3440
        %3587 = vst [vmem:[%s490 + $0xb8] sm:$0xff] %v3442
        %3588 = vst [vmem:[%s490 + $0xc0] sm:$0xff] %v3446
        %3589 = vst [vmem:[%s490 + $0xc8] sm:$0xff] %v3448
        %3590 = vst [vmem:[%s490 + $0xd0] sm:$0xff] %v3452
        %3591 = vst [vmem:[%s490 + $0xd8] sm:$0xff] %v3454
        %3592 = vst [vmem:[%s490 + $0xe0] sm:$0xff] %v3458
        %3593 = vst [vmem:[%s490 + $0xe8] sm:$0xff] %v3460
        %3594 = vst [vmem:[%s490 + $0xf0] sm:$0xff] %v3464
        %3595 = vst [vmem:[%s490 + $0xf8] sm:$0xff] %v3466
        %3596 = vst [vmem:[%s490 + $0x100] sm:$0xff] %v3470
        %3597 = vst [vmem:[%s490 + $0x108] sm:$0xff] %v3472
        %3598 = vst [vmem:[%s490 + $0x110] sm:$0xff] %v3476
        %3599 = vst [vmem:[%s490 + $0x118] sm:$0xff] %v3478
        %3600 = vst [vmem:[%s490 + $0x120] sm:$0xff] %v3482
        %3601 = vst [vmem:[%s490 + $0x128] sm:$0xff] %v3484
        %3602 = vst [vmem:[%s490 + $0x130] sm:$0xff] %v3488
        %3603 = vst [vmem:[%s490 + $0x138] sm:$0xff] %v3490
        %3604 = vst [vmem:[%s490 + $0x140] sm:$0xff] %v3494
        %3605 = vst [vmem:[%s490 + $0x148] sm:$0xff] %v3496
        %3606 = vst [vmem:[%s490 + $0x150] sm:$0xff] %v3500
        %3607 = vst [vmem:[%s490 + $0x158] sm:$0xff] %v3502
        %3608 = vst [vmem:[%s490 + $0x160] sm:$0xff] %v3506
        %3609 = vst [vmem:[%s490 + $0x168] sm:$0xff] %v3508
        %3610 = vst [vmem:[%s490 + $0x170] sm:$0xff] %v3512
        %3611 = vst [vmem:[%s490 + $0x178] sm:$0xff] %v3514
        %3612 = vst [vmem:[%s490 + $0x180] sm:$0xff] %v3518
        %3613 = vst [vmem:[%s490 + $0x188] sm:$0xff] %v3520
        %3614 = vst [vmem:[%s490 + $0x190] sm:$0xff] %v3524
        %3615 = vst [vmem:[%s490 + $0x198] sm:$0xff] %v3526
        %3616 = vst [vmem:[%s490 + $0x1a0] sm:$0xff] %v3530
        %3617 = vst [vmem:[%s490 + $0x1a8] sm:$0xff] %v3532
        %3618 = vst [vmem:[%s490 + $0x1b0] sm:$0xff] %v3536
        %3619 = vst [vmem:[%s490 + $0x1b8] sm:$0xff] %v3538
        %3620 = vst [vmem:[%s490 + $0x1c0] sm:$0xff] %v3542
        %3621 = vst [vmem:[%s490 + $0x1c8] sm:$0xff] %v3544
        %3622 = vst [vmem:[%s490 + $0x1d0] sm:$0xff] %v3548
        %3623 = vst [vmem:[%s490 + $0x1d8] sm:$0xff] %v3550
        %3624 = vst [vmem:[%s490 + $0x1e0] sm:$0xff] %v3554
        %3625 = vst [vmem:[%s490 + $0x1e8] sm:$0xff] %v3556
        %3626 = vst [vmem:[%s490 + $0x1f0] sm:$0xff] %v3560
        %3627 = vst [vmem:[%s490 + $0x1f8] sm:$0xff] %v3562
        %s3628 = sand.u32 %s275, 1
        %s3629 = scalar_lea.sflag [#allocation4], %s3628
        %s3630 = sand.u32 %s275, 1
        %s3631 = smul.addr %s3630, 512
        %s3632 = scalar_lea.vmem [#allocation14], %s3631
        // Predicated region
        $region93: #{tpu_custom_call.1} parent=63 // pred_check
          %p3633 = pneg %p285
        $region94: #{tpu_custom_call.1} parent=63 // pred_check_branch
          %3635 = sbr.rel (%p3633) target = $region96
        $region95: #{tpu_custom_call.1} parent=63 // pred_region
          %s3636 = smul.u32 32, %s31
          %s3638 = ssub.s32 8192, 8192
          %3639 = vsyncadd %s3629, %s3638
          %s3640 = smul.addr %s3636, 2
          %s3641 = smul.addr %s3640, 128
          %s3642 = scalar_lea.hbm %s11, %s3641
          %s3643 = sshll.u32 %s3632, 4
          %s3644 = int_to_ptr.vmem [resolvable:$true] %s3643
          %3649 = dma.vmem_to_hbm [thread:$0]  %s3644, 8192, %s3642, %s3629, 256, 256, 16
        $region96: #{tpu_custom_call.1} parent=63 // pred_fallthru
          _
      $region64: #{tpu_custom_call.1} parent=5 // pred_fallthru
        _
      %p3650 = scmp.le.s32.totalorder 2, %s26
      // Predicated region
      $region97: #{tpu_custom_call.1} parent=5 // pred_check
        %p3651 = pneg %p3650
      $region98: #{tpu_custom_call.1} parent=5 // pred_check_branch
        %3653 = sbr.rel (%p3651) target = $region100
      $region99: #{tpu_custom_call.1} parent=5 // pred_region
        %s3654 = ssub.s32 %s26, 2
        // Predicated region
        $region101: #{tpu_custom_call.1} parent=99 // pred_check
          %p3655 = pneg %p291
        $region102: #{tpu_custom_call.1} parent=99 // pred_check_branch
          %3657 = sbr.rel (%p3655) target = $region104
        $region103: #{tpu_custom_call.1} parent=99 // pred_region
          %s3658 = sand.u32 %s276, 1
          %s3659 = scalar_lea.sflag [#allocation4], %s3658
          %s3660 = sand.u32 %s276, 1
          %s3661 = smul.addr %s3660, 512
          %s3662 = scalar_lea.vmem [#allocation14], %s3661
          %3663 = dma.done %s3659, 8192
        $region104: #{tpu_custom_call.1} parent=99 // pred_fallthru
          _
      $region100: #{tpu_custom_call.1} parent=5 // pred_fallthru
        _
    $region6: #{tpu_custom_call.1} parent=1 // loop_footer
      %s30 = sadd.s32 1, %s26
    $region7: #{tpu_custom_call.1} parent=1 // loop_footer_branch
      %25 = sbr.rel target = $region3
    $region8: #{tpu_custom_call.1} parent=1 // loop_exit
      _
    %3664 = vsyncpa [#allocation3], 1
    %s3665 = scalar_lea.sflag [#allocation3], 1
    %3666 = vsyncpa %s3665, 1
    %3667 = vsyncpa [#allocation6], 1
    %3668 = vsyncpa [#allocation9], 1
    %3669 = vsyncpa [#allocation12], 1
    %3670 = vsyncpa [#allocation4], 1
    %s3671 = scalar_lea.sflag [#allocation4], 1
    %3672 = vsyncpa %s3671, 1

</llo_original>
